<compile_context>
chip_gen: v7x
topology: tpu7x:2x2x1
jax: 0.10.0
libtpu: 0.0.40
codegen_flags: <defaults>
</compile_context>

<pallas_src>
import functools
import math

import jax
import jax.numpy as jnp
from jax import lax
from jax.experimental import pallas as pl
from jax.experimental.pallas import tpu as pltpu

WINDOW_SIZE = 30
H1 = 128       # lstm1 hidden
H2 = 64        # lstm2 hidden (logical)
H2P = 128      # lstm2 hidden padded to a full 128-lane register
G1 = 4 * H1    # 512
G2 = 4 * H2P   # 512
FC1 = 25
FC2 = 1
SUBLANE = 8


# ----------------------------- Pallas kernel --------------------------------

def _gate_act(gates, c):
    """PyTorch LSTM cell nonlinearity; gate order [i, f, g, o], 128-aligned."""
    hp = c.shape[-1]
    i = jax.nn.sigmoid(gates[:, 0 * hp:1 * hp])
    f = jax.nn.sigmoid(gates[:, 1 * hp:2 * hp])
    g = jnp.tanh(gates[:, 2 * hp:3 * hp])
    o = jax.nn.sigmoid(gates[:, 3 * hp:4 * hp])
    c_new = f * c + i * g
    h_new = o * jnp.tanh(c_new)
    return h_new, c_new


def _lstm_model_kernel(x_ref, wih1_ref, b1_ref, wrec_ref, b2_ref, wfc_ref,
                       bfc_ref, out_ref,
                       g1_ref, h2s_ref, hcat_ref, c1_ref, c2_ref, *, Tc, Bt):
    # x_ref:    (Tc*Bt, 30)      one time chunk, time-major rows
    # wih1_ref: (30, 512)        layer-1 input projection weight
    # b1_ref:   (1, 512)         b_ih1 + b_hh1
    # wrec_ref: (256, 1024)      [[Whh1, Wih2],[0, Whh2]] block weight
    # b2_ref:   (1, 512)         b_ih2 + b_hh2 (gate-padded)
    # wfc_ref:  (128, 1)         folded fc1∘fc2
    # bfc_ref:  (1, 1)
    # out_ref:  (Tc*Bt, 1)
    # g1_ref:   (Tc*Bt, 512)     scratch: hoisted layer-1 input gates
    # h2s_ref:  (Tc*Bt, 128)     scratch: per-step layer-2 hidden states
    # hcat_ref: (Bt, 256)        persistent state [h1 | h2]
    # c1_ref:   (Bt, 128)        persistent layer-1 cell
    # c2_ref:   (Bt, 128)        persistent (padded) layer-2 cell
    chunk = pl.program_id(1)

    @pl.when(chunk == 0)
    def _():
        hcat_ref[...] = jnp.zeros_like(hcat_ref)
        c1_ref[...] = jnp.zeros_like(c1_ref)
        c2_ref[...] = jnp.zeros_like(c2_ref)

    # Hoisted layer-1 input projection for the whole chunk (one big MXU matmul
    # with the fused layer-1 bias folded in).
    g1_ref[...] = (jnp.dot(x_ref[...], wih1_ref[...],
                           preferred_element_type=jnp.float32)
                   + b1_ref[...])

    # ---- prologue: layer-1 step 0 of this chunk (no layer-2 work pending) --
    gates1 = g1_ref[0:Bt, :] + jnp.dot(hcat_ref[:, :H1], wrec_ref[:H1, :G1],
                                       preferred_element_type=jnp.float32)
    h1, c1 = _gate_act(gates1, c1_ref[...])
    c1_ref[...] = c1
    hcat_ref[:, :H1] = h1

    # ---- steady state: ONE fused (Bt,256)@(256,1024) matmul per time step --
    # Entering iteration t (chunk-local): hcat = [h1_t | h2_{t-1}].
    # Left gate half -> gates1 for step t+1, right half -> gates2 for step t.
    def step(t, carry):
        g = jnp.dot(hcat_ref[...], wrec_ref[...],
                    preferred_element_type=jnp.float32)
        # layer 2, step t
        h2, c2 = _gate_act(g[:, G1:] + b2_ref[...], c2_ref[...])
        c2_ref[...] = c2
        off_t = pl.multiple_of(t * Bt, SUBLANE)
        h2s_ref[pl.ds(off_t, Bt), :] = h2
        # layer 1, step t+1
        off_t1 = pl.multiple_of((t + 1) * Bt, SUBLANE)
        h1n, c1n = _gate_act(g[:, :G1] + g1_ref[pl.ds(off_t1, Bt), :],
                             c1_ref[...])
        c1_ref[...] = c1n
        hcat_ref[:, :H1] = h1n
        hcat_ref[:, H1:] = h2
        return carry

    lax.fori_loop(0, Tc - 1, step, 0,
                  unroll=(True if Tc - 1 <= 16 else 4))

    # ---- epilogue: drain layer-2 for the chunk's last step -----------------
    g2 = (jnp.dot(hcat_ref[...], wrec_ref[:, G1:],
                  preferred_element_type=jnp.float32) + b2_ref[...])
    h2, c2 = _gate_act(g2, c2_ref[...])
    c2_ref[...] = c2
    hcat_ref[:, H1:] = h2
    h2s_ref[pl.ds((Tc - 1) * Bt, Bt), :] = h2

    # ---- fused fc1∘fc2 head over the whole chunk, single store -------------
    out_ref[...] = (jnp.dot(h2s_ref[...], wfc_ref[...],
                            preferred_element_type=jnp.float32)
                    + bfc_ref[0, 0])


# ------------------------------ JAX wrapper ----------------------------------

def _pad_gate_cols(w, h, hp):
    """(K, 4*h) gate-major columns -> (K, 4*hp), zero-padding each gate block."""
    k = w.shape[0]
    return jnp.pad(w.reshape(k, 4, h),
                   ((0, 0), (0, 0), (0, hp - h))).reshape(k, 4 * hp)


def _prepare_weights(params):
    f32 = jnp.float32
    # layer 1 (already 128-lane aligned per gate)
    wih1 = params["w_ih1"].T.astype(f32)                                   # (30, 512)
    whh1 = params["w_hh1"].T.astype(f32)                                   # (128, 512)
    b1 = (params["b_ih1"] + params["b_hh1"]).reshape(1, -1).astype(f32)    # (1, 512)

    # layer 2: pad hidden 64 -> 128 per gate.
    wih2 = _pad_gate_cols(params["w_ih2"].T.astype(f32), H2, H2P)          # (128, 512)
    whh2 = _pad_gate_cols(params["w_hh2"].T.astype(f32), H2, H2P)          # (64, 512)
    whh2 = jnp.pad(whh2, ((0, H2P - H2), (0, 0)))                          # (128, 512)
    b2 = _pad_gate_cols((params["b_ih2"] + params["b_hh2"])
                        .reshape(1, -1).astype(f32), H2, H2P)              # (1, 512)

    # Block weight for the skewed fused recurrence:
    #   [h1_t | h2_{t-1}] @ [[Whh1, Wih2],[0, Whh2]]
    #     = [ h1_t@Whh1 (layer-1 recurrent part) | gates2_t (unbiased) ]
    wrec = jnp.concatenate(
        [jnp.concatenate([whh1, wih2], axis=1),
         jnp.concatenate([jnp.zeros((H2P, G1), f32), whh2], axis=1)],
        axis=0)                                                            # (256, 1024)

    # fc1 ∘ fc2 folded (no nonlinearity between them) into one 64 -> 1 head.
    hi = jax.lax.Precision.HIGHEST
    w_fc = jnp.dot(params["w_fc1"].T, params["w_fc2"].T,
                   precision=hi).astype(f32)                               # (64, 1)
    w_fc = jnp.pad(w_fc, ((0, H2P - H2), (0, 0)))                          # (128, 1)
    b_fc = (jnp.dot(params["b_fc1"], params["w_fc2"].T, precision=hi)
            + params["b_fc2"]).reshape(1, 1).astype(f32)                   # (1, 1)
    return wih1, b1, wrec, b2, w_fc, b_fc


def _round_up(n, m):
    return ((n + m - 1) // m) * m


def lstm_model_forward(x, params, *, time_chunk=None, batch_tile=None):
    """x: (B, T, WINDOW_SIZE) batch_first float32 -> (B, T, 1)."""
    B, T, F = x.shape
    assert F == WINDOW_SIZE

    # Batch tiles (grid axis 0, "parallel": sharded across TCs on v7x).
    if batch_tile is None:
        batch_tile = 256 if B > 256 else B
    Bt = _round_up(max(batch_tile, 1), SUBLANE)
    NB = pl.cdiv(B, Bt)
    Bp = NB * Bt

    # Time chunks (grid axis 1, "arbitrary"). Per-chunk VMEM scratch is
    # g1 (Tc*Bt*2KB) + h2s (Tc*Bt*0.5KB): Tc*Bt <= 4096 keeps the kernel well
    # under the 32 MiB scoped budget (and v7x's 64 MiB physical VMEM).
    if time_chunk is None:
        time_chunk = max(1, min(T, 4096 // Bt))
    Tc = max(1, min(time_chunk, T))
    NC = pl.cdiv(T, Tc)
    Tp = NC * Tc

    xf = x.astype(jnp.float32)
    # (B,T,F) -> time-major, pad batch & time, order rows as (b_tile, t, b_in)
    # so every (batch-tile, time-chunk) block is a contiguous 2D slab.
    x_tm = jnp.transpose(xf, (1, 0, 2))                               # (T, B, F)
    x_tm = jnp.pad(x_tm, ((0, Tp - T), (0, Bp - B), (0, 0)))          # (Tp, Bp, F)
    x2d = (x_tm.reshape(Tp, NB, Bt, F).transpose(1, 0, 2, 3)
           .reshape(NB * Tp * Bt, F))

    weights = _prepare_weights(params)
    wih1, b1, wrec, b2, w_fc, b_fc = weights

    def full(a):
        # Whole-array block, same block every grid step -> DMA'd once.
        return pl.BlockSpec(a.shape, lambda nb, c: (0, 0))

    kernel = functools.partial(_lstm_model_kernel, Tc=Tc, Bt=Bt)
    out2d = pl.pallas_call(
        kernel,
        out_shape=jax.ShapeDtypeStruct((NB * Tp * Bt, 1), jnp.float32),
        grid_spec=pltpu.PrefetchScalarGridSpec(
            num_scalar_prefetch=0,
            grid=(NB, NC),
            in_specs=[pl.BlockSpec((Tc * Bt, F),
                                   lambda nb, c: (nb * NC + c, 0)),
                      full(wih1), full(b1), full(wrec), full(b2),
                      full(w_fc), full(b_fc)],
            out_specs=pl.BlockSpec((Tc * Bt, 1),
                                   lambda nb, c: (nb * NC + c, 0)),
            scratch_shapes=[pltpu.VMEM((Tc * Bt, G1), jnp.float32),
                            pltpu.VMEM((Tc * Bt, H2P), jnp.float32),
                            pltpu.VMEM((Bt, H1 + H2P), jnp.float32),
                            pltpu.VMEM((Bt, H1), jnp.float32),
                            pltpu.VMEM((Bt, H2P), jnp.float32)]),
        compiler_params=pltpu.CompilerParams(
            dimension_semantics=("parallel", "arbitrary"),
            vmem_limit_bytes=32 * 1024 * 1024),
    )(x2d, *weights)

    out = (out2d.reshape(NB, Tp, Bt, 1).transpose(1, 0, 2, 3)
           .reshape(Tp, Bp, 1)[:T, :B])
    return jnp.transpose(out, (1, 0, 2))                              # (B, T, 1)


lstm_model_forward = jax.jit(lstm_model_forward,
                             static_argnames=("time_chunk", "batch_tile"))


# ----------------------- deterministic parameter init ------------------------

def init_params(key):
    ks = jax.random.split(key, 14)

    def u(k, shape, bound):
        return jax.random.uniform(k, shape, jnp.float32, -bound, bound)

    k1 = 1.0 / math.sqrt(H1)
    k2 = 1.0 / math.sqrt(H2)
    kf1 = 1.0 / math.sqrt(H2)    # fc1 fan_in = 64
    kf2 = 1.0 / math.sqrt(FC1)   # fc2 fan_in = 25

    return {
        # lstm1 (PyTorch layouts: weight_ih (4H, in), weight_hh (4H, H))
        "w_ih1": u(ks[0], (4 * H1, WINDOW_SIZE), k1),
        "w_hh1": u(ks[1], (4 * H1, H1), k1),
        "b_ih1": u(ks[2], (4 * H1,), k1),
        "b_hh1": u(ks[3], (4 * H1,), k1),
        # lstm2
        "w_ih2": u(ks[4], (4 * H2, H1), k2),
        "w_hh2": u(ks[5], (4 * H2, H2), k2),
        "b_ih2": u(ks[6], (4 * H2,), k2),
        "b_hh2": u(ks[7], (4 * H2,), k2),
        # fc1, fc2 (PyTorch Linear: weight (out, in))
        "w_fc1": u(ks[8], (FC1, H2), kf1),
        "b_fc1": u(ks[9], (FC1,), kf1),
        "w_fc2": u(ks[10], (FC2, FC1), kf2),
        "b_fc2": u(ks[11], (FC2,), kf2),
    }


# ------------------------- pure-JAX reference (check) ------------------------

def reference_forward(x, params):
    def cell(x_t, h, c, w_ih, w_hh, b_ih, b_hh, H):
        g = x_t @ w_ih.T + b_ih + h @ w_hh.T + b_hh
        i = jax.nn.sigmoid(g[:, :H])
        f = jax.nn.sigmoid(g[:, H:2 * H])
        gg = jnp.tanh(g[:, 2 * H:3 * H])
        o = jax.nn.sigmoid(g[:, 3 * H:])
        c = f * c + i * gg
        h = o * jnp.tanh(c)
        return h, c

    B, T, _ = x.shape
    h1 = jnp.zeros((B, H1)); c1 = jnp.zeros((B, H1))
    h2 = jnp.zeros((B, H2)); c2 = jnp.zeros((B, H2))
    outs = []
    for t in range(T):
        h1, c1 = cell(x[:, t], h1, c1, params["w_ih1"], params["w_hh1"],
                      params["b_ih1"], params["b_hh1"], H1)
        h2, c2 = cell(h1, h2, c2, params["w_ih2"], params["w_hh2"],
                      params["b_ih2"], params["b_hh2"], H2)
        y = h2 @ params["w_fc1"].T + params["b_fc1"]
        y = y @ params["w_fc2"].T + params["b_fc2"]
        outs.append(y)
    return jnp.stack(outs, axis=1)                               # (B, T, 1)


# ----------------------------------- main ------------------------------------

if __name__ == "__main__":
    key = jax.random.PRNGKey(0)
    pkey, xkey = jax.random.split(key)
    params = init_params(pkey)

    # Small demo shape: single chunk / single batch tile.
    B, T = 2, 8
    x = jax.random.normal(xkey, (B, T, WINDOW_SIZE), dtype=jnp.float32)
    out = jax.block_until_ready(lstm_model_forward(x, params))
    assert out.shape == (B, T, 1), out.shape
    ref = jax.block_until_ready(reference_forward(x, params))
    err = float(jnp.max(jnp.abs(out - ref)))
    # Folded fc1∘fc2 re-associates one small f32 dot; 1e-4 covers it.
    assert jnp.allclose(out, ref, atol=1e-4, rtol=1e-4), err

    # Exercise the scaling path: 2 batch tiles x 3 (padded) time chunks with
    # recurrent state carried across grid steps in persistent VMEM scratch.
    B2, T2 = 10, 12
    x2 = jax.random.normal(jax.random.PRNGKey(1), (B2, T2, WINDOW_SIZE),
                           dtype=jnp.float32)
    out2 = jax.block_until_ready(
        lstm_model_forward(x2, params, time_chunk=5, batch_tile=8))
    assert out2.shape == (B2, T2, 1), out2.shape
    ref2 = jax.block_until_ready(reference_forward(x2, params))
    err2 = float(jnp.max(jnp.abs(out2 - ref2)))
    assert jnp.allclose(out2, ref2, atol=1e-4, rtol=1e-4), err2

    print("KERNEL_OK")
</pallas_src>

<mosaic_0001>
module attributes {stable_mosaic.version = 11 : i64} {
  func.func @_lstm_model_kernel(%arg0: i32, %arg1: i32, %arg2: memref<64x30xf32, #tpu.memory_space<vmem>>, %arg3: memref<30x512xf32, #tpu.memory_space<vmem>>, %arg4: memref<1x512xf32, #tpu.memory_space<vmem>>, %arg5: memref<256x1024xf32, #tpu.memory_space<vmem>>, %arg6: memref<1x512xf32, #tpu.memory_space<vmem>>, %arg7: memref<128x1xf32, #tpu.memory_space<vmem>>, %arg8: memref<1x1xf32, #tpu.memory_space<vmem>>, %arg9: memref<64x1xf32, #tpu.memory_space<vmem>>, %arg10: memref<64x512xf32, #tpu.memory_space<vmem>>, %arg11: memref<64x128xf32, #tpu.memory_space<vmem>>, %arg12: memref<8x256xf32, #tpu.memory_space<vmem>>, %arg13: memref<8x128xf32, #tpu.memory_space<vmem>>, %arg14: memref<8x128xf32, #tpu.memory_space<vmem>>) attributes {dimension_semantics = [#tpu.dimension_semantics<parallel>, #tpu.dimension_semantics<arbitrary>], iteration_bounds = array<i64: 1, 1>, scalar_prefetch = 0 : i64, scratch_operands = 5 : i64, tpu.core_type = #tpu.core_type<tc>, window_params = [{transform_indices = @transform_0, window_bounds = array<i64: 64, 30>}, {pipeline_mode = #tpu.pipeline_mode<synchronous>, transform_indices = @transform_1, window_bounds = array<i64: 30, 512>}, {pipeline_mode = #tpu.pipeline_mode<synchronous>, transform_indices = @transform_2, window_bounds = array<i64: 1, 512>}, {pipeline_mode = #tpu.pipeline_mode<synchronous>, transform_indices = @transform_3, window_bounds = array<i64: 256, 1024>}, {pipeline_mode = #tpu.pipeline_mode<synchronous>, transform_indices = @transform_4, window_bounds = array<i64: 1, 512>}, {pipeline_mode = #tpu.pipeline_mode<synchronous>, transform_indices = @transform_5, window_bounds = array<i64: 128, 1>}, {pipeline_mode = #tpu.pipeline_mode<synchronous>, transform_indices = @transform_6, window_bounds = array<i64: 1, 1>}, {transform_indices = @transform_7, window_bounds = array<i64: 64, 1>}]} {
    %c0_i32 = arith.constant 0 : i32
    %0 = arith.cmpi eq, %arg1, %c0_i32 : i32
    %1 = arith.extui %0 : i1 to i32
    %c0_i32_0 = arith.constant 0 : i32
    %2 = arith.cmpi ne, %1, %c0_i32_0 : i32
    scf.if %2 {
      %cst_258 = arith.constant 0.000000e+00 : f32
      %604 = vector.broadcast %cst_258 : f32 to vector<8x256xf32>
      %c0_259 = arith.constant 0 : index
      %c0_260 = arith.constant 0 : index
      %605 = vector.load %arg12[%c0_259, %c0_260] : memref<8x256xf32, #tpu.memory_space<vmem>>, vector<8x256xf32>
      tpu.vector_store %arg12[%c0_259, %c0_260], %604 {strides = array<i32>} : memref<8x256xf32, #tpu.memory_space<vmem>>, vector<8x256xf32>,
      %cst_261 = arith.constant 0.000000e+00 : f32
      %606 = vector.broadcast %cst_261 : f32 to vector<8x128xf32>
      %c0_262 = arith.constant 0 : index
      %c0_263 = arith.constant 0 : index
      %607 = vector.load %arg13[%c0_262, %c0_263] : memref<8x128xf32, #tpu.memory_space<vmem>>, vector<8x128xf32>
      tpu.vector_store %arg13[%c0_262, %c0_263], %606 {strides = array<i32>} : memref<8x128xf32, #tpu.memory_space<vmem>>, vector<8x128xf32>,
      %cst_264 = arith.constant 0.000000e+00 : f32
      %608 = vector.broadcast %cst_264 : f32 to vector<8x128xf32>
      %c0_265 = arith.constant 0 : index
      %c0_266 = arith.constant 0 : index
      %609 = vector.load %arg14[%c0_265, %c0_266] : memref<8x128xf32, #tpu.memory_space<vmem>>, vector<8x128xf32>
      tpu.vector_store %arg14[%c0_265, %c0_266], %608 {strides = array<i32>} : memref<8x128xf32, #tpu.memory_space<vmem>>, vector<8x128xf32>,
    } else {
    }
    %c0 = arith.constant 0 : index
    %c0_1 = arith.constant 0 : index
    %3 = vector.load %arg2[%c0, %c0_1] : memref<64x30xf32, #tpu.memory_space<vmem>>, vector<64x30xf32>
    %c0_2 = arith.constant 0 : index
    %c0_3 = arith.constant 0 : index
    %4 = vector.load %arg3[%c0_2, %c0_3] : memref<30x512xf32, #tpu.memory_space<vmem>>, vector<30x512xf32>
    %cst = arith.constant dense<0.000000e+00> : vector<64x512xf32>
    %5 = tpu.matmul %3, %4, %cst {dimension_numbers = #tpu.dot_dimension_numbers<[1], [0], [0], [1], [0, 0, 1, 1], [], []>} : vector<64x30xf32>, vector<30x512xf32>, vector<64x512xf32> -> vector<64x512xf32>
    %c0_4 = arith.constant 0 : index
    %c0_5 = arith.constant 0 : index
    %6 = vector.load %arg4[%c0_4, %c0_5] : memref<1x512xf32, #tpu.memory_space<vmem>>, vector<1x512xf32>
    %7 = vector.broadcast %6 : vector<1x512xf32> to vector<64x512xf32>
    %8 = arith.addf %5, %7 : vector<64x512xf32>
    %c0_6 = arith.constant 0 : index
    %c0_7 = arith.constant 0 : index
    %9 = vector.load %arg10[%c0_6, %c0_7] : memref<64x512xf32, #tpu.memory_space<vmem>>, vector<64x512xf32>
    tpu.vector_store %arg10[%c0_6, %c0_7], %8 {strides = array<i32>} : memref<64x512xf32, #tpu.memory_space<vmem>>, vector<64x512xf32>,
    %c0_8 = arith.constant 0 : index
    %c0_9 = arith.constant 0 : index
    %10 = vector.load %arg10[%c0_8, %c0_9] : memref<64x512xf32, #tpu.memory_space<vmem>>, vector<8x512xf32>
    %c0_10 = arith.constant 0 : index
    %c0_11 = arith.constant 0 : index
    %11 = vector.load %arg12[%c0_10, %c0_11] : memref<8x256xf32, #tpu.memory_space<vmem>>, vector<8x128xf32>
    %c0_12 = arith.constant 0 : index
    %c0_13 = arith.constant 0 : index
    %12 = vector.load %arg5[%c0_12, %c0_13] : memref<256x1024xf32, #tpu.memory_space<vmem>>, vector<128x512xf32>
    %cst_14 = arith.constant dense<0.000000e+00> : vector<8x512xf32>
    %13 = tpu.matmul %11, %12, %cst_14 {dimension_numbers = #tpu.dot_dimension_numbers<[1], [0], [0], [1], [0, 0, 1, 1], [], []>} : vector<8x128xf32>, vector<128x512xf32>, vector<8x512xf32> -> vector<8x512xf32>
    %14 = arith.addf %10, %13 : vector<8x512xf32>
    %c0_15 = arith.constant 0 : index
    %c0_16 = arith.constant 0 : index
    %15 = vector.load %arg13[%c0_15, %c0_16] : memref<8x128xf32, #tpu.memory_space<vmem>>, vector<8x128xf32>
    %16 = vector.extract_strided_slice %14 {offsets = [0, 0], sizes = [8, 128], strides = [1, 1]} : vector<8x512xf32> to vector<8x128xf32>
    %17 = arith.negf %16 : vector<8x128xf32>
    %18 = math.exp %17 : vector<8x128xf32>
    %cst_17 = arith.constant 1.000000e+00 : f32
    %19 = vector.broadcast %cst_17 : f32 to vector<8x128xf32>
    %20 = arith.addf %19, %18 : vector<8x128xf32>
    %21 = arith.divf %19, %20 : vector<8x128xf32>
    %22 = vector.extract_strided_slice %14 {offsets = [0, 128], sizes = [8, 128], strides = [1, 1]} : vector<8x512xf32> to vector<8x128xf32>
    %23 = arith.negf %22 : vector<8x128xf32>
    %24 = math.exp %23 : vector<8x128xf32>
    %cst_18 = arith.constant 1.000000e+00 : f32
    %25 = vector.broadcast %cst_18 : f32 to vector<8x128xf32>
    %26 = arith.addf %25, %24 : vector<8x128xf32>
    %27 = arith.divf %25, %26 : vector<8x128xf32>
    %28 = vector.extract_strided_slice %14 {offsets = [0, 256], sizes = [8, 128], strides = [1, 1]} : vector<8x512xf32> to vector<8x128xf32>
    %29 = math.tanh %28 : vector<8x128xf32>
    %30 = vector.extract_strided_slice %14 {offsets = [0, 384], sizes = [8, 128], strides = [1, 1]} : vector<8x512xf32> to vector<8x128xf32>
    %31 = arith.negf %30 : vector<8x128xf32>
    %32 = math.exp %31 : vector<8x128xf32>
    %cst_19 = arith.constant 1.000000e+00 : f32
    %33 = vector.broadcast %cst_19 : f32 to vector<8x128xf32>
    %34 = arith.addf %33, %32 : vector<8x128xf32>
    %35 = arith.divf %33, %34 : vector<8x128xf32>
    %36 = arith.mulf %27, %15 : vector<8x128xf32>
    %37 = arith.mulf %21, %29 : vector<8x128xf32>
    %38 = arith.addf %36, %37 : vector<8x128xf32>
    %39 = math.tanh %38 : vector<8x128xf32>
    %40 = arith.mulf %35, %39 : vector<8x128xf32>
    %c0_20 = arith.constant 0 : index
    %c0_21 = arith.constant 0 : index
    %41 = vector.load %arg13[%c0_20, %c0_21] : memref<8x128xf32, #tpu.memory_space<vmem>>, vector<8x128xf32>
    tpu.vector_store %arg13[%c0_20, %c0_21], %38 {strides = array<i32>} : memref<8x128xf32, #tpu.memory_space<vmem>>, vector<8x128xf32>,
    %c0_22 = arith.constant 0 : index
    %c0_23 = arith.constant 0 : index
    %42 = vector.load %arg12[%c0_22, %c0_23] : memref<8x256xf32, #tpu.memory_space<vmem>>, vector<8x128xf32>
    tpu.vector_store %arg12[%c0_22, %c0_23], %40 {strides = array<i32>} : memref<8x256xf32, #tpu.memory_space<vmem>>, vector<8x128xf32>,
    %c0_i32_24 = arith.constant 0 : i32
    %c0_25 = arith.constant 0 : index
    %c0_26 = arith.constant 0 : index
    %43 = vector.load %arg12[%c0_25, %c0_26] : memref<8x256xf32, #tpu.memory_space<vmem>>, vector<8x256xf32>
    %c0_27 = arith.constant 0 : index
    %c0_28 = arith.constant 0 : index
    %44 = vector.load %arg5[%c0_27, %c0_28] : memref<256x1024xf32, #tpu.memory_space<vmem>>, vector<256x1024xf32>
    %cst_29 = arith.constant dense<0.000000e+00> : vector<8x1024xf32>
    %45 = tpu.matmul %43, %44, %cst_29 {dimension_numbers = #tpu.dot_dimension_numbers<[1], [0], [0], [1], [0, 0, 1, 1], [], []>} : vector<8x256xf32>, vector<256x1024xf32>, vector<8x1024xf32> -> vector<8x1024xf32>
    %46 = vector.extract_strided_slice %45 {offsets = [0, 512], sizes = [8, 512], strides = [1, 1]} : vector<8x1024xf32> to vector<8x512xf32>
    %c0_30 = arith.constant 0 : index
    %c0_31 = arith.constant 0 : index
    %47 = vector.load %arg6[%c0_30, %c0_31] : memref<1x512xf32, #tpu.memory_space<vmem>>, vector<1x512xf32>
    %48 = vector.broadcast %47 : vector<1x512xf32> to vector<8x512xf32>
    %49 = arith.addf %46, %48 : vector<8x512xf32>
    %c0_32 = arith.constant 0 : index
    %c0_33 = arith.constant 0 : index
    %50 = vector.load %arg14[%c0_32, %c0_33] : memref<8x128xf32, #tpu.memory_space<vmem>>, vector<8x128xf32>
    %51 = vector.extract_strided_slice %49 {offsets = [0, 0], sizes = [8, 128], strides = [1, 1]} : vector<8x512xf32> to vector<8x128xf32>
    %52 = arith.negf %51 : vector<8x128xf32>
    %53 = math.exp %52 : vector<8x128xf32>
    %cst_34 = arith.constant 1.000000e+00 : f32
    %54 = vector.broadcast %cst_34 : f32 to vector<8x128xf32>
    %55 = arith.addf %54, %53 : vector<8x128xf32>
    %56 = arith.divf %54, %55 : vector<8x128xf32>
    %57 = vector.extract_strided_slice %49 {offsets = [0, 128], sizes = [8, 128], strides = [1, 1]} : vector<8x512xf32> to vector<8x128xf32>
    %58 = arith.negf %57 : vector<8x128xf32>
    %59 = math.exp %58 : vector<8x128xf32>
    %cst_35 = arith.constant 1.000000e+00 : f32
    %60 = vector.broadcast %cst_35 : f32 to vector<8x128xf32>
    %61 = arith.addf %60, %59 : vector<8x128xf32>
    %62 = arith.divf %60, %61 : vector<8x128xf32>
    %63 = vector.extract_strided_slice %49 {offsets = [0, 256], sizes = [8, 128], strides = [1, 1]} : vector<8x512xf32> to vector<8x128xf32>
    %64 = math.tanh %63 : vector<8x128xf32>
    %65 = vector.extract_strided_slice %49 {offsets = [0, 384], sizes = [8, 128], strides = [1, 1]} : vector<8x512xf32> to vector<8x128xf32>
    %66 = arith.negf %65 : vector<8x128xf32>
    %67 = math.exp %66 : vector<8x128xf32>
    %cst_36 = arith.constant 1.000000e+00 : f32
    %68 = vector.broadcast %cst_36 : f32 to vector<8x128xf32>
    %69 = arith.addf %68, %67 : vector<8x128xf32>
    %70 = arith.divf %68, %69 : vector<8x128xf32>
    %71 = arith.mulf %62, %50 : vector<8x128xf32>
    %72 = arith.mulf %56, %64 : vector<8x128xf32>
    %73 = arith.addf %71, %72 : vector<8x128xf32>
    %74 = math.tanh %73 : vector<8x128xf32>
    %75 = arith.mulf %70, %74 : vector<8x128xf32>
    %c0_37 = arith.constant 0 : index
    %c0_38 = arith.constant 0 : index
    %76 = vector.load %arg14[%c0_37, %c0_38] : memref<8x128xf32, #tpu.memory_space<vmem>>, vector<8x128xf32>
    tpu.vector_store %arg14[%c0_37, %c0_38], %73 {strides = array<i32>} : memref<8x128xf32, #tpu.memory_space<vmem>>, vector<8x128xf32>,
    %c8_i32 = arith.constant 8 : i32
    %77 = arith.muli %c0_i32_24, %c8_i32 : i32
    %78 = tpu.assume_multiple %77, 8 : i32
    %79 = arith.index_cast %78 : i32 to index
    %c0_39 = arith.constant 0 : index
    %80 = vector.load %arg11[%79, %c0_39] : memref<64x128xf32, #tpu.memory_space<vmem>>, vector<8x128xf32>
    tpu.vector_store %arg11[%79, %c0_39], %75 {strides = array<i32>} : memref<64x128xf32, #tpu.memory_space<vmem>>, vector<8x128xf32>,
    %c1_i32 = arith.constant 1 : i32
    %81 = arith.addi %c0_i32_24, %c1_i32 : i32
    %c8_i32_40 = arith.constant 8 : i32
    %82 = arith.muli %81, %c8_i32_40 : i32
    %83 = tpu.assume_multiple %82, 8 : i32
    %84 = vector.extract_strided_slice %45 {offsets = [0, 0], sizes = [8, 512], strides = [1, 1]} : vector<8x1024xf32> to vector<8x512xf32>
    %85 = arith.index_cast %83 : i32 to index
    %c0_41 = arith.constant 0 : index
    %86 = vector.load %arg10[%85, %c0_41] : memref<64x512xf32, #tpu.memory_space<vmem>>, vector<8x512xf32>
    %87 = arith.addf %84, %86 : vector<8x512xf32>
    %c0_42 = arith.constant 0 : index
    %c0_43 = arith.constant 0 : index
    %88 = vector.load %arg13[%c0_42, %c0_43] : memref<8x128xf32, #tpu.memory_space<vmem>>, vector<8x128xf32>
    %89 = vector.extract_strided_slice %87 {offsets = [0, 0], sizes = [8, 128], strides = [1, 1]} : vector<8x512xf32> to vector<8x128xf32>
    %90 = arith.negf %89 : vector<8x128xf32>
    %91 = math.exp %90 : vector<8x128xf32>
    %cst_44 = arith.constant 1.000000e+00 : f32
    %92 = vector.broadcast %cst_44 : f32 to vector<8x128xf32>
    %93 = arith.addf %92, %91 : vector<8x128xf32>
    %94 = arith.divf %92, %93 : vector<8x128xf32>
    %95 = vector.extract_strided_slice %87 {offsets = [0, 128], sizes = [8, 128], strides = [1, 1]} : vector<8x512xf32> to vector<8x128xf32>
    %96 = arith.negf %95 : vector<8x128xf32>
    %97 = math.exp %96 : vector<8x128xf32>
    %cst_45 = arith.constant 1.000000e+00 : f32
    %98 = vector.broadcast %cst_45 : f32 to vector<8x128xf32>
    %99 = arith.addf %98, %97 : vector<8x128xf32>
    %100 = arith.divf %98, %99 : vector<8x128xf32>
    %101 = vector.extract_strided_slice %87 {offsets = [0, 256], sizes = [8, 128], strides = [1, 1]} : vector<8x512xf32> to vector<8x128xf32>
    %102 = math.tanh %101 : vector<8x128xf32>
    %103 = vector.extract_strided_slice %87 {offsets = [0, 384], sizes = [8, 128], strides = [1, 1]} : vector<8x512xf32> to vector<8x128xf32>
    %104 = arith.negf %103 : vector<8x128xf32>
    %105 = math.exp %104 : vector<8x128xf32>
    %cst_46 = arith.constant 1.000000e+00 : f32
    %106 = vector.broadcast %cst_46 : f32 to vector<8x128xf32>
    %107 = arith.addf %106, %105 : vector<8x128xf32>
    %108 = arith.divf %106, %107 : vector<8x128xf32>
    %109 = arith.mulf %100, %88 : vector<8x128xf32>
    %110 = arith.mulf %94, %102 : vector<8x128xf32>
    %111 = arith.addf %109, %110 : vector<8x128xf32>
    %112 = math.tanh %111 : vector<8x128xf32>
    %113 = arith.mulf %108, %112 : vector<8x128xf32>
    %c0_47 = arith.constant 0 : index
    %c0_48 = arith.constant 0 : index
    %114 = vector.load %arg13[%c0_47, %c0_48] : memref<8x128xf32, #tpu.memory_space<vmem>>, vector<8x128xf32>
    tpu.vector_store %arg13[%c0_47, %c0_48], %111 {strides = array<i32>} : memref<8x128xf32, #tpu.memory_space<vmem>>, vector<8x128xf32>,
    %c0_49 = arith.constant 0 : index
    %c0_50 = arith.constant 0 : index
    %115 = vector.load %arg12[%c0_49, %c0_50] : memref<8x256xf32, #tpu.memory_space<vmem>>, vector<8x128xf32>
    tpu.vector_store %arg12[%c0_49, %c0_50], %113 {strides = array<i32>} : memref<8x256xf32, #tpu.memory_space<vmem>>, vector<8x128xf32>,
    %c0_51 = arith.constant 0 : index
    %c128 = arith.constant 128 : index
    %116 = vector.load %arg12[%c0_51, %c128] : memref<8x256xf32, #tpu.memory_space<vmem>>, vector<8x128xf32>
    tpu.vector_store %arg12[%c0_51, %c128], %75 {strides = array<i32>} : memref<8x256xf32, #tpu.memory_space<vmem>>, vector<8x128xf32>,
    %c1_i32_52 = arith.constant 1 : i32
    %c0_53 = arith.constant 0 : index
    %c0_54 = arith.constant 0 : index
    %117 = vector.load %arg12[%c0_53, %c0_54] : memref<8x256xf32, #tpu.memory_space<vmem>>, vector<8x256xf32>
    %c0_55 = arith.constant 0 : index
    %c0_56 = arith.constant 0 : index
    %118 = vector.load %arg5[%c0_55, %c0_56] : memref<256x1024xf32, #tpu.memory_space<vmem>>, vector<256x1024xf32>
    %cst_57 = arith.constant dense<0.000000e+00> : vector<8x1024xf32>
    %119 = tpu.matmul %117, %118, %cst_57 {dimension_numbers = #tpu.dot_dimension_numbers<[1], [0], [0], [1], [0, 0, 1, 1], [], []>} : vector<8x256xf32>, vector<256x1024xf32>, vector<8x1024xf32> -> vector<8x1024xf32>
    %120 = vector.extract_strided_slice %119 {offsets = [0, 512], sizes = [8, 512], strides = [1, 1]} : vector<8x1024xf32> to vector<8x512xf32>
    %c0_58 = arith.constant 0 : index
    %c0_59 = arith.constant 0 : index
    %121 = vector.load %arg6[%c0_58, %c0_59] : memref<1x512xf32, #tpu.memory_space<vmem>>, vector<1x512xf32>
    %122 = vector.broadcast %121 : vector<1x512xf32> to vector<8x512xf32>
    %123 = arith.addf %120, %122 : vector<8x512xf32>
    %c0_60 = arith.constant 0 : index
    %c0_61 = arith.constant 0 : index
    %124 = vector.load %arg14[%c0_60, %c0_61] : memref<8x128xf32, #tpu.memory_space<vmem>>, vector<8x128xf32>
    %125 = vector.extract_strided_slice %123 {offsets = [0, 0], sizes = [8, 128], strides = [1, 1]} : vector<8x512xf32> to vector<8x128xf32>
    %126 = arith.negf %125 : vector<8x128xf32>
    %127 = math.exp %126 : vector<8x128xf32>
    %cst_62 = arith.constant 1.000000e+00 : f32
    %128 = vector.broadcast %cst_62 : f32 to vector<8x128xf32>
    %129 = arith.addf %128, %127 : vector<8x128xf32>
    %130 = arith.divf %128, %129 : vector<8x128xf32>
    %131 = vector.extract_strided_slice %123 {offsets = [0, 128], sizes = [8, 128], strides = [1, 1]} : vector<8x512xf32> to vector<8x128xf32>
    %132 = arith.negf %131 : vector<8x128xf32>
    %133 = math.exp %132 : vector<8x128xf32>
    %cst_63 = arith.constant 1.000000e+00 : f32
    %134 = vector.broadcast %cst_63 : f32 to vector<8x128xf32>
    %135 = arith.addf %134, %133 : vector<8x128xf32>
    %136 = arith.divf %134, %135 : vector<8x128xf32>
    %137 = vector.extract_strided_slice %123 {offsets = [0, 256], sizes = [8, 128], strides = [1, 1]} : vector<8x512xf32> to vector<8x128xf32>
    %138 = math.tanh %137 : vector<8x128xf32>
    %139 = vector.extract_strided_slice %123 {offsets = [0, 384], sizes = [8, 128], strides = [1, 1]} : vector<8x512xf32> to vector<8x128xf32>
    %140 = arith.negf %139 : vector<8x128xf32>
    %141 = math.exp %140 : vector<8x128xf32>
    %cst_64 = arith.constant 1.000000e+00 : f32
    %142 = vector.broadcast %cst_64 : f32 to vector<8x128xf32>
    %143 = arith.addf %142, %141 : vector<8x128xf32>
    %144 = arith.divf %142, %143 : vector<8x128xf32>
    %145 = arith.mulf %136, %124 : vector<8x128xf32>
    %146 = arith.mulf %130, %138 : vector<8x128xf32>
    %147 = arith.addf %145, %146 : vector<8x128xf32>
    %148 = math.tanh %147 : vector<8x128xf32>
    %149 = arith.mulf %144, %148 : vector<8x128xf32>
    %c0_65 = arith.constant 0 : index
    %c0_66 = arith.constant 0 : index
    %150 = vector.load %arg14[%c0_65, %c0_66] : memref<8x128xf32, #tpu.memory_space<vmem>>, vector<8x128xf32>
    tpu.vector_store %arg14[%c0_65, %c0_66], %147 {strides = array<i32>} : memref<8x128xf32, #tpu.memory_space<vmem>>, vector<8x128xf32>,
    %c8_i32_67 = arith.constant 8 : i32
    %151 = arith.muli %c1_i32_52, %c8_i32_67 : i32
    %152 = tpu.assume_multiple %151, 8 : i32
    %153 = arith.index_cast %152 : i32 to index
    %c0_68 = arith.constant 0 : index
    %154 = vector.load %arg11[%153, %c0_68] : memref<64x128xf32, #tpu.memory_space<vmem>>, vector<8x128xf32>
    tpu.vector_store %arg11[%153, %c0_68], %149 {strides = array<i32>} : memref<64x128xf32, #tpu.memory_space<vmem>>, vector<8x128xf32>,
    %c1_i32_69 = arith.constant 1 : i32
    %155 = arith.addi %c1_i32_52, %c1_i32_69 : i32
    %c8_i32_70 = arith.constant 8 : i32
    %156 = arith.muli %155, %c8_i32_70 : i32
    %157 = tpu.assume_multiple %156, 8 : i32
    %158 = vector.extract_strided_slice %119 {offsets = [0, 0], sizes = [8, 512], strides = [1, 1]} : vector<8x1024xf32> to vector<8x512xf32>
    %159 = arith.index_cast %157 : i32 to index
    %c0_71 = arith.constant 0 : index
    %160 = vector.load %arg10[%159, %c0_71] : memref<64x512xf32, #tpu.memory_space<vmem>>, vector<8x512xf32>
    %161 = arith.addf %158, %160 : vector<8x512xf32>
    %c0_72 = arith.constant 0 : index
    %c0_73 = arith.constant 0 : index
    %162 = vector.load %arg13[%c0_72, %c0_73] : memref<8x128xf32, #tpu.memory_space<vmem>>, vector<8x128xf32>
    %163 = vector.extract_strided_slice %161 {offsets = [0, 0], sizes = [8, 128], strides = [1, 1]} : vector<8x512xf32> to vector<8x128xf32>
    %164 = arith.negf %163 : vector<8x128xf32>
    %165 = math.exp %164 : vector<8x128xf32>
    %cst_74 = arith.constant 1.000000e+00 : f32
    %166 = vector.broadcast %cst_74 : f32 to vector<8x128xf32>
    %167 = arith.addf %166, %165 : vector<8x128xf32>
    %168 = arith.divf %166, %167 : vector<8x128xf32>
    %169 = vector.extract_strided_slice %161 {offsets = [0, 128], sizes = [8, 128], strides = [1, 1]} : vector<8x512xf32> to vector<8x128xf32>
    %170 = arith.negf %169 : vector<8x128xf32>
    %171 = math.exp %170 : vector<8x128xf32>
    %cst_75 = arith.constant 1.000000e+00 : f32
    %172 = vector.broadcast %cst_75 : f32 to vector<8x128xf32>
    %173 = arith.addf %172, %171 : vector<8x128xf32>
    %174 = arith.divf %172, %173 : vector<8x128xf32>
    %175 = vector.extract_strided_slice %161 {offsets = [0, 256], sizes = [8, 128], strides = [1, 1]} : vector<8x512xf32> to vector<8x128xf32>
    %176 = math.tanh %175 : vector<8x128xf32>
    %177 = vector.extract_strided_slice %161 {offsets = [0, 384], sizes = [8, 128], strides = [1, 1]} : vector<8x512xf32> to vector<8x128xf32>
    %178 = arith.negf %177 : vector<8x128xf32>
    %179 = math.exp %178 : vector<8x128xf32>
    %cst_76 = arith.constant 1.000000e+00 : f32
    %180 = vector.broadcast %cst_76 : f32 to vector<8x128xf32>
    %181 = arith.addf %180, %179 : vector<8x128xf32>
    %182 = arith.divf %180, %181 : vector<8x128xf32>
    %183 = arith.mulf %174, %162 : vector<8x128xf32>
    %184 = arith.mulf %168, %176 : vector<8x128xf32>
    %185 = arith.addf %183, %184 : vector<8x128xf32>
    %186 = math.tanh %185 : vector<8x128xf32>
    %187 = arith.mulf %182, %186 : vector<8x128xf32>
    %c0_77 = arith.constant 0 : index
    %c0_78 = arith.constant 0 : index
    %188 = vector.load %arg13[%c0_77, %c0_78] : memref<8x128xf32, #tpu.memory_space<vmem>>, vector<8x128xf32>
    tpu.vector_store %arg13[%c0_77, %c0_78], %185 {strides = array<i32>} : memref<8x128xf32, #tpu.memory_space<vmem>>, vector<8x128xf32>,
    %c0_79 = arith.constant 0 : index
    %c0_80 = arith.constant 0 : index
    %189 = vector.load %arg12[%c0_79, %c0_80] : memref<8x256xf32, #tpu.memory_space<vmem>>, vector<8x128xf32>
    tpu.vector_store %arg12[%c0_79, %c0_80], %187 {strides = array<i32>} : memref<8x256xf32, #tpu.memory_space<vmem>>, vector<8x128xf32>,
    %c0_81 = arith.constant 0 : index
    %c128_82 = arith.constant 128 : index
    %190 = vector.load %arg12[%c0_81, %c128_82] : memref<8x256xf32, #tpu.memory_space<vmem>>, vector<8x128xf32>
    tpu.vector_store %arg12[%c0_81, %c128_82], %149 {strides = array<i32>} : memref<8x256xf32, #tpu.memory_space<vmem>>, vector<8x128xf32>,
    %c2_i32 = arith.constant 2 : i32
    %c0_83 = arith.constant 0 : index
    %c0_84 = arith.constant 0 : index
    %191 = vector.load %arg12[%c0_83, %c0_84] : memref<8x256xf32, #tpu.memory_space<vmem>>, vector<8x256xf32>
    %c0_85 = arith.constant 0 : index
    %c0_86 = arith.constant 0 : index
    %192 = vector.load %arg5[%c0_85, %c0_86] : memref<256x1024xf32, #tpu.memory_space<vmem>>, vector<256x1024xf32>
    %cst_87 = arith.constant dense<0.000000e+00> : vector<8x1024xf32>
    %193 = tpu.matmul %191, %192, %cst_87 {dimension_numbers = #tpu.dot_dimension_numbers<[1], [0], [0], [1], [0, 0, 1, 1], [], []>} : vector<8x256xf32>, vector<256x1024xf32>, vector<8x1024xf32> -> vector<8x1024xf32>
    %194 = vector.extract_strided_slice %193 {offsets = [0, 512], sizes = [8, 512], strides = [1, 1]} : vector<8x1024xf32> to vector<8x512xf32>
    %c0_88 = arith.constant 0 : index
    %c0_89 = arith.constant 0 : index
    %195 = vector.load %arg6[%c0_88, %c0_89] : memref<1x512xf32, #tpu.memory_space<vmem>>, vector<1x512xf32>
    %196 = vector.broadcast %195 : vector<1x512xf32> to vector<8x512xf32>
    %197 = arith.addf %194, %196 : vector<8x512xf32>
    %c0_90 = arith.constant 0 : index
    %c0_91 = arith.constant 0 : index
    %198 = vector.load %arg14[%c0_90, %c0_91] : memref<8x128xf32, #tpu.memory_space<vmem>>, vector<8x128xf32>
    %199 = vector.extract_strided_slice %197 {offsets = [0, 0], sizes = [8, 128], strides = [1, 1]} : vector<8x512xf32> to vector<8x128xf32>
    %200 = arith.negf %199 : vector<8x128xf32>
    %201 = math.exp %200 : vector<8x128xf32>
    %cst_92 = arith.constant 1.000000e+00 : f32
    %202 = vector.broadcast %cst_92 : f32 to vector<8x128xf32>
    %203 = arith.addf %202, %201 : vector<8x128xf32>
    %204 = arith.divf %202, %203 : vector<8x128xf32>
    %205 = vector.extract_strided_slice %197 {offsets = [0, 128], sizes = [8, 128], strides = [1, 1]} : vector<8x512xf32> to vector<8x128xf32>
    %206 = arith.negf %205 : vector<8x128xf32>
    %207 = math.exp %206 : vector<8x128xf32>
    %cst_93 = arith.constant 1.000000e+00 : f32
    %208 = vector.broadcast %cst_93 : f32 to vector<8x128xf32>
    %209 = arith.addf %208, %207 : vector<8x128xf32>
    %210 = arith.divf %208, %209 : vector<8x128xf32>
    %211 = vector.extract_strided_slice %197 {offsets = [0, 256], sizes = [8, 128], strides = [1, 1]} : vector<8x512xf32> to vector<8x128xf32>
    %212 = math.tanh %211 : vector<8x128xf32>
    %213 = vector.extract_strided_slice %197 {offsets = [0, 384], sizes = [8, 128], strides = [1, 1]} : vector<8x512xf32> to vector<8x128xf32>
    %214 = arith.negf %213 : vector<8x128xf32>
    %215 = math.exp %214 : vector<8x128xf32>
    %cst_94 = arith.constant 1.000000e+00 : f32
    %216 = vector.broadcast %cst_94 : f32 to vector<8x128xf32>
    %217 = arith.addf %216, %215 : vector<8x128xf32>
    %218 = arith.divf %216, %217 : vector<8x128xf32>
    %219 = arith.mulf %210, %198 : vector<8x128xf32>
    %220 = arith.mulf %204, %212 : vector<8x128xf32>
    %221 = arith.addf %219, %220 : vector<8x128xf32>
    %222 = math.tanh %221 : vector<8x128xf32>
    %223 = arith.mulf %218, %222 : vector<8x128xf32>
    %c0_95 = arith.constant 0 : index
    %c0_96 = arith.constant 0 : index
    %224 = vector.load %arg14[%c0_95, %c0_96] : memref<8x128xf32, #tpu.memory_space<vmem>>, vector<8x128xf32>
    tpu.vector_store %arg14[%c0_95, %c0_96], %221 {strides = array<i32>} : memref<8x128xf32, #tpu.memory_space<vmem>>, vector<8x128xf32>,
    %c8_i32_97 = arith.constant 8 : i32
    %225 = arith.muli %c2_i32, %c8_i32_97 : i32
    %226 = tpu.assume_multiple %225, 8 : i32
    %227 = arith.index_cast %226 : i32 to index
    %c0_98 = arith.constant 0 : index
    %228 = vector.load %arg11[%227, %c0_98] : memref<64x128xf32, #tpu.memory_space<vmem>>, vector<8x128xf32>
    tpu.vector_store %arg11[%227, %c0_98], %223 {strides = array<i32>} : memref<64x128xf32, #tpu.memory_space<vmem>>, vector<8x128xf32>,
    %c1_i32_99 = arith.constant 1 : i32
    %229 = arith.addi %c2_i32, %c1_i32_99 : i32
    %c8_i32_100 = arith.constant 8 : i32
    %230 = arith.muli %229, %c8_i32_100 : i32
    %231 = tpu.assume_multiple %230, 8 : i32
    %232 = vector.extract_strided_slice %193 {offsets = [0, 0], sizes = [8, 512], strides = [1, 1]} : vector<8x1024xf32> to vector<8x512xf32>
    %233 = arith.index_cast %231 : i32 to index
    %c0_101 = arith.constant 0 : index
    %234 = vector.load %arg10[%233, %c0_101] : memref<64x512xf32, #tpu.memory_space<vmem>>, vector<8x512xf32>
    %235 = arith.addf %232, %234 : vector<8x512xf32>
    %c0_102 = arith.constant 0 : index
    %c0_103 = arith.constant 0 : index
    %236 = vector.load %arg13[%c0_102, %c0_103] : memref<8x128xf32, #tpu.memory_space<vmem>>, vector<8x128xf32>
    %237 = vector.extract_strided_slice %235 {offsets = [0, 0], sizes = [8, 128], strides = [1, 1]} : vector<8x512xf32> to vector<8x128xf32>
    %238 = arith.negf %237 : vector<8x128xf32>
    %239 = math.exp %238 : vector<8x128xf32>
    %cst_104 = arith.constant 1.000000e+00 : f32
    %240 = vector.broadcast %cst_104 : f32 to vector<8x128xf32>
    %241 = arith.addf %240, %239 : vector<8x128xf32>
    %242 = arith.divf %240, %241 : vector<8x128xf32>
    %243 = vector.extract_strided_slice %235 {offsets = [0, 128], sizes = [8, 128], strides = [1, 1]} : vector<8x512xf32> to vector<8x128xf32>
    %244 = arith.negf %243 : vector<8x128xf32>
    %245 = math.exp %244 : vector<8x128xf32>
    %cst_105 = arith.constant 1.000000e+00 : f32
    %246 = vector.broadcast %cst_105 : f32 to vector<8x128xf32>
    %247 = arith.addf %246, %245 : vector<8x128xf32>
    %248 = arith.divf %246, %247 : vector<8x128xf32>
    %249 = vector.extract_strided_slice %235 {offsets = [0, 256], sizes = [8, 128], strides = [1, 1]} : vector<8x512xf32> to vector<8x128xf32>
    %250 = math.tanh %249 : vector<8x128xf32>
    %251 = vector.extract_strided_slice %235 {offsets = [0, 384], sizes = [8, 128], strides = [1, 1]} : vector<8x512xf32> to vector<8x128xf32>
    %252 = arith.negf %251 : vector<8x128xf32>
    %253 = math.exp %252 : vector<8x128xf32>
    %cst_106 = arith.constant 1.000000e+00 : f32
    %254 = vector.broadcast %cst_106 : f32 to vector<8x128xf32>
    %255 = arith.addf %254, %253 : vector<8x128xf32>
    %256 = arith.divf %254, %255 : vector<8x128xf32>
    %257 = arith.mulf %248, %236 : vector<8x128xf32>
    %258 = arith.mulf %242, %250 : vector<8x128xf32>
    %259 = arith.addf %257, %258 : vector<8x128xf32>
    %260 = math.tanh %259 : vector<8x128xf32>
    %261 = arith.mulf %256, %260 : vector<8x128xf32>
    %c0_107 = arith.constant 0 : index
    %c0_108 = arith.constant 0 : index
    %262 = vector.load %arg13[%c0_107, %c0_108] : memref<8x128xf32, #tpu.memory_space<vmem>>, vector<8x128xf32>
    tpu.vector_store %arg13[%c0_107, %c0_108], %259 {strides = array<i32>} : memref<8x128xf32, #tpu.memory_space<vmem>>, vector<8x128xf32>,
    %c0_109 = arith.constant 0 : index
    %c0_110 = arith.constant 0 : index
    %263 = vector.load %arg12[%c0_109, %c0_110] : memref<8x256xf32, #tpu.memory_space<vmem>>, vector<8x128xf32>
    tpu.vector_store %arg12[%c0_109, %c0_110], %261 {strides = array<i32>} : memref<8x256xf32, #tpu.memory_space<vmem>>, vector<8x128xf32>,
    %c0_111 = arith.constant 0 : index
    %c128_112 = arith.constant 128 : index
    %264 = vector.load %arg12[%c0_111, %c128_112] : memref<8x256xf32, #tpu.memory_space<vmem>>, vector<8x128xf32>
    tpu.vector_store %arg12[%c0_111, %c128_112], %223 {strides = array<i32>} : memref<8x256xf32, #tpu.memory_space<vmem>>, vector<8x128xf32>,
    %c3_i32 = arith.constant 3 : i32
    %c0_113 = arith.constant 0 : index
    %c0_114 = arith.constant 0 : index
    %265 = vector.load %arg12[%c0_113, %c0_114] : memref<8x256xf32, #tpu.memory_space<vmem>>, vector<8x256xf32>
    %c0_115 = arith.constant 0 : index
    %c0_116 = arith.constant 0 : index
    %266 = vector.load %arg5[%c0_115, %c0_116] : memref<256x1024xf32, #tpu.memory_space<vmem>>, vector<256x1024xf32>
    %cst_117 = arith.constant dense<0.000000e+00> : vector<8x1024xf32>
    %267 = tpu.matmul %265, %266, %cst_117 {dimension_numbers = #tpu.dot_dimension_numbers<[1], [0], [0], [1], [0, 0, 1, 1], [], []>} : vector<8x256xf32>, vector<256x1024xf32>, vector<8x1024xf32> -> vector<8x1024xf32>
    %268 = vector.extract_strided_slice %267 {offsets = [0, 512], sizes = [8, 512], strides = [1, 1]} : vector<8x1024xf32> to vector<8x512xf32>
    %c0_118 = arith.constant 0 : index
    %c0_119 = arith.constant 0 : index
    %269 = vector.load %arg6[%c0_118, %c0_119] : memref<1x512xf32, #tpu.memory_space<vmem>>, vector<1x512xf32>
    %270 = vector.broadcast %269 : vector<1x512xf32> to vector<8x512xf32>
    %271 = arith.addf %268, %270 : vector<8x512xf32>
    %c0_120 = arith.constant 0 : index
    %c0_121 = arith.constant 0 : index
    %272 = vector.load %arg14[%c0_120, %c0_121] : memref<8x128xf32, #tpu.memory_space<vmem>>, vector<8x128xf32>
    %273 = vector.extract_strided_slice %271 {offsets = [0, 0], sizes = [8, 128], strides = [1, 1]} : vector<8x512xf32> to vector<8x128xf32>
    %274 = arith.negf %273 : vector<8x128xf32>
    %275 = math.exp %274 : vector<8x128xf32>
    %cst_122 = arith.constant 1.000000e+00 : f32
    %276 = vector.broadcast %cst_122 : f32 to vector<8x128xf32>
    %277 = arith.addf %276, %275 : vector<8x128xf32>
    %278 = arith.divf %276, %277 : vector<8x128xf32>
    %279 = vector.extract_strided_slice %271 {offsets = [0, 128], sizes = [8, 128], strides = [1, 1]} : vector<8x512xf32> to vector<8x128xf32>
    %280 = arith.negf %279 : vector<8x128xf32>
    %281 = math.exp %280 : vector<8x128xf32>
    %cst_123 = arith.constant 1.000000e+00 : f32
    %282 = vector.broadcast %cst_123 : f32 to vector<8x128xf32>
    %283 = arith.addf %282, %281 : vector<8x128xf32>
    %284 = arith.divf %282, %283 : vector<8x128xf32>
    %285 = vector.extract_strided_slice %271 {offsets = [0, 256], sizes = [8, 128], strides = [1, 1]} : vector<8x512xf32> to vector<8x128xf32>
    %286 = math.tanh %285 : vector<8x128xf32>
    %287 = vector.extract_strided_slice %271 {offsets = [0, 384], sizes = [8, 128], strides = [1, 1]} : vector<8x512xf32> to vector<8x128xf32>
    %288 = arith.negf %287 : vector<8x128xf32>
    %289 = math.exp %288 : vector<8x128xf32>
    %cst_124 = arith.constant 1.000000e+00 : f32
    %290 = vector.broadcast %cst_124 : f32 to vector<8x128xf32>
    %291 = arith.addf %290, %289 : vector<8x128xf32>
    %292 = arith.divf %290, %291 : vector<8x128xf32>
    %293 = arith.mulf %284, %272 : vector<8x128xf32>
    %294 = arith.mulf %278, %286 : vector<8x128xf32>
    %295 = arith.addf %293, %294 : vector<8x128xf32>
    %296 = math.tanh %295 : vector<8x128xf32>
    %297 = arith.mulf %292, %296 : vector<8x128xf32>
    %c0_125 = arith.constant 0 : index
    %c0_126 = arith.constant 0 : index
    %298 = vector.load %arg14[%c0_125, %c0_126] : memref<8x128xf32, #tpu.memory_space<vmem>>, vector<8x128xf32>
    tpu.vector_store %arg14[%c0_125, %c0_126], %295 {strides = array<i32>} : memref<8x128xf32, #tpu.memory_space<vmem>>, vector<8x128xf32>,
    %c8_i32_127 = arith.constant 8 : i32
    %299 = arith.muli %c3_i32, %c8_i32_127 : i32
    %300 = tpu.assume_multiple %299, 8 : i32
    %301 = arith.index_cast %300 : i32 to index
    %c0_128 = arith.constant 0 : index
    %302 = vector.load %arg11[%301, %c0_128] : memref<64x128xf32, #tpu.memory_space<vmem>>, vector<8x128xf32>
    tpu.vector_store %arg11[%301, %c0_128], %297 {strides = array<i32>} : memref<64x128xf32, #tpu.memory_space<vmem>>, vector<8x128xf32>,
    %c1_i32_129 = arith.constant 1 : i32
    %303 = arith.addi %c3_i32, %c1_i32_129 : i32
    %c8_i32_130 = arith.constant 8 : i32
    %304 = arith.muli %303, %c8_i32_130 : i32
    %305 = tpu.assume_multiple %304, 8 : i32
    %306 = vector.extract_strided_slice %267 {offsets = [0, 0], sizes = [8, 512], strides = [1, 1]} : vector<8x1024xf32> to vector<8x512xf32>
    %307 = arith.index_cast %305 : i32 to index
    %c0_131 = arith.constant 0 : index
    %308 = vector.load %arg10[%307, %c0_131] : memref<64x512xf32, #tpu.memory_space<vmem>>, vector<8x512xf32>
    %309 = arith.addf %306, %308 : vector<8x512xf32>
    %c0_132 = arith.constant 0 : index
    %c0_133 = arith.constant 0 : index
    %310 = vector.load %arg13[%c0_132, %c0_133] : memref<8x128xf32, #tpu.memory_space<vmem>>, vector<8x128xf32>
    %311 = vector.extract_strided_slice %309 {offsets = [0, 0], sizes = [8, 128], strides = [1, 1]} : vector<8x512xf32> to vector<8x128xf32>
    %312 = arith.negf %311 : vector<8x128xf32>
    %313 = math.exp %312 : vector<8x128xf32>
    %cst_134 = arith.constant 1.000000e+00 : f32
    %314 = vector.broadcast %cst_134 : f32 to vector<8x128xf32>
    %315 = arith.addf %314, %313 : vector<8x128xf32>
    %316 = arith.divf %314, %315 : vector<8x128xf32>
    %317 = vector.extract_strided_slice %309 {offsets = [0, 128], sizes = [8, 128], strides = [1, 1]} : vector<8x512xf32> to vector<8x128xf32>
    %318 = arith.negf %317 : vector<8x128xf32>
    %319 = math.exp %318 : vector<8x128xf32>
    %cst_135 = arith.constant 1.000000e+00 : f32
    %320 = vector.broadcast %cst_135 : f32 to vector<8x128xf32>
    %321 = arith.addf %320, %319 : vector<8x128xf32>
    %322 = arith.divf %320, %321 : vector<8x128xf32>
    %323 = vector.extract_strided_slice %309 {offsets = [0, 256], sizes = [8, 128], strides = [1, 1]} : vector<8x512xf32> to vector<8x128xf32>
    %324 = math.tanh %323 : vector<8x128xf32>
    %325 = vector.extract_strided_slice %309 {offsets = [0, 384], sizes = [8, 128], strides = [1, 1]} : vector<8x512xf32> to vector<8x128xf32>
    %326 = arith.negf %325 : vector<8x128xf32>
    %327 = math.exp %326 : vector<8x128xf32>
    %cst_136 = arith.constant 1.000000e+00 : f32
    %328 = vector.broadcast %cst_136 : f32 to vector<8x128xf32>
    %329 = arith.addf %328, %327 : vector<8x128xf32>
    %330 = arith.divf %328, %329 : vector<8x128xf32>
    %331 = arith.mulf %322, %310 : vector<8x128xf32>
    %332 = arith.mulf %316, %324 : vector<8x128xf32>
    %333 = arith.addf %331, %332 : vector<8x128xf32>
    %334 = math.tanh %333 : vector<8x128xf32>
    %335 = arith.mulf %330, %334 : vector<8x128xf32>
    %c0_137 = arith.constant 0 : index
    %c0_138 = arith.constant 0 : index
    %336 = vector.load %arg13[%c0_137, %c0_138] : memref<8x128xf32, #tpu.memory_space<vmem>>, vector<8x128xf32>
    tpu.vector_store %arg13[%c0_137, %c0_138], %333 {strides = array<i32>} : memref<8x128xf32, #tpu.memory_space<vmem>>, vector<8x128xf32>,
    %c0_139 = arith.constant 0 : index
    %c0_140 = arith.constant 0 : index
    %337 = vector.load %arg12[%c0_139, %c0_140] : memref<8x256xf32, #tpu.memory_space<vmem>>, vector<8x128xf32>
    tpu.vector_store %arg12[%c0_139, %c0_140], %335 {strides = array<i32>} : memref<8x256xf32, #tpu.memory_space<vmem>>, vector<8x128xf32>,
    %c0_141 = arith.constant 0 : index
    %c128_142 = arith.constant 128 : index
    %338 = vector.load %arg12[%c0_141, %c128_142] : memref<8x256xf32, #tpu.memory_space<vmem>>, vector<8x128xf32>
    tpu.vector_store %arg12[%c0_141, %c128_142], %297 {strides = array<i32>} : memref<8x256xf32, #tpu.memory_space<vmem>>, vector<8x128xf32>,
    %c4_i32 = arith.constant 4 : i32
    %c0_143 = arith.constant 0 : index
    %c0_144 = arith.constant 0 : index
    %339 = vector.load %arg12[%c0_143, %c0_144] : memref<8x256xf32, #tpu.memory_space<vmem>>, vector<8x256xf32>
    %c0_145 = arith.constant 0 : index
    %c0_146 = arith.constant 0 : index
    %340 = vector.load %arg5[%c0_145, %c0_146] : memref<256x1024xf32, #tpu.memory_space<vmem>>, vector<256x1024xf32>
    %cst_147 = arith.constant dense<0.000000e+00> : vector<8x1024xf32>
    %341 = tpu.matmul %339, %340, %cst_147 {dimension_numbers = #tpu.dot_dimension_numbers<[1], [0], [0], [1], [0, 0, 1, 1], [], []>} : vector<8x256xf32>, vector<256x1024xf32>, vector<8x1024xf32> -> vector<8x1024xf32>
    %342 = vector.extract_strided_slice %341 {offsets = [0, 512], sizes = [8, 512], strides = [1, 1]} : vector<8x1024xf32> to vector<8x512xf32>
    %c0_148 = arith.constant 0 : index
    %c0_149 = arith.constant 0 : index
    %343 = vector.load %arg6[%c0_148, %c0_149] : memref<1x512xf32, #tpu.memory_space<vmem>>, vector<1x512xf32>
    %344 = vector.broadcast %343 : vector<1x512xf32> to vector<8x512xf32>
    %345 = arith.addf %342, %344 : vector<8x512xf32>
    %c0_150 = arith.constant 0 : index
    %c0_151 = arith.constant 0 : index
    %346 = vector.load %arg14[%c0_150, %c0_151] : memref<8x128xf32, #tpu.memory_space<vmem>>, vector<8x128xf32>
    %347 = vector.extract_strided_slice %345 {offsets = [0, 0], sizes = [8, 128], strides = [1, 1]} : vector<8x512xf32> to vector<8x128xf32>
    %348 = arith.negf %347 : vector<8x128xf32>
    %349 = math.exp %348 : vector<8x128xf32>
    %cst_152 = arith.constant 1.000000e+00 : f32
    %350 = vector.broadcast %cst_152 : f32 to vector<8x128xf32>
    %351 = arith.addf %350, %349 : vector<8x128xf32>
    %352 = arith.divf %350, %351 : vector<8x128xf32>
    %353 = vector.extract_strided_slice %345 {offsets = [0, 128], sizes = [8, 128], strides = [1, 1]} : vector<8x512xf32> to vector<8x128xf32>
    %354 = arith.negf %353 : vector<8x128xf32>
    %355 = math.exp %354 : vector<8x128xf32>
    %cst_153 = arith.constant 1.000000e+00 : f32
    %356 = vector.broadcast %cst_153 : f32 to vector<8x128xf32>
    %357 = arith.addf %356, %355 : vector<8x128xf32>
    %358 = arith.divf %356, %357 : vector<8x128xf32>
    %359 = vector.extract_strided_slice %345 {offsets = [0, 256], sizes = [8, 128], strides = [1, 1]} : vector<8x512xf32> to vector<8x128xf32>
    %360 = math.tanh %359 : vector<8x128xf32>
    %361 = vector.extract_strided_slice %345 {offsets = [0, 384], sizes = [8, 128], strides = [1, 1]} : vector<8x512xf32> to vector<8x128xf32>
    %362 = arith.negf %361 : vector<8x128xf32>
    %363 = math.exp %362 : vector<8x128xf32>
    %cst_154 = arith.constant 1.000000e+00 : f32
    %364 = vector.broadcast %cst_154 : f32 to vector<8x128xf32>
    %365 = arith.addf %364, %363 : vector<8x128xf32>
    %366 = arith.divf %364, %365 : vector<8x128xf32>
    %367 = arith.mulf %358, %346 : vector<8x128xf32>
    %368 = arith.mulf %352, %360 : vector<8x128xf32>
    %369 = arith.addf %367, %368 : vector<8x128xf32>
    %370 = math.tanh %369 : vector<8x128xf32>
    %371 = arith.mulf %366, %370 : vector<8x128xf32>
    %c0_155 = arith.constant 0 : index
    %c0_156 = arith.constant 0 : index
    %372 = vector.load %arg14[%c0_155, %c0_156] : memref<8x128xf32, #tpu.memory_space<vmem>>, vector<8x128xf32>
    tpu.vector_store %arg14[%c0_155, %c0_156], %369 {strides = array<i32>} : memref<8x128xf32, #tpu.memory_space<vmem>>, vector<8x128xf32>,
    %c8_i32_157 = arith.constant 8 : i32
    %373 = arith.muli %c4_i32, %c8_i32_157 : i32
    %374 = tpu.assume_multiple %373, 8 : i32
    %375 = arith.index_cast %374 : i32 to index
    %c0_158 = arith.constant 0 : index
    %376 = vector.load %arg11[%375, %c0_158] : memref<64x128xf32, #tpu.memory_space<vmem>>, vector<8x128xf32>
    tpu.vector_store %arg11[%375, %c0_158], %371 {strides = array<i32>} : memref<64x128xf32, #tpu.memory_space<vmem>>, vector<8x128xf32>,
    %c1_i32_159 = arith.constant 1 : i32
    %377 = arith.addi %c4_i32, %c1_i32_159 : i32
    %c8_i32_160 = arith.constant 8 : i32
    %378 = arith.muli %377, %c8_i32_160 : i32
    %379 = tpu.assume_multiple %378, 8 : i32
    %380 = vector.extract_strided_slice %341 {offsets = [0, 0], sizes = [8, 512], strides = [1, 1]} : vector<8x1024xf32> to vector<8x512xf32>
    %381 = arith.index_cast %379 : i32 to index
    %c0_161 = arith.constant 0 : index
    %382 = vector.load %arg10[%381, %c0_161] : memref<64x512xf32, #tpu.memory_space<vmem>>, vector<8x512xf32>
    %383 = arith.addf %380, %382 : vector<8x512xf32>
    %c0_162 = arith.constant 0 : index
    %c0_163 = arith.constant 0 : index
    %384 = vector.load %arg13[%c0_162, %c0_163] : memref<8x128xf32, #tpu.memory_space<vmem>>, vector<8x128xf32>
    %385 = vector.extract_strided_slice %383 {offsets = [0, 0], sizes = [8, 128], strides = [1, 1]} : vector<8x512xf32> to vector<8x128xf32>
    %386 = arith.negf %385 : vector<8x128xf32>
    %387 = math.exp %386 : vector<8x128xf32>
    %cst_164 = arith.constant 1.000000e+00 : f32
    %388 = vector.broadcast %cst_164 : f32 to vector<8x128xf32>
    %389 = arith.addf %388, %387 : vector<8x128xf32>
    %390 = arith.divf %388, %389 : vector<8x128xf32>
    %391 = vector.extract_strided_slice %383 {offsets = [0, 128], sizes = [8, 128], strides = [1, 1]} : vector<8x512xf32> to vector<8x128xf32>
    %392 = arith.negf %391 : vector<8x128xf32>
    %393 = math.exp %392 : vector<8x128xf32>
    %cst_165 = arith.constant 1.000000e+00 : f32
    %394 = vector.broadcast %cst_165 : f32 to vector<8x128xf32>
    %395 = arith.addf %394, %393 : vector<8x128xf32>
    %396 = arith.divf %394, %395 : vector<8x128xf32>
    %397 = vector.extract_strided_slice %383 {offsets = [0, 256], sizes = [8, 128], strides = [1, 1]} : vector<8x512xf32> to vector<8x128xf32>
    %398 = math.tanh %397 : vector<8x128xf32>
    %399 = vector.extract_strided_slice %383 {offsets = [0, 384], sizes = [8, 128], strides = [1, 1]} : vector<8x512xf32> to vector<8x128xf32>
    %400 = arith.negf %399 : vector<8x128xf32>
    %401 = math.exp %400 : vector<8x128xf32>
    %cst_166 = arith.constant 1.000000e+00 : f32
    %402 = vector.broadcast %cst_166 : f32 to vector<8x128xf32>
    %403 = arith.addf %402, %401 : vector<8x128xf32>
    %404 = arith.divf %402, %403 : vector<8x128xf32>
    %405 = arith.mulf %396, %384 : vector<8x128xf32>
    %406 = arith.mulf %390, %398 : vector<8x128xf32>
    %407 = arith.addf %405, %406 : vector<8x128xf32>
    %408 = math.tanh %407 : vector<8x128xf32>
    %409 = arith.mulf %404, %408 : vector<8x128xf32>
    %c0_167 = arith.constant 0 : index
    %c0_168 = arith.constant 0 : index
    %410 = vector.load %arg13[%c0_167, %c0_168] : memref<8x128xf32, #tpu.memory_space<vmem>>, vector<8x128xf32>
    tpu.vector_store %arg13[%c0_167, %c0_168], %407 {strides = array<i32>} : memref<8x128xf32, #tpu.memory_space<vmem>>, vector<8x128xf32>,
    %c0_169 = arith.constant 0 : index
    %c0_170 = arith.constant 0 : index
    %411 = vector.load %arg12[%c0_169, %c0_170] : memref<8x256xf32, #tpu.memory_space<vmem>>, vector<8x128xf32>
    tpu.vector_store %arg12[%c0_169, %c0_170], %409 {strides = array<i32>} : memref<8x256xf32, #tpu.memory_space<vmem>>, vector<8x128xf32>,
    %c0_171 = arith.constant 0 : index
    %c128_172 = arith.constant 128 : index
    %412 = vector.load %arg12[%c0_171, %c128_172] : memref<8x256xf32, #tpu.memory_space<vmem>>, vector<8x128xf32>
    tpu.vector_store %arg12[%c0_171, %c128_172], %371 {strides = array<i32>} : memref<8x256xf32, #tpu.memory_space<vmem>>, vector<8x128xf32>,
    %c5_i32 = arith.constant 5 : i32
    %c0_173 = arith.constant 0 : index
    %c0_174 = arith.constant 0 : index
    %413 = vector.load %arg12[%c0_173, %c0_174] : memref<8x256xf32, #tpu.memory_space<vmem>>, vector<8x256xf32>
    %c0_175 = arith.constant 0 : index
    %c0_176 = arith.constant 0 : index
    %414 = vector.load %arg5[%c0_175, %c0_176] : memref<256x1024xf32, #tpu.memory_space<vmem>>, vector<256x1024xf32>
    %cst_177 = arith.constant dense<0.000000e+00> : vector<8x1024xf32>
    %415 = tpu.matmul %413, %414, %cst_177 {dimension_numbers = #tpu.dot_dimension_numbers<[1], [0], [0], [1], [0, 0, 1, 1], [], []>} : vector<8x256xf32>, vector<256x1024xf32>, vector<8x1024xf32> -> vector<8x1024xf32>
    %416 = vector.extract_strided_slice %415 {offsets = [0, 512], sizes = [8, 512], strides = [1, 1]} : vector<8x1024xf32> to vector<8x512xf32>
    %c0_178 = arith.constant 0 : index
    %c0_179 = arith.constant 0 : index
    %417 = vector.load %arg6[%c0_178, %c0_179] : memref<1x512xf32, #tpu.memory_space<vmem>>, vector<1x512xf32>
    %418 = vector.broadcast %417 : vector<1x512xf32> to vector<8x512xf32>
    %419 = arith.addf %416, %418 : vector<8x512xf32>
    %c0_180 = arith.constant 0 : index
    %c0_181 = arith.constant 0 : index
    %420 = vector.load %arg14[%c0_180, %c0_181] : memref<8x128xf32, #tpu.memory_space<vmem>>, vector<8x128xf32>
    %421 = vector.extract_strided_slice %419 {offsets = [0, 0], sizes = [8, 128], strides = [1, 1]} : vector<8x512xf32> to vector<8x128xf32>
    %422 = arith.negf %421 : vector<8x128xf32>
    %423 = math.exp %422 : vector<8x128xf32>
    %cst_182 = arith.constant 1.000000e+00 : f32
    %424 = vector.broadcast %cst_182 : f32 to vector<8x128xf32>
    %425 = arith.addf %424, %423 : vector<8x128xf32>
    %426 = arith.divf %424, %425 : vector<8x128xf32>
    %427 = vector.extract_strided_slice %419 {offsets = [0, 128], sizes = [8, 128], strides = [1, 1]} : vector<8x512xf32> to vector<8x128xf32>
    %428 = arith.negf %427 : vector<8x128xf32>
    %429 = math.exp %428 : vector<8x128xf32>
    %cst_183 = arith.constant 1.000000e+00 : f32
    %430 = vector.broadcast %cst_183 : f32 to vector<8x128xf32>
    %431 = arith.addf %430, %429 : vector<8x128xf32>
    %432 = arith.divf %430, %431 : vector<8x128xf32>
    %433 = vector.extract_strided_slice %419 {offsets = [0, 256], sizes = [8, 128], strides = [1, 1]} : vector<8x512xf32> to vector<8x128xf32>
    %434 = math.tanh %433 : vector<8x128xf32>
    %435 = vector.extract_strided_slice %419 {offsets = [0, 384], sizes = [8, 128], strides = [1, 1]} : vector<8x512xf32> to vector<8x128xf32>
    %436 = arith.negf %435 : vector<8x128xf32>
    %437 = math.exp %436 : vector<8x128xf32>
    %cst_184 = arith.constant 1.000000e+00 : f32
    %438 = vector.broadcast %cst_184 : f32 to vector<8x128xf32>
    %439 = arith.addf %438, %437 : vector<8x128xf32>
    %440 = arith.divf %438, %439 : vector<8x128xf32>
    %441 = arith.mulf %432, %420 : vector<8x128xf32>
    %442 = arith.mulf %426, %434 : vector<8x128xf32>
    %443 = arith.addf %441, %442 : vector<8x128xf32>
    %444 = math.tanh %443 : vector<8x128xf32>
    %445 = arith.mulf %440, %444 : vector<8x128xf32>
    %c0_185 = arith.constant 0 : index
    %c0_186 = arith.constant 0 : index
    %446 = vector.load %arg14[%c0_185, %c0_186] : memref<8x128xf32, #tpu.memory_space<vmem>>, vector<8x128xf32>
    tpu.vector_store %arg14[%c0_185, %c0_186], %443 {strides = array<i32>} : memref<8x128xf32, #tpu.memory_space<vmem>>, vector<8x128xf32>,
    %c8_i32_187 = arith.constant 8 : i32
    %447 = arith.muli %c5_i32, %c8_i32_187 : i32
    %448 = tpu.assume_multiple %447, 8 : i32
    %449 = arith.index_cast %448 : i32 to index
    %c0_188 = arith.constant 0 : index
    %450 = vector.load %arg11[%449, %c0_188] : memref<64x128xf32, #tpu.memory_space<vmem>>, vector<8x128xf32>
    tpu.vector_store %arg11[%449, %c0_188], %445 {strides = array<i32>} : memref<64x128xf32, #tpu.memory_space<vmem>>, vector<8x128xf32>,
    %c1_i32_189 = arith.constant 1 : i32
    %451 = arith.addi %c5_i32, %c1_i32_189 : i32
    %c8_i32_190 = arith.constant 8 : i32
    %452 = arith.muli %451, %c8_i32_190 : i32
    %453 = tpu.assume_multiple %452, 8 : i32
    %454 = vector.extract_strided_slice %415 {offsets = [0, 0], sizes = [8, 512], strides = [1, 1]} : vector<8x1024xf32> to vector<8x512xf32>
    %455 = arith.index_cast %453 : i32 to index
    %c0_191 = arith.constant 0 : index
    %456 = vector.load %arg10[%455, %c0_191] : memref<64x512xf32, #tpu.memory_space<vmem>>, vector<8x512xf32>
    %457 = arith.addf %454, %456 : vector<8x512xf32>
    %c0_192 = arith.constant 0 : index
    %c0_193 = arith.constant 0 : index
    %458 = vector.load %arg13[%c0_192, %c0_193] : memref<8x128xf32, #tpu.memory_space<vmem>>, vector<8x128xf32>
    %459 = vector.extract_strided_slice %457 {offsets = [0, 0], sizes = [8, 128], strides = [1, 1]} : vector<8x512xf32> to vector<8x128xf32>
    %460 = arith.negf %459 : vector<8x128xf32>
    %461 = math.exp %460 : vector<8x128xf32>
    %cst_194 = arith.constant 1.000000e+00 : f32
    %462 = vector.broadcast %cst_194 : f32 to vector<8x128xf32>
    %463 = arith.addf %462, %461 : vector<8x128xf32>
    %464 = arith.divf %462, %463 : vector<8x128xf32>
    %465 = vector.extract_strided_slice %457 {offsets = [0, 128], sizes = [8, 128], strides = [1, 1]} : vector<8x512xf32> to vector<8x128xf32>
    %466 = arith.negf %465 : vector<8x128xf32>
    %467 = math.exp %466 : vector<8x128xf32>
    %cst_195 = arith.constant 1.000000e+00 : f32
    %468 = vector.broadcast %cst_195 : f32 to vector<8x128xf32>
    %469 = arith.addf %468, %467 : vector<8x128xf32>
    %470 = arith.divf %468, %469 : vector<8x128xf32>
    %471 = vector.extract_strided_slice %457 {offsets = [0, 256], sizes = [8, 128], strides = [1, 1]} : vector<8x512xf32> to vector<8x128xf32>
    %472 = math.tanh %471 : vector<8x128xf32>
    %473 = vector.extract_strided_slice %457 {offsets = [0, 384], sizes = [8, 128], strides = [1, 1]} : vector<8x512xf32> to vector<8x128xf32>
    %474 = arith.negf %473 : vector<8x128xf32>
    %475 = math.exp %474 : vector<8x128xf32>
    %cst_196 = arith.constant 1.000000e+00 : f32
    %476 = vector.broadcast %cst_196 : f32 to vector<8x128xf32>
    %477 = arith.addf %476, %475 : vector<8x128xf32>
    %478 = arith.divf %476, %477 : vector<8x128xf32>
    %479 = arith.mulf %470, %458 : vector<8x128xf32>
    %480 = arith.mulf %464, %472 : vector<8x128xf32>
    %481 = arith.addf %479, %480 : vector<8x128xf32>
    %482 = math.tanh %481 : vector<8x128xf32>
    %483 = arith.mulf %478, %482 : vector<8x128xf32>
    %c0_197 = arith.constant 0 : index
    %c0_198 = arith.constant 0 : index
    %484 = vector.load %arg13[%c0_197, %c0_198] : memref<8x128xf32, #tpu.memory_space<vmem>>, vector<8x128xf32>
    tpu.vector_store %arg13[%c0_197, %c0_198], %481 {strides = array<i32>} : memref<8x128xf32, #tpu.memory_space<vmem>>, vector<8x128xf32>,
    %c0_199 = arith.constant 0 : index
    %c0_200 = arith.constant 0 : index
    %485 = vector.load %arg12[%c0_199, %c0_200] : memref<8x256xf32, #tpu.memory_space<vmem>>, vector<8x128xf32>
    tpu.vector_store %arg12[%c0_199, %c0_200], %483 {strides = array<i32>} : memref<8x256xf32, #tpu.memory_space<vmem>>, vector<8x128xf32>,
    %c0_201 = arith.constant 0 : index
    %c128_202 = arith.constant 128 : index
    %486 = vector.load %arg12[%c0_201, %c128_202] : memref<8x256xf32, #tpu.memory_space<vmem>>, vector<8x128xf32>
    tpu.vector_store %arg12[%c0_201, %c128_202], %445 {strides = array<i32>} : memref<8x256xf32, #tpu.memory_space<vmem>>, vector<8x128xf32>,
    %c6_i32 = arith.constant 6 : i32
    %c0_203 = arith.constant 0 : index
    %c0_204 = arith.constant 0 : index
    %487 = vector.load %arg12[%c0_203, %c0_204] : memref<8x256xf32, #tpu.memory_space<vmem>>, vector<8x256xf32>
    %c0_205 = arith.constant 0 : index
    %c0_206 = arith.constant 0 : index
    %488 = vector.load %arg5[%c0_205, %c0_206] : memref<256x1024xf32, #tpu.memory_space<vmem>>, vector<256x1024xf32>
    %cst_207 = arith.constant dense<0.000000e+00> : vector<8x1024xf32>
    %489 = tpu.matmul %487, %488, %cst_207 {dimension_numbers = #tpu.dot_dimension_numbers<[1], [0], [0], [1], [0, 0, 1, 1], [], []>} : vector<8x256xf32>, vector<256x1024xf32>, vector<8x1024xf32> -> vector<8x1024xf32>
    %490 = vector.extract_strided_slice %489 {offsets = [0, 512], sizes = [8, 512], strides = [1, 1]} : vector<8x1024xf32> to vector<8x512xf32>
    %c0_208 = arith.constant 0 : index
    %c0_209 = arith.constant 0 : index
    %491 = vector.load %arg6[%c0_208, %c0_209] : memref<1x512xf32, #tpu.memory_space<vmem>>, vector<1x512xf32>
    %492 = vector.broadcast %491 : vector<1x512xf32> to vector<8x512xf32>
    %493 = arith.addf %490, %492 : vector<8x512xf32>
    %c0_210 = arith.constant 0 : index
    %c0_211 = arith.constant 0 : index
    %494 = vector.load %arg14[%c0_210, %c0_211] : memref<8x128xf32, #tpu.memory_space<vmem>>, vector<8x128xf32>
    %495 = vector.extract_strided_slice %493 {offsets = [0, 0], sizes = [8, 128], strides = [1, 1]} : vector<8x512xf32> to vector<8x128xf32>
    %496 = arith.negf %495 : vector<8x128xf32>
    %497 = math.exp %496 : vector<8x128xf32>
    %cst_212 = arith.constant 1.000000e+00 : f32
    %498 = vector.broadcast %cst_212 : f32 to vector<8x128xf32>
    %499 = arith.addf %498, %497 : vector<8x128xf32>
    %500 = arith.divf %498, %499 : vector<8x128xf32>
    %501 = vector.extract_strided_slice %493 {offsets = [0, 128], sizes = [8, 128], strides = [1, 1]} : vector<8x512xf32> to vector<8x128xf32>
    %502 = arith.negf %501 : vector<8x128xf32>
    %503 = math.exp %502 : vector<8x128xf32>
    %cst_213 = arith.constant 1.000000e+00 : f32
    %504 = vector.broadcast %cst_213 : f32 to vector<8x128xf32>
    %505 = arith.addf %504, %503 : vector<8x128xf32>
    %506 = arith.divf %504, %505 : vector<8x128xf32>
    %507 = vector.extract_strided_slice %493 {offsets = [0, 256], sizes = [8, 128], strides = [1, 1]} : vector<8x512xf32> to vector<8x128xf32>
    %508 = math.tanh %507 : vector<8x128xf32>
    %509 = vector.extract_strided_slice %493 {offsets = [0, 384], sizes = [8, 128], strides = [1, 1]} : vector<8x512xf32> to vector<8x128xf32>
    %510 = arith.negf %509 : vector<8x128xf32>
    %511 = math.exp %510 : vector<8x128xf32>
    %cst_214 = arith.constant 1.000000e+00 : f32
    %512 = vector.broadcast %cst_214 : f32 to vector<8x128xf32>
    %513 = arith.addf %512, %511 : vector<8x128xf32>
    %514 = arith.divf %512, %513 : vector<8x128xf32>
    %515 = arith.mulf %506, %494 : vector<8x128xf32>
    %516 = arith.mulf %500, %508 : vector<8x128xf32>
    %517 = arith.addf %515, %516 : vector<8x128xf32>
    %518 = math.tanh %517 : vector<8x128xf32>
    %519 = arith.mulf %514, %518 : vector<8x128xf32>
    %c0_215 = arith.constant 0 : index
    %c0_216 = arith.constant 0 : index
    %520 = vector.load %arg14[%c0_215, %c0_216] : memref<8x128xf32, #tpu.memory_space<vmem>>, vector<8x128xf32>
    tpu.vector_store %arg14[%c0_215, %c0_216], %517 {strides = array<i32>} : memref<8x128xf32, #tpu.memory_space<vmem>>, vector<8x128xf32>,
    %c8_i32_217 = arith.constant 8 : i32
    %521 = arith.muli %c6_i32, %c8_i32_217 : i32
    %522 = tpu.assume_multiple %521, 8 : i32
    %523 = arith.index_cast %522 : i32 to index
    %c0_218 = arith.constant 0 : index
    %524 = vector.load %arg11[%523, %c0_218] : memref<64x128xf32, #tpu.memory_space<vmem>>, vector<8x128xf32>
    tpu.vector_store %arg11[%523, %c0_218], %519 {strides = array<i32>} : memref<64x128xf32, #tpu.memory_space<vmem>>, vector<8x128xf32>,
    %c1_i32_219 = arith.constant 1 : i32
    %525 = arith.addi %c6_i32, %c1_i32_219 : i32
    %c8_i32_220 = arith.constant 8 : i32
    %526 = arith.muli %525, %c8_i32_220 : i32
    %527 = tpu.assume_multiple %526, 8 : i32
    %528 = vector.extract_strided_slice %489 {offsets = [0, 0], sizes = [8, 512], strides = [1, 1]} : vector<8x1024xf32> to vector<8x512xf32>
    %529 = arith.index_cast %527 : i32 to index
    %c0_221 = arith.constant 0 : index
    %530 = vector.load %arg10[%529, %c0_221] : memref<64x512xf32, #tpu.memory_space<vmem>>, vector<8x512xf32>
    %531 = arith.addf %528, %530 : vector<8x512xf32>
    %c0_222 = arith.constant 0 : index
    %c0_223 = arith.constant 0 : index
    %532 = vector.load %arg13[%c0_222, %c0_223] : memref<8x128xf32, #tpu.memory_space<vmem>>, vector<8x128xf32>
    %533 = vector.extract_strided_slice %531 {offsets = [0, 0], sizes = [8, 128], strides = [1, 1]} : vector<8x512xf32> to vector<8x128xf32>
    %534 = arith.negf %533 : vector<8x128xf32>
    %535 = math.exp %534 : vector<8x128xf32>
    %cst_224 = arith.constant 1.000000e+00 : f32
    %536 = vector.broadcast %cst_224 : f32 to vector<8x128xf32>
    %537 = arith.addf %536, %535 : vector<8x128xf32>
    %538 = arith.divf %536, %537 : vector<8x128xf32>
    %539 = vector.extract_strided_slice %531 {offsets = [0, 128], sizes = [8, 128], strides = [1, 1]} : vector<8x512xf32> to vector<8x128xf32>
    %540 = arith.negf %539 : vector<8x128xf32>
    %541 = math.exp %540 : vector<8x128xf32>
    %cst_225 = arith.constant 1.000000e+00 : f32
    %542 = vector.broadcast %cst_225 : f32 to vector<8x128xf32>
    %543 = arith.addf %542, %541 : vector<8x128xf32>
    %544 = arith.divf %542, %543 : vector<8x128xf32>
    %545 = vector.extract_strided_slice %531 {offsets = [0, 256], sizes = [8, 128], strides = [1, 1]} : vector<8x512xf32> to vector<8x128xf32>
    %546 = math.tanh %545 : vector<8x128xf32>
    %547 = vector.extract_strided_slice %531 {offsets = [0, 384], sizes = [8, 128], strides = [1, 1]} : vector<8x512xf32> to vector<8x128xf32>
    %548 = arith.negf %547 : vector<8x128xf32>
    %549 = math.exp %548 : vector<8x128xf32>
    %cst_226 = arith.constant 1.000000e+00 : f32
    %550 = vector.broadcast %cst_226 : f32 to vector<8x128xf32>
    %551 = arith.addf %550, %549 : vector<8x128xf32>
    %552 = arith.divf %550, %551 : vector<8x128xf32>
    %553 = arith.mulf %544, %532 : vector<8x128xf32>
    %554 = arith.mulf %538, %546 : vector<8x128xf32>
    %555 = arith.addf %553, %554 : vector<8x128xf32>
    %556 = math.tanh %555 : vector<8x128xf32>
    %557 = arith.mulf %552, %556 : vector<8x128xf32>
    %c0_227 = arith.constant 0 : index
    %c0_228 = arith.constant 0 : index
    %558 = vector.load %arg13[%c0_227, %c0_228] : memref<8x128xf32, #tpu.memory_space<vmem>>, vector<8x128xf32>
    tpu.vector_store %arg13[%c0_227, %c0_228], %555 {strides = array<i32>} : memref<8x128xf32, #tpu.memory_space<vmem>>, vector<8x128xf32>,
    %c0_229 = arith.constant 0 : index
    %c0_230 = arith.constant 0 : index
    %559 = vector.load %arg12[%c0_229, %c0_230] : memref<8x256xf32, #tpu.memory_space<vmem>>, vector<8x128xf32>
    tpu.vector_store %arg12[%c0_229, %c0_230], %557 {strides = array<i32>} : memref<8x256xf32, #tpu.memory_space<vmem>>, vector<8x128xf32>,
    %c0_231 = arith.constant 0 : index
    %c128_232 = arith.constant 128 : index
    %560 = vector.load %arg12[%c0_231, %c128_232] : memref<8x256xf32, #tpu.memory_space<vmem>>, vector<8x128xf32>
    tpu.vector_store %arg12[%c0_231, %c128_232], %519 {strides = array<i32>} : memref<8x256xf32, #tpu.memory_space<vmem>>, vector<8x128xf32>,
    %c7_i32 = arith.constant 7 : i32
    %c0_233 = arith.constant 0 : index
    %c0_234 = arith.constant 0 : index
    %561 = vector.load %arg12[%c0_233, %c0_234] : memref<8x256xf32, #tpu.memory_space<vmem>>, vector<8x256xf32>
    %c0_235 = arith.constant 0 : index
    %c512 = arith.constant 512 : index
    %562 = vector.load %arg5[%c0_235, %c512] : memref<256x1024xf32, #tpu.memory_space<vmem>>, vector<256x512xf32>
    %cst_236 = arith.constant dense<0.000000e+00> : vector<8x512xf32>
    %563 = tpu.matmul %561, %562, %cst_236 {dimension_numbers = #tpu.dot_dimension_numbers<[1], [0], [0], [1], [0, 0, 1, 1], [], []>} : vector<8x256xf32>, vector<256x512xf32>, vector<8x512xf32> -> vector<8x512xf32>
    %c0_237 = arith.constant 0 : index
    %c0_238 = arith.constant 0 : index
    %564 = vector.load %arg6[%c0_237, %c0_238] : memref<1x512xf32, #tpu.memory_space<vmem>>, vector<1x512xf32>
    %565 = vector.broadcast %564 : vector<1x512xf32> to vector<8x512xf32>
    %566 = arith.addf %563, %565 : vector<8x512xf32>
    %c0_239 = arith.constant 0 : index
    %c0_240 = arith.constant 0 : index
    %567 = vector.load %arg14[%c0_239, %c0_240] : memref<8x128xf32, #tpu.memory_space<vmem>>, vector<8x128xf32>
    %568 = vector.extract_strided_slice %566 {offsets = [0, 0], sizes = [8, 128], strides = [1, 1]} : vector<8x512xf32> to vector<8x128xf32>
    %569 = arith.negf %568 : vector<8x128xf32>
    %570 = math.exp %569 : vector<8x128xf32>
    %cst_241 = arith.constant 1.000000e+00 : f32
    %571 = vector.broadcast %cst_241 : f32 to vector<8x128xf32>
    %572 = arith.addf %571, %570 : vector<8x128xf32>
    %573 = arith.divf %571, %572 : vector<8x128xf32>
    %574 = vector.extract_strided_slice %566 {offsets = [0, 128], sizes = [8, 128], strides = [1, 1]} : vector<8x512xf32> to vector<8x128xf32>
    %575 = arith.negf %574 : vector<8x128xf32>
    %576 = math.exp %575 : vector<8x128xf32>
    %cst_242 = arith.constant 1.000000e+00 : f32
    %577 = vector.broadcast %cst_242 : f32 to vector<8x128xf32>
    %578 = arith.addf %577, %576 : vector<8x128xf32>
    %579 = arith.divf %577, %578 : vector<8x128xf32>
    %580 = vector.extract_strided_slice %566 {offsets = [0, 256], sizes = [8, 128], strides = [1, 1]} : vector<8x512xf32> to vector<8x128xf32>
    %581 = math.tanh %580 : vector<8x128xf32>
    %582 = vector.extract_strided_slice %566 {offsets = [0, 384], sizes = [8, 128], strides = [1, 1]} : vector<8x512xf32> to vector<8x128xf32>
    %583 = arith.negf %582 : vector<8x128xf32>
    %584 = math.exp %583 : vector<8x128xf32>
    %cst_243 = arith.constant 1.000000e+00 : f32
    %585 = vector.broadcast %cst_243 : f32 to vector<8x128xf32>
    %586 = arith.addf %585, %584 : vector<8x128xf32>
    %587 = arith.divf %585, %586 : vector<8x128xf32>
    %588 = arith.mulf %579, %567 : vector<8x128xf32>
    %589 = arith.mulf %573, %581 : vector<8x128xf32>
    %590 = arith.addf %588, %589 : vector<8x128xf32>
    %591 = math.tanh %590 : vector<8x128xf32>
    %592 = arith.mulf %587, %591 : vector<8x128xf32>
    %c0_244 = arith.constant 0 : index
    %c0_245 = arith.constant 0 : index
    %593 = vector.load %arg14[%c0_244, %c0_245] : memref<8x128xf32, #tpu.memory_space<vmem>>, vector<8x128xf32>
    tpu.vector_store %arg14[%c0_244, %c0_245], %590 {strides = array<i32>} : memref<8x128xf32, #tpu.memory_space<vmem>>, vector<8x128xf32>,
    %c0_246 = arith.constant 0 : index
    %c128_247 = arith.constant 128 : index
    %594 = vector.load %arg12[%c0_246, %c128_247] : memref<8x256xf32, #tpu.memory_space<vmem>>, vector<8x128xf32>
    tpu.vector_store %arg12[%c0_246, %c128_247], %592 {strides = array<i32>} : memref<8x256xf32, #tpu.memory_space<vmem>>, vector<8x128xf32>,
    %c56 = arith.constant 56 : index
    %c0_248 = arith.constant 0 : index
    %595 = vector.load %arg11[%c56, %c0_248] : memref<64x128xf32, #tpu.memory_space<vmem>>, vector<8x128xf32>
    tpu.vector_store %arg11[%c56, %c0_248], %592 {strides = array<i32>} : memref<64x128xf32, #tpu.memory_space<vmem>>, vector<8x128xf32>,
    %c0_249 = arith.constant 0 : index
    %c0_250 = arith.constant 0 : index
    %596 = vector.load %arg11[%c0_249, %c0_250] : memref<64x128xf32, #tpu.memory_space<vmem>>, vector<64x128xf32>
    %c0_251 = arith.constant 0 : index
    %c0_252 = arith.constant 0 : index
    %597 = vector.load %arg7[%c0_251, %c0_252] : memref<128x1xf32, #tpu.memory_space<vmem>>, vector<128x1xf32>
    %cst_253 = arith.constant dense<0.000000e+00> : vector<64x1xf32>
    %598 = tpu.matmul %596, %597, %cst_253 {dimension_numbers = #tpu.dot_dimension_numbers<[1], [0], [0], [1], [0, 0, 1, 1], [], []>} : vector<64x128xf32>, vector<128x1xf32>, vector<64x1xf32> -> vector<64x1xf32>
    %c0_254 = arith.constant 0 : index
    %c0_255 = arith.constant 0 : index
    %599 = vector.load %arg8[%c0_254, %c0_255] : memref<1x1xf32, #tpu.memory_space<vmem>>, vector<1x1xf32>
    %600 = vector.extract %599[0, 0] : f32 from vector<1x1xf32>
    %601 = vector.broadcast %600 : f32 to vector<64x1xf32>
    %602 = arith.addf %598, %601 : vector<64x1xf32>
    %c0_256 = arith.constant 0 : index
    %c0_257 = arith.constant 0 : index
    %603 = vector.load %arg9[%c0_256, %c0_257] : memref<64x1xf32, #tpu.memory_space<vmem>>, vector<64x1xf32>
    tpu.vector_store %arg9[%c0_256, %c0_257], %602 {strides = array<i32>} : memref<64x1xf32, #tpu.memory_space<vmem>>, vector<64x1xf32>,
    return
  }
  func.func @transform_0(%arg0: i32, %arg1: i32) -> (i32, i32) {
    %c1_i32 = arith.constant 1 : i32
    %0 = arith.muli %arg0, %c1_i32 : i32
    %1 = arith.addi %0, %arg1 : i32
    %c0_i32 = arith.constant 0 : i32
    %c0_i32_0 = arith.constant 0 : i32
    return %1, %c0_i32 : i32, i32
  }
  func.func @transform_1(%arg0: i32, %arg1: i32) -> (i32, i32) {
    %c0_i32 = arith.constant 0 : i32
    %c0_i32_0 = arith.constant 0 : i32
    %c0_i32_1 = arith.constant 0 : i32
    return %c0_i32, %c0_i32_0 : i32, i32
  }
  func.func @transform_2(%arg0: i32, %arg1: i32) -> (i32, i32) {
    %c0_i32 = arith.constant 0 : i32
    %c0_i32_0 = arith.constant 0 : i32
    %c0_i32_1 = arith.constant 0 : i32
    return %c0_i32, %c0_i32_0 : i32, i32
  }
  func.func @transform_3(%arg0: i32, %arg1: i32) -> (i32, i32) {
    %c0_i32 = arith.constant 0 : i32
    %c0_i32_0 = arith.constant 0 : i32
    %c0_i32_1 = arith.constant 0 : i32
    return %c0_i32, %c0_i32_0 : i32, i32
  }
  func.func @transform_4(%arg0: i32, %arg1: i32) -> (i32, i32) {
    %c0_i32 = arith.constant 0 : i32
    %c0_i32_0 = arith.constant 0 : i32
    %c0_i32_1 = arith.constant 0 : i32
    return %c0_i32, %c0_i32_0 : i32, i32
  }
  func.func @transform_5(%arg0: i32, %arg1: i32) -> (i32, i32) {
    %c0_i32 = arith.constant 0 : i32
    %c0_i32_0 = arith.constant 0 : i32
    %c0_i32_1 = arith.constant 0 : i32
    return %c0_i32, %c0_i32_0 : i32, i32
  }
  func.func @transform_6(%arg0: i32, %arg1: i32) -> (i32, i32) {
    %c0_i32 = arith.constant 0 : i32
    %c0_i32_0 = arith.constant 0 : i32
    %c0_i32_1 = arith.constant 0 : i32
    return %c0_i32, %c0_i32_0 : i32, i32
  }
  func.func @transform_7(%arg0: i32, %arg1: i32) -> (i32, i32) {
    %c1_i32 = arith.constant 1 : i32
    %0 = arith.muli %arg0, %c1_i32 : i32
    %1 = arith.addi %0, %arg1 : i32
    %c0_i32 = arith.constant 0 : i32
    %c0_i32_0 = arith.constant 0 : i32
    return %1, %c0_i32 : i32, i32
  }
}

</mosaic_0001>

<llo_original>
// kernel: lstm_model_forward.1
$region0: #{lstm_model_forward.1}
  #allocation0 [shape = 'u32[]', space=smem, size = 0x4, offset = 0x4, fixed_abs, tag = 'smem constant byte address 0x4 - core index']
  #allocation1 [shape = 'u32[144,128]{1,0:T(1,128)}', space=vmem, size = 0x12000, scoped, tag = 'internal scratch']
  #allocation2 [shape = 'f32[64,512]{1,0:T(8,128)}', space=vmem, size = 0x20000, scoped, tag = 'scratch operand']
  #allocation3 [shape = 'f32[64,128]{1,0:T(8,128)}', space=vmem, size = 0x8000, scoped, tag = 'scratch operand']
  #allocation4 [shape = 'f32[8,256]{1,0:T(8,128)}', space=vmem, size = 0x2000, scoped, tag = 'scratch operand']
  #allocation5 [shape = 'f32[8,128]{1,0:T(8,128)}', space=vmem, size = 0x1000, scoped, tag = 'scratch operand']
  #allocation6 [shape = 'f32[8,128]{1,0:T(8,128)}', space=vmem, size = 0x1000, scoped, tag = 'scratch operand']
  #allocation7 [shape = 'f32[1,1]{1,0:T(1,128)S(1)}', space=vmem, size = 0x200, scoped, tag = 'scoped memory for lstm_model_forward.1']
  %s0 = inlined_call_operand.vmem [shape: f32[64,30], index: 0, kind: input, shape index: {}]
  %s1 = inlined_call_operand.vmem [shape: f32[30,512], index: 1, kind: input, shape index: {}]
  %s2 = inlined_call_operand.vmem [shape: f32[1,512], index: 2, kind: input, shape index: {}]
  %s3 = inlined_call_operand.vmem [shape: f32[256,1024], index: 3, kind: input, shape index: {}]
  %s4 = inlined_call_operand.vmem [shape: f32[1,512], index: 4, kind: input, shape index: {}]
  %s5 = inlined_call_operand.vmem [shape: f32[128,1], index: 5, kind: input, shape index: {}]
  %s6 = inlined_call_operand.<no memory space> [shape: f32[1,1], index: 6, kind: input, shape index: {}]
  %s7 = inlined_call_operand.vmem [shape: f32[64,1], index: 7, kind: output, shape index: {}]
  %s8 = sld [smem:[#allocation0]]
  $region42: #{lstm_model_forward.1} parent=0
    _
  %s10 = ssub.s32 1, %s8
  %s11 = scalar_select 0, %s10, %s8
  %v12 = vstv %s6
  %13 = vst [vmem:[#allocation7] sm:$0x1] %v12
  // Predicated region
  $region2: #{lstm_model_forward.1} parent=0 // pred_check
    _
  $region3: #{lstm_model_forward.1} parent=0 // pred_check_branch
    %15 = sbr.rel (0) target = $region5
  $region4: #{lstm_model_forward.1} parent=0 // pred_region
    %s16 = sadd.s32 0, 0
    %s17 = smul.u32 8, %s16
    %p18 = scmp.lt.s32.totalorder %s17, 7
    %s19 = scalar_select %p18, %s17, 7
    %s20 = smul.addr %s19, 8
    %s21 = scalar_lea.vmem %s0, %s20
    %s22 = sadd.s32 0, 0
    %s23 = smul.u32 8, %s22
  $region5: #{lstm_model_forward.1} parent=0 // pred_fallthru
    _
  // Predicated region
  $region6: #{lstm_model_forward.1} parent=0 // pred_check
    _
  $region7: #{lstm_model_forward.1} parent=0 // pred_check_branch
    %25 = sbr.rel (0) target = $region9
  $region8: #{lstm_model_forward.1} parent=0 // pred_region
    _
  $region9: #{lstm_model_forward.1} parent=0 // pred_fallthru
    _
  // Predicated region
  $region10: #{lstm_model_forward.1} parent=0 // pred_check
    _
  $region11: #{lstm_model_forward.1} parent=0 // pred_check_branch
    %27 = sbr.rel (0) target = $region13
  $region12: #{lstm_model_forward.1} parent=0 // pred_region
    _
  $region13: #{lstm_model_forward.1} parent=0 // pred_fallthru
    _
  // Predicated region
  $region14: #{lstm_model_forward.1} parent=0 // pred_check
    _
  $region15: #{lstm_model_forward.1} parent=0 // pred_check_branch
    %29 = sbr.rel (0) target = $region17
  $region16: #{lstm_model_forward.1} parent=0 // pred_region
    _
  $region17: #{lstm_model_forward.1} parent=0 // pred_fallthru
    _
  // Predicated region
  $region18: #{lstm_model_forward.1} parent=0 // pred_check
    _
  $region19: #{lstm_model_forward.1} parent=0 // pred_check_branch
    %31 = sbr.rel (0) target = $region21
  $region20: #{lstm_model_forward.1} parent=0 // pred_region
    _
  $region21: #{lstm_model_forward.1} parent=0 // pred_fallthru
    _
  // Predicated region
  $region22: #{lstm_model_forward.1} parent=0 // pred_check
    _
  $region23: #{lstm_model_forward.1} parent=0 // pred_check_branch
    %33 = sbr.rel (0) target = $region25
  $region24: #{lstm_model_forward.1} parent=0 // pred_region
    _
  $region25: #{lstm_model_forward.1} parent=0 // pred_fallthru
    _
  // Predicated region
  $region26: #{lstm_model_forward.1} parent=0 // pred_check
    _
  $region27: #{lstm_model_forward.1} parent=0 // pred_check_branch
    %35 = sbr.rel (0) target = $region29
  $region28: #{lstm_model_forward.1} parent=0 // pred_region
    _
  $region29: #{lstm_model_forward.1} parent=0 // pred_fallthru
    _
  %s36 = sadd.s32 0, 0
  %s37 = smul.u32 8, %s36
  %p38 = scmp.lt.s32.totalorder %s37, 7
  %s39 = scalar_select %p38, %s37, 7
  %s40 = smul.addr %s39, 8
  %s41 = scalar_lea.vmem %s0, %s40
  %s42 = sadd.s32 0, 0
  %s43 = smul.u32 8, %s42
  %p44 = scmp.lt.s32.totalorder %s43, 7
  %s45 = scalar_select %p44, %s43, 7
  %s46 = smul.addr %s45, 8
  %s47 = scalar_lea.vmem %s7, %s46
  %s48 = sadd.s32 0, 0
  %s49 = smul.u32 8, %s48
  %p50 = scmp.lt.s32.totalorder %s49, 7
  %s51 = scalar_select %p50, %s49, 7
  %s52 = smul.addr %s51, 8
  %s53 = scalar_lea.vmem %s0, %s52
  %s54 = sadd.s32 0, 0
  %s55 = smul.u32 8, %s54
  %s56 = sadd.s32 0, 0
  %s57 = smul.u32 8, %s56
  %p58 = scmp.lt.s32.totalorder %s57, 7
  %s59 = scalar_select %p58, %s57, 7
  %s60 = smul.addr %s59, 8
  %s61 = scalar_lea.vmem %s7, %s60
  %s62 = sadd.s32 0, 0
  %s63 = smul.u32 8, %s62
  %p64 = scmp.eq.s32.totalorder 0, 0
  // Predicated region
  $region30: #{lstm_model_forward.1} parent=0 // pred_check
    %p65 = pneg %p64
  $region31: #{lstm_model_forward.1} parent=0 // pred_check_branch
    %67 = sbr.rel (%p65) target = $region33
  $region32: #{lstm_model_forward.1} parent=0 // pred_region
    %68 = vst [vmem:[#allocation4] sm:$0xff] 0.0
    %69 = vst [vmem:[#allocation4 + $0x8] sm:$0xff] 0.0
    %70 = vst [vmem:[#allocation5] sm:$0xff] 0.0
    %71 = vst [vmem:[#allocation6] sm:$0xff] 0.0
  $region33: #{lstm_model_forward.1} parent=0 // pred_fallthru
    _
  %v72 = vld [vmem:[%s53] sm:$0xff]
  %v73 = vld [vmem:[%s53 + $0x8] sm:$0xff]
  %v74 = vld [vmem:[%s53 + $0x10] sm:$0xff]
  %v75 = vld [vmem:[%s53 + $0x18] sm:$0xff]
  %v76 = vld [vmem:[%s53 + $0x20] sm:$0xff]
  %v77 = vld [vmem:[%s53 + $0x28] sm:$0xff]
  %v78 = vld [vmem:[%s53 + $0x30] sm:$0xff]
  %v79 = vld [vmem:[%s53 + $0x38] sm:$0xff]
  %v80 = vld [vmem:[%s1] sm:$0xff]
  %v81 = vld [vmem:[%s1 + $0x8] sm:$0xff]
  %v82 = vld [vmem:[%s1 + $0x10] sm:$0xff]
  %v83 = vld [vmem:[%s1 + $0x18] sm:$0xff]
  %v84 = vld [vmem:[%s1 + $0x20] sm:$0xff]
  %v85 = vld [vmem:[%s1 + $0x28] sm:$0xff]
  %v86 = vld [vmem:[%s1 + $0x30] sm:$0xff]
  %v87 = vld [vmem:[%s1 + $0x38] sm:$0xff]
  %v88 = vld [vmem:[%s1 + $0x40] sm:$0xff]
  %v89 = vld [vmem:[%s1 + $0x48] sm:$0xff]
  %v90 = vld [vmem:[%s1 + $0x50] sm:$0xff]
  %v91 = vld [vmem:[%s1 + $0x58] sm:$0xff]
  %v92 = vld [vmem:[%s1 + $0x60] sm:$0x3f]
  %v93 = vld [vmem:[%s1 + $0x68] sm:$0x3f]
  %v94 = vld [vmem:[%s1 + $0x70] sm:$0x3f]
  %v95 = vld [vmem:[%s1 + $0x78] sm:$0x3f]
  %v96 = vld [vmem:[%s2] sm:$0xf]
  %v98 = vlaneseq
  %v99 = vshrl.u32 %v98, 7
  %v100 = vsub.s32 0, %v99
  %v101 = vrot.slane %v96, %v100
  %v102 = vlaneseq
  %v103 = vshrl.u32 %v102, 7
  %v104 = vsub.s32 1, %v103
  %v105 = vrot.slane %v96, %v104
  %v106 = vlaneseq
  %v107 = vshrl.u32 %v106, 7
  %v108 = vsub.s32 2, %v107
  %v109 = vrot.slane %v96, %v108
  %v110 = vlaneseq
  %v111 = vshrl.u32 %v110, 7
  %v112 = vsub.s32 3, %v111
  %v113 = vrot.slane %v96, %v112
  %vm118 = vcmask 244736
  %v120 = vsel %vm118, %v72, 0
  %v123 = vsel %vm118, %v73, 0
  %v126 = vsel %vm118, %v74, 0
  %v129 = vsel %vm118, %v75, 0
  %v132 = vsel %vm118, %v76, 0
  %v135 = vsel %vm118, %v77, 0
  %v138 = vsel %vm118, %v78, 0
  %v141 = vsel %vm118, %v79, 0
  %vm143 = vcmask 1045504
  %v145 = vsel %vm143, %v92, 0
  %v148 = vsel %vm143, %v93, 0
  %v151 = vsel %vm143, %v94, 0
  %v154 = vsel %vm143, %v95, 0
  %156 = vmatprep.subr.mxu0 %v81
  %157 = vmatpush1.msra.mxu0 %v80
  %158 = vmatprep.subr.mxu0 %v85
  %159 = vmatpush1.msra.mxu0 %v84
  %160 = vmatprep.subr.mxu0 %v89
  %161 = vmatpush1.msra.mxu0 %v88
  %162 = vmatprep.subr.mxu0 %v148
  %163 = vmatpush1.msra.mxu0 %v145
  %164 = vmatprep.subr.mxu0 0.0
  %165 = vmatpush1.msra.mxu0 0.0
  %166 = vmatprep.subr.mxu0 0.0
  %167 = vmatpush1.msra.mxu0 0.0
  %168 = vmatprep.subr.mxu0 0.0
  %169 = vmatpush1.msra.mxu0 0.0
  %170 = vmatprep.subr.mxu0 0.0
  %171 = vmatpush1.msra.mxu0 0.0
  %172 = vmatprep.subr.mxu0 0.0
  %173 = vmatpush1.msra.mxu0 0.0
  %174 = vmatprep.subr.mxu0 0.0
  %175 = vmatpush1.msra.mxu0 0.0
  %176 = vmatprep.subr.mxu0 0.0
  %177 = vmatpush1.msra.mxu0 0.0
  %178 = vmatprep.subr.mxu0 0.0
  %179 = vmatpush1.msra.mxu0 0.0
  %180 = vmatprep.subr.mxu0 0.0
  %181 = vmatpush1.msra.mxu0 0.0
  %182 = vmatprep.subr.mxu0 0.0
  %183 = vmatpush1.msra.mxu0 0.0
  %184 = vmatprep.subr.mxu0 0.0
  %185 = vmatpush1.msra.mxu0 0.0
  %186 = vmatprep.subr.mxu0 0.0
  %187 = vmatpush1.msra.mxu0 0.0
  %188 = vmatprep.subr.mxu0 0.0
  %189 = vmatpush1.msra.mxu0 0.0
  %190 = vmatprep.subr.mxu0 0.0
  %191 = vmatpush1.msra.mxu0 0.0
  %192 = vmatprep.subr.mxu0 0.0
  %193 = vmatpush1.msra.mxu0 0.0
  %194 = vmatprep.subr.mxu0 0.0
  %195 = vmatpush1.msra.mxu0 0.0
  %196 = vmatprep.subr.mxu0 0.0
  %197 = vmatpush1.msra.mxu0 0.0
  %198 = vmatprep.subr.mxu0 0.0
  %199 = vmatpush1.msra.mxu0 0.0
  %200 = vmatprep.subr.mxu0 0.0
  %201 = vmatpush1.msra.mxu0 0.0
  %202 = vmatprep.subr.mxu0 0.0
  %203 = vmatpush1.msra.mxu0 0.0
  %204 = vmatprep.subr.mxu0 0.0
  %205 = vmatpush1.msra.mxu0 0.0
  %206 = vmatprep.subr.mxu0 0.0
  %207 = vmatpush1.msra.mxu0 0.0
  %208 = vmatprep.subr.mxu0 0.0
  %209 = vmatpush1.msra.mxu0 0.0
  %210 = vmatprep.subr.mxu0 0.0
  %211 = vmatpush1.msra.mxu0 0.0
  %212 = vmatprep.subr.mxu0 0.0
  %213 = vmatpush1.msra.mxu0 0.0
  %214 = vmatprep.subr.mxu0 0.0
  %215 = vmatpush1.msra.mxu0 0.0
  %216 = vmatprep.subr.mxu0 0.0
  %217 = vmatpush1.msra.mxu0 0.0
  %218 = vmatprep.subr.mxu0 0.0
  %219 = vmatpush1.msra.mxu0 0.0
  %220 = vmatprep.mubr.f32.mxu0 0.0
  %221 = vmatmul.mubr.f32.gmra.mrb[0].mxu0 %v120
  %v222 = vpop.f32.mrb[0].mxu0
  %v223 = vadd.f32 %v101, %v222
  %v224 = vpop.f32.mrb[0].mxu0
  %v225 = vadd.f32 %v105, %v224
  %226 = vmatprep.mubr.f32.mxu0 0.0
  %227 = vmatmul.mubr.f32.gmra.mrb[0].mxu0 %v123
  %v228 = vpop.f32.mrb[0].mxu0
  %v229 = vadd.f32 %v101, %v228
  %v230 = vpop.f32.mrb[0].mxu0
  %v231 = vadd.f32 %v105, %v230
  %232 = vmatprep.mubr.f32.mxu0 0.0
  %233 = vmatmul.mubr.f32.gmra.mrb[0].mxu0 %v126
  %v234 = vpop.f32.mrb[0].mxu0
  %v235 = vadd.f32 %v101, %v234
  %v236 = vpop.f32.mrb[0].mxu0
  %v237 = vadd.f32 %v105, %v236
  %238 = vmatprep.mubr.f32.mxu0 0.0
  %239 = vmatmul.mubr.f32.gmra.mrb[0].mxu0 %v129
  %v240 = vpop.f32.mrb[0].mxu0
  %v241 = vadd.f32 %v101, %v240
  %v242 = vpop.f32.mrb[0].mxu0
  %v243 = vadd.f32 %v105, %v242
  %244 = vmatprep.mubr.f32.mxu0 0.0
  %245 = vmatmul.mubr.f32.gmra.mrb[0].mxu0 %v132
  %v246 = vpop.f32.mrb[0].mxu0
  %v247 = vadd.f32 %v101, %v246
  %v248 = vpop.f32.mrb[0].mxu0
  %v249 = vadd.f32 %v105, %v248
  %250 = vmatprep.mubr.f32.mxu0 0.0
  %251 = vmatmul.mubr.f32.gmra.mrb[0].mxu0 %v135
  %v252 = vpop.f32.mrb[0].mxu0
  %v253 = vadd.f32 %v101, %v252
  %v254 = vpop.f32.mrb[0].mxu0
  %v255 = vadd.f32 %v105, %v254
  %256 = vmatprep.mubr.f32.mxu0 0.0
  %257 = vmatmul.mubr.f32.gmra.mrb[0].mxu0 %v138
  %v258 = vpop.f32.mrb[0].mxu0
  %v259 = vadd.f32 %v101, %v258
  %v260 = vpop.f32.mrb[0].mxu0
  %v261 = vadd.f32 %v105, %v260
  %262 = vmatprep.mubr.f32.mxu0 0.0
  %263 = vmatmul.mubr.f32.gmra.mrb[0].mxu0 %v141
  %v264 = vpop.f32.mrb[0].mxu0
  %v265 = vadd.f32 %v101, %v264
  %v266 = vpop.f32.mrb[0].mxu0
  %v267 = vadd.f32 %v105, %v266
  %268 = vdwg.mxu0
  %269 = vmatprep.subr.mxu0 %v83
  %270 = vmatpush1.msra.mxu0 %v82
  %271 = vmatprep.subr.mxu0 %v87
  %272 = vmatpush1.msra.mxu0 %v86
  %273 = vmatprep.subr.mxu0 %v91
  %274 = vmatpush1.msra.mxu0 %v90
  %275 = vmatprep.subr.mxu0 %v154
  %276 = vmatpush1.msra.mxu0 %v151
  %277 = vmatprep.subr.mxu0 0.0
  %278 = vmatpush1.msra.mxu0 0.0
  %279 = vmatprep.subr.mxu0 0.0
  %280 = vmatpush1.msra.mxu0 0.0
  %281 = vmatprep.subr.mxu0 0.0
  %282 = vmatpush1.msra.mxu0 0.0
  %283 = vmatprep.subr.mxu0 0.0
  %284 = vmatpush1.msra.mxu0 0.0
  %285 = vmatprep.subr.mxu0 0.0
  %286 = vmatpush1.msra.mxu0 0.0
  %287 = vmatprep.subr.mxu0 0.0
  %288 = vmatpush1.msra.mxu0 0.0
  %289 = vmatprep.subr.mxu0 0.0
  %290 = vmatpush1.msra.mxu0 0.0
  %291 = vmatprep.subr.mxu0 0.0
  %292 = vmatpush1.msra.mxu0 0.0
  %293 = vmatprep.subr.mxu0 0.0
  %294 = vmatpush1.msra.mxu0 0.0
  %295 = vmatprep.subr.mxu0 0.0
  %296 = vmatpush1.msra.mxu0 0.0
  %297 = vmatprep.subr.mxu0 0.0
  %298 = vmatpush1.msra.mxu0 0.0
  %299 = vmatprep.subr.mxu0 0.0
  %300 = vmatpush1.msra.mxu0 0.0
  %301 = vmatprep.subr.mxu0 0.0
  %302 = vmatpush1.msra.mxu0 0.0
  %303 = vmatprep.subr.mxu0 0.0
  %304 = vmatpush1.msra.mxu0 0.0
  %305 = vmatprep.subr.mxu0 0.0
  %306 = vmatpush1.msra.mxu0 0.0
  %307 = vmatprep.subr.mxu0 0.0
  %308 = vmatpush1.msra.mxu0 0.0
  %309 = vmatprep.subr.mxu0 0.0
  %310 = vmatpush1.msra.mxu0 0.0
  %311 = vmatprep.subr.mxu0 0.0
  %312 = vmatpush1.msra.mxu0 0.0
  %313 = vmatprep.subr.mxu0 0.0
  %314 = vmatpush1.msra.mxu0 0.0
  %315 = vmatprep.subr.mxu0 0.0
  %316 = vmatpush1.msra.mxu0 0.0
  %317 = vmatprep.subr.mxu0 0.0
  %318 = vmatpush1.msra.mxu0 0.0
  %319 = vmatprep.subr.mxu0 0.0
  %320 = vmatpush1.msra.mxu0 0.0
  %321 = vmatprep.subr.mxu0 0.0
  %322 = vmatpush1.msra.mxu0 0.0
  %323 = vmatprep.subr.mxu0 0.0
  %324 = vmatpush1.msra.mxu0 0.0
  %325 = vmatprep.subr.mxu0 0.0
  %326 = vmatpush1.msra.mxu0 0.0
  %327 = vmatprep.subr.mxu0 0.0
  %328 = vmatpush1.msra.mxu0 0.0
  %329 = vmatprep.subr.mxu0 0.0
  %330 = vmatpush1.msra.mxu0 0.0
  %331 = vmatprep.subr.mxu0 0.0
  %332 = vmatpush1.msra.mxu0 0.0
  %333 = vmatprep.mubr.f32.mxu0 0.0
  %334 = vmatmul.mubr.f32.gmra.mrb[0].mxu0 %v120
  %v335 = vpop.f32.mrb[0].mxu0
  %v336 = vadd.f32 %v109, %v335
  %v337 = vpop.f32.mrb[0].mxu0
  %v338 = vadd.f32 %v113, %v337
  %339 = vmatprep.mubr.f32.mxu0 0.0
  %340 = vmatmul.mubr.f32.gmra.mrb[0].mxu0 %v123
  %v341 = vpop.f32.mrb[0].mxu0
  %v342 = vadd.f32 %v109, %v341
  %v343 = vpop.f32.mrb[0].mxu0
  %v344 = vadd.f32 %v113, %v343
  %345 = vmatprep.mubr.f32.mxu0 0.0
  %346 = vmatmul.mubr.f32.gmra.mrb[0].mxu0 %v126
  %v347 = vpop.f32.mrb[0].mxu0
  %v348 = vadd.f32 %v109, %v347
  %v349 = vpop.f32.mrb[0].mxu0
  %v350 = vadd.f32 %v113, %v349
  %351 = vmatprep.mubr.f32.mxu0 0.0
  %352 = vmatmul.mubr.f32.gmra.mrb[0].mxu0 %v129
  %v353 = vpop.f32.mrb[0].mxu0
  %v354 = vadd.f32 %v109, %v353
  %v355 = vpop.f32.mrb[0].mxu0
  %v356 = vadd.f32 %v113, %v355
  %357 = vmatprep.mubr.f32.mxu0 0.0
  %358 = vmatmul.mubr.f32.gmra.mrb[0].mxu0 %v132
  %v359 = vpop.f32.mrb[0].mxu0
  %v360 = vadd.f32 %v109, %v359
  %v361 = vpop.f32.mrb[0].mxu0
  %v362 = vadd.f32 %v113, %v361
  %363 = vmatprep.mubr.f32.mxu0 0.0
  %364 = vmatmul.mubr.f32.gmra.mrb[0].mxu0 %v135
  %v365 = vpop.f32.mrb[0].mxu0
  %v366 = vadd.f32 %v109, %v365
  %v367 = vpop.f32.mrb[0].mxu0
  %v368 = vadd.f32 %v113, %v367
  %369 = vmatprep.mubr.f32.mxu0 0.0
  %370 = vmatmul.mubr.f32.gmra.mrb[0].mxu0 %v138
  %v371 = vpop.f32.mrb[0].mxu0
  %v372 = vadd.f32 %v109, %v371
  %v373 = vpop.f32.mrb[0].mxu0
  %v374 = vadd.f32 %v113, %v373
  %375 = vmatprep.mubr.f32.mxu0 0.0
  %376 = vmatmul.mubr.f32.gmra.mrb[0].mxu0 %v141
  %v377 = vpop.f32.mrb[0].mxu0
  %v378 = vadd.f32 %v109, %v377
  %v379 = vpop.f32.mrb[0].mxu0
  %v380 = vadd.f32 %v113, %v379
  %381 = vdwg.mxu0
  %382 = vst [vmem:[#allocation2] sm:$0xff] %v223
  %383 = vst [vmem:[#allocation2 + $0x8] sm:$0xff] %v225
  %384 = vst [vmem:[#allocation2 + $0x10] sm:$0xff] %v336
  %385 = vst [vmem:[#allocation2 + $0x18] sm:$0xff] %v338
  %386 = vst [vmem:[#allocation2 + $0x20] sm:$0xff] %v229
  %387 = vst [vmem:[#allocation2 + $0x28] sm:$0xff] %v231
  %388 = vst [vmem:[#allocation2 + $0x30] sm:$0xff] %v342
  %389 = vst [vmem:[#allocation2 + $0x38] sm:$0xff] %v344
  %390 = vst [vmem:[#allocation2 + $0x40] sm:$0xff] %v235
  %391 = vst [vmem:[#allocation2 + $0x48] sm:$0xff] %v237
  %392 = vst [vmem:[#allocation2 + $0x50] sm:$0xff] %v348
  %393 = vst [vmem:[#allocation2 + $0x58] sm:$0xff] %v350
  %394 = vst [vmem:[#allocation2 + $0x60] sm:$0xff] %v241
  %395 = vst [vmem:[#allocation2 + $0x68] sm:$0xff] %v243
  %396 = vst [vmem:[#allocation2 + $0x70] sm:$0xff] %v354
  %397 = vst [vmem:[#allocation2 + $0x78] sm:$0xff] %v356
  %398 = vst [vmem:[#allocation2 + $0x80] sm:$0xff] %v247
  %399 = vst [vmem:[#allocation2 + $0x88] sm:$0xff] %v249
  %400 = vst [vmem:[#allocation2 + $0x90] sm:$0xff] %v360
  %401 = vst [vmem:[#allocation2 + $0x98] sm:$0xff] %v362
  %402 = vst [vmem:[#allocation2 + $0xa0] sm:$0xff] %v253
  %403 = vst [vmem:[#allocation2 + $0xa8] sm:$0xff] %v255
  %404 = vst [vmem:[#allocation2 + $0xb0] sm:$0xff] %v366
  %405 = vst [vmem:[#allocation2 + $0xb8] sm:$0xff] %v368
  %406 = vst [vmem:[#allocation2 + $0xc0] sm:$0xff] %v259
  %407 = vst [vmem:[#allocation2 + $0xc8] sm:$0xff] %v261
  %408 = vst [vmem:[#allocation2 + $0xd0] sm:$0xff] %v372
  %409 = vst [vmem:[#allocation2 + $0xd8] sm:$0xff] %v374
  %410 = vst [vmem:[#allocation2 + $0xe0] sm:$0xff] %v265
  %411 = vst [vmem:[#allocation2 + $0xe8] sm:$0xff] %v267
  %412 = vst [vmem:[#allocation2 + $0xf0] sm:$0xff] %v378
  %413 = vst [vmem:[#allocation2 + $0xf8] sm:$0xff] %v380
  %v414 = vld [vmem:[#allocation2] sm:$0xff]
  %v415 = vld [vmem:[#allocation2 + $0x8] sm:$0xff]
  %v416 = vld [vmem:[#allocation2 + $0x10] sm:$0xff]
  %v417 = vld [vmem:[#allocation2 + $0x18] sm:$0xff]
  %v418 = vld [vmem:[#allocation4] sm:$0xff]
  %v419 = vld [vmem:[%s3] sm:$0xff]
  %v420 = vld [vmem:[%s3 + $0x8] sm:$0xff]
  %v421 = vld [vmem:[%s3 + $0x10] sm:$0xff]
  %v422 = vld [vmem:[%s3 + $0x18] sm:$0xff]
  %v423 = vld [vmem:[%s3 + $0x40] sm:$0xff]
  %v424 = vld [vmem:[%s3 + $0x48] sm:$0xff]
  %v425 = vld [vmem:[%s3 + $0x50] sm:$0xff]
  %v426 = vld [vmem:[%s3 + $0x58] sm:$0xff]
  %v427 = vld [vmem:[%s3 + $0x80] sm:$0xff]
  %v428 = vld [vmem:[%s3 + $0x88] sm:$0xff]
  %v429 = vld [vmem:[%s3 + $0x90] sm:$0xff]
  %v430 = vld [vmem:[%s3 + $0x98] sm:$0xff]
  %v431 = vld [vmem:[%s3 + $0xc0] sm:$0xff]
  %v432 = vld [vmem:[%s3 + $0xc8] sm:$0xff]
  %v433 = vld [vmem:[%s3 + $0xd0] sm:$0xff]
  %v434 = vld [vmem:[%s3 + $0xd8] sm:$0xff]
  %v435 = vld [vmem:[%s3 + $0x100] sm:$0xff]
  %v436 = vld [vmem:[%s3 + $0x108] sm:$0xff]
  %v437 = vld [vmem:[%s3 + $0x110] sm:$0xff]
  %v438 = vld [vmem:[%s3 + $0x118] sm:$0xff]
  %v439 = vld [vmem:[%s3 + $0x140] sm:$0xff]
  %v440 = vld [vmem:[%s3 + $0x148] sm:$0xff]
  %v441 = vld [vmem:[%s3 + $0x150] sm:$0xff]
  %v442 = vld [vmem:[%s3 + $0x158] sm:$0xff]
  %v443 = vld [vmem:[%s3 + $0x180] sm:$0xff]
  %v444 = vld [vmem:[%s3 + $0x188] sm:$0xff]
  %v445 = vld [vmem:[%s3 + $0x190] sm:$0xff]
  %v446 = vld [vmem:[%s3 + $0x198] sm:$0xff]
  %v447 = vld [vmem:[%s3 + $0x1c0] sm:$0xff]
  %v448 = vld [vmem:[%s3 + $0x1c8] sm:$0xff]
  %v449 = vld [vmem:[%s3 + $0x1d0] sm:$0xff]
  %v450 = vld [vmem:[%s3 + $0x1d8] sm:$0xff]
  %v451 = vld [vmem:[%s3 + $0x200] sm:$0xff]
  %v452 = vld [vmem:[%s3 + $0x208] sm:$0xff]
  %v453 = vld [vmem:[%s3 + $0x210] sm:$0xff]
  %v454 = vld [vmem:[%s3 + $0x218] sm:$0xff]
  %v455 = vld [vmem:[%s3 + $0x240] sm:$0xff]
  %v456 = vld [vmem:[%s3 + $0x248] sm:$0xff]
  %v457 = vld [vmem:[%s3 + $0x250] sm:$0xff]
  %v458 = vld [vmem:[%s3 + $0x258] sm:$0xff]
  %v459 = vld [vmem:[%s3 + $0x280] sm:$0xff]
  %v460 = vld [vmem:[%s3 + $0x288] sm:$0xff]
  %v461 = vld [vmem:[%s3 + $0x290] sm:$0xff]
  %v462 = vld [vmem:[%s3 + $0x298] sm:$0xff]
  %v463 = vld [vmem:[%s3 + $0x2c0] sm:$0xff]
  %v464 = vld [vmem:[%s3 + $0x2c8] sm:$0xff]
  %v465 = vld [vmem:[%s3 + $0x2d0] sm:$0xff]
  %v466 = vld [vmem:[%s3 + $0x2d8] sm:$0xff]
  %v467 = vld [vmem:[%s3 + $0x300] sm:$0xff]
  %v468 = vld [vmem:[%s3 + $0x308] sm:$0xff]
  %v469 = vld [vmem:[%s3 + $0x310] sm:$0xff]
  %v470 = vld [vmem:[%s3 + $0x318] sm:$0xff]
  %v471 = vld [vmem:[%s3 + $0x340] sm:$0xff]
  %v472 = vld [vmem:[%s3 + $0x348] sm:$0xff]
  %v473 = vld [vmem:[%s3 + $0x350] sm:$0xff]
  %v474 = vld [vmem:[%s3 + $0x358] sm:$0xff]
  %v475 = vld [vmem:[%s3 + $0x380] sm:$0xff]
  %v476 = vld [vmem:[%s3 + $0x388] sm:$0xff]
  %v477 = vld [vmem:[%s3 + $0x390] sm:$0xff]
  %v478 = vld [vmem:[%s3 + $0x398] sm:$0xff]
  %v479 = vld [vmem:[%s3 + $0x3c0] sm:$0xff]
  %v480 = vld [vmem:[%s3 + $0x3c8] sm:$0xff]
  %v481 = vld [vmem:[%s3 + $0x3d0] sm:$0xff]
  %v482 = vld [vmem:[%s3 + $0x3d8] sm:$0xff]
  %483 = vmatprep.subr.mxu0 %v420
  %484 = vmatpush1.msra.mxu0 %v419
  %485 = vmatprep.subr.mxu0 %v424
  %486 = vmatpush1.msra.mxu0 %v423
  %487 = vmatprep.subr.mxu0 %v428
  %488 = vmatpush1.msra.mxu0 %v427
  %489 = vmatprep.subr.mxu0 %v432
  %490 = vmatpush1.msra.mxu0 %v431
  %491 = vmatprep.subr.mxu0 %v436
  %492 = vmatpush1.msra.mxu0 %v435
  %493 = vmatprep.subr.mxu0 %v440
  %494 = vmatpush1.msra.mxu0 %v439
  %495 = vmatprep.subr.mxu0 %v444
  %496 = vmatpush1.msra.mxu0 %v443
  %497 = vmatprep.subr.mxu0 %v448
  %498 = vmatpush1.msra.mxu0 %v447
  %499 = vmatprep.subr.mxu0 %v452
  %500 = vmatpush1.msra.mxu0 %v451
  %501 = vmatprep.subr.mxu0 %v456
  %502 = vmatpush1.msra.mxu0 %v455
  %503 = vmatprep.subr.mxu0 %v460
  %504 = vmatpush1.msra.mxu0 %v459
  %505 = vmatprep.subr.mxu0 %v464
  %506 = vmatpush1.msra.mxu0 %v463
  %507 = vmatprep.subr.mxu0 %v468
  %508 = vmatpush1.msra.mxu0 %v467
  %509 = vmatprep.subr.mxu0 %v472
  %510 = vmatpush1.msra.mxu0 %v471
  %511 = vmatprep.subr.mxu0 %v476
  %512 = vmatpush1.msra.mxu0 %v475
  %513 = vmatprep.subr.mxu0 %v480
  %514 = vmatpush1.msra.mxu0 %v479
  %515 = vmatprep.subr.mxu0 0.0
  %516 = vmatpush1.msra.mxu0 0.0
  %517 = vmatprep.subr.mxu0 0.0
  %518 = vmatpush1.msra.mxu0 0.0
  %519 = vmatprep.subr.mxu0 0.0
  %520 = vmatpush1.msra.mxu0 0.0
  %521 = vmatprep.subr.mxu0 0.0
  %522 = vmatpush1.msra.mxu0 0.0
  %523 = vmatprep.subr.mxu0 0.0
  %524 = vmatpush1.msra.mxu0 0.0
  %525 = vmatprep.subr.mxu0 0.0
  %526 = vmatpush1.msra.mxu0 0.0
  %527 = vmatprep.subr.mxu0 0.0
  %528 = vmatpush1.msra.mxu0 0.0
  %529 = vmatprep.subr.mxu0 0.0
  %530 = vmatpush1.msra.mxu0 0.0
  %531 = vmatprep.subr.mxu0 0.0
  %532 = vmatpush1.msra.mxu0 0.0
  %533 = vmatprep.subr.mxu0 0.0
  %534 = vmatpush1.msra.mxu0 0.0
  %535 = vmatprep.subr.mxu0 0.0
  %536 = vmatpush1.msra.mxu0 0.0
  %537 = vmatprep.subr.mxu0 0.0
  %538 = vmatpush1.msra.mxu0 0.0
  %539 = vmatprep.subr.mxu0 0.0
  %540 = vmatpush1.msra.mxu0 0.0
  %541 = vmatprep.subr.mxu0 0.0
  %542 = vmatpush1.msra.mxu0 0.0
  %543 = vmatprep.subr.mxu0 0.0
  %544 = vmatpush1.msra.mxu0 0.0
  %545 = vmatprep.subr.mxu0 0.0
  %546 = vmatpush1.msra.mxu0 0.0
  %547 = vmatprep.mubr.f32.mxu0 0.0
  %548 = vmatmul.mubr.f32.gmra.mrb[0].mxu0 %v418
  %v549 = vpop.f32.mrb[0].mxu0
  %v550 = vadd.f32 0.0, %v549
  %v551 = vpop.f32.mrb[0].mxu0
  %v552 = vadd.f32 0.0, %v551
  %553 = vdwg.mxu0
  %554 = vmatprep.subr.mxu0 %v422
  %555 = vmatpush1.msra.mxu0 %v421
  %556 = vmatprep.subr.mxu0 %v426
  %557 = vmatpush1.msra.mxu0 %v425
  %558 = vmatprep.subr.mxu0 %v430
  %559 = vmatpush1.msra.mxu0 %v429
  %560 = vmatprep.subr.mxu0 %v434
  %561 = vmatpush1.msra.mxu0 %v433
  %562 = vmatprep.subr.mxu0 %v438
  %563 = vmatpush1.msra.mxu0 %v437
  %564 = vmatprep.subr.mxu0 %v442
  %565 = vmatpush1.msra.mxu0 %v441
  %566 = vmatprep.subr.mxu0 %v446
  %567 = vmatpush1.msra.mxu0 %v445
  %568 = vmatprep.subr.mxu0 %v450
  %569 = vmatpush1.msra.mxu0 %v449
  %570 = vmatprep.subr.mxu0 %v454
  %571 = vmatpush1.msra.mxu0 %v453
  %572 = vmatprep.subr.mxu0 %v458
  %573 = vmatpush1.msra.mxu0 %v457
  %574 = vmatprep.subr.mxu0 %v462
  %575 = vmatpush1.msra.mxu0 %v461
  %576 = vmatprep.subr.mxu0 %v466
  %577 = vmatpush1.msra.mxu0 %v465
  %578 = vmatprep.subr.mxu0 %v470
  %579 = vmatpush1.msra.mxu0 %v469
  %580 = vmatprep.subr.mxu0 %v474
  %581 = vmatpush1.msra.mxu0 %v473
  %582 = vmatprep.subr.mxu0 %v478
  %583 = vmatpush1.msra.mxu0 %v477
  %584 = vmatprep.subr.mxu0 %v482
  %585 = vmatpush1.msra.mxu0 %v481
  %586 = vmatprep.subr.mxu0 0.0
  %587 = vmatpush1.msra.mxu0 0.0
  %588 = vmatprep.subr.mxu0 0.0
  %589 = vmatpush1.msra.mxu0 0.0
  %590 = vmatprep.subr.mxu0 0.0
  %591 = vmatpush1.msra.mxu0 0.0
  %592 = vmatprep.subr.mxu0 0.0
  %593 = vmatpush1.msra.mxu0 0.0
  %594 = vmatprep.subr.mxu0 0.0
  %595 = vmatpush1.msra.mxu0 0.0
  %596 = vmatprep.subr.mxu0 0.0
  %597 = vmatpush1.msra.mxu0 0.0
  %598 = vmatprep.subr.mxu0 0.0
  %599 = vmatpush1.msra.mxu0 0.0
  %600 = vmatprep.subr.mxu0 0.0
  %601 = vmatpush1.msra.mxu0 0.0
  %602 = vmatprep.subr.mxu0 0.0
  %603 = vmatpush1.msra.mxu0 0.0
  %604 = vmatprep.subr.mxu0 0.0
  %605 = vmatpush1.msra.mxu0 0.0
  %606 = vmatprep.subr.mxu0 0.0
  %607 = vmatpush1.msra.mxu0 0.0
  %608 = vmatprep.subr.mxu0 0.0
  %609 = vmatpush1.msra.mxu0 0.0
  %610 = vmatprep.subr.mxu0 0.0
  %611 = vmatpush1.msra.mxu0 0.0
  %612 = vmatprep.subr.mxu0 0.0
  %613 = vmatpush1.msra.mxu0 0.0
  %614 = vmatprep.subr.mxu0 0.0
  %615 = vmatpush1.msra.mxu0 0.0
  %616 = vmatprep.subr.mxu0 0.0
  %617 = vmatpush1.msra.mxu0 0.0
  %618 = vmatprep.mubr.f32.mxu0 0.0
  %619 = vmatmul.mubr.f32.gmra.mrb[0].mxu0 %v418
  %v620 = vpop.f32.mrb[0].mxu0
  %v621 = vadd.f32 0.0, %v620
  %v622 = vpop.f32.mrb[0].mxu0
  %v623 = vadd.f32 0.0, %v622
  %624 = vdwg.mxu0
  %v625 = vadd.f32 %v414, %v550
  %v626 = vadd.f32 %v415, %v552
  %v627 = vadd.f32 %v416, %v621
  %v628 = vadd.f32 %v417, %v623
  %v629 = vld [vmem:[#allocation5] sm:$0xff]
  %v630 = vxor.u32 %v625, 2147483648
  %v631 = vmul.f32 %v630, 1.442695
  %v632 = vpow.pop %v631
  %v633 = vadd.f32 %v632, 1.0
  %v634 = vrcp.pop %v633
  %v635 = vmul.f32 1.0, %v634
  %v636 = vxor.u32 %v626, 2147483648
  %v637 = vmul.f32 %v636, 1.442695
  %v638 = vpow.pop %v637
  %v639 = vadd.f32 %v638, 1.0
  %v640 = vrcp.pop %v639
  %v641 = vmul.f32 1.0, %v640
  %v642 = vtanh.pop %v627
  %v643 = vxor.u32 %v628, 2147483648
  %v644 = vmul.f32 %v643, 1.442695
  %v645 = vpow.pop %v644
  %v646 = vadd.f32 %v645, 1.0
  %v647 = vrcp.pop %v646
  %v648 = vmul.f32 1.0, %v647
  %v649 = vmul.f32 %v641, %v629
  %v650 = vmul.f32 %v635, %v642
  %v651 = vadd.f32 %v649, %v650
  %v652 = vtanh.pop %v651
  %v653 = vmul.f32 %v648, %v652
  %654 = vst [vmem:[#allocation5] sm:$0xff] %v651
  %655 = vst [vmem:[#allocation4] sm:$0xff] %v653
  %v656 = vld [vmem:[#allocation4] sm:$0xff]
  %v657 = vld [vmem:[#allocation4 + $0x8] sm:$0xff]
  %v658 = vld [vmem:[%s3] sm:$0xff]
  %v659 = vld [vmem:[%s3 + $0x8] sm:$0xff]
  %v660 = vld [vmem:[%s3 + $0x10] sm:$0xff]
  %v661 = vld [vmem:[%s3 + $0x18] sm:$0xff]
  %v662 = vld [vmem:[%s3 + $0x20] sm:$0xff]
  %v663 = vld [vmem:[%s3 + $0x28] sm:$0xff]
  %v664 = vld [vmem:[%s3 + $0x30] sm:$0xff]
  %v665 = vld [vmem:[%s3 + $0x38] sm:$0xff]
  %v666 = vld [vmem:[%s3 + $0x40] sm:$0xff]
  %v667 = vld [vmem:[%s3 + $0x48] sm:$0xff]
  %v668 = vld [vmem:[%s3 + $0x50] sm:$0xff]
  %v669 = vld [vmem:[%s3 + $0x58] sm:$0xff]
  %v670 = vld [vmem:[%s3 + $0x60] sm:$0xff]
  %v671 = vld [vmem:[%s3 + $0x68] sm:$0xff]
  %v672 = vld [vmem:[%s3 + $0x70] sm:$0xff]
  %v673 = vld [vmem:[%s3 + $0x78] sm:$0xff]
  %v674 = vld [vmem:[%s3 + $0x80] sm:$0xff]
  %v675 = vld [vmem:[%s3 + $0x88] sm:$0xff]
  %v676 = vld [vmem:[%s3 + $0x90] sm:$0xff]
  %v677 = vld [vmem:[%s3 + $0x98] sm:$0xff]
  %v678 = vld [vmem:[%s3 + $0xa0] sm:$0xff]
  %v679 = vld [vmem:[%s3 + $0xa8] sm:$0xff]
  %v680 = vld [vmem:[%s3 + $0xb0] sm:$0xff]
  %v681 = vld [vmem:[%s3 + $0xb8] sm:$0xff]
  %v682 = vld [vmem:[%s3 + $0xc0] sm:$0xff]
  %v683 = vld [vmem:[%s3 + $0xc8] sm:$0xff]
  %v684 = vld [vmem:[%s3 + $0xd0] sm:$0xff]
  %v685 = vld [vmem:[%s3 + $0xd8] sm:$0xff]
  %v686 = vld [vmem:[%s3 + $0xe0] sm:$0xff]
  %v687 = vld [vmem:[%s3 + $0xe8] sm:$0xff]
  %v688 = vld [vmem:[%s3 + $0xf0] sm:$0xff]
  %v689 = vld [vmem:[%s3 + $0xf8] sm:$0xff]
  %v690 = vld [vmem:[%s3 + $0x100] sm:$0xff]
  %v691 = vld [vmem:[%s3 + $0x108] sm:$0xff]
  %v692 = vld [vmem:[%s3 + $0x110] sm:$0xff]
  %v693 = vld [vmem:[%s3 + $0x118] sm:$0xff]
  %v694 = vld [vmem:[%s3 + $0x120] sm:$0xff]
  %v695 = vld [vmem:[%s3 + $0x128] sm:$0xff]
  %v696 = vld [vmem:[%s3 + $0x130] sm:$0xff]
  %v697 = vld [vmem:[%s3 + $0x138] sm:$0xff]
  %v698 = vld [vmem:[%s3 + $0x140] sm:$0xff]
  %v699 = vld [vmem:[%s3 + $0x148] sm:$0xff]
  %v700 = vld [vmem:[%s3 + $0x150] sm:$0xff]
  %v701 = vld [vmem:[%s3 + $0x158] sm:$0xff]
  %v702 = vld [vmem:[%s3 + $0x160] sm:$0xff]
  %v703 = vld [vmem:[%s3 + $0x168] sm:$0xff]
  %v704 = vld [vmem:[%s3 + $0x170] sm:$0xff]
  %v705 = vld [vmem:[%s3 + $0x178] sm:$0xff]
  %v706 = vld [vmem:[%s3 + $0x180] sm:$0xff]
  %v707 = vld [vmem:[%s3 + $0x188] sm:$0xff]
  %v708 = vld [vmem:[%s3 + $0x190] sm:$0xff]
  %v709 = vld [vmem:[%s3 + $0x198] sm:$0xff]
  %v710 = vld [vmem:[%s3 + $0x1a0] sm:$0xff]
  %v711 = vld [vmem:[%s3 + $0x1a8] sm:$0xff]
  %v712 = vld [vmem:[%s3 + $0x1b0] sm:$0xff]
  %v713 = vld [vmem:[%s3 + $0x1b8] sm:$0xff]
  %v714 = vld [vmem:[%s3 + $0x1c0] sm:$0xff]
  %v715 = vld [vmem:[%s3 + $0x1c8] sm:$0xff]
  %v716 = vld [vmem:[%s3 + $0x1d0] sm:$0xff]
  %v717 = vld [vmem:[%s3 + $0x1d8] sm:$0xff]
  %v718 = vld [vmem:[%s3 + $0x1e0] sm:$0xff]
  %v719 = vld [vmem:[%s3 + $0x1e8] sm:$0xff]
  %v720 = vld [vmem:[%s3 + $0x1f0] sm:$0xff]
  %v721 = vld [vmem:[%s3 + $0x1f8] sm:$0xff]
  %v722 = vld [vmem:[%s3 + $0x200] sm:$0xff]
  %v723 = vld [vmem:[%s3 + $0x208] sm:$0xff]
  %v724 = vld [vmem:[%s3 + $0x210] sm:$0xff]
  %v725 = vld [vmem:[%s3 + $0x218] sm:$0xff]
  %v726 = vld [vmem:[%s3 + $0x220] sm:$0xff]
  %v727 = vld [vmem:[%s3 + $0x228] sm:$0xff]
  %v728 = vld [vmem:[%s3 + $0x230] sm:$0xff]
  %v729 = vld [vmem:[%s3 + $0x238] sm:$0xff]
  %v730 = vld [vmem:[%s3 + $0x240] sm:$0xff]
  %v731 = vld [vmem:[%s3 + $0x248] sm:$0xff]
  %v732 = vld [vmem:[%s3 + $0x250] sm:$0xff]
  %v733 = vld [vmem:[%s3 + $0x258] sm:$0xff]
  %v734 = vld [vmem:[%s3 + $0x260] sm:$0xff]
  %v735 = vld [vmem:[%s3 + $0x268] sm:$0xff]
  %v736 = vld [vmem:[%s3 + $0x270] sm:$0xff]
  %v737 = vld [vmem:[%s3 + $0x278] sm:$0xff]
  %v738 = vld [vmem:[%s3 + $0x280] sm:$0xff]
  %v739 = vld [vmem:[%s3 + $0x288] sm:$0xff]
  %v740 = vld [vmem:[%s3 + $0x290] sm:$0xff]
  %v741 = vld [vmem:[%s3 + $0x298] sm:$0xff]
  %v742 = vld [vmem:[%s3 + $0x2a0] sm:$0xff]
  %v743 = vld [vmem:[%s3 + $0x2a8] sm:$0xff]
  %v744 = vld [vmem:[%s3 + $0x2b0] sm:$0xff]
  %v745 = vld [vmem:[%s3 + $0x2b8] sm:$0xff]
  %v746 = vld [vmem:[%s3 + $0x2c0] sm:$0xff]
  %v747 = vld [vmem:[%s3 + $0x2c8] sm:$0xff]
  %v748 = vld [vmem:[%s3 + $0x2d0] sm:$0xff]
  %v749 = vld [vmem:[%s3 + $0x2d8] sm:$0xff]
  %v750 = vld [vmem:[%s3 + $0x2e0] sm:$0xff]
  %v751 = vld [vmem:[%s3 + $0x2e8] sm:$0xff]
  %v752 = vld [vmem:[%s3 + $0x2f0] sm:$0xff]
  %v753 = vld [vmem:[%s3 + $0x2f8] sm:$0xff]
  %v754 = vld [vmem:[%s3 + $0x300] sm:$0xff]
  %v755 = vld [vmem:[%s3 + $0x308] sm:$0xff]
  %v756 = vld [vmem:[%s3 + $0x310] sm:$0xff]
  %v757 = vld [vmem:[%s3 + $0x318] sm:$0xff]
  %v758 = vld [vmem:[%s3 + $0x320] sm:$0xff]
  %v759 = vld [vmem:[%s3 + $0x328] sm:$0xff]
  %v760 = vld [vmem:[%s3 + $0x330] sm:$0xff]
  %v761 = vld [vmem:[%s3 + $0x338] sm:$0xff]
  %v762 = vld [vmem:[%s3 + $0x340] sm:$0xff]
  %v763 = vld [vmem:[%s3 + $0x348] sm:$0xff]
  %v764 = vld [vmem:[%s3 + $0x350] sm:$0xff]
  %v765 = vld [vmem:[%s3 + $0x358] sm:$0xff]
  %v766 = vld [vmem:[%s3 + $0x360] sm:$0xff]
  %v767 = vld [vmem:[%s3 + $0x368] sm:$0xff]
  %v768 = vld [vmem:[%s3 + $0x370] sm:$0xff]
  %v769 = vld [vmem:[%s3 + $0x378] sm:$0xff]
  %v770 = vld [vmem:[%s3 + $0x380] sm:$0xff]
  %v771 = vld [vmem:[%s3 + $0x388] sm:$0xff]
  %v772 = vld [vmem:[%s3 + $0x390] sm:$0xff]
  %v773 = vld [vmem:[%s3 + $0x398] sm:$0xff]
  %v774 = vld [vmem:[%s3 + $0x3a0] sm:$0xff]
  %v775 = vld [vmem:[%s3 + $0x3a8] sm:$0xff]
  %v776 = vld [vmem:[%s3 + $0x3b0] sm:$0xff]
  %v777 = vld [vmem:[%s3 + $0x3b8] sm:$0xff]
  %v778 = vld [vmem:[%s3 + $0x3c0] sm:$0xff]
  %v779 = vld [vmem:[%s3 + $0x3c8] sm:$0xff]
  %v780 = vld [vmem:[%s3 + $0x3d0] sm:$0xff]
  %v781 = vld [vmem:[%s3 + $0x3d8] sm:$0xff]
  %v782 = vld [vmem:[%s3 + $0x3e0] sm:$0xff]
  %v783 = vld [vmem:[%s3 + $0x3e8] sm:$0xff]
  %v784 = vld [vmem:[%s3 + $0x3f0] sm:$0xff]
  %v785 = vld [vmem:[%s3 + $0x3f8] sm:$0xff]
  %v786 = vld [vmem:[%s3 + $0x400] sm:$0xff]
  %v787 = vld [vmem:[%s3 + $0x408] sm:$0xff]
  %v788 = vld [vmem:[%s3 + $0x410] sm:$0xff]
  %v789 = vld [vmem:[%s3 + $0x418] sm:$0xff]
  %v790 = vld [vmem:[%s3 + $0x420] sm:$0xff]
  %v791 = vld [vmem:[%s3 + $0x428] sm:$0xff]
  %v792 = vld [vmem:[%s3 + $0x430] sm:$0xff]
  %v793 = vld [vmem:[%s3 + $0x438] sm:$0xff]
  %v794 = vld [vmem:[%s3 + $0x440] sm:$0xff]
  %v795 = vld [vmem:[%s3 + $0x448] sm:$0xff]
  %v796 = vld [vmem:[%s3 + $0x450] sm:$0xff]
  %v797 = vld [vmem:[%s3 + $0x458] sm:$0xff]
  %v798 = vld [vmem:[%s3 + $0x460] sm:$0xff]
  %v799 = vld [vmem:[%s3 + $0x468] sm:$0xff]
  %v800 = vld [vmem:[%s3 + $0x470] sm:$0xff]
  %v801 = vld [vmem:[%s3 + $0x478] sm:$0xff]
  %v802 = vld [vmem:[%s3 + $0x480] sm:$0xff]
  %v803 = vld [vmem:[%s3 + $0x488] sm:$0xff]
  %v804 = vld [vmem:[%s3 + $0x490] sm:$0xff]
  %v805 = vld [vmem:[%s3 + $0x498] sm:$0xff]
  %v806 = vld [vmem:[%s3 + $0x4a0] sm:$0xff]
  %v807 = vld [vmem:[%s3 + $0x4a8] sm:$0xff]
  %v808 = vld [vmem:[%s3 + $0x4b0] sm:$0xff]
  %v809 = vld [vmem:[%s3 + $0x4b8] sm:$0xff]
  %v810 = vld [vmem:[%s3 + $0x4c0] sm:$0xff]
  %v811 = vld [vmem:[%s3 + $0x4c8] sm:$0xff]
  %v812 = vld [vmem:[%s3 + $0x4d0] sm:$0xff]
  %v813 = vld [vmem:[%s3 + $0x4d8] sm:$0xff]
  %v814 = vld [vmem:[%s3 + $0x4e0] sm:$0xff]
  %v815 = vld [vmem:[%s3 + $0x4e8] sm:$0xff]
  %v816 = vld [vmem:[%s3 + $0x4f0] sm:$0xff]
  %v817 = vld [vmem:[%s3 + $0x4f8] sm:$0xff]
  %v818 = vld [vmem:[%s3 + $0x500] sm:$0xff]
  %v819 = vld [vmem:[%s3 + $0x508] sm:$0xff]
  %v820 = vld [vmem:[%s3 + $0x510] sm:$0xff]
  %v821 = vld [vmem:[%s3 + $0x518] sm:$0xff]
  %v822 = vld [vmem:[%s3 + $0x520] sm:$0xff]
  %v823 = vld [vmem:[%s3 + $0x528] sm:$0xff]
  %v824 = vld [vmem:[%s3 + $0x530] sm:$0xff]
  %v825 = vld [vmem:[%s3 + $0x538] sm:$0xff]
  %v826 = vld [vmem:[%s3 + $0x540] sm:$0xff]
  %v827 = vld [vmem:[%s3 + $0x548] sm:$0xff]
  %v828 = vld [vmem:[%s3 + $0x550] sm:$0xff]
  %v829 = vld [vmem:[%s3 + $0x558] sm:$0xff]
  %v830 = vld [vmem:[%s3 + $0x560] sm:$0xff]
  %v831 = vld [vmem:[%s3 + $0x568] sm:$0xff]
  %v832 = vld [vmem:[%s3 + $0x570] sm:$0xff]
  %v833 = vld [vmem:[%s3 + $0x578] sm:$0xff]
  %v834 = vld [vmem:[%s3 + $0x580] sm:$0xff]
  %v835 = vld [vmem:[%s3 + $0x588] sm:$0xff]
  %v836 = vld [vmem:[%s3 + $0x590] sm:$0xff]
  %v837 = vld [vmem:[%s3 + $0x598] sm:$0xff]
  %v838 = vld [vmem:[%s3 + $0x5a0] sm:$0xff]
  %v839 = vld [vmem:[%s3 + $0x5a8] sm:$0xff]
  %v840 = vld [vmem:[%s3 + $0x5b0] sm:$0xff]
  %v841 = vld [vmem:[%s3 + $0x5b8] sm:$0xff]
  %v842 = vld [vmem:[%s3 + $0x5c0] sm:$0xff]
  %v843 = vld [vmem:[%s3 + $0x5c8] sm:$0xff]
  %v844 = vld [vmem:[%s3 + $0x5d0] sm:$0xff]
  %v845 = vld [vmem:[%s3 + $0x5d8] sm:$0xff]
  %v846 = vld [vmem:[%s3 + $0x5e0] sm:$0xff]
  %v847 = vld [vmem:[%s3 + $0x5e8] sm:$0xff]
  %v848 = vld [vmem:[%s3 + $0x5f0] sm:$0xff]
  %v849 = vld [vmem:[%s3 + $0x5f8] sm:$0xff]
  %v850 = vld [vmem:[%s3 + $0x600] sm:$0xff]
  %v851 = vld [vmem:[%s3 + $0x608] sm:$0xff]
  %v852 = vld [vmem:[%s3 + $0x610] sm:$0xff]
  %v853 = vld [vmem:[%s3 + $0x618] sm:$0xff]
  %v854 = vld [vmem:[%s3 + $0x620] sm:$0xff]
  %v855 = vld [vmem:[%s3 + $0x628] sm:$0xff]
  %v856 = vld [vmem:[%s3 + $0x630] sm:$0xff]
  %v857 = vld [vmem:[%s3 + $0x638] sm:$0xff]
  %v858 = vld [vmem:[%s3 + $0x640] sm:$0xff]
  %v859 = vld [vmem:[%s3 + $0x648] sm:$0xff]
  %v860 = vld [vmem:[%s3 + $0x650] sm:$0xff]
  %v861 = vld [vmem:[%s3 + $0x658] sm:$0xff]
  %v862 = vld [vmem:[%s3 + $0x660] sm:$0xff]
  %v863 = vld [vmem:[%s3 + $0x668] sm:$0xff]
  %v864 = vld [vmem:[%s3 + $0x670] sm:$0xff]
  %v865 = vld [vmem:[%s3 + $0x678] sm:$0xff]
  %v866 = vld [vmem:[%s3 + $0x680] sm:$0xff]
  %v867 = vld [vmem:[%s3 + $0x688] sm:$0xff]
  %v868 = vld [vmem:[%s3 + $0x690] sm:$0xff]
  %v869 = vld [vmem:[%s3 + $0x698] sm:$0xff]
  %v870 = vld [vmem:[%s3 + $0x6a0] sm:$0xff]
  %v871 = vld [vmem:[%s3 + $0x6a8] sm:$0xff]
  %v872 = vld [vmem:[%s3 + $0x6b0] sm:$0xff]
  %v873 = vld [vmem:[%s3 + $0x6b8] sm:$0xff]
  %v874 = vld [vmem:[%s3 + $0x6c0] sm:$0xff]
  %v875 = vld [vmem:[%s3 + $0x6c8] sm:$0xff]
  %v876 = vld [vmem:[%s3 + $0x6d0] sm:$0xff]
  %v877 = vld [vmem:[%s3 + $0x6d8] sm:$0xff]
  %v878 = vld [vmem:[%s3 + $0x6e0] sm:$0xff]
  %v879 = vld [vmem:[%s3 + $0x6e8] sm:$0xff]
  %v880 = vld [vmem:[%s3 + $0x6f0] sm:$0xff]
  %v881 = vld [vmem:[%s3 + $0x6f8] sm:$0xff]
  %v882 = vld [vmem:[%s3 + $0x700] sm:$0xff]
  %v883 = vld [vmem:[%s3 + $0x708] sm:$0xff]
  %v884 = vld [vmem:[%s3 + $0x710] sm:$0xff]
  %v885 = vld [vmem:[%s3 + $0x718] sm:$0xff]
  %v886 = vld [vmem:[%s3 + $0x720] sm:$0xff]
  %v887 = vld [vmem:[%s3 + $0x728] sm:$0xff]
  %v888 = vld [vmem:[%s3 + $0x730] sm:$0xff]
  %v889 = vld [vmem:[%s3 + $0x738] sm:$0xff]
  %v890 = vld [vmem:[%s3 + $0x740] sm:$0xff]
  %v891 = vld [vmem:[%s3 + $0x748] sm:$0xff]
  %v892 = vld [vmem:[%s3 + $0x750] sm:$0xff]
  %v893 = vld [vmem:[%s3 + $0x758] sm:$0xff]
  %v894 = vld [vmem:[%s3 + $0x760] sm:$0xff]
  %v895 = vld [vmem:[%s3 + $0x768] sm:$0xff]
  %v896 = vld [vmem:[%s3 + $0x770] sm:$0xff]
  %v897 = vld [vmem:[%s3 + $0x778] sm:$0xff]
  %v898 = vld [vmem:[%s3 + $0x780] sm:$0xff]
  %v899 = vld [vmem:[%s3 + $0x788] sm:$0xff]
  %v900 = vld [vmem:[%s3 + $0x790] sm:$0xff]
  %v901 = vld [vmem:[%s3 + $0x798] sm:$0xff]
  %v902 = vld [vmem:[%s3 + $0x7a0] sm:$0xff]
  %v903 = vld [vmem:[%s3 + $0x7a8] sm:$0xff]
  %v904 = vld [vmem:[%s3 + $0x7b0] sm:$0xff]
  %v905 = vld [vmem:[%s3 + $0x7b8] sm:$0xff]
  %v906 = vld [vmem:[%s3 + $0x7c0] sm:$0xff]
  %v907 = vld [vmem:[%s3 + $0x7c8] sm:$0xff]
  %v908 = vld [vmem:[%s3 + $0x7d0] sm:$0xff]
  %v909 = vld [vmem:[%s3 + $0x7d8] sm:$0xff]
  %v910 = vld [vmem:[%s3 + $0x7e0] sm:$0xff]
  %v911 = vld [vmem:[%s3 + $0x7e8] sm:$0xff]
  %v912 = vld [vmem:[%s3 + $0x7f0] sm:$0xff]
  %v913 = vld [vmem:[%s3 + $0x7f8] sm:$0xff]
  %914 = vmatprep.subr.mxu0 %v659
  %915 = vmatpush1.msra.mxu0 %v658
  %916 = vmatprep.subr.mxu0 %v667
  %917 = vmatpush1.msra.mxu0 %v666
  %918 = vmatprep.subr.mxu0 %v675
  %919 = vmatpush1.msra.mxu0 %v674
  %920 = vmatprep.subr.mxu0 %v683
  %921 = vmatpush1.msra.mxu0 %v682
  %922 = vmatprep.subr.mxu0 %v691
  %923 = vmatpush1.msra.mxu0 %v690
  %924 = vmatprep.subr.mxu0 %v699
  %925 = vmatpush1.msra.mxu0 %v698
  %926 = vmatprep.subr.mxu0 %v707
  %927 = vmatpush1.msra.mxu0 %v706
  %928 = vmatprep.subr.mxu0 %v715
  %929 = vmatpush1.msra.mxu0 %v714
  %930 = vmatprep.subr.mxu0 %v723
  %931 = vmatpush1.msra.mxu0 %v722
  %932 = vmatprep.subr.mxu0 %v731
  %933 = vmatpush1.msra.mxu0 %v730
  %934 = vmatprep.subr.mxu0 %v739
  %935 = vmatpush1.msra.mxu0 %v738
  %936 = vmatprep.subr.mxu0 %v747
  %937 = vmatpush1.msra.mxu0 %v746
  %938 = vmatprep.subr.mxu0 %v755
  %939 = vmatpush1.msra.mxu0 %v754
  %940 = vmatprep.subr.mxu0 %v763
  %941 = vmatpush1.msra.mxu0 %v762
  %942 = vmatprep.subr.mxu0 %v771
  %943 = vmatpush1.msra.mxu0 %v770
  %944 = vmatprep.subr.mxu0 %v779
  %945 = vmatpush1.msra.mxu0 %v778
  %946 = vmatprep.subr.mxu0 %v787
  %947 = vmatpush1.msra.mxu0 %v786
  %948 = vmatprep.subr.mxu0 %v795
  %949 = vmatpush1.msra.mxu0 %v794
  %950 = vmatprep.subr.mxu0 %v803
  %951 = vmatpush1.msra.mxu0 %v802
  %952 = vmatprep.subr.mxu0 %v811
  %953 = vmatpush1.msra.mxu0 %v810
  %954 = vmatprep.subr.mxu0 %v819
  %955 = vmatpush1.msra.mxu0 %v818
  %956 = vmatprep.subr.mxu0 %v827
  %957 = vmatpush1.msra.mxu0 %v826
  %958 = vmatprep.subr.mxu0 %v835
  %959 = vmatpush1.msra.mxu0 %v834
  %960 = vmatprep.subr.mxu0 %v843
  %961 = vmatpush1.msra.mxu0 %v842
  %962 = vmatprep.subr.mxu0 %v851
  %963 = vmatpush1.msra.mxu0 %v850
  %964 = vmatprep.subr.mxu0 %v859
  %965 = vmatpush1.msra.mxu0 %v858
  %966 = vmatprep.subr.mxu0 %v867
  %967 = vmatpush1.msra.mxu0 %v866
  %968 = vmatprep.subr.mxu0 %v875
  %969 = vmatpush1.msra.mxu0 %v874
  %970 = vmatprep.subr.mxu0 %v883
  %971 = vmatpush1.msra.mxu0 %v882
  %972 = vmatprep.subr.mxu0 %v891
  %973 = vmatpush1.msra.mxu0 %v890
  %974 = vmatprep.subr.mxu0 %v899
  %975 = vmatpush1.msra.mxu0 %v898
  %976 = vmatprep.subr.mxu0 %v907
  %977 = vmatpush1.msra.mxu0 %v906
  %978 = vmatprep.mubr.f32.mxu0 %v657
  %979 = vmatmul.mubr.f32.gmra.mrb[0].mxu0 %v656
  %v980 = vpop.f32.mrb[0].mxu0
  %v981 = vadd.f32 0.0, %v980
  %v982 = vpop.f32.mrb[0].mxu0
  %v983 = vadd.f32 0.0, %v982
  %984 = vdwg.mxu0
  %985 = vmatprep.subr.mxu0 %v661
  %986 = vmatpush1.msra.mxu0 %v660
  %987 = vmatprep.subr.mxu0 %v669
  %988 = vmatpush1.msra.mxu0 %v668
  %989 = vmatprep.subr.mxu0 %v677
  %990 = vmatpush1.msra.mxu0 %v676
  %991 = vmatprep.subr.mxu0 %v685
  %992 = vmatpush1.msra.mxu0 %v684
  %993 = vmatprep.subr.mxu0 %v693
  %994 = vmatpush1.msra.mxu0 %v692
  %995 = vmatprep.subr.mxu0 %v701
  %996 = vmatpush1.msra.mxu0 %v700
  %997 = vmatprep.subr.mxu0 %v709
  %998 = vmatpush1.msra.mxu0 %v708
  %999 = vmatprep.subr.mxu0 %v717
  %1000 = vmatpush1.msra.mxu0 %v716
  %1001 = vmatprep.subr.mxu0 %v725
  %1002 = vmatpush1.msra.mxu0 %v724
  %1003 = vmatprep.subr.mxu0 %v733
  %1004 = vmatpush1.msra.mxu0 %v732
  %1005 = vmatprep.subr.mxu0 %v741
  %1006 = vmatpush1.msra.mxu0 %v740
  %1007 = vmatprep.subr.mxu0 %v749
  %1008 = vmatpush1.msra.mxu0 %v748
  %1009 = vmatprep.subr.mxu0 %v757
  %1010 = vmatpush1.msra.mxu0 %v756
  %1011 = vmatprep.subr.mxu0 %v765
  %1012 = vmatpush1.msra.mxu0 %v764
  %1013 = vmatprep.subr.mxu0 %v773
  %1014 = vmatpush1.msra.mxu0 %v772
  %1015 = vmatprep.subr.mxu0 %v781
  %1016 = vmatpush1.msra.mxu0 %v780
  %1017 = vmatprep.subr.mxu0 %v789
  %1018 = vmatpush1.msra.mxu0 %v788
  %1019 = vmatprep.subr.mxu0 %v797
  %1020 = vmatpush1.msra.mxu0 %v796
  %1021 = vmatprep.subr.mxu0 %v805
  %1022 = vmatpush1.msra.mxu0 %v804
  %1023 = vmatprep.subr.mxu0 %v813
  %1024 = vmatpush1.msra.mxu0 %v812
  %1025 = vmatprep.subr.mxu0 %v821
  %1026 = vmatpush1.msra.mxu0 %v820
  %1027 = vmatprep.subr.mxu0 %v829
  %1028 = vmatpush1.msra.mxu0 %v828
  %1029 = vmatprep.subr.mxu0 %v837
  %1030 = vmatpush1.msra.mxu0 %v836
  %1031 = vmatprep.subr.mxu0 %v845
  %1032 = vmatpush1.msra.mxu0 %v844
  %1033 = vmatprep.subr.mxu0 %v853
  %1034 = vmatpush1.msra.mxu0 %v852
  %1035 = vmatprep.subr.mxu0 %v861
  %1036 = vmatpush1.msra.mxu0 %v860
  %1037 = vmatprep.subr.mxu0 %v869
  %1038 = vmatpush1.msra.mxu0 %v868
  %1039 = vmatprep.subr.mxu0 %v877
  %1040 = vmatpush1.msra.mxu0 %v876
  %1041 = vmatprep.subr.mxu0 %v885
  %1042 = vmatpush1.msra.mxu0 %v884
  %1043 = vmatprep.subr.mxu0 %v893
  %1044 = vmatpush1.msra.mxu0 %v892
  %1045 = vmatprep.subr.mxu0 %v901
  %1046 = vmatpush1.msra.mxu0 %v900
  %1047 = vmatprep.subr.mxu0 %v909
  %1048 = vmatpush1.msra.mxu0 %v908
  %1049 = vmatprep.mubr.f32.mxu0 %v657
  %1050 = vmatmul.mubr.f32.gmra.mrb[0].mxu0 %v656
  %v1051 = vpop.f32.mrb[0].mxu0
  %v1052 = vadd.f32 0.0, %v1051
  %v1053 = vpop.f32.mrb[0].mxu0
  %v1054 = vadd.f32 0.0, %v1053
  %1055 = vdwg.mxu0
  %1056 = vmatprep.subr.mxu0 %v663
  %1057 = vmatpush1.msra.mxu0 %v662
  %1058 = vmatprep.subr.mxu0 %v671
  %1059 = vmatpush1.msra.mxu0 %v670
  %1060 = vmatprep.subr.mxu0 %v679
  %1061 = vmatpush1.msra.mxu0 %v678
  %1062 = vmatprep.subr.mxu0 %v687
  %1063 = vmatpush1.msra.mxu0 %v686
  %1064 = vmatprep.subr.mxu0 %v695
  %1065 = vmatpush1.msra.mxu0 %v694
  %1066 = vmatprep.subr.mxu0 %v703
  %1067 = vmatpush1.msra.mxu0 %v702
  %1068 = vmatprep.subr.mxu0 %v711
  %1069 = vmatpush1.msra.mxu0 %v710
  %1070 = vmatprep.subr.mxu0 %v719
  %1071 = vmatpush1.msra.mxu0 %v718
  %1072 = vmatprep.subr.mxu0 %v727
  %1073 = vmatpush1.msra.mxu0 %v726
  %1074 = vmatprep.subr.mxu0 %v735
  %1075 = vmatpush1.msra.mxu0 %v734
  %1076 = vmatprep.subr.mxu0 %v743
  %1077 = vmatpush1.msra.mxu0 %v742
  %1078 = vmatprep.subr.mxu0 %v751
  %1079 = vmatpush1.msra.mxu0 %v750
  %1080 = vmatprep.subr.mxu0 %v759
  %1081 = vmatpush1.msra.mxu0 %v758
  %1082 = vmatprep.subr.mxu0 %v767
  %1083 = vmatpush1.msra.mxu0 %v766
  %1084 = vmatprep.subr.mxu0 %v775
  %1085 = vmatpush1.msra.mxu0 %v774
  %1086 = vmatprep.subr.mxu0 %v783
  %1087 = vmatpush1.msra.mxu0 %v782
  %1088 = vmatprep.subr.mxu0 %v791
  %1089 = vmatpush1.msra.mxu0 %v790
  %1090 = vmatprep.subr.mxu0 %v799
  %1091 = vmatpush1.msra.mxu0 %v798
  %1092 = vmatprep.subr.mxu0 %v807
  %1093 = vmatpush1.msra.mxu0 %v806
  %1094 = vmatprep.subr.mxu0 %v815
  %1095 = vmatpush1.msra.mxu0 %v814
  %1096 = vmatprep.subr.mxu0 %v823
  %1097 = vmatpush1.msra.mxu0 %v822
  %1098 = vmatprep.subr.mxu0 %v831
  %1099 = vmatpush1.msra.mxu0 %v830
  %1100 = vmatprep.subr.mxu0 %v839
  %1101 = vmatpush1.msra.mxu0 %v838
  %1102 = vmatprep.subr.mxu0 %v847
  %1103 = vmatpush1.msra.mxu0 %v846
  %1104 = vmatprep.subr.mxu0 %v855
  %1105 = vmatpush1.msra.mxu0 %v854
  %1106 = vmatprep.subr.mxu0 %v863
  %1107 = vmatpush1.msra.mxu0 %v862
  %1108 = vmatprep.subr.mxu0 %v871
  %1109 = vmatpush1.msra.mxu0 %v870
  %1110 = vmatprep.subr.mxu0 %v879
  %1111 = vmatpush1.msra.mxu0 %v878
  %1112 = vmatprep.subr.mxu0 %v887
  %1113 = vmatpush1.msra.mxu0 %v886
  %1114 = vmatprep.subr.mxu0 %v895
  %1115 = vmatpush1.msra.mxu0 %v894
  %1116 = vmatprep.subr.mxu0 %v903
  %1117 = vmatpush1.msra.mxu0 %v902
  %1118 = vmatprep.subr.mxu0 %v911
  %1119 = vmatpush1.msra.mxu0 %v910
  %1120 = vmatprep.mubr.f32.mxu0 %v657
  %1121 = vmatmul.mubr.f32.gmra.mrb[0].mxu0 %v656
  %v1122 = vpop.f32.mrb[0].mxu0
  %v1123 = vadd.f32 0.0, %v1122
  %v1124 = vpop.f32.mrb[0].mxu0
  %v1125 = vadd.f32 0.0, %v1124
  %1126 = vdwg.mxu0
  %1127 = vmatprep.subr.mxu0 %v665
  %1128 = vmatpush1.msra.mxu0 %v664
  %1129 = vmatprep.subr.mxu0 %v673
  %1130 = vmatpush1.msra.mxu0 %v672
  %1131 = vmatprep.subr.mxu0 %v681
  %1132 = vmatpush1.msra.mxu0 %v680
  %1133 = vmatprep.subr.mxu0 %v689
  %1134 = vmatpush1.msra.mxu0 %v688
  %1135 = vmatprep.subr.mxu0 %v697
  %1136 = vmatpush1.msra.mxu0 %v696
  %1137 = vmatprep.subr.mxu0 %v705
  %1138 = vmatpush1.msra.mxu0 %v704
  %1139 = vmatprep.subr.mxu0 %v713
  %1140 = vmatpush1.msra.mxu0 %v712
  %1141 = vmatprep.subr.mxu0 %v721
  %1142 = vmatpush1.msra.mxu0 %v720
  %1143 = vmatprep.subr.mxu0 %v729
  %1144 = vmatpush1.msra.mxu0 %v728
  %1145 = vmatprep.subr.mxu0 %v737
  %1146 = vmatpush1.msra.mxu0 %v736
  %1147 = vmatprep.subr.mxu0 %v745
  %1148 = vmatpush1.msra.mxu0 %v744
  %1149 = vmatprep.subr.mxu0 %v753
  %1150 = vmatpush1.msra.mxu0 %v752
  %1151 = vmatprep.subr.mxu0 %v761
  %1152 = vmatpush1.msra.mxu0 %v760
  %1153 = vmatprep.subr.mxu0 %v769
  %1154 = vmatpush1.msra.mxu0 %v768
  %1155 = vmatprep.subr.mxu0 %v777
  %1156 = vmatpush1.msra.mxu0 %v776
  %1157 = vmatprep.subr.mxu0 %v785
  %1158 = vmatpush1.msra.mxu0 %v784
  %1159 = vmatprep.subr.mxu0 %v793
  %1160 = vmatpush1.msra.mxu0 %v792
  %1161 = vmatprep.subr.mxu0 %v801
  %1162 = vmatpush1.msra.mxu0 %v800
  %1163 = vmatprep.subr.mxu0 %v809
  %1164 = vmatpush1.msra.mxu0 %v808
  %1165 = vmatprep.subr.mxu0 %v817
  %1166 = vmatpush1.msra.mxu0 %v816
  %1167 = vmatprep.subr.mxu0 %v825
  %1168 = vmatpush1.msra.mxu0 %v824
  %1169 = vmatprep.subr.mxu0 %v833
  %1170 = vmatpush1.msra.mxu0 %v832
  %1171 = vmatprep.subr.mxu0 %v841
  %1172 = vmatpush1.msra.mxu0 %v840
  %1173 = vmatprep.subr.mxu0 %v849
  %1174 = vmatpush1.msra.mxu0 %v848
  %1175 = vmatprep.subr.mxu0 %v857
  %1176 = vmatpush1.msra.mxu0 %v856
  %1177 = vmatprep.subr.mxu0 %v865
  %1178 = vmatpush1.msra.mxu0 %v864
  %1179 = vmatprep.subr.mxu0 %v873
  %1180 = vmatpush1.msra.mxu0 %v872
  %1181 = vmatprep.subr.mxu0 %v881
  %1182 = vmatpush1.msra.mxu0 %v880
  %1183 = vmatprep.subr.mxu0 %v889
  %1184 = vmatpush1.msra.mxu0 %v888
  %1185 = vmatprep.subr.mxu0 %v897
  %1186 = vmatpush1.msra.mxu0 %v896
  %1187 = vmatprep.subr.mxu0 %v905
  %1188 = vmatpush1.msra.mxu0 %v904
  %1189 = vmatprep.subr.mxu0 %v913
  %1190 = vmatpush1.msra.mxu0 %v912
  %1191 = vmatprep.mubr.f32.mxu0 %v657
  %1192 = vmatmul.mubr.f32.gmra.mrb[0].mxu0 %v656
  %v1193 = vpop.f32.mrb[0].mxu0
  %v1194 = vadd.f32 0.0, %v1193
  %v1195 = vpop.f32.mrb[0].mxu0
  %v1196 = vadd.f32 0.0, %v1195
  %1197 = vdwg.mxu0
  %v1198 = vld [vmem:[%s4] sm:$0xf]
  %v1200 = vlaneseq
  %v1201 = vshrl.u32 %v1200, 7
  %v1202 = vsub.s32 0, %v1201
  %v1203 = vrot.slane %v1198, %v1202
  %v1204 = vlaneseq
  %v1205 = vshrl.u32 %v1204, 7
  %v1206 = vsub.s32 1, %v1205
  %v1207 = vrot.slane %v1198, %v1206
  %v1208 = vlaneseq
  %v1209 = vshrl.u32 %v1208, 7
  %v1210 = vsub.s32 2, %v1209
  %v1211 = vrot.slane %v1198, %v1210
  %v1212 = vlaneseq
  %v1213 = vshrl.u32 %v1212, 7
  %v1214 = vsub.s32 3, %v1213
  %v1215 = vrot.slane %v1198, %v1214
  %v1220 = vadd.f32 %v1123, %v1203
  %v1221 = vadd.f32 %v1125, %v1207
  %v1222 = vadd.f32 %v1194, %v1211
  %v1223 = vadd.f32 %v1196, %v1215
  %v1224 = vld [vmem:[#allocation6] sm:$0xff]
  %v1225 = vxor.u32 %v1220, 2147483648
  %v1226 = vmul.f32 %v1225, 1.442695
  %v1227 = vpow.pop %v1226
  %v1228 = vadd.f32 %v1227, 1.0
  %v1229 = vrcp.pop %v1228
  %v1230 = vmul.f32 1.0, %v1229
  %v1231 = vxor.u32 %v1221, 2147483648
  %v1232 = vmul.f32 %v1231, 1.442695
  %v1233 = vpow.pop %v1232
  %v1234 = vadd.f32 %v1233, 1.0
  %v1235 = vrcp.pop %v1234
  %v1236 = vmul.f32 1.0, %v1235
  %v1237 = vtanh.pop %v1222
  %v1238 = vxor.u32 %v1223, 2147483648
  %v1239 = vmul.f32 %v1238, 1.442695
  %v1240 = vpow.pop %v1239
  %v1241 = vadd.f32 %v1240, 1.0
  %v1242 = vrcp.pop %v1241
  %v1243 = vmul.f32 1.0, %v1242
  %v1244 = vmul.f32 %v1236, %v1224
  %v1245 = vmul.f32 %v1230, %v1237
  %v1246 = vadd.f32 %v1244, %v1245
  %v1247 = vtanh.pop %v1246
  %v1248 = vmul.f32 %v1243, %v1247
  %1249 = vst [vmem:[#allocation6] sm:$0xff] %v1246
  %1250 = vst [vmem:[#allocation3] sm:$0xff] %v1248
  %s1251 = smul.u32 1, 4
  %s1252 = smul.addr %s1251, 8
  %s1253 = scalar_lea.vmem [#allocation2], %s1252
  %v1254 = vld [vmem:[%s1253] sm:$0xff]
  %v1255 = vld [vmem:[%s1253 + $0x8] sm:$0xff]
  %v1256 = vld [vmem:[%s1253 + $0x10] sm:$0xff]
  %v1257 = vld [vmem:[%s1253 + $0x18] sm:$0xff]
  %v1258 = vadd.f32 %v981, %v1254
  %v1259 = vadd.f32 %v983, %v1255
  %v1260 = vadd.f32 %v1052, %v1256
  %v1261 = vadd.f32 %v1054, %v1257
  %v1262 = vld [vmem:[#allocation5] sm:$0xff]
  %v1263 = vxor.u32 %v1258, 2147483648
  %v1264 = vmul.f32 %v1263, 1.442695
  %v1265 = vpow.pop %v1264
  %v1266 = vadd.f32 %v1265, 1.0
  %v1267 = vrcp.pop %v1266
  %v1268 = vmul.f32 1.0, %v1267
  %v1269 = vxor.u32 %v1259, 2147483648
  %v1270 = vmul.f32 %v1269, 1.442695
  %v1271 = vpow.pop %v1270
  %v1272 = vadd.f32 %v1271, 1.0
  %v1273 = vrcp.pop %v1272
  %v1274 = vmul.f32 1.0, %v1273
  %v1275 = vtanh.pop %v1260
  %v1276 = vxor.u32 %v1261, 2147483648
  %v1277 = vmul.f32 %v1276, 1.442695
  %v1278 = vpow.pop %v1277
  %v1279 = vadd.f32 %v1278, 1.0
  %v1280 = vrcp.pop %v1279
  %v1281 = vmul.f32 1.0, %v1280
  %v1282 = vmul.f32 %v1274, %v1262
  %v1283 = vmul.f32 %v1268, %v1275
  %v1284 = vadd.f32 %v1282, %v1283
  %v1285 = vtanh.pop %v1284
  %v1286 = vmul.f32 %v1281, %v1285
  %1287 = vst [vmem:[#allocation5] sm:$0xff] %v1284
  %1288 = vst [vmem:[#allocation4] sm:$0xff] %v1286
  %1289 = vst [vmem:[#allocation4 + $0x8] sm:$0xff] %v1248
  %v1290 = vld [vmem:[#allocation4] sm:$0xff]
  %v1291 = vld [vmem:[#allocation4 + $0x8] sm:$0xff]
  %v1292 = vld [vmem:[%s3] sm:$0xff]
  %v1293 = vld [vmem:[%s3 + $0x8] sm:$0xff]
  %v1294 = vld [vmem:[%s3 + $0x10] sm:$0xff]
  %v1295 = vld [vmem:[%s3 + $0x18] sm:$0xff]
  %v1296 = vld [vmem:[%s3 + $0x20] sm:$0xff]
  %v1297 = vld [vmem:[%s3 + $0x28] sm:$0xff]
  %v1298 = vld [vmem:[%s3 + $0x30] sm:$0xff]
  %v1299 = vld [vmem:[%s3 + $0x38] sm:$0xff]
  %v1300 = vld [vmem:[%s3 + $0x40] sm:$0xff]
  %v1301 = vld [vmem:[%s3 + $0x48] sm:$0xff]
  %v1302 = vld [vmem:[%s3 + $0x50] sm:$0xff]
  %v1303 = vld [vmem:[%s3 + $0x58] sm:$0xff]
  %v1304 = vld [vmem:[%s3 + $0x60] sm:$0xff]
  %v1305 = vld [vmem:[%s3 + $0x68] sm:$0xff]
  %v1306 = vld [vmem:[%s3 + $0x70] sm:$0xff]
  %v1307 = vld [vmem:[%s3 + $0x78] sm:$0xff]
  %v1308 = vld [vmem:[%s3 + $0x80] sm:$0xff]
  %v1309 = vld [vmem:[%s3 + $0x88] sm:$0xff]
  %v1310 = vld [vmem:[%s3 + $0x90] sm:$0xff]
  %v1311 = vld [vmem:[%s3 + $0x98] sm:$0xff]
  %v1312 = vld [vmem:[%s3 + $0xa0] sm:$0xff]
  %v1313 = vld [vmem:[%s3 + $0xa8] sm:$0xff]
  %v1314 = vld [vmem:[%s3 + $0xb0] sm:$0xff]
  %v1315 = vld [vmem:[%s3 + $0xb8] sm:$0xff]
  %v1316 = vld [vmem:[%s3 + $0xc0] sm:$0xff]
  %v1317 = vld [vmem:[%s3 + $0xc8] sm:$0xff]
  %v1318 = vld [vmem:[%s3 + $0xd0] sm:$0xff]
  %v1319 = vld [vmem:[%s3 + $0xd8] sm:$0xff]
  %v1320 = vld [vmem:[%s3 + $0xe0] sm:$0xff]
  %v1321 = vld [vmem:[%s3 + $0xe8] sm:$0xff]
  %v1322 = vld [vmem:[%s3 + $0xf0] sm:$0xff]
  %v1323 = vld [vmem:[%s3 + $0xf8] sm:$0xff]
  %v1324 = vld [vmem:[%s3 + $0x100] sm:$0xff]
  %v1325 = vld [vmem:[%s3 + $0x108] sm:$0xff]
  %v1326 = vld [vmem:[%s3 + $0x110] sm:$0xff]
  %v1327 = vld [vmem:[%s3 + $0x118] sm:$0xff]
  %v1328 = vld [vmem:[%s3 + $0x120] sm:$0xff]
  %v1329 = vld [vmem:[%s3 + $0x128] sm:$0xff]
  %v1330 = vld [vmem:[%s3 + $0x130] sm:$0xff]
  %v1331 = vld [vmem:[%s3 + $0x138] sm:$0xff]
  %v1332 = vld [vmem:[%s3 + $0x140] sm:$0xff]
  %v1333 = vld [vmem:[%s3 + $0x148] sm:$0xff]
  %v1334 = vld [vmem:[%s3 + $0x150] sm:$0xff]
  %v1335 = vld [vmem:[%s3 + $0x158] sm:$0xff]
  %v1336 = vld [vmem:[%s3 + $0x160] sm:$0xff]
  %v1337 = vld [vmem:[%s3 + $0x168] sm:$0xff]
  %v1338 = vld [vmem:[%s3 + $0x170] sm:$0xff]
  %v1339 = vld [vmem:[%s3 + $0x178] sm:$0xff]
  %v1340 = vld [vmem:[%s3 + $0x180] sm:$0xff]
  %v1341 = vld [vmem:[%s3 + $0x188] sm:$0xff]
  %v1342 = vld [vmem:[%s3 + $0x190] sm:$0xff]
  %v1343 = vld [vmem:[%s3 + $0x198] sm:$0xff]
  %v1344 = vld [vmem:[%s3 + $0x1a0] sm:$0xff]
  %v1345 = vld [vmem:[%s3 + $0x1a8] sm:$0xff]
  %v1346 = vld [vmem:[%s3 + $0x1b0] sm:$0xff]
  %v1347 = vld [vmem:[%s3 + $0x1b8] sm:$0xff]
  %v1348 = vld [vmem:[%s3 + $0x1c0] sm:$0xff]
  %v1349 = vld [vmem:[%s3 + $0x1c8] sm:$0xff]
  %v1350 = vld [vmem:[%s3 + $0x1d0] sm:$0xff]
  %v1351 = vld [vmem:[%s3 + $0x1d8] sm:$0xff]
  %v1352 = vld [vmem:[%s3 + $0x1e0] sm:$0xff]
  %v1353 = vld [vmem:[%s3 + $0x1e8] sm:$0xff]
  %v1354 = vld [vmem:[%s3 + $0x1f0] sm:$0xff]
  %v1355 = vld [vmem:[%s3 + $0x1f8] sm:$0xff]
  %v1356 = vld [vmem:[%s3 + $0x200] sm:$0xff]
  %v1357 = vld [vmem:[%s3 + $0x208] sm:$0xff]
  %v1358 = vld [vmem:[%s3 + $0x210] sm:$0xff]
  %v1359 = vld [vmem:[%s3 + $0x218] sm:$0xff]
  %v1360 = vld [vmem:[%s3 + $0x220] sm:$0xff]
  %v1361 = vld [vmem:[%s3 + $0x228] sm:$0xff]
  %v1362 = vld [vmem:[%s3 + $0x230] sm:$0xff]
  %v1363 = vld [vmem:[%s3 + $0x238] sm:$0xff]
  %v1364 = vld [vmem:[%s3 + $0x240] sm:$0xff]
  %v1365 = vld [vmem:[%s3 + $0x248] sm:$0xff]
  %v1366 = vld [vmem:[%s3 + $0x250] sm:$0xff]
  %v1367 = vld [vmem:[%s3 + $0x258] sm:$0xff]
  %v1368 = vld [vmem:[%s3 + $0x260] sm:$0xff]
  %v1369 = vld [vmem:[%s3 + $0x268] sm:$0xff]
  %v1370 = vld [vmem:[%s3 + $0x270] sm:$0xff]
  %v1371 = vld [vmem:[%s3 + $0x278] sm:$0xff]
  %v1372 = vld [vmem:[%s3 + $0x280] sm:$0xff]
  %v1373 = vld [vmem:[%s3 + $0x288] sm:$0xff]
  %v1374 = vld [vmem:[%s3 + $0x290] sm:$0xff]
  %v1375 = vld [vmem:[%s3 + $0x298] sm:$0xff]
  %v1376 = vld [vmem:[%s3 + $0x2a0] sm:$0xff]
  %v1377 = vld [vmem:[%s3 + $0x2a8] sm:$0xff]
  %v1378 = vld [vmem:[%s3 + $0x2b0] sm:$0xff]
  %v1379 = vld [vmem:[%s3 + $0x2b8] sm:$0xff]
  %v1380 = vld [vmem:[%s3 + $0x2c0] sm:$0xff]
  %v1381 = vld [vmem:[%s3 + $0x2c8] sm:$0xff]
  %v1382 = vld [vmem:[%s3 + $0x2d0] sm:$0xff]
  %v1383 = vld [vmem:[%s3 + $0x2d8] sm:$0xff]
  %v1384 = vld [vmem:[%s3 + $0x2e0] sm:$0xff]
  %v1385 = vld [vmem:[%s3 + $0x2e8] sm:$0xff]
  %v1386 = vld [vmem:[%s3 + $0x2f0] sm:$0xff]
  %v1387 = vld [vmem:[%s3 + $0x2f8] sm:$0xff]
  %v1388 = vld [vmem:[%s3 + $0x300] sm:$0xff]
  %v1389 = vld [vmem:[%s3 + $0x308] sm:$0xff]
  %v1390 = vld [vmem:[%s3 + $0x310] sm:$0xff]
  %v1391 = vld [vmem:[%s3 + $0x318] sm:$0xff]
  %v1392 = vld [vmem:[%s3 + $0x320] sm:$0xff]
  %v1393 = vld [vmem:[%s3 + $0x328] sm:$0xff]
  %v1394 = vld [vmem:[%s3 + $0x330] sm:$0xff]
  %v1395 = vld [vmem:[%s3 + $0x338] sm:$0xff]
  %v1396 = vld [vmem:[%s3 + $0x340] sm:$0xff]
  %v1397 = vld [vmem:[%s3 + $0x348] sm:$0xff]
  %v1398 = vld [vmem:[%s3 + $0x350] sm:$0xff]
  %v1399 = vld [vmem:[%s3 + $0x358] sm:$0xff]
  %v1400 = vld [vmem:[%s3 + $0x360] sm:$0xff]
  %v1401 = vld [vmem:[%s3 + $0x368] sm:$0xff]
  %v1402 = vld [vmem:[%s3 + $0x370] sm:$0xff]
  %v1403 = vld [vmem:[%s3 + $0x378] sm:$0xff]
  %v1404 = vld [vmem:[%s3 + $0x380] sm:$0xff]
  %v1405 = vld [vmem:[%s3 + $0x388] sm:$0xff]
  %v1406 = vld [vmem:[%s3 + $0x390] sm:$0xff]
  %v1407 = vld [vmem:[%s3 + $0x398] sm:$0xff]
  %v1408 = vld [vmem:[%s3 + $0x3a0] sm:$0xff]
  %v1409 = vld [vmem:[%s3 + $0x3a8] sm:$0xff]
  %v1410 = vld [vmem:[%s3 + $0x3b0] sm:$0xff]
  %v1411 = vld [vmem:[%s3 + $0x3b8] sm:$0xff]
  %v1412 = vld [vmem:[%s3 + $0x3c0] sm:$0xff]
  %v1413 = vld [vmem:[%s3 + $0x3c8] sm:$0xff]
  %v1414 = vld [vmem:[%s3 + $0x3d0] sm:$0xff]
  %v1415 = vld [vmem:[%s3 + $0x3d8] sm:$0xff]
  %v1416 = vld [vmem:[%s3 + $0x3e0] sm:$0xff]
  %v1417 = vld [vmem:[%s3 + $0x3e8] sm:$0xff]
  %v1418 = vld [vmem:[%s3 + $0x3f0] sm:$0xff]
  %v1419 = vld [vmem:[%s3 + $0x3f8] sm:$0xff]
  %v1420 = vld [vmem:[%s3 + $0x400] sm:$0xff]
  %v1421 = vld [vmem:[%s3 + $0x408] sm:$0xff]
  %v1422 = vld [vmem:[%s3 + $0x410] sm:$0xff]
  %v1423 = vld [vmem:[%s3 + $0x418] sm:$0xff]
  %v1424 = vld [vmem:[%s3 + $0x420] sm:$0xff]
  %v1425 = vld [vmem:[%s3 + $0x428] sm:$0xff]
  %v1426 = vld [vmem:[%s3 + $0x430] sm:$0xff]
  %v1427 = vld [vmem:[%s3 + $0x438] sm:$0xff]
  %v1428 = vld [vmem:[%s3 + $0x440] sm:$0xff]
  %v1429 = vld [vmem:[%s3 + $0x448] sm:$0xff]
  %v1430 = vld [vmem:[%s3 + $0x450] sm:$0xff]
  %v1431 = vld [vmem:[%s3 + $0x458] sm:$0xff]
  %v1432 = vld [vmem:[%s3 + $0x460] sm:$0xff]
  %v1433 = vld [vmem:[%s3 + $0x468] sm:$0xff]
  %v1434 = vld [vmem:[%s3 + $0x470] sm:$0xff]
  %v1435 = vld [vmem:[%s3 + $0x478] sm:$0xff]
  %v1436 = vld [vmem:[%s3 + $0x480] sm:$0xff]
  %v1437 = vld [vmem:[%s3 + $0x488] sm:$0xff]
  %v1438 = vld [vmem:[%s3 + $0x490] sm:$0xff]
  %v1439 = vld [vmem:[%s3 + $0x498] sm:$0xff]
  %v1440 = vld [vmem:[%s3 + $0x4a0] sm:$0xff]
  %v1441 = vld [vmem:[%s3 + $0x4a8] sm:$0xff]
  %v1442 = vld [vmem:[%s3 + $0x4b0] sm:$0xff]
  %v1443 = vld [vmem:[%s3 + $0x4b8] sm:$0xff]
  %v1444 = vld [vmem:[%s3 + $0x4c0] sm:$0xff]
  %v1445 = vld [vmem:[%s3 + $0x4c8] sm:$0xff]
  %v1446 = vld [vmem:[%s3 + $0x4d0] sm:$0xff]
  %v1447 = vld [vmem:[%s3 + $0x4d8] sm:$0xff]
  %v1448 = vld [vmem:[%s3 + $0x4e0] sm:$0xff]
  %v1449 = vld [vmem:[%s3 + $0x4e8] sm:$0xff]
  %v1450 = vld [vmem:[%s3 + $0x4f0] sm:$0xff]
  %v1451 = vld [vmem:[%s3 + $0x4f8] sm:$0xff]
  %v1452 = vld [vmem:[%s3 + $0x500] sm:$0xff]
  %v1453 = vld [vmem:[%s3 + $0x508] sm:$0xff]
  %v1454 = vld [vmem:[%s3 + $0x510] sm:$0xff]
  %v1455 = vld [vmem:[%s3 + $0x518] sm:$0xff]
  %v1456 = vld [vmem:[%s3 + $0x520] sm:$0xff]
  %v1457 = vld [vmem:[%s3 + $0x528] sm:$0xff]
  %v1458 = vld [vmem:[%s3 + $0x530] sm:$0xff]
  %v1459 = vld [vmem:[%s3 + $0x538] sm:$0xff]
  %v1460 = vld [vmem:[%s3 + $0x540] sm:$0xff]
  %v1461 = vld [vmem:[%s3 + $0x548] sm:$0xff]
  %v1462 = vld [vmem:[%s3 + $0x550] sm:$0xff]
  %v1463 = vld [vmem:[%s3 + $0x558] sm:$0xff]
  %v1464 = vld [vmem:[%s3 + $0x560] sm:$0xff]
  %v1465 = vld [vmem:[%s3 + $0x568] sm:$0xff]
  %v1466 = vld [vmem:[%s3 + $0x570] sm:$0xff]
  %v1467 = vld [vmem:[%s3 + $0x578] sm:$0xff]
  %v1468 = vld [vmem:[%s3 + $0x580] sm:$0xff]
  %v1469 = vld [vmem:[%s3 + $0x588] sm:$0xff]
  %v1470 = vld [vmem:[%s3 + $0x590] sm:$0xff]
  %v1471 = vld [vmem:[%s3 + $0x598] sm:$0xff]
  %v1472 = vld [vmem:[%s3 + $0x5a0] sm:$0xff]
  %v1473 = vld [vmem:[%s3 + $0x5a8] sm:$0xff]
  %v1474 = vld [vmem:[%s3 + $0x5b0] sm:$0xff]
  %v1475 = vld [vmem:[%s3 + $0x5b8] sm:$0xff]
  %v1476 = vld [vmem:[%s3 + $0x5c0] sm:$0xff]
  %v1477 = vld [vmem:[%s3 + $0x5c8] sm:$0xff]
  %v1478 = vld [vmem:[%s3 + $0x5d0] sm:$0xff]
  %v1479 = vld [vmem:[%s3 + $0x5d8] sm:$0xff]
  %v1480 = vld [vmem:[%s3 + $0x5e0] sm:$0xff]
  %v1481 = vld [vmem:[%s3 + $0x5e8] sm:$0xff]
  %v1482 = vld [vmem:[%s3 + $0x5f0] sm:$0xff]
  %v1483 = vld [vmem:[%s3 + $0x5f8] sm:$0xff]
  %v1484 = vld [vmem:[%s3 + $0x600] sm:$0xff]
  %v1485 = vld [vmem:[%s3 + $0x608] sm:$0xff]
  %v1486 = vld [vmem:[%s3 + $0x610] sm:$0xff]
  %v1487 = vld [vmem:[%s3 + $0x618] sm:$0xff]
  %v1488 = vld [vmem:[%s3 + $0x620] sm:$0xff]
  %v1489 = vld [vmem:[%s3 + $0x628] sm:$0xff]
  %v1490 = vld [vmem:[%s3 + $0x630] sm:$0xff]
  %v1491 = vld [vmem:[%s3 + $0x638] sm:$0xff]
  %v1492 = vld [vmem:[%s3 + $0x640] sm:$0xff]
  %v1493 = vld [vmem:[%s3 + $0x648] sm:$0xff]
  %v1494 = vld [vmem:[%s3 + $0x650] sm:$0xff]
  %v1495 = vld [vmem:[%s3 + $0x658] sm:$0xff]
  %v1496 = vld [vmem:[%s3 + $0x660] sm:$0xff]
  %v1497 = vld [vmem:[%s3 + $0x668] sm:$0xff]
  %v1498 = vld [vmem:[%s3 + $0x670] sm:$0xff]
  %v1499 = vld [vmem:[%s3 + $0x678] sm:$0xff]
  %v1500 = vld [vmem:[%s3 + $0x680] sm:$0xff]
  %v1501 = vld [vmem:[%s3 + $0x688] sm:$0xff]
  %v1502 = vld [vmem:[%s3 + $0x690] sm:$0xff]
  %v1503 = vld [vmem:[%s3 + $0x698] sm:$0xff]
  %v1504 = vld [vmem:[%s3 + $0x6a0] sm:$0xff]
  %v1505 = vld [vmem:[%s3 + $0x6a8] sm:$0xff]
  %v1506 = vld [vmem:[%s3 + $0x6b0] sm:$0xff]
  %v1507 = vld [vmem:[%s3 + $0x6b8] sm:$0xff]
  %v1508 = vld [vmem:[%s3 + $0x6c0] sm:$0xff]
  %v1509 = vld [vmem:[%s3 + $0x6c8] sm:$0xff]
  %v1510 = vld [vmem:[%s3 + $0x6d0] sm:$0xff]
  %v1511 = vld [vmem:[%s3 + $0x6d8] sm:$0xff]
  %v1512 = vld [vmem:[%s3 + $0x6e0] sm:$0xff]
  %v1513 = vld [vmem:[%s3 + $0x6e8] sm:$0xff]
  %v1514 = vld [vmem:[%s3 + $0x6f0] sm:$0xff]
  %v1515 = vld [vmem:[%s3 + $0x6f8] sm:$0xff]
  %v1516 = vld [vmem:[%s3 + $0x700] sm:$0xff]
  %v1517 = vld [vmem:[%s3 + $0x708] sm:$0xff]
  %v1518 = vld [vmem:[%s3 + $0x710] sm:$0xff]
  %v1519 = vld [vmem:[%s3 + $0x718] sm:$0xff]
  %v1520 = vld [vmem:[%s3 + $0x720] sm:$0xff]
  %v1521 = vld [vmem:[%s3 + $0x728] sm:$0xff]
  %v1522 = vld [vmem:[%s3 + $0x730] sm:$0xff]
  %v1523 = vld [vmem:[%s3 + $0x738] sm:$0xff]
  %v1524 = vld [vmem:[%s3 + $0x740] sm:$0xff]
  %v1525 = vld [vmem:[%s3 + $0x748] sm:$0xff]
  %v1526 = vld [vmem:[%s3 + $0x750] sm:$0xff]
  %v1527 = vld [vmem:[%s3 + $0x758] sm:$0xff]
  %v1528 = vld [vmem:[%s3 + $0x760] sm:$0xff]
  %v1529 = vld [vmem:[%s3 + $0x768] sm:$0xff]
  %v1530 = vld [vmem:[%s3 + $0x770] sm:$0xff]
  %v1531 = vld [vmem:[%s3 + $0x778] sm:$0xff]
  %v1532 = vld [vmem:[%s3 + $0x780] sm:$0xff]
  %v1533 = vld [vmem:[%s3 + $0x788] sm:$0xff]
  %v1534 = vld [vmem:[%s3 + $0x790] sm:$0xff]
  %v1535 = vld [vmem:[%s3 + $0x798] sm:$0xff]
  %v1536 = vld [vmem:[%s3 + $0x7a0] sm:$0xff]
  %v1537 = vld [vmem:[%s3 + $0x7a8] sm:$0xff]
  %v1538 = vld [vmem:[%s3 + $0x7b0] sm:$0xff]
  %v1539 = vld [vmem:[%s3 + $0x7b8] sm:$0xff]
  %v1540 = vld [vmem:[%s3 + $0x7c0] sm:$0xff]
  %v1541 = vld [vmem:[%s3 + $0x7c8] sm:$0xff]
  %v1542 = vld [vmem:[%s3 + $0x7d0] sm:$0xff]
  %v1543 = vld [vmem:[%s3 + $0x7d8] sm:$0xff]
  %v1544 = vld [vmem:[%s3 + $0x7e0] sm:$0xff]
  %v1545 = vld [vmem:[%s3 + $0x7e8] sm:$0xff]
  %v1546 = vld [vmem:[%s3 + $0x7f0] sm:$0xff]
  %v1547 = vld [vmem:[%s3 + $0x7f8] sm:$0xff]
  %1548 = vmatprep.subr.mxu0 %v1293
  %1549 = vmatpush1.msra.mxu0 %v1292
  %1550 = vmatprep.subr.mxu0 %v1301
  %1551 = vmatpush1.msra.mxu0 %v1300
  %1552 = vmatprep.subr.mxu0 %v1309
  %1553 = vmatpush1.msra.mxu0 %v1308
  %1554 = vmatprep.subr.mxu0 %v1317
  %1555 = vmatpush1.msra.mxu0 %v1316
  %1556 = vmatprep.subr.mxu0 %v1325
  %1557 = vmatpush1.msra.mxu0 %v1324
  %1558 = vmatprep.subr.mxu0 %v1333
  %1559 = vmatpush1.msra.mxu0 %v1332
  %1560 = vmatprep.subr.mxu0 %v1341
  %1561 = vmatpush1.msra.mxu0 %v1340
  %1562 = vmatprep.subr.mxu0 %v1349
  %1563 = vmatpush1.msra.mxu0 %v1348
  %1564 = vmatprep.subr.mxu0 %v1357
  %1565 = vmatpush1.msra.mxu0 %v1356
  %1566 = vmatprep.subr.mxu0 %v1365
  %1567 = vmatpush1.msra.mxu0 %v1364
  %1568 = vmatprep.subr.mxu0 %v1373
  %1569 = vmatpush1.msra.mxu0 %v1372
  %1570 = vmatprep.subr.mxu0 %v1381
  %1571 = vmatpush1.msra.mxu0 %v1380
  %1572 = vmatprep.subr.mxu0 %v1389
  %1573 = vmatpush1.msra.mxu0 %v1388
  %1574 = vmatprep.subr.mxu0 %v1397
  %1575 = vmatpush1.msra.mxu0 %v1396
  %1576 = vmatprep.subr.mxu0 %v1405
  %1577 = vmatpush1.msra.mxu0 %v1404
  %1578 = vmatprep.subr.mxu0 %v1413
  %1579 = vmatpush1.msra.mxu0 %v1412
  %1580 = vmatprep.subr.mxu0 %v1421
  %1581 = vmatpush1.msra.mxu0 %v1420
  %1582 = vmatprep.subr.mxu0 %v1429
  %1583 = vmatpush1.msra.mxu0 %v1428
  %1584 = vmatprep.subr.mxu0 %v1437
  %1585 = vmatpush1.msra.mxu0 %v1436
  %1586 = vmatprep.subr.mxu0 %v1445
  %1587 = vmatpush1.msra.mxu0 %v1444
  %1588 = vmatprep.subr.mxu0 %v1453
  %1589 = vmatpush1.msra.mxu0 %v1452
  %1590 = vmatprep.subr.mxu0 %v1461
  %1591 = vmatpush1.msra.mxu0 %v1460
  %1592 = vmatprep.subr.mxu0 %v1469
  %1593 = vmatpush1.msra.mxu0 %v1468
  %1594 = vmatprep.subr.mxu0 %v1477
  %1595 = vmatpush1.msra.mxu0 %v1476
  %1596 = vmatprep.subr.mxu0 %v1485
  %1597 = vmatpush1.msra.mxu0 %v1484
  %1598 = vmatprep.subr.mxu0 %v1493
  %1599 = vmatpush1.msra.mxu0 %v1492
  %1600 = vmatprep.subr.mxu0 %v1501
  %1601 = vmatpush1.msra.mxu0 %v1500
  %1602 = vmatprep.subr.mxu0 %v1509
  %1603 = vmatpush1.msra.mxu0 %v1508
  %1604 = vmatprep.subr.mxu0 %v1517
  %1605 = vmatpush1.msra.mxu0 %v1516
  %1606 = vmatprep.subr.mxu0 %v1525
  %1607 = vmatpush1.msra.mxu0 %v1524
  %1608 = vmatprep.subr.mxu0 %v1533
  %1609 = vmatpush1.msra.mxu0 %v1532
  %1610 = vmatprep.subr.mxu0 %v1541
  %1611 = vmatpush1.msra.mxu0 %v1540
  %1612 = vmatprep.mubr.f32.mxu0 %v1291
  %1613 = vmatmul.mubr.f32.gmra.mrb[0].mxu0 %v1290
  %v1614 = vpop.f32.mrb[0].mxu0
  %v1615 = vadd.f32 0.0, %v1614
  %v1616 = vpop.f32.mrb[0].mxu0
  %v1617 = vadd.f32 0.0, %v1616
  %1618 = vdwg.mxu0
  %1619 = vmatprep.subr.mxu0 %v1295
  %1620 = vmatpush1.msra.mxu0 %v1294
  %1621 = vmatprep.subr.mxu0 %v1303
  %1622 = vmatpush1.msra.mxu0 %v1302
  %1623 = vmatprep.subr.mxu0 %v1311
  %1624 = vmatpush1.msra.mxu0 %v1310
  %1625 = vmatprep.subr.mxu0 %v1319
  %1626 = vmatpush1.msra.mxu0 %v1318
  %1627 = vmatprep.subr.mxu0 %v1327
  %1628 = vmatpush1.msra.mxu0 %v1326
  %1629 = vmatprep.subr.mxu0 %v1335
  %1630 = vmatpush1.msra.mxu0 %v1334
  %1631 = vmatprep.subr.mxu0 %v1343
  %1632 = vmatpush1.msra.mxu0 %v1342
  %1633 = vmatprep.subr.mxu0 %v1351
  %1634 = vmatpush1.msra.mxu0 %v1350
  %1635 = vmatprep.subr.mxu0 %v1359
  %1636 = vmatpush1.msra.mxu0 %v1358
  %1637 = vmatprep.subr.mxu0 %v1367
  %1638 = vmatpush1.msra.mxu0 %v1366
  %1639 = vmatprep.subr.mxu0 %v1375
  %1640 = vmatpush1.msra.mxu0 %v1374
  %1641 = vmatprep.subr.mxu0 %v1383
  %1642 = vmatpush1.msra.mxu0 %v1382
  %1643 = vmatprep.subr.mxu0 %v1391
  %1644 = vmatpush1.msra.mxu0 %v1390
  %1645 = vmatprep.subr.mxu0 %v1399
  %1646 = vmatpush1.msra.mxu0 %v1398
  %1647 = vmatprep.subr.mxu0 %v1407
  %1648 = vmatpush1.msra.mxu0 %v1406
  %1649 = vmatprep.subr.mxu0 %v1415
  %1650 = vmatpush1.msra.mxu0 %v1414
  %1651 = vmatprep.subr.mxu0 %v1423
  %1652 = vmatpush1.msra.mxu0 %v1422
  %1653 = vmatprep.subr.mxu0 %v1431
  %1654 = vmatpush1.msra.mxu0 %v1430
  %1655 = vmatprep.subr.mxu0 %v1439
  %1656 = vmatpush1.msra.mxu0 %v1438
  %1657 = vmatprep.subr.mxu0 %v1447
  %1658 = vmatpush1.msra.mxu0 %v1446
  %1659 = vmatprep.subr.mxu0 %v1455
  %1660 = vmatpush1.msra.mxu0 %v1454
  %1661 = vmatprep.subr.mxu0 %v1463
  %1662 = vmatpush1.msra.mxu0 %v1462
  %1663 = vmatprep.subr.mxu0 %v1471
  %1664 = vmatpush1.msra.mxu0 %v1470
  %1665 = vmatprep.subr.mxu0 %v1479
  %1666 = vmatpush1.msra.mxu0 %v1478
  %1667 = vmatprep.subr.mxu0 %v1487
  %1668 = vmatpush1.msra.mxu0 %v1486
  %1669 = vmatprep.subr.mxu0 %v1495
  %1670 = vmatpush1.msra.mxu0 %v1494
  %1671 = vmatprep.subr.mxu0 %v1503
  %1672 = vmatpush1.msra.mxu0 %v1502
  %1673 = vmatprep.subr.mxu0 %v1511
  %1674 = vmatpush1.msra.mxu0 %v1510
  %1675 = vmatprep.subr.mxu0 %v1519
  %1676 = vmatpush1.msra.mxu0 %v1518
  %1677 = vmatprep.subr.mxu0 %v1527
  %1678 = vmatpush1.msra.mxu0 %v1526
  %1679 = vmatprep.subr.mxu0 %v1535
  %1680 = vmatpush1.msra.mxu0 %v1534
  %1681 = vmatprep.subr.mxu0 %v1543
  %1682 = vmatpush1.msra.mxu0 %v1542
  %1683 = vmatprep.mubr.f32.mxu0 %v1291
  %1684 = vmatmul.mubr.f32.gmra.mrb[0].mxu0 %v1290
  %v1685 = vpop.f32.mrb[0].mxu0
  %v1686 = vadd.f32 0.0, %v1685
  %v1687 = vpop.f32.mrb[0].mxu0
  %v1688 = vadd.f32 0.0, %v1687
  %1689 = vdwg.mxu0
  %1690 = vmatprep.subr.mxu0 %v1297
  %1691 = vmatpush1.msra.mxu0 %v1296
  %1692 = vmatprep.subr.mxu0 %v1305
  %1693 = vmatpush1.msra.mxu0 %v1304
  %1694 = vmatprep.subr.mxu0 %v1313
  %1695 = vmatpush1.msra.mxu0 %v1312
  %1696 = vmatprep.subr.mxu0 %v1321
  %1697 = vmatpush1.msra.mxu0 %v1320
  %1698 = vmatprep.subr.mxu0 %v1329
  %1699 = vmatpush1.msra.mxu0 %v1328
  %1700 = vmatprep.subr.mxu0 %v1337
  %1701 = vmatpush1.msra.mxu0 %v1336
  %1702 = vmatprep.subr.mxu0 %v1345
  %1703 = vmatpush1.msra.mxu0 %v1344
  %1704 = vmatprep.subr.mxu0 %v1353
  %1705 = vmatpush1.msra.mxu0 %v1352
  %1706 = vmatprep.subr.mxu0 %v1361
  %1707 = vmatpush1.msra.mxu0 %v1360
  %1708 = vmatprep.subr.mxu0 %v1369
  %1709 = vmatpush1.msra.mxu0 %v1368
  %1710 = vmatprep.subr.mxu0 %v1377
  %1711 = vmatpush1.msra.mxu0 %v1376
  %1712 = vmatprep.subr.mxu0 %v1385
  %1713 = vmatpush1.msra.mxu0 %v1384
  %1714 = vmatprep.subr.mxu0 %v1393
  %1715 = vmatpush1.msra.mxu0 %v1392
  %1716 = vmatprep.subr.mxu0 %v1401
  %1717 = vmatpush1.msra.mxu0 %v1400
  %1718 = vmatprep.subr.mxu0 %v1409
  %1719 = vmatpush1.msra.mxu0 %v1408
  %1720 = vmatprep.subr.mxu0 %v1417
  %1721 = vmatpush1.msra.mxu0 %v1416
  %1722 = vmatprep.subr.mxu0 %v1425
  %1723 = vmatpush1.msra.mxu0 %v1424
  %1724 = vmatprep.subr.mxu0 %v1433
  %1725 = vmatpush1.msra.mxu0 %v1432
  %1726 = vmatprep.subr.mxu0 %v1441
  %1727 = vmatpush1.msra.mxu0 %v1440
  %1728 = vmatprep.subr.mxu0 %v1449
  %1729 = vmatpush1.msra.mxu0 %v1448
  %1730 = vmatprep.subr.mxu0 %v1457
  %1731 = vmatpush1.msra.mxu0 %v1456
  %1732 = vmatprep.subr.mxu0 %v1465
  %1733 = vmatpush1.msra.mxu0 %v1464
  %1734 = vmatprep.subr.mxu0 %v1473
  %1735 = vmatpush1.msra.mxu0 %v1472
  %1736 = vmatprep.subr.mxu0 %v1481
  %1737 = vmatpush1.msra.mxu0 %v1480
  %1738 = vmatprep.subr.mxu0 %v1489
  %1739 = vmatpush1.msra.mxu0 %v1488
  %1740 = vmatprep.subr.mxu0 %v1497
  %1741 = vmatpush1.msra.mxu0 %v1496
  %1742 = vmatprep.subr.mxu0 %v1505
  %1743 = vmatpush1.msra.mxu0 %v1504
  %1744 = vmatprep.subr.mxu0 %v1513
  %1745 = vmatpush1.msra.mxu0 %v1512
  %1746 = vmatprep.subr.mxu0 %v1521
  %1747 = vmatpush1.msra.mxu0 %v1520
  %1748 = vmatprep.subr.mxu0 %v1529
  %1749 = vmatpush1.msra.mxu0 %v1528
  %1750 = vmatprep.subr.mxu0 %v1537
  %1751 = vmatpush1.msra.mxu0 %v1536
  %1752 = vmatprep.subr.mxu0 %v1545
  %1753 = vmatpush1.msra.mxu0 %v1544
  %1754 = vmatprep.mubr.f32.mxu0 %v1291
  %1755 = vmatmul.mubr.f32.gmra.mrb[0].mxu0 %v1290
  %v1756 = vpop.f32.mrb[0].mxu0
  %v1757 = vadd.f32 0.0, %v1756
  %v1758 = vpop.f32.mrb[0].mxu0
  %v1759 = vadd.f32 0.0, %v1758
  %1760 = vdwg.mxu0
  %1761 = vmatprep.subr.mxu0 %v1299
  %1762 = vmatpush1.msra.mxu0 %v1298
  %1763 = vmatprep.subr.mxu0 %v1307
  %1764 = vmatpush1.msra.mxu0 %v1306
  %1765 = vmatprep.subr.mxu0 %v1315
  %1766 = vmatpush1.msra.mxu0 %v1314
  %1767 = vmatprep.subr.mxu0 %v1323
  %1768 = vmatpush1.msra.mxu0 %v1322
  %1769 = vmatprep.subr.mxu0 %v1331
  %1770 = vmatpush1.msra.mxu0 %v1330
  %1771 = vmatprep.subr.mxu0 %v1339
  %1772 = vmatpush1.msra.mxu0 %v1338
  %1773 = vmatprep.subr.mxu0 %v1347
  %1774 = vmatpush1.msra.mxu0 %v1346
  %1775 = vmatprep.subr.mxu0 %v1355
  %1776 = vmatpush1.msra.mxu0 %v1354
  %1777 = vmatprep.subr.mxu0 %v1363
  %1778 = vmatpush1.msra.mxu0 %v1362
  %1779 = vmatprep.subr.mxu0 %v1371
  %1780 = vmatpush1.msra.mxu0 %v1370
  %1781 = vmatprep.subr.mxu0 %v1379
  %1782 = vmatpush1.msra.mxu0 %v1378
  %1783 = vmatprep.subr.mxu0 %v1387
  %1784 = vmatpush1.msra.mxu0 %v1386
  %1785 = vmatprep.subr.mxu0 %v1395
  %1786 = vmatpush1.msra.mxu0 %v1394
  %1787 = vmatprep.subr.mxu0 %v1403
  %1788 = vmatpush1.msra.mxu0 %v1402
  %1789 = vmatprep.subr.mxu0 %v1411
  %1790 = vmatpush1.msra.mxu0 %v1410
  %1791 = vmatprep.subr.mxu0 %v1419
  %1792 = vmatpush1.msra.mxu0 %v1418
  %1793 = vmatprep.subr.mxu0 %v1427
  %1794 = vmatpush1.msra.mxu0 %v1426
  %1795 = vmatprep.subr.mxu0 %v1435
  %1796 = vmatpush1.msra.mxu0 %v1434
  %1797 = vmatprep.subr.mxu0 %v1443
  %1798 = vmatpush1.msra.mxu0 %v1442
  %1799 = vmatprep.subr.mxu0 %v1451
  %1800 = vmatpush1.msra.mxu0 %v1450
  %1801 = vmatprep.subr.mxu0 %v1459
  %1802 = vmatpush1.msra.mxu0 %v1458
  %1803 = vmatprep.subr.mxu0 %v1467
  %1804 = vmatpush1.msra.mxu0 %v1466
  %1805 = vmatprep.subr.mxu0 %v1475
  %1806 = vmatpush1.msra.mxu0 %v1474
  %1807 = vmatprep.subr.mxu0 %v1483
  %1808 = vmatpush1.msra.mxu0 %v1482
  %1809 = vmatprep.subr.mxu0 %v1491
  %1810 = vmatpush1.msra.mxu0 %v1490
  %1811 = vmatprep.subr.mxu0 %v1499
  %1812 = vmatpush1.msra.mxu0 %v1498
  %1813 = vmatprep.subr.mxu0 %v1507
  %1814 = vmatpush1.msra.mxu0 %v1506
  %1815 = vmatprep.subr.mxu0 %v1515
  %1816 = vmatpush1.msra.mxu0 %v1514
  %1817 = vmatprep.subr.mxu0 %v1523
  %1818 = vmatpush1.msra.mxu0 %v1522
  %1819 = vmatprep.subr.mxu0 %v1531
  %1820 = vmatpush1.msra.mxu0 %v1530
  %1821 = vmatprep.subr.mxu0 %v1539
  %1822 = vmatpush1.msra.mxu0 %v1538
  %1823 = vmatprep.subr.mxu0 %v1547
  %1824 = vmatpush1.msra.mxu0 %v1546
  %1825 = vmatprep.mubr.f32.mxu0 %v1291
  %1826 = vmatmul.mubr.f32.gmra.mrb[0].mxu0 %v1290
  %v1827 = vpop.f32.mrb[0].mxu0
  %v1828 = vadd.f32 0.0, %v1827
  %v1829 = vpop.f32.mrb[0].mxu0
  %v1830 = vadd.f32 0.0, %v1829
  %1831 = vdwg.mxu0
  %v1832 = vld [vmem:[%s4] sm:$0xf]
  %v1834 = vlaneseq
  %v1835 = vshrl.u32 %v1834, 7
  %v1836 = vsub.s32 0, %v1835
  %v1837 = vrot.slane %v1832, %v1836
  %v1838 = vlaneseq
  %v1839 = vshrl.u32 %v1838, 7
  %v1840 = vsub.s32 1, %v1839
  %v1841 = vrot.slane %v1832, %v1840
  %v1842 = vlaneseq
  %v1843 = vshrl.u32 %v1842, 7
  %v1844 = vsub.s32 2, %v1843
  %v1845 = vrot.slane %v1832, %v1844
  %v1846 = vlaneseq
  %v1847 = vshrl.u32 %v1846, 7
  %v1848 = vsub.s32 3, %v1847
  %v1849 = vrot.slane %v1832, %v1848
  %v1854 = vadd.f32 %v1757, %v1837
  %v1855 = vadd.f32 %v1759, %v1841
  %v1856 = vadd.f32 %v1828, %v1845
  %v1857 = vadd.f32 %v1830, %v1849
  %v1858 = vld [vmem:[#allocation6] sm:$0xff]
  %v1859 = vxor.u32 %v1854, 2147483648
  %v1860 = vmul.f32 %v1859, 1.442695
  %v1861 = vpow.pop %v1860
  %v1862 = vadd.f32 %v1861, 1.0
  %v1863 = vrcp.pop %v1862
  %v1864 = vmul.f32 1.0, %v1863
  %v1865 = vxor.u32 %v1855, 2147483648
  %v1866 = vmul.f32 %v1865, 1.442695
  %v1867 = vpow.pop %v1866
  %v1868 = vadd.f32 %v1867, 1.0
  %v1869 = vrcp.pop %v1868
  %v1870 = vmul.f32 1.0, %v1869
  %v1871 = vtanh.pop %v1856
  %v1872 = vxor.u32 %v1857, 2147483648
  %v1873 = vmul.f32 %v1872, 1.442695
  %v1874 = vpow.pop %v1873
  %v1875 = vadd.f32 %v1874, 1.0
  %v1876 = vrcp.pop %v1875
  %v1877 = vmul.f32 1.0, %v1876
  %v1878 = vmul.f32 %v1870, %v1858
  %v1879 = vmul.f32 %v1864, %v1871
  %v1880 = vadd.f32 %v1878, %v1879
  %v1881 = vtanh.pop %v1880
  %v1882 = vmul.f32 %v1877, %v1881
  %1883 = vst [vmem:[#allocation6] sm:$0xff] %v1880
  %s1884 = scalar_lea.vmem [#allocation3], 8
  %1885 = vst [vmem:[%s1884] sm:$0xff] %v1882
  %s1886 = smul.u32 2, 4
  %s1887 = smul.addr %s1886, 8
  %s1888 = scalar_lea.vmem [#allocation2], %s1887
  %v1889 = vld [vmem:[%s1888] sm:$0xff]
  %v1890 = vld [vmem:[%s1888 + $0x8] sm:$0xff]
  %v1891 = vld [vmem:[%s1888 + $0x10] sm:$0xff]
  %v1892 = vld [vmem:[%s1888 + $0x18] sm:$0xff]
  %v1893 = vadd.f32 %v1615, %v1889
  %v1894 = vadd.f32 %v1617, %v1890
  %v1895 = vadd.f32 %v1686, %v1891
  %v1896 = vadd.f32 %v1688, %v1892
  %v1897 = vld [vmem:[#allocation5] sm:$0xff]
  %v1898 = vxor.u32 %v1893, 2147483648
  %v1899 = vmul.f32 %v1898, 1.442695
  %v1900 = vpow.pop %v1899
  %v1901 = vadd.f32 %v1900, 1.0
  %v1902 = vrcp.pop %v1901
  %v1903 = vmul.f32 1.0, %v1902
  %v1904 = vxor.u32 %v1894, 2147483648
  %v1905 = vmul.f32 %v1904, 1.442695
  %v1906 = vpow.pop %v1905
  %v1907 = vadd.f32 %v1906, 1.0
  %v1908 = vrcp.pop %v1907
  %v1909 = vmul.f32 1.0, %v1908
  %v1910 = vtanh.pop %v1895
  %v1911 = vxor.u32 %v1896, 2147483648
  %v1912 = vmul.f32 %v1911, 1.442695
  %v1913 = vpow.pop %v1912
  %v1914 = vadd.f32 %v1913, 1.0
  %v1915 = vrcp.pop %v1914
  %v1916 = vmul.f32 1.0, %v1915
  %v1917 = vmul.f32 %v1909, %v1897
  %v1918 = vmul.f32 %v1903, %v1910
  %v1919 = vadd.f32 %v1917, %v1918
  %v1920 = vtanh.pop %v1919
  %v1921 = vmul.f32 %v1916, %v1920
  %1922 = vst [vmem:[#allocation5] sm:$0xff] %v1919
  %1923 = vst [vmem:[#allocation4] sm:$0xff] %v1921
  %1924 = vst [vmem:[#allocation4 + $0x8] sm:$0xff] %v1882
  %v1925 = vld [vmem:[#allocation4] sm:$0xff]
  %v1926 = vld [vmem:[#allocation4 + $0x8] sm:$0xff]
  %v1927 = vld [vmem:[%s3] sm:$0xff]
  %v1928 = vld [vmem:[%s3 + $0x8] sm:$0xff]
  %v1929 = vld [vmem:[%s3 + $0x10] sm:$0xff]
  %v1930 = vld [vmem:[%s3 + $0x18] sm:$0xff]
  %v1931 = vld [vmem:[%s3 + $0x20] sm:$0xff]
  %v1932 = vld [vmem:[%s3 + $0x28] sm:$0xff]
  %v1933 = vld [vmem:[%s3 + $0x30] sm:$0xff]
  %v1934 = vld [vmem:[%s3 + $0x38] sm:$0xff]
  %v1935 = vld [vmem:[%s3 + $0x40] sm:$0xff]
  %v1936 = vld [vmem:[%s3 + $0x48] sm:$0xff]
  %v1937 = vld [vmem:[%s3 + $0x50] sm:$0xff]
  %v1938 = vld [vmem:[%s3 + $0x58] sm:$0xff]
  %v1939 = vld [vmem:[%s3 + $0x60] sm:$0xff]
  %v1940 = vld [vmem:[%s3 + $0x68] sm:$0xff]
  %v1941 = vld [vmem:[%s3 + $0x70] sm:$0xff]
  %v1942 = vld [vmem:[%s3 + $0x78] sm:$0xff]
  %v1943 = vld [vmem:[%s3 + $0x80] sm:$0xff]
  %v1944 = vld [vmem:[%s3 + $0x88] sm:$0xff]
  %v1945 = vld [vmem:[%s3 + $0x90] sm:$0xff]
  %v1946 = vld [vmem:[%s3 + $0x98] sm:$0xff]
  %v1947 = vld [vmem:[%s3 + $0xa0] sm:$0xff]
  %v1948 = vld [vmem:[%s3 + $0xa8] sm:$0xff]
  %v1949 = vld [vmem:[%s3 + $0xb0] sm:$0xff]
  %v1950 = vld [vmem:[%s3 + $0xb8] sm:$0xff]
  %v1951 = vld [vmem:[%s3 + $0xc0] sm:$0xff]
  %v1952 = vld [vmem:[%s3 + $0xc8] sm:$0xff]
  %v1953 = vld [vmem:[%s3 + $0xd0] sm:$0xff]
  %v1954 = vld [vmem:[%s3 + $0xd8] sm:$0xff]
  %v1955 = vld [vmem:[%s3 + $0xe0] sm:$0xff]
  %v1956 = vld [vmem:[%s3 + $0xe8] sm:$0xff]
  %v1957 = vld [vmem:[%s3 + $0xf0] sm:$0xff]
  %v1958 = vld [vmem:[%s3 + $0xf8] sm:$0xff]
  %v1959 = vld [vmem:[%s3 + $0x100] sm:$0xff]
  %v1960 = vld [vmem:[%s3 + $0x108] sm:$0xff]
  %v1961 = vld [vmem:[%s3 + $0x110] sm:$0xff]
  %v1962 = vld [vmem:[%s3 + $0x118] sm:$0xff]
  %v1963 = vld [vmem:[%s3 + $0x120] sm:$0xff]
  %v1964 = vld [vmem:[%s3 + $0x128] sm:$0xff]
  %v1965 = vld [vmem:[%s3 + $0x130] sm:$0xff]
  %v1966 = vld [vmem:[%s3 + $0x138] sm:$0xff]
  %v1967 = vld [vmem:[%s3 + $0x140] sm:$0xff]
  %v1968 = vld [vmem:[%s3 + $0x148] sm:$0xff]
  %v1969 = vld [vmem:[%s3 + $0x150] sm:$0xff]
  %v1970 = vld [vmem:[%s3 + $0x158] sm:$0xff]
  %v1971 = vld [vmem:[%s3 + $0x160] sm:$0xff]
  %v1972 = vld [vmem:[%s3 + $0x168] sm:$0xff]
  %v1973 = vld [vmem:[%s3 + $0x170] sm:$0xff]
  %v1974 = vld [vmem:[%s3 + $0x178] sm:$0xff]
  %v1975 = vld [vmem:[%s3 + $0x180] sm:$0xff]
  %v1976 = vld [vmem:[%s3 + $0x188] sm:$0xff]
  %v1977 = vld [vmem:[%s3 + $0x190] sm:$0xff]
  %v1978 = vld [vmem:[%s3 + $0x198] sm:$0xff]
  %v1979 = vld [vmem:[%s3 + $0x1a0] sm:$0xff]
  %v1980 = vld [vmem:[%s3 + $0x1a8] sm:$0xff]
  %v1981 = vld [vmem:[%s3 + $0x1b0] sm:$0xff]
  %v1982 = vld [vmem:[%s3 + $0x1b8] sm:$0xff]
  %v1983 = vld [vmem:[%s3 + $0x1c0] sm:$0xff]
  %v1984 = vld [vmem:[%s3 + $0x1c8] sm:$0xff]
  %v1985 = vld [vmem:[%s3 + $0x1d0] sm:$0xff]
  %v1986 = vld [vmem:[%s3 + $0x1d8] sm:$0xff]
  %v1987 = vld [vmem:[%s3 + $0x1e0] sm:$0xff]
  %v1988 = vld [vmem:[%s3 + $0x1e8] sm:$0xff]
  %v1989 = vld [vmem:[%s3 + $0x1f0] sm:$0xff]
  %v1990 = vld [vmem:[%s3 + $0x1f8] sm:$0xff]
  %v1991 = vld [vmem:[%s3 + $0x200] sm:$0xff]
  %v1992 = vld [vmem:[%s3 + $0x208] sm:$0xff]
  %v1993 = vld [vmem:[%s3 + $0x210] sm:$0xff]
  %v1994 = vld [vmem:[%s3 + $0x218] sm:$0xff]
  %v1995 = vld [vmem:[%s3 + $0x220] sm:$0xff]
  %v1996 = vld [vmem:[%s3 + $0x228] sm:$0xff]
  %v1997 = vld [vmem:[%s3 + $0x230] sm:$0xff]
  %v1998 = vld [vmem:[%s3 + $0x238] sm:$0xff]
  %v1999 = vld [vmem:[%s3 + $0x240] sm:$0xff]
  %v2000 = vld [vmem:[%s3 + $0x248] sm:$0xff]
  %v2001 = vld [vmem:[%s3 + $0x250] sm:$0xff]
  %v2002 = vld [vmem:[%s3 + $0x258] sm:$0xff]
  %v2003 = vld [vmem:[%s3 + $0x260] sm:$0xff]
  %v2004 = vld [vmem:[%s3 + $0x268] sm:$0xff]
  %v2005 = vld [vmem:[%s3 + $0x270] sm:$0xff]
  %v2006 = vld [vmem:[%s3 + $0x278] sm:$0xff]
  %v2007 = vld [vmem:[%s3 + $0x280] sm:$0xff]
  %v2008 = vld [vmem:[%s3 + $0x288] sm:$0xff]
  %v2009 = vld [vmem:[%s3 + $0x290] sm:$0xff]
  %v2010 = vld [vmem:[%s3 + $0x298] sm:$0xff]
  %v2011 = vld [vmem:[%s3 + $0x2a0] sm:$0xff]
  %v2012 = vld [vmem:[%s3 + $0x2a8] sm:$0xff]
  %v2013 = vld [vmem:[%s3 + $0x2b0] sm:$0xff]
  %v2014 = vld [vmem:[%s3 + $0x2b8] sm:$0xff]
  %v2015 = vld [vmem:[%s3 + $0x2c0] sm:$0xff]
  %v2016 = vld [vmem:[%s3 + $0x2c8] sm:$0xff]
  %v2017 = vld [vmem:[%s3 + $0x2d0] sm:$0xff]
  %v2018 = vld [vmem:[%s3 + $0x2d8] sm:$0xff]
  %v2019 = vld [vmem:[%s3 + $0x2e0] sm:$0xff]
  %v2020 = vld [vmem:[%s3 + $0x2e8] sm:$0xff]
  %v2021 = vld [vmem:[%s3 + $0x2f0] sm:$0xff]
  %v2022 = vld [vmem:[%s3 + $0x2f8] sm:$0xff]
  %v2023 = vld [vmem:[%s3 + $0x300] sm:$0xff]
  %v2024 = vld [vmem:[%s3 + $0x308] sm:$0xff]
  %v2025 = vld [vmem:[%s3 + $0x310] sm:$0xff]
  %v2026 = vld [vmem:[%s3 + $0x318] sm:$0xff]
  %v2027 = vld [vmem:[%s3 + $0x320] sm:$0xff]
  %v2028 = vld [vmem:[%s3 + $0x328] sm:$0xff]
  %v2029 = vld [vmem:[%s3 + $0x330] sm:$0xff]
  %v2030 = vld [vmem:[%s3 + $0x338] sm:$0xff]
  %v2031 = vld [vmem:[%s3 + $0x340] sm:$0xff]
  %v2032 = vld [vmem:[%s3 + $0x348] sm:$0xff]
  %v2033 = vld [vmem:[%s3 + $0x350] sm:$0xff]
  %v2034 = vld [vmem:[%s3 + $0x358] sm:$0xff]
  %v2035 = vld [vmem:[%s3 + $0x360] sm:$0xff]
  %v2036 = vld [vmem:[%s3 + $0x368] sm:$0xff]
  %v2037 = vld [vmem:[%s3 + $0x370] sm:$0xff]
  %v2038 = vld [vmem:[%s3 + $0x378] sm:$0xff]
  %v2039 = vld [vmem:[%s3 + $0x380] sm:$0xff]
  %v2040 = vld [vmem:[%s3 + $0x388] sm:$0xff]
  %v2041 = vld [vmem:[%s3 + $0x390] sm:$0xff]
  %v2042 = vld [vmem:[%s3 + $0x398] sm:$0xff]
  %v2043 = vld [vmem:[%s3 + $0x3a0] sm:$0xff]
  %v2044 = vld [vmem:[%s3 + $0x3a8] sm:$0xff]
  %v2045 = vld [vmem:[%s3 + $0x3b0] sm:$0xff]
  %v2046 = vld [vmem:[%s3 + $0x3b8] sm:$0xff]
  %v2047 = vld [vmem:[%s3 + $0x3c0] sm:$0xff]
  %v2048 = vld [vmem:[%s3 + $0x3c8] sm:$0xff]
  %v2049 = vld [vmem:[%s3 + $0x3d0] sm:$0xff]
  %v2050 = vld [vmem:[%s3 + $0x3d8] sm:$0xff]
  %v2051 = vld [vmem:[%s3 + $0x3e0] sm:$0xff]
  %v2052 = vld [vmem:[%s3 + $0x3e8] sm:$0xff]
  %v2053 = vld [vmem:[%s3 + $0x3f0] sm:$0xff]
  %v2054 = vld [vmem:[%s3 + $0x3f8] sm:$0xff]
  %v2055 = vld [vmem:[%s3 + $0x400] sm:$0xff]
  %v2056 = vld [vmem:[%s3 + $0x408] sm:$0xff]
  %v2057 = vld [vmem:[%s3 + $0x410] sm:$0xff]
  %v2058 = vld [vmem:[%s3 + $0x418] sm:$0xff]
  %v2059 = vld [vmem:[%s3 + $0x420] sm:$0xff]
  %v2060 = vld [vmem:[%s3 + $0x428] sm:$0xff]
  %v2061 = vld [vmem:[%s3 + $0x430] sm:$0xff]
  %v2062 = vld [vmem:[%s3 + $0x438] sm:$0xff]
  %v2063 = vld [vmem:[%s3 + $0x440] sm:$0xff]
  %v2064 = vld [vmem:[%s3 + $0x448] sm:$0xff]
  %v2065 = vld [vmem:[%s3 + $0x450] sm:$0xff]
  %v2066 = vld [vmem:[%s3 + $0x458] sm:$0xff]
  %v2067 = vld [vmem:[%s3 + $0x460] sm:$0xff]
  %v2068 = vld [vmem:[%s3 + $0x468] sm:$0xff]
  %v2069 = vld [vmem:[%s3 + $0x470] sm:$0xff]
  %v2070 = vld [vmem:[%s3 + $0x478] sm:$0xff]
  %v2071 = vld [vmem:[%s3 + $0x480] sm:$0xff]
  %v2072 = vld [vmem:[%s3 + $0x488] sm:$0xff]
  %v2073 = vld [vmem:[%s3 + $0x490] sm:$0xff]
  %v2074 = vld [vmem:[%s3 + $0x498] sm:$0xff]
  %v2075 = vld [vmem:[%s3 + $0x4a0] sm:$0xff]
  %v2076 = vld [vmem:[%s3 + $0x4a8] sm:$0xff]
  %v2077 = vld [vmem:[%s3 + $0x4b0] sm:$0xff]
  %v2078 = vld [vmem:[%s3 + $0x4b8] sm:$0xff]
  %v2079 = vld [vmem:[%s3 + $0x4c0] sm:$0xff]
  %v2080 = vld [vmem:[%s3 + $0x4c8] sm:$0xff]
  %v2081 = vld [vmem:[%s3 + $0x4d0] sm:$0xff]
  %v2082 = vld [vmem:[%s3 + $0x4d8] sm:$0xff]
  %v2083 = vld [vmem:[%s3 + $0x4e0] sm:$0xff]
  %v2084 = vld [vmem:[%s3 + $0x4e8] sm:$0xff]
  %v2085 = vld [vmem:[%s3 + $0x4f0] sm:$0xff]
  %v2086 = vld [vmem:[%s3 + $0x4f8] sm:$0xff]
  %v2087 = vld [vmem:[%s3 + $0x500] sm:$0xff]
  %v2088 = vld [vmem:[%s3 + $0x508] sm:$0xff]
  %v2089 = vld [vmem:[%s3 + $0x510] sm:$0xff]
  %v2090 = vld [vmem:[%s3 + $0x518] sm:$0xff]
  %v2091 = vld [vmem:[%s3 + $0x520] sm:$0xff]
  %v2092 = vld [vmem:[%s3 + $0x528] sm:$0xff]
  %v2093 = vld [vmem:[%s3 + $0x530] sm:$0xff]
  %v2094 = vld [vmem:[%s3 + $0x538] sm:$0xff]
  %v2095 = vld [vmem:[%s3 + $0x540] sm:$0xff]
  %v2096 = vld [vmem:[%s3 + $0x548] sm:$0xff]
  %v2097 = vld [vmem:[%s3 + $0x550] sm:$0xff]
  %v2098 = vld [vmem:[%s3 + $0x558] sm:$0xff]
  %v2099 = vld [vmem:[%s3 + $0x560] sm:$0xff]
  %v2100 = vld [vmem:[%s3 + $0x568] sm:$0xff]
  %v2101 = vld [vmem:[%s3 + $0x570] sm:$0xff]
  %v2102 = vld [vmem:[%s3 + $0x578] sm:$0xff]
  %v2103 = vld [vmem:[%s3 + $0x580] sm:$0xff]
  %v2104 = vld [vmem:[%s3 + $0x588] sm:$0xff]
  %v2105 = vld [vmem:[%s3 + $0x590] sm:$0xff]
  %v2106 = vld [vmem:[%s3 + $0x598] sm:$0xff]
  %v2107 = vld [vmem:[%s3 + $0x5a0] sm:$0xff]
  %v2108 = vld [vmem:[%s3 + $0x5a8] sm:$0xff]
  %v2109 = vld [vmem:[%s3 + $0x5b0] sm:$0xff]
  %v2110 = vld [vmem:[%s3 + $0x5b8] sm:$0xff]
  %v2111 = vld [vmem:[%s3 + $0x5c0] sm:$0xff]
  %v2112 = vld [vmem:[%s3 + $0x5c8] sm:$0xff]
  %v2113 = vld [vmem:[%s3 + $0x5d0] sm:$0xff]
  %v2114 = vld [vmem:[%s3 + $0x5d8] sm:$0xff]
  %v2115 = vld [vmem:[%s3 + $0x5e0] sm:$0xff]
  %v2116 = vld [vmem:[%s3 + $0x5e8] sm:$0xff]
  %v2117 = vld [vmem:[%s3 + $0x5f0] sm:$0xff]
  %v2118 = vld [vmem:[%s3 + $0x5f8] sm:$0xff]
  %v2119 = vld [vmem:[%s3 + $0x600] sm:$0xff]
  %v2120 = vld [vmem:[%s3 + $0x608] sm:$0xff]
  %v2121 = vld [vmem:[%s3 + $0x610] sm:$0xff]
  %v2122 = vld [vmem:[%s3 + $0x618] sm:$0xff]
  %v2123 = vld [vmem:[%s3 + $0x620] sm:$0xff]
  %v2124 = vld [vmem:[%s3 + $0x628] sm:$0xff]
  %v2125 = vld [vmem:[%s3 + $0x630] sm:$0xff]
  %v2126 = vld [vmem:[%s3 + $0x638] sm:$0xff]
  %v2127 = vld [vmem:[%s3 + $0x640] sm:$0xff]
  %v2128 = vld [vmem:[%s3 + $0x648] sm:$0xff]
  %v2129 = vld [vmem:[%s3 + $0x650] sm:$0xff]
  %v2130 = vld [vmem:[%s3 + $0x658] sm:$0xff]
  %v2131 = vld [vmem:[%s3 + $0x660] sm:$0xff]
  %v2132 = vld [vmem:[%s3 + $0x668] sm:$0xff]
  %v2133 = vld [vmem:[%s3 + $0x670] sm:$0xff]
  %v2134 = vld [vmem:[%s3 + $0x678] sm:$0xff]
  %v2135 = vld [vmem:[%s3 + $0x680] sm:$0xff]
  %v2136 = vld [vmem:[%s3 + $0x688] sm:$0xff]
  %v2137 = vld [vmem:[%s3 + $0x690] sm:$0xff]
  %v2138 = vld [vmem:[%s3 + $0x698] sm:$0xff]
  %v2139 = vld [vmem:[%s3 + $0x6a0] sm:$0xff]
  %v2140 = vld [vmem:[%s3 + $0x6a8] sm:$0xff]
  %v2141 = vld [vmem:[%s3 + $0x6b0] sm:$0xff]
  %v2142 = vld [vmem:[%s3 + $0x6b8] sm:$0xff]
  %v2143 = vld [vmem:[%s3 + $0x6c0] sm:$0xff]
  %v2144 = vld [vmem:[%s3 + $0x6c8] sm:$0xff]
  %v2145 = vld [vmem:[%s3 + $0x6d0] sm:$0xff]
  %v2146 = vld [vmem:[%s3 + $0x6d8] sm:$0xff]
  %v2147 = vld [vmem:[%s3 + $0x6e0] sm:$0xff]
  %v2148 = vld [vmem:[%s3 + $0x6e8] sm:$0xff]
  %v2149 = vld [vmem:[%s3 + $0x6f0] sm:$0xff]
  %v2150 = vld [vmem:[%s3 + $0x6f8] sm:$0xff]
  %v2151 = vld [vmem:[%s3 + $0x700] sm:$0xff]
  %v2152 = vld [vmem:[%s3 + $0x708] sm:$0xff]
  %v2153 = vld [vmem:[%s3 + $0x710] sm:$0xff]
  %v2154 = vld [vmem:[%s3 + $0x718] sm:$0xff]
  %v2155 = vld [vmem:[%s3 + $0x720] sm:$0xff]
  %v2156 = vld [vmem:[%s3 + $0x728] sm:$0xff]
  %v2157 = vld [vmem:[%s3 + $0x730] sm:$0xff]
  %v2158 = vld [vmem:[%s3 + $0x738] sm:$0xff]
  %v2159 = vld [vmem:[%s3 + $0x740] sm:$0xff]
  %v2160 = vld [vmem:[%s3 + $0x748] sm:$0xff]
  %v2161 = vld [vmem:[%s3 + $0x750] sm:$0xff]
  %v2162 = vld [vmem:[%s3 + $0x758] sm:$0xff]
  %v2163 = vld [vmem:[%s3 + $0x760] sm:$0xff]
  %v2164 = vld [vmem:[%s3 + $0x768] sm:$0xff]
  %v2165 = vld [vmem:[%s3 + $0x770] sm:$0xff]
  %v2166 = vld [vmem:[%s3 + $0x778] sm:$0xff]
  %v2167 = vld [vmem:[%s3 + $0x780] sm:$0xff]
  %v2168 = vld [vmem:[%s3 + $0x788] sm:$0xff]
  %v2169 = vld [vmem:[%s3 + $0x790] sm:$0xff]
  %v2170 = vld [vmem:[%s3 + $0x798] sm:$0xff]
  %v2171 = vld [vmem:[%s3 + $0x7a0] sm:$0xff]
  %v2172 = vld [vmem:[%s3 + $0x7a8] sm:$0xff]
  %v2173 = vld [vmem:[%s3 + $0x7b0] sm:$0xff]
  %v2174 = vld [vmem:[%s3 + $0x7b8] sm:$0xff]
  %v2175 = vld [vmem:[%s3 + $0x7c0] sm:$0xff]
  %v2176 = vld [vmem:[%s3 + $0x7c8] sm:$0xff]
  %v2177 = vld [vmem:[%s3 + $0x7d0] sm:$0xff]
  %v2178 = vld [vmem:[%s3 + $0x7d8] sm:$0xff]
  %v2179 = vld [vmem:[%s3 + $0x7e0] sm:$0xff]
  %v2180 = vld [vmem:[%s3 + $0x7e8] sm:$0xff]
  %v2181 = vld [vmem:[%s3 + $0x7f0] sm:$0xff]
  %v2182 = vld [vmem:[%s3 + $0x7f8] sm:$0xff]
  %2183 = vmatprep.subr.mxu0 %v1928
  %2184 = vmatpush1.msra.mxu0 %v1927
  %2185 = vmatprep.subr.mxu0 %v1936
  %2186 = vmatpush1.msra.mxu0 %v1935
  %2187 = vmatprep.subr.mxu0 %v1944
  %2188 = vmatpush1.msra.mxu0 %v1943
  %2189 = vmatprep.subr.mxu0 %v1952
  %2190 = vmatpush1.msra.mxu0 %v1951
  %2191 = vmatprep.subr.mxu0 %v1960
  %2192 = vmatpush1.msra.mxu0 %v1959
  %2193 = vmatprep.subr.mxu0 %v1968
  %2194 = vmatpush1.msra.mxu0 %v1967
  %2195 = vmatprep.subr.mxu0 %v1976
  %2196 = vmatpush1.msra.mxu0 %v1975
  %2197 = vmatprep.subr.mxu0 %v1984
  %2198 = vmatpush1.msra.mxu0 %v1983
  %2199 = vmatprep.subr.mxu0 %v1992
  %2200 = vmatpush1.msra.mxu0 %v1991
  %2201 = vmatprep.subr.mxu0 %v2000
  %2202 = vmatpush1.msra.mxu0 %v1999
  %2203 = vmatprep.subr.mxu0 %v2008
  %2204 = vmatpush1.msra.mxu0 %v2007
  %2205 = vmatprep.subr.mxu0 %v2016
  %2206 = vmatpush1.msra.mxu0 %v2015
  %2207 = vmatprep.subr.mxu0 %v2024
  %2208 = vmatpush1.msra.mxu0 %v2023
  %2209 = vmatprep.subr.mxu0 %v2032
  %2210 = vmatpush1.msra.mxu0 %v2031
  %2211 = vmatprep.subr.mxu0 %v2040
  %2212 = vmatpush1.msra.mxu0 %v2039
  %2213 = vmatprep.subr.mxu0 %v2048
  %2214 = vmatpush1.msra.mxu0 %v2047
  %2215 = vmatprep.subr.mxu0 %v2056
  %2216 = vmatpush1.msra.mxu0 %v2055
  %2217 = vmatprep.subr.mxu0 %v2064
  %2218 = vmatpush1.msra.mxu0 %v2063
  %2219 = vmatprep.subr.mxu0 %v2072
  %2220 = vmatpush1.msra.mxu0 %v2071
  %2221 = vmatprep.subr.mxu0 %v2080
  %2222 = vmatpush1.msra.mxu0 %v2079
  %2223 = vmatprep.subr.mxu0 %v2088
  %2224 = vmatpush1.msra.mxu0 %v2087
  %2225 = vmatprep.subr.mxu0 %v2096
  %2226 = vmatpush1.msra.mxu0 %v2095
  %2227 = vmatprep.subr.mxu0 %v2104
  %2228 = vmatpush1.msra.mxu0 %v2103
  %2229 = vmatprep.subr.mxu0 %v2112
  %2230 = vmatpush1.msra.mxu0 %v2111
  %2231 = vmatprep.subr.mxu0 %v2120
  %2232 = vmatpush1.msra.mxu0 %v2119
  %2233 = vmatprep.subr.mxu0 %v2128
  %2234 = vmatpush1.msra.mxu0 %v2127
  %2235 = vmatprep.subr.mxu0 %v2136
  %2236 = vmatpush1.msra.mxu0 %v2135
  %2237 = vmatprep.subr.mxu0 %v2144
  %2238 = vmatpush1.msra.mxu0 %v2143
  %2239 = vmatprep.subr.mxu0 %v2152
  %2240 = vmatpush1.msra.mxu0 %v2151
  %2241 = vmatprep.subr.mxu0 %v2160
  %2242 = vmatpush1.msra.mxu0 %v2159
  %2243 = vmatprep.subr.mxu0 %v2168
  %2244 = vmatpush1.msra.mxu0 %v2167
  %2245 = vmatprep.subr.mxu0 %v2176
  %2246 = vmatpush1.msra.mxu0 %v2175
  %2247 = vmatprep.mubr.f32.mxu0 %v1926
  %2248 = vmatmul.mubr.f32.gmra.mrb[0].mxu0 %v1925
  %v2249 = vpop.f32.mrb[0].mxu0
  %v2250 = vadd.f32 0.0, %v2249
  %v2251 = vpop.f32.mrb[0].mxu0
  %v2252 = vadd.f32 0.0, %v2251
  %2253 = vdwg.mxu0
  %2254 = vmatprep.subr.mxu0 %v1930
  %2255 = vmatpush1.msra.mxu0 %v1929
  %2256 = vmatprep.subr.mxu0 %v1938
  %2257 = vmatpush1.msra.mxu0 %v1937
  %2258 = vmatprep.subr.mxu0 %v1946
  %2259 = vmatpush1.msra.mxu0 %v1945
  %2260 = vmatprep.subr.mxu0 %v1954
  %2261 = vmatpush1.msra.mxu0 %v1953
  %2262 = vmatprep.subr.mxu0 %v1962
  %2263 = vmatpush1.msra.mxu0 %v1961
  %2264 = vmatprep.subr.mxu0 %v1970
  %2265 = vmatpush1.msra.mxu0 %v1969
  %2266 = vmatprep.subr.mxu0 %v1978
  %2267 = vmatpush1.msra.mxu0 %v1977
  %2268 = vmatprep.subr.mxu0 %v1986
  %2269 = vmatpush1.msra.mxu0 %v1985
  %2270 = vmatprep.subr.mxu0 %v1994
  %2271 = vmatpush1.msra.mxu0 %v1993
  %2272 = vmatprep.subr.mxu0 %v2002
  %2273 = vmatpush1.msra.mxu0 %v2001
  %2274 = vmatprep.subr.mxu0 %v2010
  %2275 = vmatpush1.msra.mxu0 %v2009
  %2276 = vmatprep.subr.mxu0 %v2018
  %2277 = vmatpush1.msra.mxu0 %v2017
  %2278 = vmatprep.subr.mxu0 %v2026
  %2279 = vmatpush1.msra.mxu0 %v2025
  %2280 = vmatprep.subr.mxu0 %v2034
  %2281 = vmatpush1.msra.mxu0 %v2033
  %2282 = vmatprep.subr.mxu0 %v2042
  %2283 = vmatpush1.msra.mxu0 %v2041
  %2284 = vmatprep.subr.mxu0 %v2050
  %2285 = vmatpush1.msra.mxu0 %v2049
  %2286 = vmatprep.subr.mxu0 %v2058
  %2287 = vmatpush1.msra.mxu0 %v2057
  %2288 = vmatprep.subr.mxu0 %v2066
  %2289 = vmatpush1.msra.mxu0 %v2065
  %2290 = vmatprep.subr.mxu0 %v2074
  %2291 = vmatpush1.msra.mxu0 %v2073
  %2292 = vmatprep.subr.mxu0 %v2082
  %2293 = vmatpush1.msra.mxu0 %v2081
  %2294 = vmatprep.subr.mxu0 %v2090
  %2295 = vmatpush1.msra.mxu0 %v2089
  %2296 = vmatprep.subr.mxu0 %v2098
  %2297 = vmatpush1.msra.mxu0 %v2097
  %2298 = vmatprep.subr.mxu0 %v2106
  %2299 = vmatpush1.msra.mxu0 %v2105
  %2300 = vmatprep.subr.mxu0 %v2114
  %2301 = vmatpush1.msra.mxu0 %v2113
  %2302 = vmatprep.subr.mxu0 %v2122
  %2303 = vmatpush1.msra.mxu0 %v2121
  %2304 = vmatprep.subr.mxu0 %v2130
  %2305 = vmatpush1.msra.mxu0 %v2129
  %2306 = vmatprep.subr.mxu0 %v2138
  %2307 = vmatpush1.msra.mxu0 %v2137
  %2308 = vmatprep.subr.mxu0 %v2146
  %2309 = vmatpush1.msra.mxu0 %v2145
  %2310 = vmatprep.subr.mxu0 %v2154
  %2311 = vmatpush1.msra.mxu0 %v2153
  %2312 = vmatprep.subr.mxu0 %v2162
  %2313 = vmatpush1.msra.mxu0 %v2161
  %2314 = vmatprep.subr.mxu0 %v2170
  %2315 = vmatpush1.msra.mxu0 %v2169
  %2316 = vmatprep.subr.mxu0 %v2178
  %2317 = vmatpush1.msra.mxu0 %v2177
  %2318 = vmatprep.mubr.f32.mxu0 %v1926
  %2319 = vmatmul.mubr.f32.gmra.mrb[0].mxu0 %v1925
  %v2320 = vpop.f32.mrb[0].mxu0
  %v2321 = vadd.f32 0.0, %v2320
  %v2322 = vpop.f32.mrb[0].mxu0
  %v2323 = vadd.f32 0.0, %v2322
  %2324 = vdwg.mxu0
  %2325 = vmatprep.subr.mxu0 %v1932
  %2326 = vmatpush1.msra.mxu0 %v1931
  %2327 = vmatprep.subr.mxu0 %v1940
  %2328 = vmatpush1.msra.mxu0 %v1939
  %2329 = vmatprep.subr.mxu0 %v1948
  %2330 = vmatpush1.msra.mxu0 %v1947
  %2331 = vmatprep.subr.mxu0 %v1956
  %2332 = vmatpush1.msra.mxu0 %v1955
  %2333 = vmatprep.subr.mxu0 %v1964
  %2334 = vmatpush1.msra.mxu0 %v1963
  %2335 = vmatprep.subr.mxu0 %v1972
  %2336 = vmatpush1.msra.mxu0 %v1971
  %2337 = vmatprep.subr.mxu0 %v1980
  %2338 = vmatpush1.msra.mxu0 %v1979
  %2339 = vmatprep.subr.mxu0 %v1988
  %2340 = vmatpush1.msra.mxu0 %v1987
  %2341 = vmatprep.subr.mxu0 %v1996
  %2342 = vmatpush1.msra.mxu0 %v1995
  %2343 = vmatprep.subr.mxu0 %v2004
  %2344 = vmatpush1.msra.mxu0 %v2003
  %2345 = vmatprep.subr.mxu0 %v2012
  %2346 = vmatpush1.msra.mxu0 %v2011
  %2347 = vmatprep.subr.mxu0 %v2020
  %2348 = vmatpush1.msra.mxu0 %v2019
  %2349 = vmatprep.subr.mxu0 %v2028
  %2350 = vmatpush1.msra.mxu0 %v2027
  %2351 = vmatprep.subr.mxu0 %v2036
  %2352 = vmatpush1.msra.mxu0 %v2035
  %2353 = vmatprep.subr.mxu0 %v2044
  %2354 = vmatpush1.msra.mxu0 %v2043
  %2355 = vmatprep.subr.mxu0 %v2052
  %2356 = vmatpush1.msra.mxu0 %v2051
  %2357 = vmatprep.subr.mxu0 %v2060
  %2358 = vmatpush1.msra.mxu0 %v2059
  %2359 = vmatprep.subr.mxu0 %v2068
  %2360 = vmatpush1.msra.mxu0 %v2067
  %2361 = vmatprep.subr.mxu0 %v2076
  %2362 = vmatpush1.msra.mxu0 %v2075
  %2363 = vmatprep.subr.mxu0 %v2084
  %2364 = vmatpush1.msra.mxu0 %v2083
  %2365 = vmatprep.subr.mxu0 %v2092
  %2366 = vmatpush1.msra.mxu0 %v2091
  %2367 = vmatprep.subr.mxu0 %v2100
  %2368 = vmatpush1.msra.mxu0 %v2099
  %2369 = vmatprep.subr.mxu0 %v2108
  %2370 = vmatpush1.msra.mxu0 %v2107
  %2371 = vmatprep.subr.mxu0 %v2116
  %2372 = vmatpush1.msra.mxu0 %v2115
  %2373 = vmatprep.subr.mxu0 %v2124
  %2374 = vmatpush1.msra.mxu0 %v2123
  %2375 = vmatprep.subr.mxu0 %v2132
  %2376 = vmatpush1.msra.mxu0 %v2131
  %2377 = vmatprep.subr.mxu0 %v2140
  %2378 = vmatpush1.msra.mxu0 %v2139
  %2379 = vmatprep.subr.mxu0 %v2148
  %2380 = vmatpush1.msra.mxu0 %v2147
  %2381 = vmatprep.subr.mxu0 %v2156
  %2382 = vmatpush1.msra.mxu0 %v2155
  %2383 = vmatprep.subr.mxu0 %v2164
  %2384 = vmatpush1.msra.mxu0 %v2163
  %2385 = vmatprep.subr.mxu0 %v2172
  %2386 = vmatpush1.msra.mxu0 %v2171
  %2387 = vmatprep.subr.mxu0 %v2180
  %2388 = vmatpush1.msra.mxu0 %v2179
  %2389 = vmatprep.mubr.f32.mxu0 %v1926
  %2390 = vmatmul.mubr.f32.gmra.mrb[0].mxu0 %v1925
  %v2391 = vpop.f32.mrb[0].mxu0
  %v2392 = vadd.f32 0.0, %v2391
  %v2393 = vpop.f32.mrb[0].mxu0
  %v2394 = vadd.f32 0.0, %v2393
  %2395 = vdwg.mxu0
  %2396 = vmatprep.subr.mxu0 %v1934
  %2397 = vmatpush1.msra.mxu0 %v1933
  %2398 = vmatprep.subr.mxu0 %v1942
  %2399 = vmatpush1.msra.mxu0 %v1941
  %2400 = vmatprep.subr.mxu0 %v1950
  %2401 = vmatpush1.msra.mxu0 %v1949
  %2402 = vmatprep.subr.mxu0 %v1958
  %2403 = vmatpush1.msra.mxu0 %v1957
  %2404 = vmatprep.subr.mxu0 %v1966
  %2405 = vmatpush1.msra.mxu0 %v1965
  %2406 = vmatprep.subr.mxu0 %v1974
  %2407 = vmatpush1.msra.mxu0 %v1973
  %2408 = vmatprep.subr.mxu0 %v1982
  %2409 = vmatpush1.msra.mxu0 %v1981
  %2410 = vmatprep.subr.mxu0 %v1990
  %2411 = vmatpush1.msra.mxu0 %v1989
  %2412 = vmatprep.subr.mxu0 %v1998
  %2413 = vmatpush1.msra.mxu0 %v1997
  %2414 = vmatprep.subr.mxu0 %v2006
  %2415 = vmatpush1.msra.mxu0 %v2005
  %2416 = vmatprep.subr.mxu0 %v2014
  %2417 = vmatpush1.msra.mxu0 %v2013
  %2418 = vmatprep.subr.mxu0 %v2022
  %2419 = vmatpush1.msra.mxu0 %v2021
  %2420 = vmatprep.subr.mxu0 %v2030
  %2421 = vmatpush1.msra.mxu0 %v2029
  %2422 = vmatprep.subr.mxu0 %v2038
  %2423 = vmatpush1.msra.mxu0 %v2037
  %2424 = vmatprep.subr.mxu0 %v2046
  %2425 = vmatpush1.msra.mxu0 %v2045
  %2426 = vmatprep.subr.mxu0 %v2054
  %2427 = vmatpush1.msra.mxu0 %v2053
  %2428 = vmatprep.subr.mxu0 %v2062
  %2429 = vmatpush1.msra.mxu0 %v2061
  %2430 = vmatprep.subr.mxu0 %v2070
  %2431 = vmatpush1.msra.mxu0 %v2069
  %2432 = vmatprep.subr.mxu0 %v2078
  %2433 = vmatpush1.msra.mxu0 %v2077
  %2434 = vmatprep.subr.mxu0 %v2086
  %2435 = vmatpush1.msra.mxu0 %v2085
  %2436 = vmatprep.subr.mxu0 %v2094
  %2437 = vmatpush1.msra.mxu0 %v2093
  %2438 = vmatprep.subr.mxu0 %v2102
  %2439 = vmatpush1.msra.mxu0 %v2101
  %2440 = vmatprep.subr.mxu0 %v2110
  %2441 = vmatpush1.msra.mxu0 %v2109
  %2442 = vmatprep.subr.mxu0 %v2118
  %2443 = vmatpush1.msra.mxu0 %v2117
  %2444 = vmatprep.subr.mxu0 %v2126
  %2445 = vmatpush1.msra.mxu0 %v2125
  %2446 = vmatprep.subr.mxu0 %v2134
  %2447 = vmatpush1.msra.mxu0 %v2133
  %2448 = vmatprep.subr.mxu0 %v2142
  %2449 = vmatpush1.msra.mxu0 %v2141
  %2450 = vmatprep.subr.mxu0 %v2150
  %2451 = vmatpush1.msra.mxu0 %v2149
  %2452 = vmatprep.subr.mxu0 %v2158
  %2453 = vmatpush1.msra.mxu0 %v2157
  %2454 = vmatprep.subr.mxu0 %v2166
  %2455 = vmatpush1.msra.mxu0 %v2165
  %2456 = vmatprep.subr.mxu0 %v2174
  %2457 = vmatpush1.msra.mxu0 %v2173
  %2458 = vmatprep.subr.mxu0 %v2182
  %2459 = vmatpush1.msra.mxu0 %v2181
  %2460 = vmatprep.mubr.f32.mxu0 %v1926
  %2461 = vmatmul.mubr.f32.gmra.mrb[0].mxu0 %v1925
  %v2462 = vpop.f32.mrb[0].mxu0
  %v2463 = vadd.f32 0.0, %v2462
  %v2464 = vpop.f32.mrb[0].mxu0
  %v2465 = vadd.f32 0.0, %v2464
  %2466 = vdwg.mxu0
  %v2467 = vld [vmem:[%s4] sm:$0xf]
  %v2469 = vlaneseq
  %v2470 = vshrl.u32 %v2469, 7
  %v2471 = vsub.s32 0, %v2470
  %v2472 = vrot.slane %v2467, %v2471
  %v2473 = vlaneseq
  %v2474 = vshrl.u32 %v2473, 7
  %v2475 = vsub.s32 1, %v2474
  %v2476 = vrot.slane %v2467, %v2475
  %v2477 = vlaneseq
  %v2478 = vshrl.u32 %v2477, 7
  %v2479 = vsub.s32 2, %v2478
  %v2480 = vrot.slane %v2467, %v2479
  %v2481 = vlaneseq
  %v2482 = vshrl.u32 %v2481, 7
  %v2483 = vsub.s32 3, %v2482
  %v2484 = vrot.slane %v2467, %v2483
  %v2489 = vadd.f32 %v2392, %v2472
  %v2490 = vadd.f32 %v2394, %v2476
  %v2491 = vadd.f32 %v2463, %v2480
  %v2492 = vadd.f32 %v2465, %v2484
  %v2493 = vld [vmem:[#allocation6] sm:$0xff]
  %v2494 = vxor.u32 %v2489, 2147483648
  %v2495 = vmul.f32 %v2494, 1.442695
  %v2496 = vpow.pop %v2495
  %v2497 = vadd.f32 %v2496, 1.0
  %v2498 = vrcp.pop %v2497
  %v2499 = vmul.f32 1.0, %v2498
  %v2500 = vxor.u32 %v2490, 2147483648
  %v2501 = vmul.f32 %v2500, 1.442695
  %v2502 = vpow.pop %v2501
  %v2503 = vadd.f32 %v2502, 1.0
  %v2504 = vrcp.pop %v2503
  %v2505 = vmul.f32 1.0, %v2504
  %v2506 = vtanh.pop %v2491
  %v2507 = vxor.u32 %v2492, 2147483648
  %v2508 = vmul.f32 %v2507, 1.442695
  %v2509 = vpow.pop %v2508
  %v2510 = vadd.f32 %v2509, 1.0
  %v2511 = vrcp.pop %v2510
  %v2512 = vmul.f32 1.0, %v2511
  %v2513 = vmul.f32 %v2505, %v2493
  %v2514 = vmul.f32 %v2499, %v2506
  %v2515 = vadd.f32 %v2513, %v2514
  %v2516 = vtanh.pop %v2515
  %v2517 = vmul.f32 %v2512, %v2516
  %2518 = vst [vmem:[#allocation6] sm:$0xff] %v2515
  %s2519 = scalar_lea.vmem [#allocation3], 16
  %2520 = vst [vmem:[%s2519] sm:$0xff] %v2517
  %s2521 = smul.u32 3, 4
  %s2522 = smul.addr %s2521, 8
  %s2523 = scalar_lea.vmem [#allocation2], %s2522
  %v2524 = vld [vmem:[%s2523] sm:$0xff]
  %v2525 = vld [vmem:[%s2523 + $0x8] sm:$0xff]
  %v2526 = vld [vmem:[%s2523 + $0x10] sm:$0xff]
  %v2527 = vld [vmem:[%s2523 + $0x18] sm:$0xff]
  %v2528 = vadd.f32 %v2250, %v2524
  %v2529 = vadd.f32 %v2252, %v2525
  %v2530 = vadd.f32 %v2321, %v2526
  %v2531 = vadd.f32 %v2323, %v2527
  %v2532 = vld [vmem:[#allocation5] sm:$0xff]
  %v2533 = vxor.u32 %v2528, 2147483648
  %v2534 = vmul.f32 %v2533, 1.442695
  %v2535 = vpow.pop %v2534
  %v2536 = vadd.f32 %v2535, 1.0
  %v2537 = vrcp.pop %v2536
  %v2538 = vmul.f32 1.0, %v2537
  %v2539 = vxor.u32 %v2529, 2147483648
  %v2540 = vmul.f32 %v2539, 1.442695
  %v2541 = vpow.pop %v2540
  %v2542 = vadd.f32 %v2541, 1.0
  %v2543 = vrcp.pop %v2542
  %v2544 = vmul.f32 1.0, %v2543
  %v2545 = vtanh.pop %v2530
  %v2546 = vxor.u32 %v2531, 2147483648
  %v2547 = vmul.f32 %v2546, 1.442695
  %v2548 = vpow.pop %v2547
  %v2549 = vadd.f32 %v2548, 1.0
  %v2550 = vrcp.pop %v2549
  %v2551 = vmul.f32 1.0, %v2550
  %v2552 = vmul.f32 %v2544, %v2532
  %v2553 = vmul.f32 %v2538, %v2545
  %v2554 = vadd.f32 %v2552, %v2553
  %v2555 = vtanh.pop %v2554
  %v2556 = vmul.f32 %v2551, %v2555
  %2557 = vst [vmem:[#allocation5] sm:$0xff] %v2554
  %2558 = vst [vmem:[#allocation4] sm:$0xff] %v2556
  %2559 = vst [vmem:[#allocation4 + $0x8] sm:$0xff] %v2517
  %v2560 = vld [vmem:[#allocation4] sm:$0xff]
  %v2561 = vld [vmem:[#allocation4 + $0x8] sm:$0xff]
  %v2562 = vld [vmem:[%s3] sm:$0xff]
  %v2563 = vld [vmem:[%s3 + $0x8] sm:$0xff]
  %v2564 = vld [vmem:[%s3 + $0x10] sm:$0xff]
  %v2565 = vld [vmem:[%s3 + $0x18] sm:$0xff]
  %v2566 = vld [vmem:[%s3 + $0x20] sm:$0xff]
  %v2567 = vld [vmem:[%s3 + $0x28] sm:$0xff]
  %v2568 = vld [vmem:[%s3 + $0x30] sm:$0xff]
  %v2569 = vld [vmem:[%s3 + $0x38] sm:$0xff]
  %v2570 = vld [vmem:[%s3 + $0x40] sm:$0xff]
  %v2571 = vld [vmem:[%s3 + $0x48] sm:$0xff]
  %v2572 = vld [vmem:[%s3 + $0x50] sm:$0xff]
  %v2573 = vld [vmem:[%s3 + $0x58] sm:$0xff]
  %v2574 = vld [vmem:[%s3 + $0x60] sm:$0xff]
  %v2575 = vld [vmem:[%s3 + $0x68] sm:$0xff]
  %v2576 = vld [vmem:[%s3 + $0x70] sm:$0xff]
  %v2577 = vld [vmem:[%s3 + $0x78] sm:$0xff]
  %v2578 = vld [vmem:[%s3 + $0x80] sm:$0xff]
  %v2579 = vld [vmem:[%s3 + $0x88] sm:$0xff]
  %v2580 = vld [vmem:[%s3 + $0x90] sm:$0xff]
  %v2581 = vld [vmem:[%s3 + $0x98] sm:$0xff]
  %v2582 = vld [vmem:[%s3 + $0xa0] sm:$0xff]
  %v2583 = vld [vmem:[%s3 + $0xa8] sm:$0xff]
  %v2584 = vld [vmem:[%s3 + $0xb0] sm:$0xff]
  %v2585 = vld [vmem:[%s3 + $0xb8] sm:$0xff]
  %v2586 = vld [vmem:[%s3 + $0xc0] sm:$0xff]
  %v2587 = vld [vmem:[%s3 + $0xc8] sm:$0xff]
  %v2588 = vld [vmem:[%s3 + $0xd0] sm:$0xff]
  %v2589 = vld [vmem:[%s3 + $0xd8] sm:$0xff]
  %v2590 = vld [vmem:[%s3 + $0xe0] sm:$0xff]
  %v2591 = vld [vmem:[%s3 + $0xe8] sm:$0xff]
  %v2592 = vld [vmem:[%s3 + $0xf0] sm:$0xff]
  %v2593 = vld [vmem:[%s3 + $0xf8] sm:$0xff]
  %v2594 = vld [vmem:[%s3 + $0x100] sm:$0xff]
  %v2595 = vld [vmem:[%s3 + $0x108] sm:$0xff]
  %v2596 = vld [vmem:[%s3 + $0x110] sm:$0xff]
  %v2597 = vld [vmem:[%s3 + $0x118] sm:$0xff]
  %v2598 = vld [vmem:[%s3 + $0x120] sm:$0xff]
  %v2599 = vld [vmem:[%s3 + $0x128] sm:$0xff]
  %v2600 = vld [vmem:[%s3 + $0x130] sm:$0xff]
  %v2601 = vld [vmem:[%s3 + $0x138] sm:$0xff]
  %v2602 = vld [vmem:[%s3 + $0x140] sm:$0xff]
  %v2603 = vld [vmem:[%s3 + $0x148] sm:$0xff]
  %v2604 = vld [vmem:[%s3 + $0x150] sm:$0xff]
  %v2605 = vld [vmem:[%s3 + $0x158] sm:$0xff]
  %v2606 = vld [vmem:[%s3 + $0x160] sm:$0xff]
  %v2607 = vld [vmem:[%s3 + $0x168] sm:$0xff]
  %v2608 = vld [vmem:[%s3 + $0x170] sm:$0xff]
  %v2609 = vld [vmem:[%s3 + $0x178] sm:$0xff]
  %v2610 = vld [vmem:[%s3 + $0x180] sm:$0xff]
  %v2611 = vld [vmem:[%s3 + $0x188] sm:$0xff]
  %v2612 = vld [vmem:[%s3 + $0x190] sm:$0xff]
  %v2613 = vld [vmem:[%s3 + $0x198] sm:$0xff]
  %v2614 = vld [vmem:[%s3 + $0x1a0] sm:$0xff]
  %v2615 = vld [vmem:[%s3 + $0x1a8] sm:$0xff]
  %v2616 = vld [vmem:[%s3 + $0x1b0] sm:$0xff]
  %v2617 = vld [vmem:[%s3 + $0x1b8] sm:$0xff]
  %v2618 = vld [vmem:[%s3 + $0x1c0] sm:$0xff]
  %v2619 = vld [vmem:[%s3 + $0x1c8] sm:$0xff]
  %v2620 = vld [vmem:[%s3 + $0x1d0] sm:$0xff]
  %v2621 = vld [vmem:[%s3 + $0x1d8] sm:$0xff]
  %v2622 = vld [vmem:[%s3 + $0x1e0] sm:$0xff]
  %v2623 = vld [vmem:[%s3 + $0x1e8] sm:$0xff]
  %v2624 = vld [vmem:[%s3 + $0x1f0] sm:$0xff]
  %v2625 = vld [vmem:[%s3 + $0x1f8] sm:$0xff]
  %v2626 = vld [vmem:[%s3 + $0x200] sm:$0xff]
  %v2627 = vld [vmem:[%s3 + $0x208] sm:$0xff]
  %v2628 = vld [vmem:[%s3 + $0x210] sm:$0xff]
  %v2629 = vld [vmem:[%s3 + $0x218] sm:$0xff]
  %v2630 = vld [vmem:[%s3 + $0x220] sm:$0xff]
  %v2631 = vld [vmem:[%s3 + $0x228] sm:$0xff]
  %v2632 = vld [vmem:[%s3 + $0x230] sm:$0xff]
  %v2633 = vld [vmem:[%s3 + $0x238] sm:$0xff]
  %v2634 = vld [vmem:[%s3 + $0x240] sm:$0xff]
  %v2635 = vld [vmem:[%s3 + $0x248] sm:$0xff]
  %v2636 = vld [vmem:[%s3 + $0x250] sm:$0xff]
  %v2637 = vld [vmem:[%s3 + $0x258] sm:$0xff]
  %v2638 = vld [vmem:[%s3 + $0x260] sm:$0xff]
  %v2639 = vld [vmem:[%s3 + $0x268] sm:$0xff]
  %v2640 = vld [vmem:[%s3 + $0x270] sm:$0xff]
  %v2641 = vld [vmem:[%s3 + $0x278] sm:$0xff]
  %v2642 = vld [vmem:[%s3 + $0x280] sm:$0xff]
  %v2643 = vld [vmem:[%s3 + $0x288] sm:$0xff]
  %v2644 = vld [vmem:[%s3 + $0x290] sm:$0xff]
  %v2645 = vld [vmem:[%s3 + $0x298] sm:$0xff]
  %v2646 = vld [vmem:[%s3 + $0x2a0] sm:$0xff]
  %v2647 = vld [vmem:[%s3 + $0x2a8] sm:$0xff]
  %v2648 = vld [vmem:[%s3 + $0x2b0] sm:$0xff]
  %v2649 = vld [vmem:[%s3 + $0x2b8] sm:$0xff]
  %v2650 = vld [vmem:[%s3 + $0x2c0] sm:$0xff]
  %v2651 = vld [vmem:[%s3 + $0x2c8] sm:$0xff]
  %v2652 = vld [vmem:[%s3 + $0x2d0] sm:$0xff]
  %v2653 = vld [vmem:[%s3 + $0x2d8] sm:$0xff]
  %v2654 = vld [vmem:[%s3 + $0x2e0] sm:$0xff]
  %v2655 = vld [vmem:[%s3 + $0x2e8] sm:$0xff]
  %v2656 = vld [vmem:[%s3 + $0x2f0] sm:$0xff]
  %v2657 = vld [vmem:[%s3 + $0x2f8] sm:$0xff]
  %v2658 = vld [vmem:[%s3 + $0x300] sm:$0xff]
  %v2659 = vld [vmem:[%s3 + $0x308] sm:$0xff]
  %v2660 = vld [vmem:[%s3 + $0x310] sm:$0xff]
  %v2661 = vld [vmem:[%s3 + $0x318] sm:$0xff]
  %v2662 = vld [vmem:[%s3 + $0x320] sm:$0xff]
  %v2663 = vld [vmem:[%s3 + $0x328] sm:$0xff]
  %v2664 = vld [vmem:[%s3 + $0x330] sm:$0xff]
  %v2665 = vld [vmem:[%s3 + $0x338] sm:$0xff]
  %v2666 = vld [vmem:[%s3 + $0x340] sm:$0xff]
  %v2667 = vld [vmem:[%s3 + $0x348] sm:$0xff]
  %v2668 = vld [vmem:[%s3 + $0x350] sm:$0xff]
  %v2669 = vld [vmem:[%s3 + $0x358] sm:$0xff]
  %v2670 = vld [vmem:[%s3 + $0x360] sm:$0xff]
  %v2671 = vld [vmem:[%s3 + $0x368] sm:$0xff]
  %v2672 = vld [vmem:[%s3 + $0x370] sm:$0xff]
  %v2673 = vld [vmem:[%s3 + $0x378] sm:$0xff]
  %v2674 = vld [vmem:[%s3 + $0x380] sm:$0xff]
  %v2675 = vld [vmem:[%s3 + $0x388] sm:$0xff]
  %v2676 = vld [vmem:[%s3 + $0x390] sm:$0xff]
  %v2677 = vld [vmem:[%s3 + $0x398] sm:$0xff]
  %v2678 = vld [vmem:[%s3 + $0x3a0] sm:$0xff]
  %v2679 = vld [vmem:[%s3 + $0x3a8] sm:$0xff]
  %v2680 = vld [vmem:[%s3 + $0x3b0] sm:$0xff]
  %v2681 = vld [vmem:[%s3 + $0x3b8] sm:$0xff]
  %v2682 = vld [vmem:[%s3 + $0x3c0] sm:$0xff]
  %v2683 = vld [vmem:[%s3 + $0x3c8] sm:$0xff]
  %v2684 = vld [vmem:[%s3 + $0x3d0] sm:$0xff]
  %v2685 = vld [vmem:[%s3 + $0x3d8] sm:$0xff]
  %v2686 = vld [vmem:[%s3 + $0x3e0] sm:$0xff]
  %v2687 = vld [vmem:[%s3 + $0x3e8] sm:$0xff]
  %v2688 = vld [vmem:[%s3 + $0x3f0] sm:$0xff]
  %v2689 = vld [vmem:[%s3 + $0x3f8] sm:$0xff]
  %v2690 = vld [vmem:[%s3 + $0x400] sm:$0xff]
  %v2691 = vld [vmem:[%s3 + $0x408] sm:$0xff]
  %v2692 = vld [vmem:[%s3 + $0x410] sm:$0xff]
  %v2693 = vld [vmem:[%s3 + $0x418] sm:$0xff]
  %v2694 = vld [vmem:[%s3 + $0x420] sm:$0xff]
  %v2695 = vld [vmem:[%s3 + $0x428] sm:$0xff]
  %v2696 = vld [vmem:[%s3 + $0x430] sm:$0xff]
  %v2697 = vld [vmem:[%s3 + $0x438] sm:$0xff]
  %v2698 = vld [vmem:[%s3 + $0x440] sm:$0xff]
  %v2699 = vld [vmem:[%s3 + $0x448] sm:$0xff]
  %v2700 = vld [vmem:[%s3 + $0x450] sm:$0xff]
  %v2701 = vld [vmem:[%s3 + $0x458] sm:$0xff]
  %v2702 = vld [vmem:[%s3 + $0x460] sm:$0xff]
  %v2703 = vld [vmem:[%s3 + $0x468] sm:$0xff]
  %v2704 = vld [vmem:[%s3 + $0x470] sm:$0xff]
  %v2705 = vld [vmem:[%s3 + $0x478] sm:$0xff]
  %v2706 = vld [vmem:[%s3 + $0x480] sm:$0xff]
  %v2707 = vld [vmem:[%s3 + $0x488] sm:$0xff]
  %v2708 = vld [vmem:[%s3 + $0x490] sm:$0xff]
  %v2709 = vld [vmem:[%s3 + $0x498] sm:$0xff]
  %v2710 = vld [vmem:[%s3 + $0x4a0] sm:$0xff]
  %v2711 = vld [vmem:[%s3 + $0x4a8] sm:$0xff]
  %v2712 = vld [vmem:[%s3 + $0x4b0] sm:$0xff]
  %v2713 = vld [vmem:[%s3 + $0x4b8] sm:$0xff]
  %v2714 = vld [vmem:[%s3 + $0x4c0] sm:$0xff]
  %v2715 = vld [vmem:[%s3 + $0x4c8] sm:$0xff]
  %v2716 = vld [vmem:[%s3 + $0x4d0] sm:$0xff]
  %v2717 = vld [vmem:[%s3 + $0x4d8] sm:$0xff]
  %v2718 = vld [vmem:[%s3 + $0x4e0] sm:$0xff]
  %v2719 = vld [vmem:[%s3 + $0x4e8] sm:$0xff]
  %v2720 = vld [vmem:[%s3 + $0x4f0] sm:$0xff]
  %v2721 = vld [vmem:[%s3 + $0x4f8] sm:$0xff]
  %v2722 = vld [vmem:[%s3 + $0x500] sm:$0xff]
  %v2723 = vld [vmem:[%s3 + $0x508] sm:$0xff]
  %v2724 = vld [vmem:[%s3 + $0x510] sm:$0xff]
  %v2725 = vld [vmem:[%s3 + $0x518] sm:$0xff]
  %v2726 = vld [vmem:[%s3 + $0x520] sm:$0xff]
  %v2727 = vld [vmem:[%s3 + $0x528] sm:$0xff]
  %v2728 = vld [vmem:[%s3 + $0x530] sm:$0xff]
  %v2729 = vld [vmem:[%s3 + $0x538] sm:$0xff]
  %v2730 = vld [vmem:[%s3 + $0x540] sm:$0xff]
  %v2731 = vld [vmem:[%s3 + $0x548] sm:$0xff]
  %v2732 = vld [vmem:[%s3 + $0x550] sm:$0xff]
  %v2733 = vld [vmem:[%s3 + $0x558] sm:$0xff]
  %v2734 = vld [vmem:[%s3 + $0x560] sm:$0xff]
  %v2735 = vld [vmem:[%s3 + $0x568] sm:$0xff]
  %v2736 = vld [vmem:[%s3 + $0x570] sm:$0xff]
  %v2737 = vld [vmem:[%s3 + $0x578] sm:$0xff]
  %v2738 = vld [vmem:[%s3 + $0x580] sm:$0xff]
  %v2739 = vld [vmem:[%s3 + $0x588] sm:$0xff]
  %v2740 = vld [vmem:[%s3 + $0x590] sm:$0xff]
  %v2741 = vld [vmem:[%s3 + $0x598] sm:$0xff]
  %v2742 = vld [vmem:[%s3 + $0x5a0] sm:$0xff]
  %v2743 = vld [vmem:[%s3 + $0x5a8] sm:$0xff]
  %v2744 = vld [vmem:[%s3 + $0x5b0] sm:$0xff]
  %v2745 = vld [vmem:[%s3 + $0x5b8] sm:$0xff]
  %v2746 = vld [vmem:[%s3 + $0x5c0] sm:$0xff]
  %v2747 = vld [vmem:[%s3 + $0x5c8] sm:$0xff]
  %v2748 = vld [vmem:[%s3 + $0x5d0] sm:$0xff]
  %v2749 = vld [vmem:[%s3 + $0x5d8] sm:$0xff]
  %v2750 = vld [vmem:[%s3 + $0x5e0] sm:$0xff]
  %v2751 = vld [vmem:[%s3 + $0x5e8] sm:$0xff]
  %v2752 = vld [vmem:[%s3 + $0x5f0] sm:$0xff]
  %v2753 = vld [vmem:[%s3 + $0x5f8] sm:$0xff]
  %v2754 = vld [vmem:[%s3 + $0x600] sm:$0xff]
  %v2755 = vld [vmem:[%s3 + $0x608] sm:$0xff]
  %v2756 = vld [vmem:[%s3 + $0x610] sm:$0xff]
  %v2757 = vld [vmem:[%s3 + $0x618] sm:$0xff]
  %v2758 = vld [vmem:[%s3 + $0x620] sm:$0xff]
  %v2759 = vld [vmem:[%s3 + $0x628] sm:$0xff]
  %v2760 = vld [vmem:[%s3 + $0x630] sm:$0xff]
  %v2761 = vld [vmem:[%s3 + $0x638] sm:$0xff]
  %v2762 = vld [vmem:[%s3 + $0x640] sm:$0xff]
  %v2763 = vld [vmem:[%s3 + $0x648] sm:$0xff]
  %v2764 = vld [vmem:[%s3 + $0x650] sm:$0xff]
  %v2765 = vld [vmem:[%s3 + $0x658] sm:$0xff]
  %v2766 = vld [vmem:[%s3 + $0x660] sm:$0xff]
  %v2767 = vld [vmem:[%s3 + $0x668] sm:$0xff]
  %v2768 = vld [vmem:[%s3 + $0x670] sm:$0xff]
  %v2769 = vld [vmem:[%s3 + $0x678] sm:$0xff]
  %v2770 = vld [vmem:[%s3 + $0x680] sm:$0xff]
  %v2771 = vld [vmem:[%s3 + $0x688] sm:$0xff]
  %v2772 = vld [vmem:[%s3 + $0x690] sm:$0xff]
  %v2773 = vld [vmem:[%s3 + $0x698] sm:$0xff]
  %v2774 = vld [vmem:[%s3 + $0x6a0] sm:$0xff]
  %v2775 = vld [vmem:[%s3 + $0x6a8] sm:$0xff]
  %v2776 = vld [vmem:[%s3 + $0x6b0] sm:$0xff]
  %v2777 = vld [vmem:[%s3 + $0x6b8] sm:$0xff]
  %v2778 = vld [vmem:[%s3 + $0x6c0] sm:$0xff]
  %v2779 = vld [vmem:[%s3 + $0x6c8] sm:$0xff]
  %v2780 = vld [vmem:[%s3 + $0x6d0] sm:$0xff]
  %v2781 = vld [vmem:[%s3 + $0x6d8] sm:$0xff]
  %v2782 = vld [vmem:[%s3 + $0x6e0] sm:$0xff]
  %v2783 = vld [vmem:[%s3 + $0x6e8] sm:$0xff]
  %v2784 = vld [vmem:[%s3 + $0x6f0] sm:$0xff]
  %v2785 = vld [vmem:[%s3 + $0x6f8] sm:$0xff]
  %v2786 = vld [vmem:[%s3 + $0x700] sm:$0xff]
  %v2787 = vld [vmem:[%s3 + $0x708] sm:$0xff]
  %v2788 = vld [vmem:[%s3 + $0x710] sm:$0xff]
  %v2789 = vld [vmem:[%s3 + $0x718] sm:$0xff]
  %v2790 = vld [vmem:[%s3 + $0x720] sm:$0xff]
  %v2791 = vld [vmem:[%s3 + $0x728] sm:$0xff]
  %v2792 = vld [vmem:[%s3 + $0x730] sm:$0xff]
  %v2793 = vld [vmem:[%s3 + $0x738] sm:$0xff]
  %v2794 = vld [vmem:[%s3 + $0x740] sm:$0xff]
  %v2795 = vld [vmem:[%s3 + $0x748] sm:$0xff]
  %v2796 = vld [vmem:[%s3 + $0x750] sm:$0xff]
  %v2797 = vld [vmem:[%s3 + $0x758] sm:$0xff]
  %v2798 = vld [vmem:[%s3 + $0x760] sm:$0xff]
  %v2799 = vld [vmem:[%s3 + $0x768] sm:$0xff]
  %v2800 = vld [vmem:[%s3 + $0x770] sm:$0xff]
  %v2801 = vld [vmem:[%s3 + $0x778] sm:$0xff]
  %v2802 = vld [vmem:[%s3 + $0x780] sm:$0xff]
  %v2803 = vld [vmem:[%s3 + $0x788] sm:$0xff]
  %v2804 = vld [vmem:[%s3 + $0x790] sm:$0xff]
  %v2805 = vld [vmem:[%s3 + $0x798] sm:$0xff]
  %v2806 = vld [vmem:[%s3 + $0x7a0] sm:$0xff]
  %v2807 = vld [vmem:[%s3 + $0x7a8] sm:$0xff]
  %v2808 = vld [vmem:[%s3 + $0x7b0] sm:$0xff]
  %v2809 = vld [vmem:[%s3 + $0x7b8] sm:$0xff]
  %v2810 = vld [vmem:[%s3 + $0x7c0] sm:$0xff]
  %v2811 = vld [vmem:[%s3 + $0x7c8] sm:$0xff]
  %v2812 = vld [vmem:[%s3 + $0x7d0] sm:$0xff]
  %v2813 = vld [vmem:[%s3 + $0x7d8] sm:$0xff]
  %v2814 = vld [vmem:[%s3 + $0x7e0] sm:$0xff]
  %v2815 = vld [vmem:[%s3 + $0x7e8] sm:$0xff]
  %v2816 = vld [vmem:[%s3 + $0x7f0] sm:$0xff]
  %v2817 = vld [vmem:[%s3 + $0x7f8] sm:$0xff]
  %2818 = vmatprep.subr.mxu0 %v2563
  %2819 = vmatpush1.msra.mxu0 %v2562
  %2820 = vmatprep.subr.mxu0 %v2571
  %2821 = vmatpush1.msra.mxu0 %v2570
  %2822 = vmatprep.subr.mxu0 %v2579
  %2823 = vmatpush1.msra.mxu0 %v2578
  %2824 = vmatprep.subr.mxu0 %v2587
  %2825 = vmatpush1.msra.mxu0 %v2586
  %2826 = vmatprep.subr.mxu0 %v2595
  %2827 = vmatpush1.msra.mxu0 %v2594
  %2828 = vmatprep.subr.mxu0 %v2603
  %2829 = vmatpush1.msra.mxu0 %v2602
  %2830 = vmatprep.subr.mxu0 %v2611
  %2831 = vmatpush1.msra.mxu0 %v2610
  %2832 = vmatprep.subr.mxu0 %v2619
  %2833 = vmatpush1.msra.mxu0 %v2618
  %2834 = vmatprep.subr.mxu0 %v2627
  %2835 = vmatpush1.msra.mxu0 %v2626
  %2836 = vmatprep.subr.mxu0 %v2635
  %2837 = vmatpush1.msra.mxu0 %v2634
  %2838 = vmatprep.subr.mxu0 %v2643
  %2839 = vmatpush1.msra.mxu0 %v2642
  %2840 = vmatprep.subr.mxu0 %v2651
  %2841 = vmatpush1.msra.mxu0 %v2650
  %2842 = vmatprep.subr.mxu0 %v2659
  %2843 = vmatpush1.msra.mxu0 %v2658
  %2844 = vmatprep.subr.mxu0 %v2667
  %2845 = vmatpush1.msra.mxu0 %v2666
  %2846 = vmatprep.subr.mxu0 %v2675
  %2847 = vmatpush1.msra.mxu0 %v2674
  %2848 = vmatprep.subr.mxu0 %v2683
  %2849 = vmatpush1.msra.mxu0 %v2682
  %2850 = vmatprep.subr.mxu0 %v2691
  %2851 = vmatpush1.msra.mxu0 %v2690
  %2852 = vmatprep.subr.mxu0 %v2699
  %2853 = vmatpush1.msra.mxu0 %v2698
  %2854 = vmatprep.subr.mxu0 %v2707
  %2855 = vmatpush1.msra.mxu0 %v2706
  %2856 = vmatprep.subr.mxu0 %v2715
  %2857 = vmatpush1.msra.mxu0 %v2714
  %2858 = vmatprep.subr.mxu0 %v2723
  %2859 = vmatpush1.msra.mxu0 %v2722
  %2860 = vmatprep.subr.mxu0 %v2731
  %2861 = vmatpush1.msra.mxu0 %v2730
  %2862 = vmatprep.subr.mxu0 %v2739
  %2863 = vmatpush1.msra.mxu0 %v2738
  %2864 = vmatprep.subr.mxu0 %v2747
  %2865 = vmatpush1.msra.mxu0 %v2746
  %2866 = vmatprep.subr.mxu0 %v2755
  %2867 = vmatpush1.msra.mxu0 %v2754
  %2868 = vmatprep.subr.mxu0 %v2763
  %2869 = vmatpush1.msra.mxu0 %v2762
  %2870 = vmatprep.subr.mxu0 %v2771
  %2871 = vmatpush1.msra.mxu0 %v2770
  %2872 = vmatprep.subr.mxu0 %v2779
  %2873 = vmatpush1.msra.mxu0 %v2778
  %2874 = vmatprep.subr.mxu0 %v2787
  %2875 = vmatpush1.msra.mxu0 %v2786
  %2876 = vmatprep.subr.mxu0 %v2795
  %2877 = vmatpush1.msra.mxu0 %v2794
  %2878 = vmatprep.subr.mxu0 %v2803
  %2879 = vmatpush1.msra.mxu0 %v2802
  %2880 = vmatprep.subr.mxu0 %v2811
  %2881 = vmatpush1.msra.mxu0 %v2810
  %2882 = vmatprep.mubr.f32.mxu0 %v2561
  %2883 = vmatmul.mubr.f32.gmra.mrb[0].mxu0 %v2560
  %v2884 = vpop.f32.mrb[0].mxu0
  %v2885 = vadd.f32 0.0, %v2884
  %v2886 = vpop.f32.mrb[0].mxu0
  %v2887 = vadd.f32 0.0, %v2886
  %2888 = vdwg.mxu0
  %2889 = vmatprep.subr.mxu0 %v2565
  %2890 = vmatpush1.msra.mxu0 %v2564
  %2891 = vmatprep.subr.mxu0 %v2573
  %2892 = vmatpush1.msra.mxu0 %v2572
  %2893 = vmatprep.subr.mxu0 %v2581
  %2894 = vmatpush1.msra.mxu0 %v2580
  %2895 = vmatprep.subr.mxu0 %v2589
  %2896 = vmatpush1.msra.mxu0 %v2588
  %2897 = vmatprep.subr.mxu0 %v2597
  %2898 = vmatpush1.msra.mxu0 %v2596
  %2899 = vmatprep.subr.mxu0 %v2605
  %2900 = vmatpush1.msra.mxu0 %v2604
  %2901 = vmatprep.subr.mxu0 %v2613
  %2902 = vmatpush1.msra.mxu0 %v2612
  %2903 = vmatprep.subr.mxu0 %v2621
  %2904 = vmatpush1.msra.mxu0 %v2620
  %2905 = vmatprep.subr.mxu0 %v2629
  %2906 = vmatpush1.msra.mxu0 %v2628
  %2907 = vmatprep.subr.mxu0 %v2637
  %2908 = vmatpush1.msra.mxu0 %v2636
  %2909 = vmatprep.subr.mxu0 %v2645
  %2910 = vmatpush1.msra.mxu0 %v2644
  %2911 = vmatprep.subr.mxu0 %v2653
  %2912 = vmatpush1.msra.mxu0 %v2652
  %2913 = vmatprep.subr.mxu0 %v2661
  %2914 = vmatpush1.msra.mxu0 %v2660
  %2915 = vmatprep.subr.mxu0 %v2669
  %2916 = vmatpush1.msra.mxu0 %v2668
  %2917 = vmatprep.subr.mxu0 %v2677
  %2918 = vmatpush1.msra.mxu0 %v2676
  %2919 = vmatprep.subr.mxu0 %v2685
  %2920 = vmatpush1.msra.mxu0 %v2684
  %2921 = vmatprep.subr.mxu0 %v2693
  %2922 = vmatpush1.msra.mxu0 %v2692
  %2923 = vmatprep.subr.mxu0 %v2701
  %2924 = vmatpush1.msra.mxu0 %v2700
  %2925 = vmatprep.subr.mxu0 %v2709
  %2926 = vmatpush1.msra.mxu0 %v2708
  %2927 = vmatprep.subr.mxu0 %v2717
  %2928 = vmatpush1.msra.mxu0 %v2716
  %2929 = vmatprep.subr.mxu0 %v2725
  %2930 = vmatpush1.msra.mxu0 %v2724
  %2931 = vmatprep.subr.mxu0 %v2733
  %2932 = vmatpush1.msra.mxu0 %v2732
  %2933 = vmatprep.subr.mxu0 %v2741
  %2934 = vmatpush1.msra.mxu0 %v2740
  %2935 = vmatprep.subr.mxu0 %v2749
  %2936 = vmatpush1.msra.mxu0 %v2748
  %2937 = vmatprep.subr.mxu0 %v2757
  %2938 = vmatpush1.msra.mxu0 %v2756
  %2939 = vmatprep.subr.mxu0 %v2765
  %2940 = vmatpush1.msra.mxu0 %v2764
  %2941 = vmatprep.subr.mxu0 %v2773
  %2942 = vmatpush1.msra.mxu0 %v2772
  %2943 = vmatprep.subr.mxu0 %v2781
  %2944 = vmatpush1.msra.mxu0 %v2780
  %2945 = vmatprep.subr.mxu0 %v2789
  %2946 = vmatpush1.msra.mxu0 %v2788
  %2947 = vmatprep.subr.mxu0 %v2797
  %2948 = vmatpush1.msra.mxu0 %v2796
  %2949 = vmatprep.subr.mxu0 %v2805
  %2950 = vmatpush1.msra.mxu0 %v2804
  %2951 = vmatprep.subr.mxu0 %v2813
  %2952 = vmatpush1.msra.mxu0 %v2812
  %2953 = vmatprep.mubr.f32.mxu0 %v2561
  %2954 = vmatmul.mubr.f32.gmra.mrb[0].mxu0 %v2560
  %v2955 = vpop.f32.mrb[0].mxu0
  %v2956 = vadd.f32 0.0, %v2955
  %v2957 = vpop.f32.mrb[0].mxu0
  %v2958 = vadd.f32 0.0, %v2957
  %2959 = vdwg.mxu0
  %2960 = vmatprep.subr.mxu0 %v2567
  %2961 = vmatpush1.msra.mxu0 %v2566
  %2962 = vmatprep.subr.mxu0 %v2575
  %2963 = vmatpush1.msra.mxu0 %v2574
  %2964 = vmatprep.subr.mxu0 %v2583
  %2965 = vmatpush1.msra.mxu0 %v2582
  %2966 = vmatprep.subr.mxu0 %v2591
  %2967 = vmatpush1.msra.mxu0 %v2590
  %2968 = vmatprep.subr.mxu0 %v2599
  %2969 = vmatpush1.msra.mxu0 %v2598
  %2970 = vmatprep.subr.mxu0 %v2607
  %2971 = vmatpush1.msra.mxu0 %v2606
  %2972 = vmatprep.subr.mxu0 %v2615
  %2973 = vmatpush1.msra.mxu0 %v2614
  %2974 = vmatprep.subr.mxu0 %v2623
  %2975 = vmatpush1.msra.mxu0 %v2622
  %2976 = vmatprep.subr.mxu0 %v2631
  %2977 = vmatpush1.msra.mxu0 %v2630
  %2978 = vmatprep.subr.mxu0 %v2639
  %2979 = vmatpush1.msra.mxu0 %v2638
  %2980 = vmatprep.subr.mxu0 %v2647
  %2981 = vmatpush1.msra.mxu0 %v2646
  %2982 = vmatprep.subr.mxu0 %v2655
  %2983 = vmatpush1.msra.mxu0 %v2654
  %2984 = vmatprep.subr.mxu0 %v2663
  %2985 = vmatpush1.msra.mxu0 %v2662
  %2986 = vmatprep.subr.mxu0 %v2671
  %2987 = vmatpush1.msra.mxu0 %v2670
  %2988 = vmatprep.subr.mxu0 %v2679
  %2989 = vmatpush1.msra.mxu0 %v2678
  %2990 = vmatprep.subr.mxu0 %v2687
  %2991 = vmatpush1.msra.mxu0 %v2686
  %2992 = vmatprep.subr.mxu0 %v2695
  %2993 = vmatpush1.msra.mxu0 %v2694
  %2994 = vmatprep.subr.mxu0 %v2703
  %2995 = vmatpush1.msra.mxu0 %v2702
  %2996 = vmatprep.subr.mxu0 %v2711
  %2997 = vmatpush1.msra.mxu0 %v2710
  %2998 = vmatprep.subr.mxu0 %v2719
  %2999 = vmatpush1.msra.mxu0 %v2718
  %3000 = vmatprep.subr.mxu0 %v2727
  %3001 = vmatpush1.msra.mxu0 %v2726
  %3002 = vmatprep.subr.mxu0 %v2735
  %3003 = vmatpush1.msra.mxu0 %v2734
  %3004 = vmatprep.subr.mxu0 %v2743
  %3005 = vmatpush1.msra.mxu0 %v2742
  %3006 = vmatprep.subr.mxu0 %v2751
  %3007 = vmatpush1.msra.mxu0 %v2750
  %3008 = vmatprep.subr.mxu0 %v2759
  %3009 = vmatpush1.msra.mxu0 %v2758
  %3010 = vmatprep.subr.mxu0 %v2767
  %3011 = vmatpush1.msra.mxu0 %v2766
  %3012 = vmatprep.subr.mxu0 %v2775
  %3013 = vmatpush1.msra.mxu0 %v2774
  %3014 = vmatprep.subr.mxu0 %v2783
  %3015 = vmatpush1.msra.mxu0 %v2782
  %3016 = vmatprep.subr.mxu0 %v2791
  %3017 = vmatpush1.msra.mxu0 %v2790
  %3018 = vmatprep.subr.mxu0 %v2799
  %3019 = vmatpush1.msra.mxu0 %v2798
  %3020 = vmatprep.subr.mxu0 %v2807
  %3021 = vmatpush1.msra.mxu0 %v2806
  %3022 = vmatprep.subr.mxu0 %v2815
  %3023 = vmatpush1.msra.mxu0 %v2814
  %3024 = vmatprep.mubr.f32.mxu0 %v2561
  %3025 = vmatmul.mubr.f32.gmra.mrb[0].mxu0 %v2560
  %v3026 = vpop.f32.mrb[0].mxu0
  %v3027 = vadd.f32 0.0, %v3026
  %v3028 = vpop.f32.mrb[0].mxu0
  %v3029 = vadd.f32 0.0, %v3028
  %3030 = vdwg.mxu0
  %3031 = vmatprep.subr.mxu0 %v2569
  %3032 = vmatpush1.msra.mxu0 %v2568
  %3033 = vmatprep.subr.mxu0 %v2577
  %3034 = vmatpush1.msra.mxu0 %v2576
  %3035 = vmatprep.subr.mxu0 %v2585
  %3036 = vmatpush1.msra.mxu0 %v2584
  %3037 = vmatprep.subr.mxu0 %v2593
  %3038 = vmatpush1.msra.mxu0 %v2592
  %3039 = vmatprep.subr.mxu0 %v2601
  %3040 = vmatpush1.msra.mxu0 %v2600
  %3041 = vmatprep.subr.mxu0 %v2609
  %3042 = vmatpush1.msra.mxu0 %v2608
  %3043 = vmatprep.subr.mxu0 %v2617
  %3044 = vmatpush1.msra.mxu0 %v2616
  %3045 = vmatprep.subr.mxu0 %v2625
  %3046 = vmatpush1.msra.mxu0 %v2624
  %3047 = vmatprep.subr.mxu0 %v2633
  %3048 = vmatpush1.msra.mxu0 %v2632
  %3049 = vmatprep.subr.mxu0 %v2641
  %3050 = vmatpush1.msra.mxu0 %v2640
  %3051 = vmatprep.subr.mxu0 %v2649
  %3052 = vmatpush1.msra.mxu0 %v2648
  %3053 = vmatprep.subr.mxu0 %v2657
  %3054 = vmatpush1.msra.mxu0 %v2656
  %3055 = vmatprep.subr.mxu0 %v2665
  %3056 = vmatpush1.msra.mxu0 %v2664
  %3057 = vmatprep.subr.mxu0 %v2673
  %3058 = vmatpush1.msra.mxu0 %v2672
  %3059 = vmatprep.subr.mxu0 %v2681
  %3060 = vmatpush1.msra.mxu0 %v2680
  %3061 = vmatprep.subr.mxu0 %v2689
  %3062 = vmatpush1.msra.mxu0 %v2688
  %3063 = vmatprep.subr.mxu0 %v2697
  %3064 = vmatpush1.msra.mxu0 %v2696
  %3065 = vmatprep.subr.mxu0 %v2705
  %3066 = vmatpush1.msra.mxu0 %v2704
  %3067 = vmatprep.subr.mxu0 %v2713
  %3068 = vmatpush1.msra.mxu0 %v2712
  %3069 = vmatprep.subr.mxu0 %v2721
  %3070 = vmatpush1.msra.mxu0 %v2720
  %3071 = vmatprep.subr.mxu0 %v2729
  %3072 = vmatpush1.msra.mxu0 %v2728
  %3073 = vmatprep.subr.mxu0 %v2737
  %3074 = vmatpush1.msra.mxu0 %v2736
  %3075 = vmatprep.subr.mxu0 %v2745
  %3076 = vmatpush1.msra.mxu0 %v2744
  %3077 = vmatprep.subr.mxu0 %v2753
  %3078 = vmatpush1.msra.mxu0 %v2752
  %3079 = vmatprep.subr.mxu0 %v2761
  %3080 = vmatpush1.msra.mxu0 %v2760
  %3081 = vmatprep.subr.mxu0 %v2769
  %3082 = vmatpush1.msra.mxu0 %v2768
  %3083 = vmatprep.subr.mxu0 %v2777
  %3084 = vmatpush1.msra.mxu0 %v2776
  %3085 = vmatprep.subr.mxu0 %v2785
  %3086 = vmatpush1.msra.mxu0 %v2784
  %3087 = vmatprep.subr.mxu0 %v2793
  %3088 = vmatpush1.msra.mxu0 %v2792
  %3089 = vmatprep.subr.mxu0 %v2801
  %3090 = vmatpush1.msra.mxu0 %v2800
  %3091 = vmatprep.subr.mxu0 %v2809
  %3092 = vmatpush1.msra.mxu0 %v2808
  %3093 = vmatprep.subr.mxu0 %v2817
  %3094 = vmatpush1.msra.mxu0 %v2816
  %3095 = vmatprep.mubr.f32.mxu0 %v2561
  %3096 = vmatmul.mubr.f32.gmra.mrb[0].mxu0 %v2560
  %v3097 = vpop.f32.mrb[0].mxu0
  %v3098 = vadd.f32 0.0, %v3097
  %v3099 = vpop.f32.mrb[0].mxu0
  %v3100 = vadd.f32 0.0, %v3099
  %3101 = vdwg.mxu0
  %v3102 = vld [vmem:[%s4] sm:$0xf]
  %v3104 = vlaneseq
  %v3105 = vshrl.u32 %v3104, 7
  %v3106 = vsub.s32 0, %v3105
  %v3107 = vrot.slane %v3102, %v3106
  %v3108 = vlaneseq
  %v3109 = vshrl.u32 %v3108, 7
  %v3110 = vsub.s32 1, %v3109
  %v3111 = vrot.slane %v3102, %v3110
  %v3112 = vlaneseq
  %v3113 = vshrl.u32 %v3112, 7
  %v3114 = vsub.s32 2, %v3113
  %v3115 = vrot.slane %v3102, %v3114
  %v3116 = vlaneseq
  %v3117 = vshrl.u32 %v3116, 7
  %v3118 = vsub.s32 3, %v3117
  %v3119 = vrot.slane %v3102, %v3118
  %v3124 = vadd.f32 %v3027, %v3107
  %v3125 = vadd.f32 %v3029, %v3111
  %v3126 = vadd.f32 %v3098, %v3115
  %v3127 = vadd.f32 %v3100, %v3119
  %v3128 = vld [vmem:[#allocation6] sm:$0xff]
  %v3129 = vxor.u32 %v3124, 2147483648
  %v3130 = vmul.f32 %v3129, 1.442695
  %v3131 = vpow.pop %v3130
  %v3132 = vadd.f32 %v3131, 1.0
  %v3133 = vrcp.pop %v3132
  %v3134 = vmul.f32 1.0, %v3133
  %v3135 = vxor.u32 %v3125, 2147483648
  %v3136 = vmul.f32 %v3135, 1.442695
  %v3137 = vpow.pop %v3136
  %v3138 = vadd.f32 %v3137, 1.0
  %v3139 = vrcp.pop %v3138
  %v3140 = vmul.f32 1.0, %v3139
  %v3141 = vtanh.pop %v3126
  %v3142 = vxor.u32 %v3127, 2147483648
  %v3143 = vmul.f32 %v3142, 1.442695
  %v3144 = vpow.pop %v3143
  %v3145 = vadd.f32 %v3144, 1.0
  %v3146 = vrcp.pop %v3145
  %v3147 = vmul.f32 1.0, %v3146
  %v3148 = vmul.f32 %v3140, %v3128
  %v3149 = vmul.f32 %v3134, %v3141
  %v3150 = vadd.f32 %v3148, %v3149
  %v3151 = vtanh.pop %v3150
  %v3152 = vmul.f32 %v3147, %v3151
  %3153 = vst [vmem:[#allocation6] sm:$0xff] %v3150
  %s3154 = scalar_lea.vmem [#allocation3], 24
  %3155 = vst [vmem:[%s3154] sm:$0xff] %v3152
  %s3156 = smul.u32 4, 4
  %s3157 = smul.addr %s3156, 8
  %s3158 = scalar_lea.vmem [#allocation2], %s3157
  %v3159 = vld [vmem:[%s3158] sm:$0xff]
  %v3160 = vld [vmem:[%s3158 + $0x8] sm:$0xff]
  %v3161 = vld [vmem:[%s3158 + $0x10] sm:$0xff]
  %v3162 = vld [vmem:[%s3158 + $0x18] sm:$0xff]
  %v3163 = vadd.f32 %v2885, %v3159
  %v3164 = vadd.f32 %v2887, %v3160
  %v3165 = vadd.f32 %v2956, %v3161
  %v3166 = vadd.f32 %v2958, %v3162
  %v3167 = vld [vmem:[#allocation5] sm:$0xff]
  %v3168 = vxor.u32 %v3163, 2147483648
  %v3169 = vmul.f32 %v3168, 1.442695
  %v3170 = vpow.pop %v3169
  %v3171 = vadd.f32 %v3170, 1.0
  %v3172 = vrcp.pop %v3171
  %v3173 = vmul.f32 1.0, %v3172
  %v3174 = vxor.u32 %v3164, 2147483648
  %v3175 = vmul.f32 %v3174, 1.442695
  %v3176 = vpow.pop %v3175
  %v3177 = vadd.f32 %v3176, 1.0
  %v3178 = vrcp.pop %v3177
  %v3179 = vmul.f32 1.0, %v3178
  %v3180 = vtanh.pop %v3165
  %v3181 = vxor.u32 %v3166, 2147483648
  %v3182 = vmul.f32 %v3181, 1.442695
  %v3183 = vpow.pop %v3182
  %v3184 = vadd.f32 %v3183, 1.0
  %v3185 = vrcp.pop %v3184
  %v3186 = vmul.f32 1.0, %v3185
  %v3187 = vmul.f32 %v3179, %v3167
  %v3188 = vmul.f32 %v3173, %v3180
  %v3189 = vadd.f32 %v3187, %v3188
  %v3190 = vtanh.pop %v3189
  %v3191 = vmul.f32 %v3186, %v3190
  %3192 = vst [vmem:[#allocation5] sm:$0xff] %v3189
  %3193 = vst [vmem:[#allocation4] sm:$0xff] %v3191
  %3194 = vst [vmem:[#allocation4 + $0x8] sm:$0xff] %v3152
  %v3195 = vld [vmem:[#allocation4] sm:$0xff]
  %v3196 = vld [vmem:[#allocation4 + $0x8] sm:$0xff]
  %v3197 = vld [vmem:[%s3] sm:$0xff]
  %v3198 = vld [vmem:[%s3 + $0x8] sm:$0xff]
  %v3199 = vld [vmem:[%s3 + $0x10] sm:$0xff]
  %v3200 = vld [vmem:[%s3 + $0x18] sm:$0xff]
  %v3201 = vld [vmem:[%s3 + $0x20] sm:$0xff]
  %v3202 = vld [vmem:[%s3 + $0x28] sm:$0xff]
  %v3203 = vld [vmem:[%s3 + $0x30] sm:$0xff]
  %v3204 = vld [vmem:[%s3 + $0x38] sm:$0xff]
  %v3205 = vld [vmem:[%s3 + $0x40] sm:$0xff]
  %v3206 = vld [vmem:[%s3 + $0x48] sm:$0xff]
  %v3207 = vld [vmem:[%s3 + $0x50] sm:$0xff]
  %v3208 = vld [vmem:[%s3 + $0x58] sm:$0xff]
  %v3209 = vld [vmem:[%s3 + $0x60] sm:$0xff]
  %v3210 = vld [vmem:[%s3 + $0x68] sm:$0xff]
  %v3211 = vld [vmem:[%s3 + $0x70] sm:$0xff]
  %v3212 = vld [vmem:[%s3 + $0x78] sm:$0xff]
  %v3213 = vld [vmem:[%s3 + $0x80] sm:$0xff]
  %v3214 = vld [vmem:[%s3 + $0x88] sm:$0xff]
  %v3215 = vld [vmem:[%s3 + $0x90] sm:$0xff]
  %v3216 = vld [vmem:[%s3 + $0x98] sm:$0xff]
  %v3217 = vld [vmem:[%s3 + $0xa0] sm:$0xff]
  %v3218 = vld [vmem:[%s3 + $0xa8] sm:$0xff]
  %v3219 = vld [vmem:[%s3 + $0xb0] sm:$0xff]
  %v3220 = vld [vmem:[%s3 + $0xb8] sm:$0xff]
  %v3221 = vld [vmem:[%s3 + $0xc0] sm:$0xff]
  %v3222 = vld [vmem:[%s3 + $0xc8] sm:$0xff]
  %v3223 = vld [vmem:[%s3 + $0xd0] sm:$0xff]
  %v3224 = vld [vmem:[%s3 + $0xd8] sm:$0xff]
  %v3225 = vld [vmem:[%s3 + $0xe0] sm:$0xff]
  %v3226 = vld [vmem:[%s3 + $0xe8] sm:$0xff]
  %v3227 = vld [vmem:[%s3 + $0xf0] sm:$0xff]
  %v3228 = vld [vmem:[%s3 + $0xf8] sm:$0xff]
  %v3229 = vld [vmem:[%s3 + $0x100] sm:$0xff]
  %v3230 = vld [vmem:[%s3 + $0x108] sm:$0xff]
  %v3231 = vld [vmem:[%s3 + $0x110] sm:$0xff]
  %v3232 = vld [vmem:[%s3 + $0x118] sm:$0xff]
  %v3233 = vld [vmem:[%s3 + $0x120] sm:$0xff]
  %v3234 = vld [vmem:[%s3 + $0x128] sm:$0xff]
  %v3235 = vld [vmem:[%s3 + $0x130] sm:$0xff]
  %v3236 = vld [vmem:[%s3 + $0x138] sm:$0xff]
  %v3237 = vld [vmem:[%s3 + $0x140] sm:$0xff]
  %v3238 = vld [vmem:[%s3 + $0x148] sm:$0xff]
  %v3239 = vld [vmem:[%s3 + $0x150] sm:$0xff]
  %v3240 = vld [vmem:[%s3 + $0x158] sm:$0xff]
  %v3241 = vld [vmem:[%s3 + $0x160] sm:$0xff]
  %v3242 = vld [vmem:[%s3 + $0x168] sm:$0xff]
  %v3243 = vld [vmem:[%s3 + $0x170] sm:$0xff]
  %v3244 = vld [vmem:[%s3 + $0x178] sm:$0xff]
  %v3245 = vld [vmem:[%s3 + $0x180] sm:$0xff]
  %v3246 = vld [vmem:[%s3 + $0x188] sm:$0xff]
  %v3247 = vld [vmem:[%s3 + $0x190] sm:$0xff]
  %v3248 = vld [vmem:[%s3 + $0x198] sm:$0xff]
  %v3249 = vld [vmem:[%s3 + $0x1a0] sm:$0xff]
  %v3250 = vld [vmem:[%s3 + $0x1a8] sm:$0xff]
  %v3251 = vld [vmem:[%s3 + $0x1b0] sm:$0xff]
  %v3252 = vld [vmem:[%s3 + $0x1b8] sm:$0xff]
  %v3253 = vld [vmem:[%s3 + $0x1c0] sm:$0xff]
  %v3254 = vld [vmem:[%s3 + $0x1c8] sm:$0xff]
  %v3255 = vld [vmem:[%s3 + $0x1d0] sm:$0xff]
  %v3256 = vld [vmem:[%s3 + $0x1d8] sm:$0xff]
  %v3257 = vld [vmem:[%s3 + $0x1e0] sm:$0xff]
  %v3258 = vld [vmem:[%s3 + $0x1e8] sm:$0xff]
  %v3259 = vld [vmem:[%s3 + $0x1f0] sm:$0xff]
  %v3260 = vld [vmem:[%s3 + $0x1f8] sm:$0xff]
  %v3261 = vld [vmem:[%s3 + $0x200] sm:$0xff]
  %v3262 = vld [vmem:[%s3 + $0x208] sm:$0xff]
  %v3263 = vld [vmem:[%s3 + $0x210] sm:$0xff]
  %v3264 = vld [vmem:[%s3 + $0x218] sm:$0xff]
  %v3265 = vld [vmem:[%s3 + $0x220] sm:$0xff]
  %v3266 = vld [vmem:[%s3 + $0x228] sm:$0xff]
  %v3267 = vld [vmem:[%s3 + $0x230] sm:$0xff]
  %v3268 = vld [vmem:[%s3 + $0x238] sm:$0xff]
  %v3269 = vld [vmem:[%s3 + $0x240] sm:$0xff]
  %v3270 = vld [vmem:[%s3 + $0x248] sm:$0xff]
  %v3271 = vld [vmem:[%s3 + $0x250] sm:$0xff]
  %v3272 = vld [vmem:[%s3 + $0x258] sm:$0xff]
  %v3273 = vld [vmem:[%s3 + $0x260] sm:$0xff]
  %v3274 = vld [vmem:[%s3 + $0x268] sm:$0xff]
  %v3275 = vld [vmem:[%s3 + $0x270] sm:$0xff]
  %v3276 = vld [vmem:[%s3 + $0x278] sm:$0xff]
  %v3277 = vld [vmem:[%s3 + $0x280] sm:$0xff]
  %v3278 = vld [vmem:[%s3 + $0x288] sm:$0xff]
  %v3279 = vld [vmem:[%s3 + $0x290] sm:$0xff]
  %v3280 = vld [vmem:[%s3 + $0x298] sm:$0xff]
  %v3281 = vld [vmem:[%s3 + $0x2a0] sm:$0xff]
  %v3282 = vld [vmem:[%s3 + $0x2a8] sm:$0xff]
  %v3283 = vld [vmem:[%s3 + $0x2b0] sm:$0xff]
  %v3284 = vld [vmem:[%s3 + $0x2b8] sm:$0xff]
  %v3285 = vld [vmem:[%s3 + $0x2c0] sm:$0xff]
  %v3286 = vld [vmem:[%s3 + $0x2c8] sm:$0xff]
  %v3287 = vld [vmem:[%s3 + $0x2d0] sm:$0xff]
  %v3288 = vld [vmem:[%s3 + $0x2d8] sm:$0xff]
  %v3289 = vld [vmem:[%s3 + $0x2e0] sm:$0xff]
  %v3290 = vld [vmem:[%s3 + $0x2e8] sm:$0xff]
  %v3291 = vld [vmem:[%s3 + $0x2f0] sm:$0xff]
  %v3292 = vld [vmem:[%s3 + $0x2f8] sm:$0xff]
  %v3293 = vld [vmem:[%s3 + $0x300] sm:$0xff]
  %v3294 = vld [vmem:[%s3 + $0x308] sm:$0xff]
  %v3295 = vld [vmem:[%s3 + $0x310] sm:$0xff]
  %v3296 = vld [vmem:[%s3 + $0x318] sm:$0xff]
  %v3297 = vld [vmem:[%s3 + $0x320] sm:$0xff]
  %v3298 = vld [vmem:[%s3 + $0x328] sm:$0xff]
  %v3299 = vld [vmem:[%s3 + $0x330] sm:$0xff]
  %v3300 = vld [vmem:[%s3 + $0x338] sm:$0xff]
  %v3301 = vld [vmem:[%s3 + $0x340] sm:$0xff]
  %v3302 = vld [vmem:[%s3 + $0x348] sm:$0xff]
  %v3303 = vld [vmem:[%s3 + $0x350] sm:$0xff]
  %v3304 = vld [vmem:[%s3 + $0x358] sm:$0xff]
  %v3305 = vld [vmem:[%s3 + $0x360] sm:$0xff]
  %v3306 = vld [vmem:[%s3 + $0x368] sm:$0xff]
  %v3307 = vld [vmem:[%s3 + $0x370] sm:$0xff]
  %v3308 = vld [vmem:[%s3 + $0x378] sm:$0xff]
  %v3309 = vld [vmem:[%s3 + $0x380] sm:$0xff]
  %v3310 = vld [vmem:[%s3 + $0x388] sm:$0xff]
  %v3311 = vld [vmem:[%s3 + $0x390] sm:$0xff]
  %v3312 = vld [vmem:[%s3 + $0x398] sm:$0xff]
  %v3313 = vld [vmem:[%s3 + $0x3a0] sm:$0xff]
  %v3314 = vld [vmem:[%s3 + $0x3a8] sm:$0xff]
  %v3315 = vld [vmem:[%s3 + $0x3b0] sm:$0xff]
  %v3316 = vld [vmem:[%s3 + $0x3b8] sm:$0xff]
  %v3317 = vld [vmem:[%s3 + $0x3c0] sm:$0xff]
  %v3318 = vld [vmem:[%s3 + $0x3c8] sm:$0xff]
  %v3319 = vld [vmem:[%s3 + $0x3d0] sm:$0xff]
  %v3320 = vld [vmem:[%s3 + $0x3d8] sm:$0xff]
  %v3321 = vld [vmem:[%s3 + $0x3e0] sm:$0xff]
  %v3322 = vld [vmem:[%s3 + $0x3e8] sm:$0xff]
  %v3323 = vld [vmem:[%s3 + $0x3f0] sm:$0xff]
  %v3324 = vld [vmem:[%s3 + $0x3f8] sm:$0xff]
  %v3325 = vld [vmem:[%s3 + $0x400] sm:$0xff]
  %v3326 = vld [vmem:[%s3 + $0x408] sm:$0xff]
  %v3327 = vld [vmem:[%s3 + $0x410] sm:$0xff]
  %v3328 = vld [vmem:[%s3 + $0x418] sm:$0xff]
  %v3329 = vld [vmem:[%s3 + $0x420] sm:$0xff]
  %v3330 = vld [vmem:[%s3 + $0x428] sm:$0xff]
  %v3331 = vld [vmem:[%s3 + $0x430] sm:$0xff]
  %v3332 = vld [vmem:[%s3 + $0x438] sm:$0xff]
  %v3333 = vld [vmem:[%s3 + $0x440] sm:$0xff]
  %v3334 = vld [vmem:[%s3 + $0x448] sm:$0xff]
  %v3335 = vld [vmem:[%s3 + $0x450] sm:$0xff]
  %v3336 = vld [vmem:[%s3 + $0x458] sm:$0xff]
  %v3337 = vld [vmem:[%s3 + $0x460] sm:$0xff]
  %v3338 = vld [vmem:[%s3 + $0x468] sm:$0xff]
  %v3339 = vld [vmem:[%s3 + $0x470] sm:$0xff]
  %v3340 = vld [vmem:[%s3 + $0x478] sm:$0xff]
  %v3341 = vld [vmem:[%s3 + $0x480] sm:$0xff]
  %v3342 = vld [vmem:[%s3 + $0x488] sm:$0xff]
  %v3343 = vld [vmem:[%s3 + $0x490] sm:$0xff]
  %v3344 = vld [vmem:[%s3 + $0x498] sm:$0xff]
  %v3345 = vld [vmem:[%s3 + $0x4a0] sm:$0xff]
  %v3346 = vld [vmem:[%s3 + $0x4a8] sm:$0xff]
  %v3347 = vld [vmem:[%s3 + $0x4b0] sm:$0xff]
  %v3348 = vld [vmem:[%s3 + $0x4b8] sm:$0xff]
  %v3349 = vld [vmem:[%s3 + $0x4c0] sm:$0xff]
  %v3350 = vld [vmem:[%s3 + $0x4c8] sm:$0xff]
  %v3351 = vld [vmem:[%s3 + $0x4d0] sm:$0xff]
  %v3352 = vld [vmem:[%s3 + $0x4d8] sm:$0xff]
  %v3353 = vld [vmem:[%s3 + $0x4e0] sm:$0xff]
  %v3354 = vld [vmem:[%s3 + $0x4e8] sm:$0xff]
  %v3355 = vld [vmem:[%s3 + $0x4f0] sm:$0xff]
  %v3356 = vld [vmem:[%s3 + $0x4f8] sm:$0xff]
  %v3357 = vld [vmem:[%s3 + $0x500] sm:$0xff]
  %v3358 = vld [vmem:[%s3 + $0x508] sm:$0xff]
  %v3359 = vld [vmem:[%s3 + $0x510] sm:$0xff]
  %v3360 = vld [vmem:[%s3 + $0x518] sm:$0xff]
  %v3361 = vld [vmem:[%s3 + $0x520] sm:$0xff]
  %v3362 = vld [vmem:[%s3 + $0x528] sm:$0xff]
  %v3363 = vld [vmem:[%s3 + $0x530] sm:$0xff]
  %v3364 = vld [vmem:[%s3 + $0x538] sm:$0xff]
  %v3365 = vld [vmem:[%s3 + $0x540] sm:$0xff]
  %v3366 = vld [vmem:[%s3 + $0x548] sm:$0xff]
  %v3367 = vld [vmem:[%s3 + $0x550] sm:$0xff]
  %v3368 = vld [vmem:[%s3 + $0x558] sm:$0xff]
  %v3369 = vld [vmem:[%s3 + $0x560] sm:$0xff]
  %v3370 = vld [vmem:[%s3 + $0x568] sm:$0xff]
  %v3371 = vld [vmem:[%s3 + $0x570] sm:$0xff]
  %v3372 = vld [vmem:[%s3 + $0x578] sm:$0xff]
  %v3373 = vld [vmem:[%s3 + $0x580] sm:$0xff]
  %v3374 = vld [vmem:[%s3 + $0x588] sm:$0xff]
  %v3375 = vld [vmem:[%s3 + $0x590] sm:$0xff]
  %v3376 = vld [vmem:[%s3 + $0x598] sm:$0xff]
  %v3377 = vld [vmem:[%s3 + $0x5a0] sm:$0xff]
  %v3378 = vld [vmem:[%s3 + $0x5a8] sm:$0xff]
  %v3379 = vld [vmem:[%s3 + $0x5b0] sm:$0xff]
  %v3380 = vld [vmem:[%s3 + $0x5b8] sm:$0xff]
  %v3381 = vld [vmem:[%s3 + $0x5c0] sm:$0xff]
  %v3382 = vld [vmem:[%s3 + $0x5c8] sm:$0xff]
  %v3383 = vld [vmem:[%s3 + $0x5d0] sm:$0xff]
  %v3384 = vld [vmem:[%s3 + $0x5d8] sm:$0xff]
  %v3385 = vld [vmem:[%s3 + $0x5e0] sm:$0xff]
  %v3386 = vld [vmem:[%s3 + $0x5e8] sm:$0xff]
  %v3387 = vld [vmem:[%s3 + $0x5f0] sm:$0xff]
  %v3388 = vld [vmem:[%s3 + $0x5f8] sm:$0xff]
  %v3389 = vld [vmem:[%s3 + $0x600] sm:$0xff]
  %v3390 = vld [vmem:[%s3 + $0x608] sm:$0xff]
  %v3391 = vld [vmem:[%s3 + $0x610] sm:$0xff]
  %v3392 = vld [vmem:[%s3 + $0x618] sm:$0xff]
  %v3393 = vld [vmem:[%s3 + $0x620] sm:$0xff]
  %v3394 = vld [vmem:[%s3 + $0x628] sm:$0xff]
  %v3395 = vld [vmem:[%s3 + $0x630] sm:$0xff]
  %v3396 = vld [vmem:[%s3 + $0x638] sm:$0xff]
  %v3397 = vld [vmem:[%s3 + $0x640] sm:$0xff]
  %v3398 = vld [vmem:[%s3 + $0x648] sm:$0xff]
  %v3399 = vld [vmem:[%s3 + $0x650] sm:$0xff]
  %v3400 = vld [vmem:[%s3 + $0x658] sm:$0xff]
  %v3401 = vld [vmem:[%s3 + $0x660] sm:$0xff]
  %v3402 = vld [vmem:[%s3 + $0x668] sm:$0xff]
  %v3403 = vld [vmem:[%s3 + $0x670] sm:$0xff]
  %v3404 = vld [vmem:[%s3 + $0x678] sm:$0xff]
  %v3405 = vld [vmem:[%s3 + $0x680] sm:$0xff]
  %v3406 = vld [vmem:[%s3 + $0x688] sm:$0xff]
  %v3407 = vld [vmem:[%s3 + $0x690] sm:$0xff]
  %v3408 = vld [vmem:[%s3 + $0x698] sm:$0xff]
  %v3409 = vld [vmem:[%s3 + $0x6a0] sm:$0xff]
  %v3410 = vld [vmem:[%s3 + $0x6a8] sm:$0xff]
  %v3411 = vld [vmem:[%s3 + $0x6b0] sm:$0xff]
  %v3412 = vld [vmem:[%s3 + $0x6b8] sm:$0xff]
  %v3413 = vld [vmem:[%s3 + $0x6c0] sm:$0xff]
  %v3414 = vld [vmem:[%s3 + $0x6c8] sm:$0xff]
  %v3415 = vld [vmem:[%s3 + $0x6d0] sm:$0xff]
  %v3416 = vld [vmem:[%s3 + $0x6d8] sm:$0xff]
  %v3417 = vld [vmem:[%s3 + $0x6e0] sm:$0xff]
  %v3418 = vld [vmem:[%s3 + $0x6e8] sm:$0xff]
  %v3419 = vld [vmem:[%s3 + $0x6f0] sm:$0xff]
  %v3420 = vld [vmem:[%s3 + $0x6f8] sm:$0xff]
  %v3421 = vld [vmem:[%s3 + $0x700] sm:$0xff]
  %v3422 = vld [vmem:[%s3 + $0x708] sm:$0xff]
  %v3423 = vld [vmem:[%s3 + $0x710] sm:$0xff]
  %v3424 = vld [vmem:[%s3 + $0x718] sm:$0xff]
  %v3425 = vld [vmem:[%s3 + $0x720] sm:$0xff]
  %v3426 = vld [vmem:[%s3 + $0x728] sm:$0xff]
  %v3427 = vld [vmem:[%s3 + $0x730] sm:$0xff]
  %v3428 = vld [vmem:[%s3 + $0x738] sm:$0xff]
  %v3429 = vld [vmem:[%s3 + $0x740] sm:$0xff]
  %v3430 = vld [vmem:[%s3 + $0x748] sm:$0xff]
  %v3431 = vld [vmem:[%s3 + $0x750] sm:$0xff]
  %v3432 = vld [vmem:[%s3 + $0x758] sm:$0xff]
  %v3433 = vld [vmem:[%s3 + $0x760] sm:$0xff]
  %v3434 = vld [vmem:[%s3 + $0x768] sm:$0xff]
  %v3435 = vld [vmem:[%s3 + $0x770] sm:$0xff]
  %v3436 = vld [vmem:[%s3 + $0x778] sm:$0xff]
  %v3437 = vld [vmem:[%s3 + $0x780] sm:$0xff]
  %v3438 = vld [vmem:[%s3 + $0x788] sm:$0xff]
  %v3439 = vld [vmem:[%s3 + $0x790] sm:$0xff]
  %v3440 = vld [vmem:[%s3 + $0x798] sm:$0xff]
  %v3441 = vld [vmem:[%s3 + $0x7a0] sm:$0xff]
  %v3442 = vld [vmem:[%s3 + $0x7a8] sm:$0xff]
  %v3443 = vld [vmem:[%s3 + $0x7b0] sm:$0xff]
  %v3444 = vld [vmem:[%s3 + $0x7b8] sm:$0xff]
  %v3445 = vld [vmem:[%s3 + $0x7c0] sm:$0xff]
  %v3446 = vld [vmem:[%s3 + $0x7c8] sm:$0xff]
  %v3447 = vld [vmem:[%s3 + $0x7d0] sm:$0xff]
  %v3448 = vld [vmem:[%s3 + $0x7d8] sm:$0xff]
  %v3449 = vld [vmem:[%s3 + $0x7e0] sm:$0xff]
  %v3450 = vld [vmem:[%s3 + $0x7e8] sm:$0xff]
  %v3451 = vld [vmem:[%s3 + $0x7f0] sm:$0xff]
  %v3452 = vld [vmem:[%s3 + $0x7f8] sm:$0xff]
  %3453 = vmatprep.subr.mxu0 %v3198
  %3454 = vmatpush1.msra.mxu0 %v3197
  %3455 = vmatprep.subr.mxu0 %v3206
  %3456 = vmatpush1.msra.mxu0 %v3205
  %3457 = vmatprep.subr.mxu0 %v3214
  %3458 = vmatpush1.msra.mxu0 %v3213
  %3459 = vmatprep.subr.mxu0 %v3222
  %3460 = vmatpush1.msra.mxu0 %v3221
  %3461 = vmatprep.subr.mxu0 %v3230
  %3462 = vmatpush1.msra.mxu0 %v3229
  %3463 = vmatprep.subr.mxu0 %v3238
  %3464 = vmatpush1.msra.mxu0 %v3237
  %3465 = vmatprep.subr.mxu0 %v3246
  %3466 = vmatpush1.msra.mxu0 %v3245
  %3467 = vmatprep.subr.mxu0 %v3254
  %3468 = vmatpush1.msra.mxu0 %v3253
  %3469 = vmatprep.subr.mxu0 %v3262
  %3470 = vmatpush1.msra.mxu0 %v3261
  %3471 = vmatprep.subr.mxu0 %v3270
  %3472 = vmatpush1.msra.mxu0 %v3269
  %3473 = vmatprep.subr.mxu0 %v3278
  %3474 = vmatpush1.msra.mxu0 %v3277
  %3475 = vmatprep.subr.mxu0 %v3286
  %3476 = vmatpush1.msra.mxu0 %v3285
  %3477 = vmatprep.subr.mxu0 %v3294
  %3478 = vmatpush1.msra.mxu0 %v3293
  %3479 = vmatprep.subr.mxu0 %v3302
  %3480 = vmatpush1.msra.mxu0 %v3301
  %3481 = vmatprep.subr.mxu0 %v3310
  %3482 = vmatpush1.msra.mxu0 %v3309
  %3483 = vmatprep.subr.mxu0 %v3318
  %3484 = vmatpush1.msra.mxu0 %v3317
  %3485 = vmatprep.subr.mxu0 %v3326
  %3486 = vmatpush1.msra.mxu0 %v3325
  %3487 = vmatprep.subr.mxu0 %v3334
  %3488 = vmatpush1.msra.mxu0 %v3333
  %3489 = vmatprep.subr.mxu0 %v3342
  %3490 = vmatpush1.msra.mxu0 %v3341
  %3491 = vmatprep.subr.mxu0 %v3350
  %3492 = vmatpush1.msra.mxu0 %v3349
  %3493 = vmatprep.subr.mxu0 %v3358
  %3494 = vmatpush1.msra.mxu0 %v3357
  %3495 = vmatprep.subr.mxu0 %v3366
  %3496 = vmatpush1.msra.mxu0 %v3365
  %3497 = vmatprep.subr.mxu0 %v3374
  %3498 = vmatpush1.msra.mxu0 %v3373
  %3499 = vmatprep.subr.mxu0 %v3382
  %3500 = vmatpush1.msra.mxu0 %v3381
  %3501 = vmatprep.subr.mxu0 %v3390
  %3502 = vmatpush1.msra.mxu0 %v3389
  %3503 = vmatprep.subr.mxu0 %v3398
  %3504 = vmatpush1.msra.mxu0 %v3397
  %3505 = vmatprep.subr.mxu0 %v3406
  %3506 = vmatpush1.msra.mxu0 %v3405
  %3507 = vmatprep.subr.mxu0 %v3414
  %3508 = vmatpush1.msra.mxu0 %v3413
  %3509 = vmatprep.subr.mxu0 %v3422
  %3510 = vmatpush1.msra.mxu0 %v3421
  %3511 = vmatprep.subr.mxu0 %v3430
  %3512 = vmatpush1.msra.mxu0 %v3429
  %3513 = vmatprep.subr.mxu0 %v3438
  %3514 = vmatpush1.msra.mxu0 %v3437
  %3515 = vmatprep.subr.mxu0 %v3446
  %3516 = vmatpush1.msra.mxu0 %v3445
  %3517 = vmatprep.mubr.f32.mxu0 %v3196
  %3518 = vmatmul.mubr.f32.gmra.mrb[0].mxu0 %v3195
  %v3519 = vpop.f32.mrb[0].mxu0
  %v3520 = vadd.f32 0.0, %v3519
  %v3521 = vpop.f32.mrb[0].mxu0
  %v3522 = vadd.f32 0.0, %v3521
  %3523 = vdwg.mxu0
  %3524 = vmatprep.subr.mxu0 %v3200
  %3525 = vmatpush1.msra.mxu0 %v3199
  %3526 = vmatprep.subr.mxu0 %v3208
  %3527 = vmatpush1.msra.mxu0 %v3207
  %3528 = vmatprep.subr.mxu0 %v3216
  %3529 = vmatpush1.msra.mxu0 %v3215
  %3530 = vmatprep.subr.mxu0 %v3224
  %3531 = vmatpush1.msra.mxu0 %v3223
  %3532 = vmatprep.subr.mxu0 %v3232
  %3533 = vmatpush1.msra.mxu0 %v3231
  %3534 = vmatprep.subr.mxu0 %v3240
  %3535 = vmatpush1.msra.mxu0 %v3239
  %3536 = vmatprep.subr.mxu0 %v3248
  %3537 = vmatpush1.msra.mxu0 %v3247
  %3538 = vmatprep.subr.mxu0 %v3256
  %3539 = vmatpush1.msra.mxu0 %v3255
  %3540 = vmatprep.subr.mxu0 %v3264
  %3541 = vmatpush1.msra.mxu0 %v3263
  %3542 = vmatprep.subr.mxu0 %v3272
  %3543 = vmatpush1.msra.mxu0 %v3271
  %3544 = vmatprep.subr.mxu0 %v3280
  %3545 = vmatpush1.msra.mxu0 %v3279
  %3546 = vmatprep.subr.mxu0 %v3288
  %3547 = vmatpush1.msra.mxu0 %v3287
  %3548 = vmatprep.subr.mxu0 %v3296
  %3549 = vmatpush1.msra.mxu0 %v3295
  %3550 = vmatprep.subr.mxu0 %v3304
  %3551 = vmatpush1.msra.mxu0 %v3303
  %3552 = vmatprep.subr.mxu0 %v3312
  %3553 = vmatpush1.msra.mxu0 %v3311
  %3554 = vmatprep.subr.mxu0 %v3320
  %3555 = vmatpush1.msra.mxu0 %v3319
  %3556 = vmatprep.subr.mxu0 %v3328
  %3557 = vmatpush1.msra.mxu0 %v3327
  %3558 = vmatprep.subr.mxu0 %v3336
  %3559 = vmatpush1.msra.mxu0 %v3335
  %3560 = vmatprep.subr.mxu0 %v3344
  %3561 = vmatpush1.msra.mxu0 %v3343
  %3562 = vmatprep.subr.mxu0 %v3352
  %3563 = vmatpush1.msra.mxu0 %v3351
  %3564 = vmatprep.subr.mxu0 %v3360
  %3565 = vmatpush1.msra.mxu0 %v3359
  %3566 = vmatprep.subr.mxu0 %v3368
  %3567 = vmatpush1.msra.mxu0 %v3367
  %3568 = vmatprep.subr.mxu0 %v3376
  %3569 = vmatpush1.msra.mxu0 %v3375
  %3570 = vmatprep.subr.mxu0 %v3384
  %3571 = vmatpush1.msra.mxu0 %v3383
  %3572 = vmatprep.subr.mxu0 %v3392
  %3573 = vmatpush1.msra.mxu0 %v3391
  %3574 = vmatprep.subr.mxu0 %v3400
  %3575 = vmatpush1.msra.mxu0 %v3399
  %3576 = vmatprep.subr.mxu0 %v3408
  %3577 = vmatpush1.msra.mxu0 %v3407
  %3578 = vmatprep.subr.mxu0 %v3416
  %3579 = vmatpush1.msra.mxu0 %v3415
  %3580 = vmatprep.subr.mxu0 %v3424
  %3581 = vmatpush1.msra.mxu0 %v3423
  %3582 = vmatprep.subr.mxu0 %v3432
  %3583 = vmatpush1.msra.mxu0 %v3431
  %3584 = vmatprep.subr.mxu0 %v3440
  %3585 = vmatpush1.msra.mxu0 %v3439
  %3586 = vmatprep.subr.mxu0 %v3448
  %3587 = vmatpush1.msra.mxu0 %v3447
  %3588 = vmatprep.mubr.f32.mxu0 %v3196
  %3589 = vmatmul.mubr.f32.gmra.mrb[0].mxu0 %v3195
  %v3590 = vpop.f32.mrb[0].mxu0
  %v3591 = vadd.f32 0.0, %v3590
  %v3592 = vpop.f32.mrb[0].mxu0
  %v3593 = vadd.f32 0.0, %v3592
  %3594 = vdwg.mxu0
  %3595 = vmatprep.subr.mxu0 %v3202
  %3596 = vmatpush1.msra.mxu0 %v3201
  %3597 = vmatprep.subr.mxu0 %v3210
  %3598 = vmatpush1.msra.mxu0 %v3209
  %3599 = vmatprep.subr.mxu0 %v3218
  %3600 = vmatpush1.msra.mxu0 %v3217
  %3601 = vmatprep.subr.mxu0 %v3226
  %3602 = vmatpush1.msra.mxu0 %v3225
  %3603 = vmatprep.subr.mxu0 %v3234
  %3604 = vmatpush1.msra.mxu0 %v3233
  %3605 = vmatprep.subr.mxu0 %v3242
  %3606 = vmatpush1.msra.mxu0 %v3241
  %3607 = vmatprep.subr.mxu0 %v3250
  %3608 = vmatpush1.msra.mxu0 %v3249
  %3609 = vmatprep.subr.mxu0 %v3258
  %3610 = vmatpush1.msra.mxu0 %v3257
  %3611 = vmatprep.subr.mxu0 %v3266
  %3612 = vmatpush1.msra.mxu0 %v3265
  %3613 = vmatprep.subr.mxu0 %v3274
  %3614 = vmatpush1.msra.mxu0 %v3273
  %3615 = vmatprep.subr.mxu0 %v3282
  %3616 = vmatpush1.msra.mxu0 %v3281
  %3617 = vmatprep.subr.mxu0 %v3290
  %3618 = vmatpush1.msra.mxu0 %v3289
  %3619 = vmatprep.subr.mxu0 %v3298
  %3620 = vmatpush1.msra.mxu0 %v3297
  %3621 = vmatprep.subr.mxu0 %v3306
  %3622 = vmatpush1.msra.mxu0 %v3305
  %3623 = vmatprep.subr.mxu0 %v3314
  %3624 = vmatpush1.msra.mxu0 %v3313
  %3625 = vmatprep.subr.mxu0 %v3322
  %3626 = vmatpush1.msra.mxu0 %v3321
  %3627 = vmatprep.subr.mxu0 %v3330
  %3628 = vmatpush1.msra.mxu0 %v3329
  %3629 = vmatprep.subr.mxu0 %v3338
  %3630 = vmatpush1.msra.mxu0 %v3337
  %3631 = vmatprep.subr.mxu0 %v3346
  %3632 = vmatpush1.msra.mxu0 %v3345
  %3633 = vmatprep.subr.mxu0 %v3354
  %3634 = vmatpush1.msra.mxu0 %v3353
  %3635 = vmatprep.subr.mxu0 %v3362
  %3636 = vmatpush1.msra.mxu0 %v3361
  %3637 = vmatprep.subr.mxu0 %v3370
  %3638 = vmatpush1.msra.mxu0 %v3369
  %3639 = vmatprep.subr.mxu0 %v3378
  %3640 = vmatpush1.msra.mxu0 %v3377
  %3641 = vmatprep.subr.mxu0 %v3386
  %3642 = vmatpush1.msra.mxu0 %v3385
  %3643 = vmatprep.subr.mxu0 %v3394
  %3644 = vmatpush1.msra.mxu0 %v3393
  %3645 = vmatprep.subr.mxu0 %v3402
  %3646 = vmatpush1.msra.mxu0 %v3401
  %3647 = vmatprep.subr.mxu0 %v3410
  %3648 = vmatpush1.msra.mxu0 %v3409
  %3649 = vmatprep.subr.mxu0 %v3418
  %3650 = vmatpush1.msra.mxu0 %v3417
  %3651 = vmatprep.subr.mxu0 %v3426
  %3652 = vmatpush1.msra.mxu0 %v3425
  %3653 = vmatprep.subr.mxu0 %v3434
  %3654 = vmatpush1.msra.mxu0 %v3433
  %3655 = vmatprep.subr.mxu0 %v3442
  %3656 = vmatpush1.msra.mxu0 %v3441
  %3657 = vmatprep.subr.mxu0 %v3450
  %3658 = vmatpush1.msra.mxu0 %v3449
  %3659 = vmatprep.mubr.f32.mxu0 %v3196
  %3660 = vmatmul.mubr.f32.gmra.mrb[0].mxu0 %v3195
  %v3661 = vpop.f32.mrb[0].mxu0
  %v3662 = vadd.f32 0.0, %v3661
  %v3663 = vpop.f32.mrb[0].mxu0
  %v3664 = vadd.f32 0.0, %v3663
  %3665 = vdwg.mxu0
  %3666 = vmatprep.subr.mxu0 %v3204
  %3667 = vmatpush1.msra.mxu0 %v3203
  %3668 = vmatprep.subr.mxu0 %v3212
  %3669 = vmatpush1.msra.mxu0 %v3211
  %3670 = vmatprep.subr.mxu0 %v3220
  %3671 = vmatpush1.msra.mxu0 %v3219
  %3672 = vmatprep.subr.mxu0 %v3228
  %3673 = vmatpush1.msra.mxu0 %v3227
  %3674 = vmatprep.subr.mxu0 %v3236
  %3675 = vmatpush1.msra.mxu0 %v3235
  %3676 = vmatprep.subr.mxu0 %v3244
  %3677 = vmatpush1.msra.mxu0 %v3243
  %3678 = vmatprep.subr.mxu0 %v3252
  %3679 = vmatpush1.msra.mxu0 %v3251
  %3680 = vmatprep.subr.mxu0 %v3260
  %3681 = vmatpush1.msra.mxu0 %v3259
  %3682 = vmatprep.subr.mxu0 %v3268
  %3683 = vmatpush1.msra.mxu0 %v3267
  %3684 = vmatprep.subr.mxu0 %v3276
  %3685 = vmatpush1.msra.mxu0 %v3275
  %3686 = vmatprep.subr.mxu0 %v3284
  %3687 = vmatpush1.msra.mxu0 %v3283
  %3688 = vmatprep.subr.mxu0 %v3292
  %3689 = vmatpush1.msra.mxu0 %v3291
  %3690 = vmatprep.subr.mxu0 %v3300
  %3691 = vmatpush1.msra.mxu0 %v3299
  %3692 = vmatprep.subr.mxu0 %v3308
  %3693 = vmatpush1.msra.mxu0 %v3307
  %3694 = vmatprep.subr.mxu0 %v3316
  %3695 = vmatpush1.msra.mxu0 %v3315
  %3696 = vmatprep.subr.mxu0 %v3324
  %3697 = vmatpush1.msra.mxu0 %v3323
  %3698 = vmatprep.subr.mxu0 %v3332
  %3699 = vmatpush1.msra.mxu0 %v3331
  %3700 = vmatprep.subr.mxu0 %v3340
  %3701 = vmatpush1.msra.mxu0 %v3339
  %3702 = vmatprep.subr.mxu0 %v3348
  %3703 = vmatpush1.msra.mxu0 %v3347
  %3704 = vmatprep.subr.mxu0 %v3356
  %3705 = vmatpush1.msra.mxu0 %v3355
  %3706 = vmatprep.subr.mxu0 %v3364
  %3707 = vmatpush1.msra.mxu0 %v3363
  %3708 = vmatprep.subr.mxu0 %v3372
  %3709 = vmatpush1.msra.mxu0 %v3371
  %3710 = vmatprep.subr.mxu0 %v3380
  %3711 = vmatpush1.msra.mxu0 %v3379
  %3712 = vmatprep.subr.mxu0 %v3388
  %3713 = vmatpush1.msra.mxu0 %v3387
  %3714 = vmatprep.subr.mxu0 %v3396
  %3715 = vmatpush1.msra.mxu0 %v3395
  %3716 = vmatprep.subr.mxu0 %v3404
  %3717 = vmatpush1.msra.mxu0 %v3403
  %3718 = vmatprep.subr.mxu0 %v3412
  %3719 = vmatpush1.msra.mxu0 %v3411
  %3720 = vmatprep.subr.mxu0 %v3420
  %3721 = vmatpush1.msra.mxu0 %v3419
  %3722 = vmatprep.subr.mxu0 %v3428
  %3723 = vmatpush1.msra.mxu0 %v3427
  %3724 = vmatprep.subr.mxu0 %v3436
  %3725 = vmatpush1.msra.mxu0 %v3435
  %3726 = vmatprep.subr.mxu0 %v3444
  %3727 = vmatpush1.msra.mxu0 %v3443
  %3728 = vmatprep.subr.mxu0 %v3452
  %3729 = vmatpush1.msra.mxu0 %v3451
  %3730 = vmatprep.mubr.f32.mxu0 %v3196
  %3731 = vmatmul.mubr.f32.gmra.mrb[0].mxu0 %v3195
  %v3732 = vpop.f32.mrb[0].mxu0
  %v3733 = vadd.f32 0.0, %v3732
  %v3734 = vpop.f32.mrb[0].mxu0
  %v3735 = vadd.f32 0.0, %v3734
  %3736 = vdwg.mxu0
  %v3737 = vld [vmem:[%s4] sm:$0xf]
  %v3739 = vlaneseq
  %v3740 = vshrl.u32 %v3739, 7
  %v3741 = vsub.s32 0, %v3740
  %v3742 = vrot.slane %v3737, %v3741
  %v3743 = vlaneseq
  %v3744 = vshrl.u32 %v3743, 7
  %v3745 = vsub.s32 1, %v3744
  %v3746 = vrot.slane %v3737, %v3745
  %v3747 = vlaneseq
  %v3748 = vshrl.u32 %v3747, 7
  %v3749 = vsub.s32 2, %v3748
  %v3750 = vrot.slane %v3737, %v3749
  %v3751 = vlaneseq
  %v3752 = vshrl.u32 %v3751, 7
  %v3753 = vsub.s32 3, %v3752
  %v3754 = vrot.slane %v3737, %v3753
  %v3759 = vadd.f32 %v3662, %v3742
  %v3760 = vadd.f32 %v3664, %v3746
  %v3761 = vadd.f32 %v3733, %v3750
  %v3762 = vadd.f32 %v3735, %v3754
  %v3763 = vld [vmem:[#allocation6] sm:$0xff]
  %v3764 = vxor.u32 %v3759, 2147483648
  %v3765 = vmul.f32 %v3764, 1.442695
  %v3766 = vpow.pop %v3765
  %v3767 = vadd.f32 %v3766, 1.0
  %v3768 = vrcp.pop %v3767
  %v3769 = vmul.f32 1.0, %v3768
  %v3770 = vxor.u32 %v3760, 2147483648
  %v3771 = vmul.f32 %v3770, 1.442695
  %v3772 = vpow.pop %v3771
  %v3773 = vadd.f32 %v3772, 1.0
  %v3774 = vrcp.pop %v3773
  %v3775 = vmul.f32 1.0, %v3774
  %v3776 = vtanh.pop %v3761
  %v3777 = vxor.u32 %v3762, 2147483648
  %v3778 = vmul.f32 %v3777, 1.442695
  %v3779 = vpow.pop %v3778
  %v3780 = vadd.f32 %v3779, 1.0
  %v3781 = vrcp.pop %v3780
  %v3782 = vmul.f32 1.0, %v3781
  %v3783 = vmul.f32 %v3775, %v3763
  %v3784 = vmul.f32 %v3769, %v3776
  %v3785 = vadd.f32 %v3783, %v3784
  %v3786 = vtanh.pop %v3785
  %v3787 = vmul.f32 %v3782, %v3786
  %3788 = vst [vmem:[#allocation6] sm:$0xff] %v3785
  %s3789 = scalar_lea.vmem [#allocation3], 32
  %3790 = vst [vmem:[%s3789] sm:$0xff] %v3787
  %s3791 = smul.u32 5, 4
  %s3792 = smul.addr %s3791, 8
  %s3793 = scalar_lea.vmem [#allocation2], %s3792
  %v3794 = vld [vmem:[%s3793] sm:$0xff]
  %v3795 = vld [vmem:[%s3793 + $0x8] sm:$0xff]
  %v3796 = vld [vmem:[%s3793 + $0x10] sm:$0xff]
  %v3797 = vld [vmem:[%s3793 + $0x18] sm:$0xff]
  %v3798 = vadd.f32 %v3520, %v3794
  %v3799 = vadd.f32 %v3522, %v3795
  %v3800 = vadd.f32 %v3591, %v3796
  %v3801 = vadd.f32 %v3593, %v3797
  %v3802 = vld [vmem:[#allocation5] sm:$0xff]
  %v3803 = vxor.u32 %v3798, 2147483648
  %v3804 = vmul.f32 %v3803, 1.442695
  %v3805 = vpow.pop %v3804
  %v3806 = vadd.f32 %v3805, 1.0
  %v3807 = vrcp.pop %v3806
  %v3808 = vmul.f32 1.0, %v3807
  %v3809 = vxor.u32 %v3799, 2147483648
  %v3810 = vmul.f32 %v3809, 1.442695
  %v3811 = vpow.pop %v3810
  %v3812 = vadd.f32 %v3811, 1.0
  %v3813 = vrcp.pop %v3812
  %v3814 = vmul.f32 1.0, %v3813
  %v3815 = vtanh.pop %v3800
  %v3816 = vxor.u32 %v3801, 2147483648
  %v3817 = vmul.f32 %v3816, 1.442695
  %v3818 = vpow.pop %v3817
  %v3819 = vadd.f32 %v3818, 1.0
  %v3820 = vrcp.pop %v3819
  %v3821 = vmul.f32 1.0, %v3820
  %v3822 = vmul.f32 %v3814, %v3802
  %v3823 = vmul.f32 %v3808, %v3815
  %v3824 = vadd.f32 %v3822, %v3823
  %v3825 = vtanh.pop %v3824
  %v3826 = vmul.f32 %v3821, %v3825
  %3827 = vst [vmem:[#allocation5] sm:$0xff] %v3824
  %3828 = vst [vmem:[#allocation4] sm:$0xff] %v3826
  %3829 = vst [vmem:[#allocation4 + $0x8] sm:$0xff] %v3787
  %v3830 = vld [vmem:[#allocation4] sm:$0xff]
  %v3831 = vld [vmem:[#allocation4 + $0x8] sm:$0xff]
  %v3832 = vld [vmem:[%s3] sm:$0xff]
  %v3833 = vld [vmem:[%s3 + $0x8] sm:$0xff]
  %v3834 = vld [vmem:[%s3 + $0x10] sm:$0xff]
  %v3835 = vld [vmem:[%s3 + $0x18] sm:$0xff]
  %v3836 = vld [vmem:[%s3 + $0x20] sm:$0xff]
  %v3837 = vld [vmem:[%s3 + $0x28] sm:$0xff]
  %v3838 = vld [vmem:[%s3 + $0x30] sm:$0xff]
  %v3839 = vld [vmem:[%s3 + $0x38] sm:$0xff]
  %v3840 = vld [vmem:[%s3 + $0x40] sm:$0xff]
  %v3841 = vld [vmem:[%s3 + $0x48] sm:$0xff]
  %v3842 = vld [vmem:[%s3 + $0x50] sm:$0xff]
  %v3843 = vld [vmem:[%s3 + $0x58] sm:$0xff]
  %v3844 = vld [vmem:[%s3 + $0x60] sm:$0xff]
  %v3845 = vld [vmem:[%s3 + $0x68] sm:$0xff]
  %v3846 = vld [vmem:[%s3 + $0x70] sm:$0xff]
  %v3847 = vld [vmem:[%s3 + $0x78] sm:$0xff]
  %v3848 = vld [vmem:[%s3 + $0x80] sm:$0xff]
  %v3849 = vld [vmem:[%s3 + $0x88] sm:$0xff]
  %v3850 = vld [vmem:[%s3 + $0x90] sm:$0xff]
  %v3851 = vld [vmem:[%s3 + $0x98] sm:$0xff]
  %v3852 = vld [vmem:[%s3 + $0xa0] sm:$0xff]
  %v3853 = vld [vmem:[%s3 + $0xa8] sm:$0xff]
  %v3854 = vld [vmem:[%s3 + $0xb0] sm:$0xff]
  %v3855 = vld [vmem:[%s3 + $0xb8] sm:$0xff]
  %v3856 = vld [vmem:[%s3 + $0xc0] sm:$0xff]
  %v3857 = vld [vmem:[%s3 + $0xc8] sm:$0xff]
  %v3858 = vld [vmem:[%s3 + $0xd0] sm:$0xff]
  %v3859 = vld [vmem:[%s3 + $0xd8] sm:$0xff]
  %v3860 = vld [vmem:[%s3 + $0xe0] sm:$0xff]
  %v3861 = vld [vmem:[%s3 + $0xe8] sm:$0xff]
  %v3862 = vld [vmem:[%s3 + $0xf0] sm:$0xff]
  %v3863 = vld [vmem:[%s3 + $0xf8] sm:$0xff]
  %v3864 = vld [vmem:[%s3 + $0x100] sm:$0xff]
  %v3865 = vld [vmem:[%s3 + $0x108] sm:$0xff]
  %v3866 = vld [vmem:[%s3 + $0x110] sm:$0xff]
  %v3867 = vld [vmem:[%s3 + $0x118] sm:$0xff]
  %v3868 = vld [vmem:[%s3 + $0x120] sm:$0xff]
  %v3869 = vld [vmem:[%s3 + $0x128] sm:$0xff]
  %v3870 = vld [vmem:[%s3 + $0x130] sm:$0xff]
  %v3871 = vld [vmem:[%s3 + $0x138] sm:$0xff]
  %v3872 = vld [vmem:[%s3 + $0x140] sm:$0xff]
  %v3873 = vld [vmem:[%s3 + $0x148] sm:$0xff]
  %v3874 = vld [vmem:[%s3 + $0x150] sm:$0xff]
  %v3875 = vld [vmem:[%s3 + $0x158] sm:$0xff]
  %v3876 = vld [vmem:[%s3 + $0x160] sm:$0xff]
  %v3877 = vld [vmem:[%s3 + $0x168] sm:$0xff]
  %v3878 = vld [vmem:[%s3 + $0x170] sm:$0xff]
  %v3879 = vld [vmem:[%s3 + $0x178] sm:$0xff]
  %v3880 = vld [vmem:[%s3 + $0x180] sm:$0xff]
  %v3881 = vld [vmem:[%s3 + $0x188] sm:$0xff]
  %v3882 = vld [vmem:[%s3 + $0x190] sm:$0xff]
  %v3883 = vld [vmem:[%s3 + $0x198] sm:$0xff]
  %v3884 = vld [vmem:[%s3 + $0x1a0] sm:$0xff]
  %v3885 = vld [vmem:[%s3 + $0x1a8] sm:$0xff]
  %v3886 = vld [vmem:[%s3 + $0x1b0] sm:$0xff]
  %v3887 = vld [vmem:[%s3 + $0x1b8] sm:$0xff]
  %v3888 = vld [vmem:[%s3 + $0x1c0] sm:$0xff]
  %v3889 = vld [vmem:[%s3 + $0x1c8] sm:$0xff]
  %v3890 = vld [vmem:[%s3 + $0x1d0] sm:$0xff]
  %v3891 = vld [vmem:[%s3 + $0x1d8] sm:$0xff]
  %v3892 = vld [vmem:[%s3 + $0x1e0] sm:$0xff]
  %v3893 = vld [vmem:[%s3 + $0x1e8] sm:$0xff]
  %v3894 = vld [vmem:[%s3 + $0x1f0] sm:$0xff]
  %v3895 = vld [vmem:[%s3 + $0x1f8] sm:$0xff]
  %v3896 = vld [vmem:[%s3 + $0x200] sm:$0xff]
  %v3897 = vld [vmem:[%s3 + $0x208] sm:$0xff]
  %v3898 = vld [vmem:[%s3 + $0x210] sm:$0xff]
  %v3899 = vld [vmem:[%s3 + $0x218] sm:$0xff]
  %v3900 = vld [vmem:[%s3 + $0x220] sm:$0xff]
  %v3901 = vld [vmem:[%s3 + $0x228] sm:$0xff]
  %v3902 = vld [vmem:[%s3 + $0x230] sm:$0xff]
  %v3903 = vld [vmem:[%s3 + $0x238] sm:$0xff]
  %v3904 = vld [vmem:[%s3 + $0x240] sm:$0xff]
  %v3905 = vld [vmem:[%s3 + $0x248] sm:$0xff]
  %v3906 = vld [vmem:[%s3 + $0x250] sm:$0xff]
  %v3907 = vld [vmem:[%s3 + $0x258] sm:$0xff]
  %v3908 = vld [vmem:[%s3 + $0x260] sm:$0xff]
  %v3909 = vld [vmem:[%s3 + $0x268] sm:$0xff]
  %v3910 = vld [vmem:[%s3 + $0x270] sm:$0xff]
  %v3911 = vld [vmem:[%s3 + $0x278] sm:$0xff]
  %v3912 = vld [vmem:[%s3 + $0x280] sm:$0xff]
  %v3913 = vld [vmem:[%s3 + $0x288] sm:$0xff]
  %v3914 = vld [vmem:[%s3 + $0x290] sm:$0xff]
  %v3915 = vld [vmem:[%s3 + $0x298] sm:$0xff]
  %v3916 = vld [vmem:[%s3 + $0x2a0] sm:$0xff]
  %v3917 = vld [vmem:[%s3 + $0x2a8] sm:$0xff]
  %v3918 = vld [vmem:[%s3 + $0x2b0] sm:$0xff]
  %v3919 = vld [vmem:[%s3 + $0x2b8] sm:$0xff]
  %v3920 = vld [vmem:[%s3 + $0x2c0] sm:$0xff]
  %v3921 = vld [vmem:[%s3 + $0x2c8] sm:$0xff]
  %v3922 = vld [vmem:[%s3 + $0x2d0] sm:$0xff]
  %v3923 = vld [vmem:[%s3 + $0x2d8] sm:$0xff]
  %v3924 = vld [vmem:[%s3 + $0x2e0] sm:$0xff]
  %v3925 = vld [vmem:[%s3 + $0x2e8] sm:$0xff]
  %v3926 = vld [vmem:[%s3 + $0x2f0] sm:$0xff]
  %v3927 = vld [vmem:[%s3 + $0x2f8] sm:$0xff]
  %v3928 = vld [vmem:[%s3 + $0x300] sm:$0xff]
  %v3929 = vld [vmem:[%s3 + $0x308] sm:$0xff]
  %v3930 = vld [vmem:[%s3 + $0x310] sm:$0xff]
  %v3931 = vld [vmem:[%s3 + $0x318] sm:$0xff]
  %v3932 = vld [vmem:[%s3 + $0x320] sm:$0xff]
  %v3933 = vld [vmem:[%s3 + $0x328] sm:$0xff]
  %v3934 = vld [vmem:[%s3 + $0x330] sm:$0xff]
  %v3935 = vld [vmem:[%s3 + $0x338] sm:$0xff]
  %v3936 = vld [vmem:[%s3 + $0x340] sm:$0xff]
  %v3937 = vld [vmem:[%s3 + $0x348] sm:$0xff]
  %v3938 = vld [vmem:[%s3 + $0x350] sm:$0xff]
  %v3939 = vld [vmem:[%s3 + $0x358] sm:$0xff]
  %v3940 = vld [vmem:[%s3 + $0x360] sm:$0xff]
  %v3941 = vld [vmem:[%s3 + $0x368] sm:$0xff]
  %v3942 = vld [vmem:[%s3 + $0x370] sm:$0xff]
  %v3943 = vld [vmem:[%s3 + $0x378] sm:$0xff]
  %v3944 = vld [vmem:[%s3 + $0x380] sm:$0xff]
  %v3945 = vld [vmem:[%s3 + $0x388] sm:$0xff]
  %v3946 = vld [vmem:[%s3 + $0x390] sm:$0xff]
  %v3947 = vld [vmem:[%s3 + $0x398] sm:$0xff]
  %v3948 = vld [vmem:[%s3 + $0x3a0] sm:$0xff]
  %v3949 = vld [vmem:[%s3 + $0x3a8] sm:$0xff]
  %v3950 = vld [vmem:[%s3 + $0x3b0] sm:$0xff]
  %v3951 = vld [vmem:[%s3 + $0x3b8] sm:$0xff]
  %v3952 = vld [vmem:[%s3 + $0x3c0] sm:$0xff]
  %v3953 = vld [vmem:[%s3 + $0x3c8] sm:$0xff]
  %v3954 = vld [vmem:[%s3 + $0x3d0] sm:$0xff]
  %v3955 = vld [vmem:[%s3 + $0x3d8] sm:$0xff]
  %v3956 = vld [vmem:[%s3 + $0x3e0] sm:$0xff]
  %v3957 = vld [vmem:[%s3 + $0x3e8] sm:$0xff]
  %v3958 = vld [vmem:[%s3 + $0x3f0] sm:$0xff]
  %v3959 = vld [vmem:[%s3 + $0x3f8] sm:$0xff]
  %v3960 = vld [vmem:[%s3 + $0x400] sm:$0xff]
  %v3961 = vld [vmem:[%s3 + $0x408] sm:$0xff]
  %v3962 = vld [vmem:[%s3 + $0x410] sm:$0xff]
  %v3963 = vld [vmem:[%s3 + $0x418] sm:$0xff]
  %v3964 = vld [vmem:[%s3 + $0x420] sm:$0xff]
  %v3965 = vld [vmem:[%s3 + $0x428] sm:$0xff]
  %v3966 = vld [vmem:[%s3 + $0x430] sm:$0xff]
  %v3967 = vld [vmem:[%s3 + $0x438] sm:$0xff]
  %v3968 = vld [vmem:[%s3 + $0x440] sm:$0xff]
  %v3969 = vld [vmem:[%s3 + $0x448] sm:$0xff]
  %v3970 = vld [vmem:[%s3 + $0x450] sm:$0xff]
  %v3971 = vld [vmem:[%s3 + $0x458] sm:$0xff]
  %v3972 = vld [vmem:[%s3 + $0x460] sm:$0xff]
  %v3973 = vld [vmem:[%s3 + $0x468] sm:$0xff]
  %v3974 = vld [vmem:[%s3 + $0x470] sm:$0xff]
  %v3975 = vld [vmem:[%s3 + $0x478] sm:$0xff]
  %v3976 = vld [vmem:[%s3 + $0x480] sm:$0xff]
  %v3977 = vld [vmem:[%s3 + $0x488] sm:$0xff]
  %v3978 = vld [vmem:[%s3 + $0x490] sm:$0xff]
  %v3979 = vld [vmem:[%s3 + $0x498] sm:$0xff]
  %v3980 = vld [vmem:[%s3 + $0x4a0] sm:$0xff]
  %v3981 = vld [vmem:[%s3 + $0x4a8] sm:$0xff]
  %v3982 = vld [vmem:[%s3 + $0x4b0] sm:$0xff]
  %v3983 = vld [vmem:[%s3 + $0x4b8] sm:$0xff]
  %v3984 = vld [vmem:[%s3 + $0x4c0] sm:$0xff]
  %v3985 = vld [vmem:[%s3 + $0x4c8] sm:$0xff]
  %v3986 = vld [vmem:[%s3 + $0x4d0] sm:$0xff]
  %v3987 = vld [vmem:[%s3 + $0x4d8] sm:$0xff]
  %v3988 = vld [vmem:[%s3 + $0x4e0] sm:$0xff]
  %v3989 = vld [vmem:[%s3 + $0x4e8] sm:$0xff]
  %v3990 = vld [vmem:[%s3 + $0x4f0] sm:$0xff]
  %v3991 = vld [vmem:[%s3 + $0x4f8] sm:$0xff]
  %v3992 = vld [vmem:[%s3 + $0x500] sm:$0xff]
  %v3993 = vld [vmem:[%s3 + $0x508] sm:$0xff]
  %v3994 = vld [vmem:[%s3 + $0x510] sm:$0xff]
  %v3995 = vld [vmem:[%s3 + $0x518] sm:$0xff]
  %v3996 = vld [vmem:[%s3 + $0x520] sm:$0xff]
  %v3997 = vld [vmem:[%s3 + $0x528] sm:$0xff]
  %v3998 = vld [vmem:[%s3 + $0x530] sm:$0xff]
  %v3999 = vld [vmem:[%s3 + $0x538] sm:$0xff]
  %v4000 = vld [vmem:[%s3 + $0x540] sm:$0xff]
  %v4001 = vld [vmem:[%s3 + $0x548] sm:$0xff]
  %v4002 = vld [vmem:[%s3 + $0x550] sm:$0xff]
  %v4003 = vld [vmem:[%s3 + $0x558] sm:$0xff]
  %v4004 = vld [vmem:[%s3 + $0x560] sm:$0xff]
  %v4005 = vld [vmem:[%s3 + $0x568] sm:$0xff]
  %v4006 = vld [vmem:[%s3 + $0x570] sm:$0xff]
  %v4007 = vld [vmem:[%s3 + $0x578] sm:$0xff]
  %v4008 = vld [vmem:[%s3 + $0x580] sm:$0xff]
  %v4009 = vld [vmem:[%s3 + $0x588] sm:$0xff]
  %v4010 = vld [vmem:[%s3 + $0x590] sm:$0xff]
  %v4011 = vld [vmem:[%s3 + $0x598] sm:$0xff]
  %v4012 = vld [vmem:[%s3 + $0x5a0] sm:$0xff]
  %v4013 = vld [vmem:[%s3 + $0x5a8] sm:$0xff]
  %v4014 = vld [vmem:[%s3 + $0x5b0] sm:$0xff]
  %v4015 = vld [vmem:[%s3 + $0x5b8] sm:$0xff]
  %v4016 = vld [vmem:[%s3 + $0x5c0] sm:$0xff]
  %v4017 = vld [vmem:[%s3 + $0x5c8] sm:$0xff]
  %v4018 = vld [vmem:[%s3 + $0x5d0] sm:$0xff]
  %v4019 = vld [vmem:[%s3 + $0x5d8] sm:$0xff]
  %v4020 = vld [vmem:[%s3 + $0x5e0] sm:$0xff]
  %v4021 = vld [vmem:[%s3 + $0x5e8] sm:$0xff]
  %v4022 = vld [vmem:[%s3 + $0x5f0] sm:$0xff]
  %v4023 = vld [vmem:[%s3 + $0x5f8] sm:$0xff]
  %v4024 = vld [vmem:[%s3 + $0x600] sm:$0xff]
  %v4025 = vld [vmem:[%s3 + $0x608] sm:$0xff]
  %v4026 = vld [vmem:[%s3 + $0x610] sm:$0xff]
  %v4027 = vld [vmem:[%s3 + $0x618] sm:$0xff]
  %v4028 = vld [vmem:[%s3 + $0x620] sm:$0xff]
  %v4029 = vld [vmem:[%s3 + $0x628] sm:$0xff]
  %v4030 = vld [vmem:[%s3 + $0x630] sm:$0xff]
  %v4031 = vld [vmem:[%s3 + $0x638] sm:$0xff]
  %v4032 = vld [vmem:[%s3 + $0x640] sm:$0xff]
  %v4033 = vld [vmem:[%s3 + $0x648] sm:$0xff]
  %v4034 = vld [vmem:[%s3 + $0x650] sm:$0xff]
  %v4035 = vld [vmem:[%s3 + $0x658] sm:$0xff]
  %v4036 = vld [vmem:[%s3 + $0x660] sm:$0xff]
  %v4037 = vld [vmem:[%s3 + $0x668] sm:$0xff]
  %v4038 = vld [vmem:[%s3 + $0x670] sm:$0xff]
  %v4039 = vld [vmem:[%s3 + $0x678] sm:$0xff]
  %v4040 = vld [vmem:[%s3 + $0x680] sm:$0xff]
  %v4041 = vld [vmem:[%s3 + $0x688] sm:$0xff]
  %v4042 = vld [vmem:[%s3 + $0x690] sm:$0xff]
  %v4043 = vld [vmem:[%s3 + $0x698] sm:$0xff]
  %v4044 = vld [vmem:[%s3 + $0x6a0] sm:$0xff]
  %v4045 = vld [vmem:[%s3 + $0x6a8] sm:$0xff]
  %v4046 = vld [vmem:[%s3 + $0x6b0] sm:$0xff]
  %v4047 = vld [vmem:[%s3 + $0x6b8] sm:$0xff]
  %v4048 = vld [vmem:[%s3 + $0x6c0] sm:$0xff]
  %v4049 = vld [vmem:[%s3 + $0x6c8] sm:$0xff]
  %v4050 = vld [vmem:[%s3 + $0x6d0] sm:$0xff]
  %v4051 = vld [vmem:[%s3 + $0x6d8] sm:$0xff]
  %v4052 = vld [vmem:[%s3 + $0x6e0] sm:$0xff]
  %v4053 = vld [vmem:[%s3 + $0x6e8] sm:$0xff]
  %v4054 = vld [vmem:[%s3 + $0x6f0] sm:$0xff]
  %v4055 = vld [vmem:[%s3 + $0x6f8] sm:$0xff]
  %v4056 = vld [vmem:[%s3 + $0x700] sm:$0xff]
  %v4057 = vld [vmem:[%s3 + $0x708] sm:$0xff]
  %v4058 = vld [vmem:[%s3 + $0x710] sm:$0xff]
  %v4059 = vld [vmem:[%s3 + $0x718] sm:$0xff]
  %v4060 = vld [vmem:[%s3 + $0x720] sm:$0xff]
  %v4061 = vld [vmem:[%s3 + $0x728] sm:$0xff]
  %v4062 = vld [vmem:[%s3 + $0x730] sm:$0xff]
  %v4063 = vld [vmem:[%s3 + $0x738] sm:$0xff]
  %v4064 = vld [vmem:[%s3 + $0x740] sm:$0xff]
  %v4065 = vld [vmem:[%s3 + $0x748] sm:$0xff]
  %v4066 = vld [vmem:[%s3 + $0x750] sm:$0xff]
  %v4067 = vld [vmem:[%s3 + $0x758] sm:$0xff]
  %v4068 = vld [vmem:[%s3 + $0x760] sm:$0xff]
  %v4069 = vld [vmem:[%s3 + $0x768] sm:$0xff]
  %v4070 = vld [vmem:[%s3 + $0x770] sm:$0xff]
  %v4071 = vld [vmem:[%s3 + $0x778] sm:$0xff]
  %v4072 = vld [vmem:[%s3 + $0x780] sm:$0xff]
  %v4073 = vld [vmem:[%s3 + $0x788] sm:$0xff]
  %v4074 = vld [vmem:[%s3 + $0x790] sm:$0xff]
  %v4075 = vld [vmem:[%s3 + $0x798] sm:$0xff]
  %v4076 = vld [vmem:[%s3 + $0x7a0] sm:$0xff]
  %v4077 = vld [vmem:[%s3 + $0x7a8] sm:$0xff]
  %v4078 = vld [vmem:[%s3 + $0x7b0] sm:$0xff]
  %v4079 = vld [vmem:[%s3 + $0x7b8] sm:$0xff]
  %v4080 = vld [vmem:[%s3 + $0x7c0] sm:$0xff]
  %v4081 = vld [vmem:[%s3 + $0x7c8] sm:$0xff]
  %v4082 = vld [vmem:[%s3 + $0x7d0] sm:$0xff]
  %v4083 = vld [vmem:[%s3 + $0x7d8] sm:$0xff]
  %v4084 = vld [vmem:[%s3 + $0x7e0] sm:$0xff]
  %v4085 = vld [vmem:[%s3 + $0x7e8] sm:$0xff]
  %v4086 = vld [vmem:[%s3 + $0x7f0] sm:$0xff]
  %v4087 = vld [vmem:[%s3 + $0x7f8] sm:$0xff]
  %4088 = vmatprep.subr.mxu0 %v3833
  %4089 = vmatpush1.msra.mxu0 %v3832
  %4090 = vmatprep.subr.mxu0 %v3841
  %4091 = vmatpush1.msra.mxu0 %v3840
  %4092 = vmatprep.subr.mxu0 %v3849
  %4093 = vmatpush1.msra.mxu0 %v3848
  %4094 = vmatprep.subr.mxu0 %v3857
  %4095 = vmatpush1.msra.mxu0 %v3856
  %4096 = vmatprep.subr.mxu0 %v3865
  %4097 = vmatpush1.msra.mxu0 %v3864
  %4098 = vmatprep.subr.mxu0 %v3873
  %4099 = vmatpush1.msra.mxu0 %v3872
  %4100 = vmatprep.subr.mxu0 %v3881
  %4101 = vmatpush1.msra.mxu0 %v3880
  %4102 = vmatprep.subr.mxu0 %v3889
  %4103 = vmatpush1.msra.mxu0 %v3888
  %4104 = vmatprep.subr.mxu0 %v3897
  %4105 = vmatpush1.msra.mxu0 %v3896
  %4106 = vmatprep.subr.mxu0 %v3905
  %4107 = vmatpush1.msra.mxu0 %v3904
  %4108 = vmatprep.subr.mxu0 %v3913
  %4109 = vmatpush1.msra.mxu0 %v3912
  %4110 = vmatprep.subr.mxu0 %v3921
  %4111 = vmatpush1.msra.mxu0 %v3920
  %4112 = vmatprep.subr.mxu0 %v3929
  %4113 = vmatpush1.msra.mxu0 %v3928
  %4114 = vmatprep.subr.mxu0 %v3937
  %4115 = vmatpush1.msra.mxu0 %v3936
  %4116 = vmatprep.subr.mxu0 %v3945
  %4117 = vmatpush1.msra.mxu0 %v3944
  %4118 = vmatprep.subr.mxu0 %v3953
  %4119 = vmatpush1.msra.mxu0 %v3952
  %4120 = vmatprep.subr.mxu0 %v3961
  %4121 = vmatpush1.msra.mxu0 %v3960
  %4122 = vmatprep.subr.mxu0 %v3969
  %4123 = vmatpush1.msra.mxu0 %v3968
  %4124 = vmatprep.subr.mxu0 %v3977
  %4125 = vmatpush1.msra.mxu0 %v3976
  %4126 = vmatprep.subr.mxu0 %v3985
  %4127 = vmatpush1.msra.mxu0 %v3984
  %4128 = vmatprep.subr.mxu0 %v3993
  %4129 = vmatpush1.msra.mxu0 %v3992
  %4130 = vmatprep.subr.mxu0 %v4001
  %4131 = vmatpush1.msra.mxu0 %v4000
  %4132 = vmatprep.subr.mxu0 %v4009
  %4133 = vmatpush1.msra.mxu0 %v4008
  %4134 = vmatprep.subr.mxu0 %v4017
  %4135 = vmatpush1.msra.mxu0 %v4016
  %4136 = vmatprep.subr.mxu0 %v4025
  %4137 = vmatpush1.msra.mxu0 %v4024
  %4138 = vmatprep.subr.mxu0 %v4033
  %4139 = vmatpush1.msra.mxu0 %v4032
  %4140 = vmatprep.subr.mxu0 %v4041
  %4141 = vmatpush1.msra.mxu0 %v4040
  %4142 = vmatprep.subr.mxu0 %v4049
  %4143 = vmatpush1.msra.mxu0 %v4048
  %4144 = vmatprep.subr.mxu0 %v4057
  %4145 = vmatpush1.msra.mxu0 %v4056
  %4146 = vmatprep.subr.mxu0 %v4065
  %4147 = vmatpush1.msra.mxu0 %v4064
  %4148 = vmatprep.subr.mxu0 %v4073
  %4149 = vmatpush1.msra.mxu0 %v4072
  %4150 = vmatprep.subr.mxu0 %v4081
  %4151 = vmatpush1.msra.mxu0 %v4080
  %4152 = vmatprep.mubr.f32.mxu0 %v3831
  %4153 = vmatmul.mubr.f32.gmra.mrb[0].mxu0 %v3830
  %v4154 = vpop.f32.mrb[0].mxu0
  %v4155 = vadd.f32 0.0, %v4154
  %v4156 = vpop.f32.mrb[0].mxu0
  %v4157 = vadd.f32 0.0, %v4156
  %4158 = vdwg.mxu0
  %4159 = vmatprep.subr.mxu0 %v3835
  %4160 = vmatpush1.msra.mxu0 %v3834
  %4161 = vmatprep.subr.mxu0 %v3843
  %4162 = vmatpush1.msra.mxu0 %v3842
  %4163 = vmatprep.subr.mxu0 %v3851
  %4164 = vmatpush1.msra.mxu0 %v3850
  %4165 = vmatprep.subr.mxu0 %v3859
  %4166 = vmatpush1.msra.mxu0 %v3858
  %4167 = vmatprep.subr.mxu0 %v3867
  %4168 = vmatpush1.msra.mxu0 %v3866
  %4169 = vmatprep.subr.mxu0 %v3875
  %4170 = vmatpush1.msra.mxu0 %v3874
  %4171 = vmatprep.subr.mxu0 %v3883
  %4172 = vmatpush1.msra.mxu0 %v3882
  %4173 = vmatprep.subr.mxu0 %v3891
  %4174 = vmatpush1.msra.mxu0 %v3890
  %4175 = vmatprep.subr.mxu0 %v3899
  %4176 = vmatpush1.msra.mxu0 %v3898
  %4177 = vmatprep.subr.mxu0 %v3907
  %4178 = vmatpush1.msra.mxu0 %v3906
  %4179 = vmatprep.subr.mxu0 %v3915
  %4180 = vmatpush1.msra.mxu0 %v3914
  %4181 = vmatprep.subr.mxu0 %v3923
  %4182 = vmatpush1.msra.mxu0 %v3922
  %4183 = vmatprep.subr.mxu0 %v3931
  %4184 = vmatpush1.msra.mxu0 %v3930
  %4185 = vmatprep.subr.mxu0 %v3939
  %4186 = vmatpush1.msra.mxu0 %v3938
  %4187 = vmatprep.subr.mxu0 %v3947
  %4188 = vmatpush1.msra.mxu0 %v3946
  %4189 = vmatprep.subr.mxu0 %v3955
  %4190 = vmatpush1.msra.mxu0 %v3954
  %4191 = vmatprep.subr.mxu0 %v3963
  %4192 = vmatpush1.msra.mxu0 %v3962
  %4193 = vmatprep.subr.mxu0 %v3971
  %4194 = vmatpush1.msra.mxu0 %v3970
  %4195 = vmatprep.subr.mxu0 %v3979
  %4196 = vmatpush1.msra.mxu0 %v3978
  %4197 = vmatprep.subr.mxu0 %v3987
  %4198 = vmatpush1.msra.mxu0 %v3986
  %4199 = vmatprep.subr.mxu0 %v3995
  %4200 = vmatpush1.msra.mxu0 %v3994
  %4201 = vmatprep.subr.mxu0 %v4003
  %4202 = vmatpush1.msra.mxu0 %v4002
  %4203 = vmatprep.subr.mxu0 %v4011
  %4204 = vmatpush1.msra.mxu0 %v4010
  %4205 = vmatprep.subr.mxu0 %v4019
  %4206 = vmatpush1.msra.mxu0 %v4018
  %4207 = vmatprep.subr.mxu0 %v4027
  %4208 = vmatpush1.msra.mxu0 %v4026
  %4209 = vmatprep.subr.mxu0 %v4035
  %4210 = vmatpush1.msra.mxu0 %v4034
  %4211 = vmatprep.subr.mxu0 %v4043
  %4212 = vmatpush1.msra.mxu0 %v4042
  %4213 = vmatprep.subr.mxu0 %v4051
  %4214 = vmatpush1.msra.mxu0 %v4050
  %4215 = vmatprep.subr.mxu0 %v4059
  %4216 = vmatpush1.msra.mxu0 %v4058
  %4217 = vmatprep.subr.mxu0 %v4067
  %4218 = vmatpush1.msra.mxu0 %v4066
  %4219 = vmatprep.subr.mxu0 %v4075
  %4220 = vmatpush1.msra.mxu0 %v4074
  %4221 = vmatprep.subr.mxu0 %v4083
  %4222 = vmatpush1.msra.mxu0 %v4082
  %4223 = vmatprep.mubr.f32.mxu0 %v3831
  %4224 = vmatmul.mubr.f32.gmra.mrb[0].mxu0 %v3830
  %v4225 = vpop.f32.mrb[0].mxu0
  %v4226 = vadd.f32 0.0, %v4225
  %v4227 = vpop.f32.mrb[0].mxu0
  %v4228 = vadd.f32 0.0, %v4227
  %4229 = vdwg.mxu0
  %4230 = vmatprep.subr.mxu0 %v3837
  %4231 = vmatpush1.msra.mxu0 %v3836
  %4232 = vmatprep.subr.mxu0 %v3845
  %4233 = vmatpush1.msra.mxu0 %v3844
  %4234 = vmatprep.subr.mxu0 %v3853
  %4235 = vmatpush1.msra.mxu0 %v3852
  %4236 = vmatprep.subr.mxu0 %v3861
  %4237 = vmatpush1.msra.mxu0 %v3860
  %4238 = vmatprep.subr.mxu0 %v3869
  %4239 = vmatpush1.msra.mxu0 %v3868
  %4240 = vmatprep.subr.mxu0 %v3877
  %4241 = vmatpush1.msra.mxu0 %v3876
  %4242 = vmatprep.subr.mxu0 %v3885
  %4243 = vmatpush1.msra.mxu0 %v3884
  %4244 = vmatprep.subr.mxu0 %v3893
  %4245 = vmatpush1.msra.mxu0 %v3892
  %4246 = vmatprep.subr.mxu0 %v3901
  %4247 = vmatpush1.msra.mxu0 %v3900
  %4248 = vmatprep.subr.mxu0 %v3909
  %4249 = vmatpush1.msra.mxu0 %v3908
  %4250 = vmatprep.subr.mxu0 %v3917
  %4251 = vmatpush1.msra.mxu0 %v3916
  %4252 = vmatprep.subr.mxu0 %v3925
  %4253 = vmatpush1.msra.mxu0 %v3924
  %4254 = vmatprep.subr.mxu0 %v3933
  %4255 = vmatpush1.msra.mxu0 %v3932
  %4256 = vmatprep.subr.mxu0 %v3941
  %4257 = vmatpush1.msra.mxu0 %v3940
  %4258 = vmatprep.subr.mxu0 %v3949
  %4259 = vmatpush1.msra.mxu0 %v3948
  %4260 = vmatprep.subr.mxu0 %v3957
  %4261 = vmatpush1.msra.mxu0 %v3956
  %4262 = vmatprep.subr.mxu0 %v3965
  %4263 = vmatpush1.msra.mxu0 %v3964
  %4264 = vmatprep.subr.mxu0 %v3973
  %4265 = vmatpush1.msra.mxu0 %v3972
  %4266 = vmatprep.subr.mxu0 %v3981
  %4267 = vmatpush1.msra.mxu0 %v3980
  %4268 = vmatprep.subr.mxu0 %v3989
  %4269 = vmatpush1.msra.mxu0 %v3988
  %4270 = vmatprep.subr.mxu0 %v3997
  %4271 = vmatpush1.msra.mxu0 %v3996
  %4272 = vmatprep.subr.mxu0 %v4005
  %4273 = vmatpush1.msra.mxu0 %v4004
  %4274 = vmatprep.subr.mxu0 %v4013
  %4275 = vmatpush1.msra.mxu0 %v4012
  %4276 = vmatprep.subr.mxu0 %v4021
  %4277 = vmatpush1.msra.mxu0 %v4020
  %4278 = vmatprep.subr.mxu0 %v4029
  %4279 = vmatpush1.msra.mxu0 %v4028
  %4280 = vmatprep.subr.mxu0 %v4037
  %4281 = vmatpush1.msra.mxu0 %v4036
  %4282 = vmatprep.subr.mxu0 %v4045
  %4283 = vmatpush1.msra.mxu0 %v4044
  %4284 = vmatprep.subr.mxu0 %v4053
  %4285 = vmatpush1.msra.mxu0 %v4052
  %4286 = vmatprep.subr.mxu0 %v4061
  %4287 = vmatpush1.msra.mxu0 %v4060
  %4288 = vmatprep.subr.mxu0 %v4069
  %4289 = vmatpush1.msra.mxu0 %v4068
  %4290 = vmatprep.subr.mxu0 %v4077
  %4291 = vmatpush1.msra.mxu0 %v4076
  %4292 = vmatprep.subr.mxu0 %v4085
  %4293 = vmatpush1.msra.mxu0 %v4084
  %4294 = vmatprep.mubr.f32.mxu0 %v3831
  %4295 = vmatmul.mubr.f32.gmra.mrb[0].mxu0 %v3830
  %v4296 = vpop.f32.mrb[0].mxu0
  %v4297 = vadd.f32 0.0, %v4296
  %v4298 = vpop.f32.mrb[0].mxu0
  %v4299 = vadd.f32 0.0, %v4298
  %4300 = vdwg.mxu0
  %4301 = vmatprep.subr.mxu0 %v3839
  %4302 = vmatpush1.msra.mxu0 %v3838
  %4303 = vmatprep.subr.mxu0 %v3847
  %4304 = vmatpush1.msra.mxu0 %v3846
  %4305 = vmatprep.subr.mxu0 %v3855
  %4306 = vmatpush1.msra.mxu0 %v3854
  %4307 = vmatprep.subr.mxu0 %v3863
  %4308 = vmatpush1.msra.mxu0 %v3862
  %4309 = vmatprep.subr.mxu0 %v3871
  %4310 = vmatpush1.msra.mxu0 %v3870
  %4311 = vmatprep.subr.mxu0 %v3879
  %4312 = vmatpush1.msra.mxu0 %v3878
  %4313 = vmatprep.subr.mxu0 %v3887
  %4314 = vmatpush1.msra.mxu0 %v3886
  %4315 = vmatprep.subr.mxu0 %v3895
  %4316 = vmatpush1.msra.mxu0 %v3894
  %4317 = vmatprep.subr.mxu0 %v3903
  %4318 = vmatpush1.msra.mxu0 %v3902
  %4319 = vmatprep.subr.mxu0 %v3911
  %4320 = vmatpush1.msra.mxu0 %v3910
  %4321 = vmatprep.subr.mxu0 %v3919
  %4322 = vmatpush1.msra.mxu0 %v3918
  %4323 = vmatprep.subr.mxu0 %v3927
  %4324 = vmatpush1.msra.mxu0 %v3926
  %4325 = vmatprep.subr.mxu0 %v3935
  %4326 = vmatpush1.msra.mxu0 %v3934
  %4327 = vmatprep.subr.mxu0 %v3943
  %4328 = vmatpush1.msra.mxu0 %v3942
  %4329 = vmatprep.subr.mxu0 %v3951
  %4330 = vmatpush1.msra.mxu0 %v3950
  %4331 = vmatprep.subr.mxu0 %v3959
  %4332 = vmatpush1.msra.mxu0 %v3958
  %4333 = vmatprep.subr.mxu0 %v3967
  %4334 = vmatpush1.msra.mxu0 %v3966
  %4335 = vmatprep.subr.mxu0 %v3975
  %4336 = vmatpush1.msra.mxu0 %v3974
  %4337 = vmatprep.subr.mxu0 %v3983
  %4338 = vmatpush1.msra.mxu0 %v3982
  %4339 = vmatprep.subr.mxu0 %v3991
  %4340 = vmatpush1.msra.mxu0 %v3990
  %4341 = vmatprep.subr.mxu0 %v3999
  %4342 = vmatpush1.msra.mxu0 %v3998
  %4343 = vmatprep.subr.mxu0 %v4007
  %4344 = vmatpush1.msra.mxu0 %v4006
  %4345 = vmatprep.subr.mxu0 %v4015
  %4346 = vmatpush1.msra.mxu0 %v4014
  %4347 = vmatprep.subr.mxu0 %v4023
  %4348 = vmatpush1.msra.mxu0 %v4022
  %4349 = vmatprep.subr.mxu0 %v4031
  %4350 = vmatpush1.msra.mxu0 %v4030
  %4351 = vmatprep.subr.mxu0 %v4039
  %4352 = vmatpush1.msra.mxu0 %v4038
  %4353 = vmatprep.subr.mxu0 %v4047
  %4354 = vmatpush1.msra.mxu0 %v4046
  %4355 = vmatprep.subr.mxu0 %v4055
  %4356 = vmatpush1.msra.mxu0 %v4054
  %4357 = vmatprep.subr.mxu0 %v4063
  %4358 = vmatpush1.msra.mxu0 %v4062
  %4359 = vmatprep.subr.mxu0 %v4071
  %4360 = vmatpush1.msra.mxu0 %v4070
  %4361 = vmatprep.subr.mxu0 %v4079
  %4362 = vmatpush1.msra.mxu0 %v4078
  %4363 = vmatprep.subr.mxu0 %v4087
  %4364 = vmatpush1.msra.mxu0 %v4086
  %4365 = vmatprep.mubr.f32.mxu0 %v3831
  %4366 = vmatmul.mubr.f32.gmra.mrb[0].mxu0 %v3830
  %v4367 = vpop.f32.mrb[0].mxu0
  %v4368 = vadd.f32 0.0, %v4367
  %v4369 = vpop.f32.mrb[0].mxu0
  %v4370 = vadd.f32 0.0, %v4369
  %4371 = vdwg.mxu0
  %v4372 = vld [vmem:[%s4] sm:$0xf]
  %v4374 = vlaneseq
  %v4375 = vshrl.u32 %v4374, 7
  %v4376 = vsub.s32 0, %v4375
  %v4377 = vrot.slane %v4372, %v4376
  %v4378 = vlaneseq
  %v4379 = vshrl.u32 %v4378, 7
  %v4380 = vsub.s32 1, %v4379
  %v4381 = vrot.slane %v4372, %v4380
  %v4382 = vlaneseq
  %v4383 = vshrl.u32 %v4382, 7
  %v4384 = vsub.s32 2, %v4383
  %v4385 = vrot.slane %v4372, %v4384
  %v4386 = vlaneseq
  %v4387 = vshrl.u32 %v4386, 7
  %v4388 = vsub.s32 3, %v4387
  %v4389 = vrot.slane %v4372, %v4388
  %v4394 = vadd.f32 %v4297, %v4377
  %v4395 = vadd.f32 %v4299, %v4381
  %v4396 = vadd.f32 %v4368, %v4385
  %v4397 = vadd.f32 %v4370, %v4389
  %v4398 = vld [vmem:[#allocation6] sm:$0xff]
  %v4399 = vxor.u32 %v4394, 2147483648
  %v4400 = vmul.f32 %v4399, 1.442695
  %v4401 = vpow.pop %v4400
  %v4402 = vadd.f32 %v4401, 1.0
  %v4403 = vrcp.pop %v4402
  %v4404 = vmul.f32 1.0, %v4403
  %v4405 = vxor.u32 %v4395, 2147483648
  %v4406 = vmul.f32 %v4405, 1.442695
  %v4407 = vpow.pop %v4406
  %v4408 = vadd.f32 %v4407, 1.0
  %v4409 = vrcp.pop %v4408
  %v4410 = vmul.f32 1.0, %v4409
  %v4411 = vtanh.pop %v4396
  %v4412 = vxor.u32 %v4397, 2147483648
  %v4413 = vmul.f32 %v4412, 1.442695
  %v4414 = vpow.pop %v4413
  %v4415 = vadd.f32 %v4414, 1.0
  %v4416 = vrcp.pop %v4415
  %v4417 = vmul.f32 1.0, %v4416
  %v4418 = vmul.f32 %v4410, %v4398
  %v4419 = vmul.f32 %v4404, %v4411
  %v4420 = vadd.f32 %v4418, %v4419
  %v4421 = vtanh.pop %v4420
  %v4422 = vmul.f32 %v4417, %v4421
  %4423 = vst [vmem:[#allocation6] sm:$0xff] %v4420
  %s4424 = scalar_lea.vmem [#allocation3], 40
  %4425 = vst [vmem:[%s4424] sm:$0xff] %v4422
  %s4426 = smul.u32 6, 4
  %s4427 = smul.addr %s4426, 8
  %s4428 = scalar_lea.vmem [#allocation2], %s4427
  %v4429 = vld [vmem:[%s4428] sm:$0xff]
  %v4430 = vld [vmem:[%s4428 + $0x8] sm:$0xff]
  %v4431 = vld [vmem:[%s4428 + $0x10] sm:$0xff]
  %v4432 = vld [vmem:[%s4428 + $0x18] sm:$0xff]
  %v4433 = vadd.f32 %v4155, %v4429
  %v4434 = vadd.f32 %v4157, %v4430
  %v4435 = vadd.f32 %v4226, %v4431
  %v4436 = vadd.f32 %v4228, %v4432
  %v4437 = vld [vmem:[#allocation5] sm:$0xff]
  %v4438 = vxor.u32 %v4433, 2147483648
  %v4439 = vmul.f32 %v4438, 1.442695
  %v4440 = vpow.pop %v4439
  %v4441 = vadd.f32 %v4440, 1.0
  %v4442 = vrcp.pop %v4441
  %v4443 = vmul.f32 1.0, %v4442
  %v4444 = vxor.u32 %v4434, 2147483648
  %v4445 = vmul.f32 %v4444, 1.442695
  %v4446 = vpow.pop %v4445
  %v4447 = vadd.f32 %v4446, 1.0
  %v4448 = vrcp.pop %v4447
  %v4449 = vmul.f32 1.0, %v4448
  %v4450 = vtanh.pop %v4435
  %v4451 = vxor.u32 %v4436, 2147483648
  %v4452 = vmul.f32 %v4451, 1.442695
  %v4453 = vpow.pop %v4452
  %v4454 = vadd.f32 %v4453, 1.0
  %v4455 = vrcp.pop %v4454
  %v4456 = vmul.f32 1.0, %v4455
  %v4457 = vmul.f32 %v4449, %v4437
  %v4458 = vmul.f32 %v4443, %v4450
  %v4459 = vadd.f32 %v4457, %v4458
  %v4460 = vtanh.pop %v4459
  %v4461 = vmul.f32 %v4456, %v4460
  %4462 = vst [vmem:[#allocation5] sm:$0xff] %v4459
  %4463 = vst [vmem:[#allocation4] sm:$0xff] %v4461
  %4464 = vst [vmem:[#allocation4 + $0x8] sm:$0xff] %v4422
  %v4465 = vld [vmem:[#allocation4] sm:$0xff]
  %v4466 = vld [vmem:[#allocation4 + $0x8] sm:$0xff]
  %v4467 = vld [vmem:[%s3] sm:$0xff]
  %v4468 = vld [vmem:[%s3 + $0x8] sm:$0xff]
  %v4469 = vld [vmem:[%s3 + $0x10] sm:$0xff]
  %v4470 = vld [vmem:[%s3 + $0x18] sm:$0xff]
  %v4471 = vld [vmem:[%s3 + $0x20] sm:$0xff]
  %v4472 = vld [vmem:[%s3 + $0x28] sm:$0xff]
  %v4473 = vld [vmem:[%s3 + $0x30] sm:$0xff]
  %v4474 = vld [vmem:[%s3 + $0x38] sm:$0xff]
  %v4475 = vld [vmem:[%s3 + $0x40] sm:$0xff]
  %v4476 = vld [vmem:[%s3 + $0x48] sm:$0xff]
  %v4477 = vld [vmem:[%s3 + $0x50] sm:$0xff]
  %v4478 = vld [vmem:[%s3 + $0x58] sm:$0xff]
  %v4479 = vld [vmem:[%s3 + $0x60] sm:$0xff]
  %v4480 = vld [vmem:[%s3 + $0x68] sm:$0xff]
  %v4481 = vld [vmem:[%s3 + $0x70] sm:$0xff]
  %v4482 = vld [vmem:[%s3 + $0x78] sm:$0xff]
  %v4483 = vld [vmem:[%s3 + $0x80] sm:$0xff]
  %v4484 = vld [vmem:[%s3 + $0x88] sm:$0xff]
  %v4485 = vld [vmem:[%s3 + $0x90] sm:$0xff]
  %v4486 = vld [vmem:[%s3 + $0x98] sm:$0xff]
  %v4487 = vld [vmem:[%s3 + $0xa0] sm:$0xff]
  %v4488 = vld [vmem:[%s3 + $0xa8] sm:$0xff]
  %v4489 = vld [vmem:[%s3 + $0xb0] sm:$0xff]
  %v4490 = vld [vmem:[%s3 + $0xb8] sm:$0xff]
  %v4491 = vld [vmem:[%s3 + $0xc0] sm:$0xff]
  %v4492 = vld [vmem:[%s3 + $0xc8] sm:$0xff]
  %v4493 = vld [vmem:[%s3 + $0xd0] sm:$0xff]
  %v4494 = vld [vmem:[%s3 + $0xd8] sm:$0xff]
  %v4495 = vld [vmem:[%s3 + $0xe0] sm:$0xff]
  %v4496 = vld [vmem:[%s3 + $0xe8] sm:$0xff]
  %v4497 = vld [vmem:[%s3 + $0xf0] sm:$0xff]
  %v4498 = vld [vmem:[%s3 + $0xf8] sm:$0xff]
  %v4499 = vld [vmem:[%s3 + $0x100] sm:$0xff]
  %v4500 = vld [vmem:[%s3 + $0x108] sm:$0xff]
  %v4501 = vld [vmem:[%s3 + $0x110] sm:$0xff]
  %v4502 = vld [vmem:[%s3 + $0x118] sm:$0xff]
  %v4503 = vld [vmem:[%s3 + $0x120] sm:$0xff]
  %v4504 = vld [vmem:[%s3 + $0x128] sm:$0xff]
  %v4505 = vld [vmem:[%s3 + $0x130] sm:$0xff]
  %v4506 = vld [vmem:[%s3 + $0x138] sm:$0xff]
  %v4507 = vld [vmem:[%s3 + $0x140] sm:$0xff]
  %v4508 = vld [vmem:[%s3 + $0x148] sm:$0xff]
  %v4509 = vld [vmem:[%s3 + $0x150] sm:$0xff]
  %v4510 = vld [vmem:[%s3 + $0x158] sm:$0xff]
  %v4511 = vld [vmem:[%s3 + $0x160] sm:$0xff]
  %v4512 = vld [vmem:[%s3 + $0x168] sm:$0xff]
  %v4513 = vld [vmem:[%s3 + $0x170] sm:$0xff]
  %v4514 = vld [vmem:[%s3 + $0x178] sm:$0xff]
  %v4515 = vld [vmem:[%s3 + $0x180] sm:$0xff]
  %v4516 = vld [vmem:[%s3 + $0x188] sm:$0xff]
  %v4517 = vld [vmem:[%s3 + $0x190] sm:$0xff]
  %v4518 = vld [vmem:[%s3 + $0x198] sm:$0xff]
  %v4519 = vld [vmem:[%s3 + $0x1a0] sm:$0xff]
  %v4520 = vld [vmem:[%s3 + $0x1a8] sm:$0xff]
  %v4521 = vld [vmem:[%s3 + $0x1b0] sm:$0xff]
  %v4522 = vld [vmem:[%s3 + $0x1b8] sm:$0xff]
  %v4523 = vld [vmem:[%s3 + $0x1c0] sm:$0xff]
  %v4524 = vld [vmem:[%s3 + $0x1c8] sm:$0xff]
  %v4525 = vld [vmem:[%s3 + $0x1d0] sm:$0xff]
  %v4526 = vld [vmem:[%s3 + $0x1d8] sm:$0xff]
  %v4527 = vld [vmem:[%s3 + $0x1e0] sm:$0xff]
  %v4528 = vld [vmem:[%s3 + $0x1e8] sm:$0xff]
  %v4529 = vld [vmem:[%s3 + $0x1f0] sm:$0xff]
  %v4530 = vld [vmem:[%s3 + $0x1f8] sm:$0xff]
  %v4531 = vld [vmem:[%s3 + $0x200] sm:$0xff]
  %v4532 = vld [vmem:[%s3 + $0x208] sm:$0xff]
  %v4533 = vld [vmem:[%s3 + $0x210] sm:$0xff]
  %v4534 = vld [vmem:[%s3 + $0x218] sm:$0xff]
  %v4535 = vld [vmem:[%s3 + $0x220] sm:$0xff]
  %v4536 = vld [vmem:[%s3 + $0x228] sm:$0xff]
  %v4537 = vld [vmem:[%s3 + $0x230] sm:$0xff]
  %v4538 = vld [vmem:[%s3 + $0x238] sm:$0xff]
  %v4539 = vld [vmem:[%s3 + $0x240] sm:$0xff]
  %v4540 = vld [vmem:[%s3 + $0x248] sm:$0xff]
  %v4541 = vld [vmem:[%s3 + $0x250] sm:$0xff]
  %v4542 = vld [vmem:[%s3 + $0x258] sm:$0xff]
  %v4543 = vld [vmem:[%s3 + $0x260] sm:$0xff]
  %v4544 = vld [vmem:[%s3 + $0x268] sm:$0xff]
  %v4545 = vld [vmem:[%s3 + $0x270] sm:$0xff]
  %v4546 = vld [vmem:[%s3 + $0x278] sm:$0xff]
  %v4547 = vld [vmem:[%s3 + $0x280] sm:$0xff]
  %v4548 = vld [vmem:[%s3 + $0x288] sm:$0xff]
  %v4549 = vld [vmem:[%s3 + $0x290] sm:$0xff]
  %v4550 = vld [vmem:[%s3 + $0x298] sm:$0xff]
  %v4551 = vld [vmem:[%s3 + $0x2a0] sm:$0xff]
  %v4552 = vld [vmem:[%s3 + $0x2a8] sm:$0xff]
  %v4553 = vld [vmem:[%s3 + $0x2b0] sm:$0xff]
  %v4554 = vld [vmem:[%s3 + $0x2b8] sm:$0xff]
  %v4555 = vld [vmem:[%s3 + $0x2c0] sm:$0xff]
  %v4556 = vld [vmem:[%s3 + $0x2c8] sm:$0xff]
  %v4557 = vld [vmem:[%s3 + $0x2d0] sm:$0xff]
  %v4558 = vld [vmem:[%s3 + $0x2d8] sm:$0xff]
  %v4559 = vld [vmem:[%s3 + $0x2e0] sm:$0xff]
  %v4560 = vld [vmem:[%s3 + $0x2e8] sm:$0xff]
  %v4561 = vld [vmem:[%s3 + $0x2f0] sm:$0xff]
  %v4562 = vld [vmem:[%s3 + $0x2f8] sm:$0xff]
  %v4563 = vld [vmem:[%s3 + $0x300] sm:$0xff]
  %v4564 = vld [vmem:[%s3 + $0x308] sm:$0xff]
  %v4565 = vld [vmem:[%s3 + $0x310] sm:$0xff]
  %v4566 = vld [vmem:[%s3 + $0x318] sm:$0xff]
  %v4567 = vld [vmem:[%s3 + $0x320] sm:$0xff]
  %v4568 = vld [vmem:[%s3 + $0x328] sm:$0xff]
  %v4569 = vld [vmem:[%s3 + $0x330] sm:$0xff]
  %v4570 = vld [vmem:[%s3 + $0x338] sm:$0xff]
  %v4571 = vld [vmem:[%s3 + $0x340] sm:$0xff]
  %v4572 = vld [vmem:[%s3 + $0x348] sm:$0xff]
  %v4573 = vld [vmem:[%s3 + $0x350] sm:$0xff]
  %v4574 = vld [vmem:[%s3 + $0x358] sm:$0xff]
  %v4575 = vld [vmem:[%s3 + $0x360] sm:$0xff]
  %v4576 = vld [vmem:[%s3 + $0x368] sm:$0xff]
  %v4577 = vld [vmem:[%s3 + $0x370] sm:$0xff]
  %v4578 = vld [vmem:[%s3 + $0x378] sm:$0xff]
  %v4579 = vld [vmem:[%s3 + $0x380] sm:$0xff]
  %v4580 = vld [vmem:[%s3 + $0x388] sm:$0xff]
  %v4581 = vld [vmem:[%s3 + $0x390] sm:$0xff]
  %v4582 = vld [vmem:[%s3 + $0x398] sm:$0xff]
  %v4583 = vld [vmem:[%s3 + $0x3a0] sm:$0xff]
  %v4584 = vld [vmem:[%s3 + $0x3a8] sm:$0xff]
  %v4585 = vld [vmem:[%s3 + $0x3b0] sm:$0xff]
  %v4586 = vld [vmem:[%s3 + $0x3b8] sm:$0xff]
  %v4587 = vld [vmem:[%s3 + $0x3c0] sm:$0xff]
  %v4588 = vld [vmem:[%s3 + $0x3c8] sm:$0xff]
  %v4589 = vld [vmem:[%s3 + $0x3d0] sm:$0xff]
  %v4590 = vld [vmem:[%s3 + $0x3d8] sm:$0xff]
  %v4591 = vld [vmem:[%s3 + $0x3e0] sm:$0xff]
  %v4592 = vld [vmem:[%s3 + $0x3e8] sm:$0xff]
  %v4593 = vld [vmem:[%s3 + $0x3f0] sm:$0xff]
  %v4594 = vld [vmem:[%s3 + $0x3f8] sm:$0xff]
  %v4595 = vld [vmem:[%s3 + $0x400] sm:$0xff]
  %v4596 = vld [vmem:[%s3 + $0x408] sm:$0xff]
  %v4597 = vld [vmem:[%s3 + $0x410] sm:$0xff]
  %v4598 = vld [vmem:[%s3 + $0x418] sm:$0xff]
  %v4599 = vld [vmem:[%s3 + $0x420] sm:$0xff]
  %v4600 = vld [vmem:[%s3 + $0x428] sm:$0xff]
  %v4601 = vld [vmem:[%s3 + $0x430] sm:$0xff]
  %v4602 = vld [vmem:[%s3 + $0x438] sm:$0xff]
  %v4603 = vld [vmem:[%s3 + $0x440] sm:$0xff]
  %v4604 = vld [vmem:[%s3 + $0x448] sm:$0xff]
  %v4605 = vld [vmem:[%s3 + $0x450] sm:$0xff]
  %v4606 = vld [vmem:[%s3 + $0x458] sm:$0xff]
  %v4607 = vld [vmem:[%s3 + $0x460] sm:$0xff]
  %v4608 = vld [vmem:[%s3 + $0x468] sm:$0xff]
  %v4609 = vld [vmem:[%s3 + $0x470] sm:$0xff]
  %v4610 = vld [vmem:[%s3 + $0x478] sm:$0xff]
  %v4611 = vld [vmem:[%s3 + $0x480] sm:$0xff]
  %v4612 = vld [vmem:[%s3 + $0x488] sm:$0xff]
  %v4613 = vld [vmem:[%s3 + $0x490] sm:$0xff]
  %v4614 = vld [vmem:[%s3 + $0x498] sm:$0xff]
  %v4615 = vld [vmem:[%s3 + $0x4a0] sm:$0xff]
  %v4616 = vld [vmem:[%s3 + $0x4a8] sm:$0xff]
  %v4617 = vld [vmem:[%s3 + $0x4b0] sm:$0xff]
  %v4618 = vld [vmem:[%s3 + $0x4b8] sm:$0xff]
  %v4619 = vld [vmem:[%s3 + $0x4c0] sm:$0xff]
  %v4620 = vld [vmem:[%s3 + $0x4c8] sm:$0xff]
  %v4621 = vld [vmem:[%s3 + $0x4d0] sm:$0xff]
  %v4622 = vld [vmem:[%s3 + $0x4d8] sm:$0xff]
  %v4623 = vld [vmem:[%s3 + $0x4e0] sm:$0xff]
  %v4624 = vld [vmem:[%s3 + $0x4e8] sm:$0xff]
  %v4625 = vld [vmem:[%s3 + $0x4f0] sm:$0xff]
  %v4626 = vld [vmem:[%s3 + $0x4f8] sm:$0xff]
  %v4627 = vld [vmem:[%s3 + $0x500] sm:$0xff]
  %v4628 = vld [vmem:[%s3 + $0x508] sm:$0xff]
  %v4629 = vld [vmem:[%s3 + $0x510] sm:$0xff]
  %v4630 = vld [vmem:[%s3 + $0x518] sm:$0xff]
  %v4631 = vld [vmem:[%s3 + $0x520] sm:$0xff]
  %v4632 = vld [vmem:[%s3 + $0x528] sm:$0xff]
  %v4633 = vld [vmem:[%s3 + $0x530] sm:$0xff]
  %v4634 = vld [vmem:[%s3 + $0x538] sm:$0xff]
  %v4635 = vld [vmem:[%s3 + $0x540] sm:$0xff]
  %v4636 = vld [vmem:[%s3 + $0x548] sm:$0xff]
  %v4637 = vld [vmem:[%s3 + $0x550] sm:$0xff]
  %v4638 = vld [vmem:[%s3 + $0x558] sm:$0xff]
  %v4639 = vld [vmem:[%s3 + $0x560] sm:$0xff]
  %v4640 = vld [vmem:[%s3 + $0x568] sm:$0xff]
  %v4641 = vld [vmem:[%s3 + $0x570] sm:$0xff]
  %v4642 = vld [vmem:[%s3 + $0x578] sm:$0xff]
  %v4643 = vld [vmem:[%s3 + $0x580] sm:$0xff]
  %v4644 = vld [vmem:[%s3 + $0x588] sm:$0xff]
  %v4645 = vld [vmem:[%s3 + $0x590] sm:$0xff]
  %v4646 = vld [vmem:[%s3 + $0x598] sm:$0xff]
  %v4647 = vld [vmem:[%s3 + $0x5a0] sm:$0xff]
  %v4648 = vld [vmem:[%s3 + $0x5a8] sm:$0xff]
  %v4649 = vld [vmem:[%s3 + $0x5b0] sm:$0xff]
  %v4650 = vld [vmem:[%s3 + $0x5b8] sm:$0xff]
  %v4651 = vld [vmem:[%s3 + $0x5c0] sm:$0xff]
  %v4652 = vld [vmem:[%s3 + $0x5c8] sm:$0xff]
  %v4653 = vld [vmem:[%s3 + $0x5d0] sm:$0xff]
  %v4654 = vld [vmem:[%s3 + $0x5d8] sm:$0xff]
  %v4655 = vld [vmem:[%s3 + $0x5e0] sm:$0xff]
  %v4656 = vld [vmem:[%s3 + $0x5e8] sm:$0xff]
  %v4657 = vld [vmem:[%s3 + $0x5f0] sm:$0xff]
  %v4658 = vld [vmem:[%s3 + $0x5f8] sm:$0xff]
  %v4659 = vld [vmem:[%s3 + $0x600] sm:$0xff]
  %v4660 = vld [vmem:[%s3 + $0x608] sm:$0xff]
  %v4661 = vld [vmem:[%s3 + $0x610] sm:$0xff]
  %v4662 = vld [vmem:[%s3 + $0x618] sm:$0xff]
  %v4663 = vld [vmem:[%s3 + $0x620] sm:$0xff]
  %v4664 = vld [vmem:[%s3 + $0x628] sm:$0xff]
  %v4665 = vld [vmem:[%s3 + $0x630] sm:$0xff]
  %v4666 = vld [vmem:[%s3 + $0x638] sm:$0xff]
  %v4667 = vld [vmem:[%s3 + $0x640] sm:$0xff]
  %v4668 = vld [vmem:[%s3 + $0x648] sm:$0xff]
  %v4669 = vld [vmem:[%s3 + $0x650] sm:$0xff]
  %v4670 = vld [vmem:[%s3 + $0x658] sm:$0xff]
  %v4671 = vld [vmem:[%s3 + $0x660] sm:$0xff]
  %v4672 = vld [vmem:[%s3 + $0x668] sm:$0xff]
  %v4673 = vld [vmem:[%s3 + $0x670] sm:$0xff]
  %v4674 = vld [vmem:[%s3 + $0x678] sm:$0xff]
  %v4675 = vld [vmem:[%s3 + $0x680] sm:$0xff]
  %v4676 = vld [vmem:[%s3 + $0x688] sm:$0xff]
  %v4677 = vld [vmem:[%s3 + $0x690] sm:$0xff]
  %v4678 = vld [vmem:[%s3 + $0x698] sm:$0xff]
  %v4679 = vld [vmem:[%s3 + $0x6a0] sm:$0xff]
  %v4680 = vld [vmem:[%s3 + $0x6a8] sm:$0xff]
  %v4681 = vld [vmem:[%s3 + $0x6b0] sm:$0xff]
  %v4682 = vld [vmem:[%s3 + $0x6b8] sm:$0xff]
  %v4683 = vld [vmem:[%s3 + $0x6c0] sm:$0xff]
  %v4684 = vld [vmem:[%s3 + $0x6c8] sm:$0xff]
  %v4685 = vld [vmem:[%s3 + $0x6d0] sm:$0xff]
  %v4686 = vld [vmem:[%s3 + $0x6d8] sm:$0xff]
  %v4687 = vld [vmem:[%s3 + $0x6e0] sm:$0xff]
  %v4688 = vld [vmem:[%s3 + $0x6e8] sm:$0xff]
  %v4689 = vld [vmem:[%s3 + $0x6f0] sm:$0xff]
  %v4690 = vld [vmem:[%s3 + $0x6f8] sm:$0xff]
  %v4691 = vld [vmem:[%s3 + $0x700] sm:$0xff]
  %v4692 = vld [vmem:[%s3 + $0x708] sm:$0xff]
  %v4693 = vld [vmem:[%s3 + $0x710] sm:$0xff]
  %v4694 = vld [vmem:[%s3 + $0x718] sm:$0xff]
  %v4695 = vld [vmem:[%s3 + $0x720] sm:$0xff]
  %v4696 = vld [vmem:[%s3 + $0x728] sm:$0xff]
  %v4697 = vld [vmem:[%s3 + $0x730] sm:$0xff]
  %v4698 = vld [vmem:[%s3 + $0x738] sm:$0xff]
  %v4699 = vld [vmem:[%s3 + $0x740] sm:$0xff]
  %v4700 = vld [vmem:[%s3 + $0x748] sm:$0xff]
  %v4701 = vld [vmem:[%s3 + $0x750] sm:$0xff]
  %v4702 = vld [vmem:[%s3 + $0x758] sm:$0xff]
  %v4703 = vld [vmem:[%s3 + $0x760] sm:$0xff]
  %v4704 = vld [vmem:[%s3 + $0x768] sm:$0xff]
  %v4705 = vld [vmem:[%s3 + $0x770] sm:$0xff]
  %v4706 = vld [vmem:[%s3 + $0x778] sm:$0xff]
  %v4707 = vld [vmem:[%s3 + $0x780] sm:$0xff]
  %v4708 = vld [vmem:[%s3 + $0x788] sm:$0xff]
  %v4709 = vld [vmem:[%s3 + $0x790] sm:$0xff]
  %v4710 = vld [vmem:[%s3 + $0x798] sm:$0xff]
  %v4711 = vld [vmem:[%s3 + $0x7a0] sm:$0xff]
  %v4712 = vld [vmem:[%s3 + $0x7a8] sm:$0xff]
  %v4713 = vld [vmem:[%s3 + $0x7b0] sm:$0xff]
  %v4714 = vld [vmem:[%s3 + $0x7b8] sm:$0xff]
  %v4715 = vld [vmem:[%s3 + $0x7c0] sm:$0xff]
  %v4716 = vld [vmem:[%s3 + $0x7c8] sm:$0xff]
  %v4717 = vld [vmem:[%s3 + $0x7d0] sm:$0xff]
  %v4718 = vld [vmem:[%s3 + $0x7d8] sm:$0xff]
  %v4719 = vld [vmem:[%s3 + $0x7e0] sm:$0xff]
  %v4720 = vld [vmem:[%s3 + $0x7e8] sm:$0xff]
  %v4721 = vld [vmem:[%s3 + $0x7f0] sm:$0xff]
  %v4722 = vld [vmem:[%s3 + $0x7f8] sm:$0xff]
  %4723 = vmatprep.subr.mxu0 %v4468
  %4724 = vmatpush1.msra.mxu0 %v4467
  %4725 = vmatprep.subr.mxu0 %v4476
  %4726 = vmatpush1.msra.mxu0 %v4475
  %4727 = vmatprep.subr.mxu0 %v4484
  %4728 = vmatpush1.msra.mxu0 %v4483
  %4729 = vmatprep.subr.mxu0 %v4492
  %4730 = vmatpush1.msra.mxu0 %v4491
  %4731 = vmatprep.subr.mxu0 %v4500
  %4732 = vmatpush1.msra.mxu0 %v4499
  %4733 = vmatprep.subr.mxu0 %v4508
  %4734 = vmatpush1.msra.mxu0 %v4507
  %4735 = vmatprep.subr.mxu0 %v4516
  %4736 = vmatpush1.msra.mxu0 %v4515
  %4737 = vmatprep.subr.mxu0 %v4524
  %4738 = vmatpush1.msra.mxu0 %v4523
  %4739 = vmatprep.subr.mxu0 %v4532
  %4740 = vmatpush1.msra.mxu0 %v4531
  %4741 = vmatprep.subr.mxu0 %v4540
  %4742 = vmatpush1.msra.mxu0 %v4539
  %4743 = vmatprep.subr.mxu0 %v4548
  %4744 = vmatpush1.msra.mxu0 %v4547
  %4745 = vmatprep.subr.mxu0 %v4556
  %4746 = vmatpush1.msra.mxu0 %v4555
  %4747 = vmatprep.subr.mxu0 %v4564
  %4748 = vmatpush1.msra.mxu0 %v4563
  %4749 = vmatprep.subr.mxu0 %v4572
  %4750 = vmatpush1.msra.mxu0 %v4571
  %4751 = vmatprep.subr.mxu0 %v4580
  %4752 = vmatpush1.msra.mxu0 %v4579
  %4753 = vmatprep.subr.mxu0 %v4588
  %4754 = vmatpush1.msra.mxu0 %v4587
  %4755 = vmatprep.subr.mxu0 %v4596
  %4756 = vmatpush1.msra.mxu0 %v4595
  %4757 = vmatprep.subr.mxu0 %v4604
  %4758 = vmatpush1.msra.mxu0 %v4603
  %4759 = vmatprep.subr.mxu0 %v4612
  %4760 = vmatpush1.msra.mxu0 %v4611
  %4761 = vmatprep.subr.mxu0 %v4620
  %4762 = vmatpush1.msra.mxu0 %v4619
  %4763 = vmatprep.subr.mxu0 %v4628
  %4764 = vmatpush1.msra.mxu0 %v4627
  %4765 = vmatprep.subr.mxu0 %v4636
  %4766 = vmatpush1.msra.mxu0 %v4635
  %4767 = vmatprep.subr.mxu0 %v4644
  %4768 = vmatpush1.msra.mxu0 %v4643
  %4769 = vmatprep.subr.mxu0 %v4652
  %4770 = vmatpush1.msra.mxu0 %v4651
  %4771 = vmatprep.subr.mxu0 %v4660
  %4772 = vmatpush1.msra.mxu0 %v4659
  %4773 = vmatprep.subr.mxu0 %v4668
  %4774 = vmatpush1.msra.mxu0 %v4667
  %4775 = vmatprep.subr.mxu0 %v4676
  %4776 = vmatpush1.msra.mxu0 %v4675
  %4777 = vmatprep.subr.mxu0 %v4684
  %4778 = vmatpush1.msra.mxu0 %v4683
  %4779 = vmatprep.subr.mxu0 %v4692
  %4780 = vmatpush1.msra.mxu0 %v4691
  %4781 = vmatprep.subr.mxu0 %v4700
  %4782 = vmatpush1.msra.mxu0 %v4699
  %4783 = vmatprep.subr.mxu0 %v4708
  %4784 = vmatpush1.msra.mxu0 %v4707
  %4785 = vmatprep.subr.mxu0 %v4716
  %4786 = vmatpush1.msra.mxu0 %v4715
  %4787 = vmatprep.mubr.f32.mxu0 %v4466
  %4788 = vmatmul.mubr.f32.gmra.mrb[0].mxu0 %v4465
  %v4789 = vpop.f32.mrb[0].mxu0
  %v4790 = vadd.f32 0.0, %v4789
  %v4791 = vpop.f32.mrb[0].mxu0
  %v4792 = vadd.f32 0.0, %v4791
  %4793 = vdwg.mxu0
  %4794 = vmatprep.subr.mxu0 %v4470
  %4795 = vmatpush1.msra.mxu0 %v4469
  %4796 = vmatprep.subr.mxu0 %v4478
  %4797 = vmatpush1.msra.mxu0 %v4477
  %4798 = vmatprep.subr.mxu0 %v4486
  %4799 = vmatpush1.msra.mxu0 %v4485
  %4800 = vmatprep.subr.mxu0 %v4494
  %4801 = vmatpush1.msra.mxu0 %v4493
  %4802 = vmatprep.subr.mxu0 %v4502
  %4803 = vmatpush1.msra.mxu0 %v4501
  %4804 = vmatprep.subr.mxu0 %v4510
  %4805 = vmatpush1.msra.mxu0 %v4509
  %4806 = vmatprep.subr.mxu0 %v4518
  %4807 = vmatpush1.msra.mxu0 %v4517
  %4808 = vmatprep.subr.mxu0 %v4526
  %4809 = vmatpush1.msra.mxu0 %v4525
  %4810 = vmatprep.subr.mxu0 %v4534
  %4811 = vmatpush1.msra.mxu0 %v4533
  %4812 = vmatprep.subr.mxu0 %v4542
  %4813 = vmatpush1.msra.mxu0 %v4541
  %4814 = vmatprep.subr.mxu0 %v4550
  %4815 = vmatpush1.msra.mxu0 %v4549
  %4816 = vmatprep.subr.mxu0 %v4558
  %4817 = vmatpush1.msra.mxu0 %v4557
  %4818 = vmatprep.subr.mxu0 %v4566
  %4819 = vmatpush1.msra.mxu0 %v4565
  %4820 = vmatprep.subr.mxu0 %v4574
  %4821 = vmatpush1.msra.mxu0 %v4573
  %4822 = vmatprep.subr.mxu0 %v4582
  %4823 = vmatpush1.msra.mxu0 %v4581
  %4824 = vmatprep.subr.mxu0 %v4590
  %4825 = vmatpush1.msra.mxu0 %v4589
  %4826 = vmatprep.subr.mxu0 %v4598
  %4827 = vmatpush1.msra.mxu0 %v4597
  %4828 = vmatprep.subr.mxu0 %v4606
  %4829 = vmatpush1.msra.mxu0 %v4605
  %4830 = vmatprep.subr.mxu0 %v4614
  %4831 = vmatpush1.msra.mxu0 %v4613
  %4832 = vmatprep.subr.mxu0 %v4622
  %4833 = vmatpush1.msra.mxu0 %v4621
  %4834 = vmatprep.subr.mxu0 %v4630
  %4835 = vmatpush1.msra.mxu0 %v4629
  %4836 = vmatprep.subr.mxu0 %v4638
  %4837 = vmatpush1.msra.mxu0 %v4637
  %4838 = vmatprep.subr.mxu0 %v4646
  %4839 = vmatpush1.msra.mxu0 %v4645
  %4840 = vmatprep.subr.mxu0 %v4654
  %4841 = vmatpush1.msra.mxu0 %v4653
  %4842 = vmatprep.subr.mxu0 %v4662
  %4843 = vmatpush1.msra.mxu0 %v4661
  %4844 = vmatprep.subr.mxu0 %v4670
  %4845 = vmatpush1.msra.mxu0 %v4669
  %4846 = vmatprep.subr.mxu0 %v4678
  %4847 = vmatpush1.msra.mxu0 %v4677
  %4848 = vmatprep.subr.mxu0 %v4686
  %4849 = vmatpush1.msra.mxu0 %v4685
  %4850 = vmatprep.subr.mxu0 %v4694
  %4851 = vmatpush1.msra.mxu0 %v4693
  %4852 = vmatprep.subr.mxu0 %v4702
  %4853 = vmatpush1.msra.mxu0 %v4701
  %4854 = vmatprep.subr.mxu0 %v4710
  %4855 = vmatpush1.msra.mxu0 %v4709
  %4856 = vmatprep.subr.mxu0 %v4718
  %4857 = vmatpush1.msra.mxu0 %v4717
  %4858 = vmatprep.mubr.f32.mxu0 %v4466
  %4859 = vmatmul.mubr.f32.gmra.mrb[0].mxu0 %v4465
  %v4860 = vpop.f32.mrb[0].mxu0
  %v4861 = vadd.f32 0.0, %v4860
  %v4862 = vpop.f32.mrb[0].mxu0
  %v4863 = vadd.f32 0.0, %v4862
  %4864 = vdwg.mxu0
  %4865 = vmatprep.subr.mxu0 %v4472
  %4866 = vmatpush1.msra.mxu0 %v4471
  %4867 = vmatprep.subr.mxu0 %v4480
  %4868 = vmatpush1.msra.mxu0 %v4479
  %4869 = vmatprep.subr.mxu0 %v4488
  %4870 = vmatpush1.msra.mxu0 %v4487
  %4871 = vmatprep.subr.mxu0 %v4496
  %4872 = vmatpush1.msra.mxu0 %v4495
  %4873 = vmatprep.subr.mxu0 %v4504
  %4874 = vmatpush1.msra.mxu0 %v4503
  %4875 = vmatprep.subr.mxu0 %v4512
  %4876 = vmatpush1.msra.mxu0 %v4511
  %4877 = vmatprep.subr.mxu0 %v4520
  %4878 = vmatpush1.msra.mxu0 %v4519
  %4879 = vmatprep.subr.mxu0 %v4528
  %4880 = vmatpush1.msra.mxu0 %v4527
  %4881 = vmatprep.subr.mxu0 %v4536
  %4882 = vmatpush1.msra.mxu0 %v4535
  %4883 = vmatprep.subr.mxu0 %v4544
  %4884 = vmatpush1.msra.mxu0 %v4543
  %4885 = vmatprep.subr.mxu0 %v4552
  %4886 = vmatpush1.msra.mxu0 %v4551
  %4887 = vmatprep.subr.mxu0 %v4560
  %4888 = vmatpush1.msra.mxu0 %v4559
  %4889 = vmatprep.subr.mxu0 %v4568
  %4890 = vmatpush1.msra.mxu0 %v4567
  %4891 = vmatprep.subr.mxu0 %v4576
  %4892 = vmatpush1.msra.mxu0 %v4575
  %4893 = vmatprep.subr.mxu0 %v4584
  %4894 = vmatpush1.msra.mxu0 %v4583
  %4895 = vmatprep.subr.mxu0 %v4592
  %4896 = vmatpush1.msra.mxu0 %v4591
  %4897 = vmatprep.subr.mxu0 %v4600
  %4898 = vmatpush1.msra.mxu0 %v4599
  %4899 = vmatprep.subr.mxu0 %v4608
  %4900 = vmatpush1.msra.mxu0 %v4607
  %4901 = vmatprep.subr.mxu0 %v4616
  %4902 = vmatpush1.msra.mxu0 %v4615
  %4903 = vmatprep.subr.mxu0 %v4624
  %4904 = vmatpush1.msra.mxu0 %v4623
  %4905 = vmatprep.subr.mxu0 %v4632
  %4906 = vmatpush1.msra.mxu0 %v4631
  %4907 = vmatprep.subr.mxu0 %v4640
  %4908 = vmatpush1.msra.mxu0 %v4639
  %4909 = vmatprep.subr.mxu0 %v4648
  %4910 = vmatpush1.msra.mxu0 %v4647
  %4911 = vmatprep.subr.mxu0 %v4656
  %4912 = vmatpush1.msra.mxu0 %v4655
  %4913 = vmatprep.subr.mxu0 %v4664
  %4914 = vmatpush1.msra.mxu0 %v4663
  %4915 = vmatprep.subr.mxu0 %v4672
  %4916 = vmatpush1.msra.mxu0 %v4671
  %4917 = vmatprep.subr.mxu0 %v4680
  %4918 = vmatpush1.msra.mxu0 %v4679
  %4919 = vmatprep.subr.mxu0 %v4688
  %4920 = vmatpush1.msra.mxu0 %v4687
  %4921 = vmatprep.subr.mxu0 %v4696
  %4922 = vmatpush1.msra.mxu0 %v4695
  %4923 = vmatprep.subr.mxu0 %v4704
  %4924 = vmatpush1.msra.mxu0 %v4703
  %4925 = vmatprep.subr.mxu0 %v4712
  %4926 = vmatpush1.msra.mxu0 %v4711
  %4927 = vmatprep.subr.mxu0 %v4720
  %4928 = vmatpush1.msra.mxu0 %v4719
  %4929 = vmatprep.mubr.f32.mxu0 %v4466
  %4930 = vmatmul.mubr.f32.gmra.mrb[0].mxu0 %v4465
  %v4931 = vpop.f32.mrb[0].mxu0
  %v4932 = vadd.f32 0.0, %v4931
  %v4933 = vpop.f32.mrb[0].mxu0
  %v4934 = vadd.f32 0.0, %v4933
  %4935 = vdwg.mxu0
  %4936 = vmatprep.subr.mxu0 %v4474
  %4937 = vmatpush1.msra.mxu0 %v4473
  %4938 = vmatprep.subr.mxu0 %v4482
  %4939 = vmatpush1.msra.mxu0 %v4481
  %4940 = vmatprep.subr.mxu0 %v4490
  %4941 = vmatpush1.msra.mxu0 %v4489
  %4942 = vmatprep.subr.mxu0 %v4498
  %4943 = vmatpush1.msra.mxu0 %v4497
  %4944 = vmatprep.subr.mxu0 %v4506
  %4945 = vmatpush1.msra.mxu0 %v4505
  %4946 = vmatprep.subr.mxu0 %v4514
  %4947 = vmatpush1.msra.mxu0 %v4513
  %4948 = vmatprep.subr.mxu0 %v4522
  %4949 = vmatpush1.msra.mxu0 %v4521
  %4950 = vmatprep.subr.mxu0 %v4530
  %4951 = vmatpush1.msra.mxu0 %v4529
  %4952 = vmatprep.subr.mxu0 %v4538
  %4953 = vmatpush1.msra.mxu0 %v4537
  %4954 = vmatprep.subr.mxu0 %v4546
  %4955 = vmatpush1.msra.mxu0 %v4545
  %4956 = vmatprep.subr.mxu0 %v4554
  %4957 = vmatpush1.msra.mxu0 %v4553
  %4958 = vmatprep.subr.mxu0 %v4562
  %4959 = vmatpush1.msra.mxu0 %v4561
  %4960 = vmatprep.subr.mxu0 %v4570
  %4961 = vmatpush1.msra.mxu0 %v4569
  %4962 = vmatprep.subr.mxu0 %v4578
  %4963 = vmatpush1.msra.mxu0 %v4577
  %4964 = vmatprep.subr.mxu0 %v4586
  %4965 = vmatpush1.msra.mxu0 %v4585
  %4966 = vmatprep.subr.mxu0 %v4594
  %4967 = vmatpush1.msra.mxu0 %v4593
  %4968 = vmatprep.subr.mxu0 %v4602
  %4969 = vmatpush1.msra.mxu0 %v4601
  %4970 = vmatprep.subr.mxu0 %v4610
  %4971 = vmatpush1.msra.mxu0 %v4609
  %4972 = vmatprep.subr.mxu0 %v4618
  %4973 = vmatpush1.msra.mxu0 %v4617
  %4974 = vmatprep.subr.mxu0 %v4626
  %4975 = vmatpush1.msra.mxu0 %v4625
  %4976 = vmatprep.subr.mxu0 %v4634
  %4977 = vmatpush1.msra.mxu0 %v4633
  %4978 = vmatprep.subr.mxu0 %v4642
  %4979 = vmatpush1.msra.mxu0 %v4641
  %4980 = vmatprep.subr.mxu0 %v4650
  %4981 = vmatpush1.msra.mxu0 %v4649
  %4982 = vmatprep.subr.mxu0 %v4658
  %4983 = vmatpush1.msra.mxu0 %v4657
  %4984 = vmatprep.subr.mxu0 %v4666
  %4985 = vmatpush1.msra.mxu0 %v4665
  %4986 = vmatprep.subr.mxu0 %v4674
  %4987 = vmatpush1.msra.mxu0 %v4673
  %4988 = vmatprep.subr.mxu0 %v4682
  %4989 = vmatpush1.msra.mxu0 %v4681
  %4990 = vmatprep.subr.mxu0 %v4690
  %4991 = vmatpush1.msra.mxu0 %v4689
  %4992 = vmatprep.subr.mxu0 %v4698
  %4993 = vmatpush1.msra.mxu0 %v4697
  %4994 = vmatprep.subr.mxu0 %v4706
  %4995 = vmatpush1.msra.mxu0 %v4705
  %4996 = vmatprep.subr.mxu0 %v4714
  %4997 = vmatpush1.msra.mxu0 %v4713
  %4998 = vmatprep.subr.mxu0 %v4722
  %4999 = vmatpush1.msra.mxu0 %v4721
  %5000 = vmatprep.mubr.f32.mxu0 %v4466
  %5001 = vmatmul.mubr.f32.gmra.mrb[0].mxu0 %v4465
  %v5002 = vpop.f32.mrb[0].mxu0
  %v5003 = vadd.f32 0.0, %v5002
  %v5004 = vpop.f32.mrb[0].mxu0
  %v5005 = vadd.f32 0.0, %v5004
  %5006 = vdwg.mxu0
  %v5007 = vld [vmem:[%s4] sm:$0xf]
  %v5009 = vlaneseq
  %v5010 = vshrl.u32 %v5009, 7
  %v5011 = vsub.s32 0, %v5010
  %v5012 = vrot.slane %v5007, %v5011
  %v5013 = vlaneseq
  %v5014 = vshrl.u32 %v5013, 7
  %v5015 = vsub.s32 1, %v5014
  %v5016 = vrot.slane %v5007, %v5015
  %v5017 = vlaneseq
  %v5018 = vshrl.u32 %v5017, 7
  %v5019 = vsub.s32 2, %v5018
  %v5020 = vrot.slane %v5007, %v5019
  %v5021 = vlaneseq
  %v5022 = vshrl.u32 %v5021, 7
  %v5023 = vsub.s32 3, %v5022
  %v5024 = vrot.slane %v5007, %v5023
  %v5029 = vadd.f32 %v4932, %v5012
  %v5030 = vadd.f32 %v4934, %v5016
  %v5031 = vadd.f32 %v5003, %v5020
  %v5032 = vadd.f32 %v5005, %v5024
  %v5033 = vld [vmem:[#allocation6] sm:$0xff]
  %v5034 = vxor.u32 %v5029, 2147483648
  %v5035 = vmul.f32 %v5034, 1.442695
  %v5036 = vpow.pop %v5035
  %v5037 = vadd.f32 %v5036, 1.0
  %v5038 = vrcp.pop %v5037
  %v5039 = vmul.f32 1.0, %v5038
  %v5040 = vxor.u32 %v5030, 2147483648
  %v5041 = vmul.f32 %v5040, 1.442695
  %v5042 = vpow.pop %v5041
  %v5043 = vadd.f32 %v5042, 1.0
  %v5044 = vrcp.pop %v5043
  %v5045 = vmul.f32 1.0, %v5044
  %v5046 = vtanh.pop %v5031
  %v5047 = vxor.u32 %v5032, 2147483648
  %v5048 = vmul.f32 %v5047, 1.442695
  %v5049 = vpow.pop %v5048
  %v5050 = vadd.f32 %v5049, 1.0
  %v5051 = vrcp.pop %v5050
  %v5052 = vmul.f32 1.0, %v5051
  %v5053 = vmul.f32 %v5045, %v5033
  %v5054 = vmul.f32 %v5039, %v5046
  %v5055 = vadd.f32 %v5053, %v5054
  %v5056 = vtanh.pop %v5055
  %v5057 = vmul.f32 %v5052, %v5056
  %5058 = vst [vmem:[#allocation6] sm:$0xff] %v5055
  %s5059 = scalar_lea.vmem [#allocation3], 48
  %5060 = vst [vmem:[%s5059] sm:$0xff] %v5057
  %s5061 = smul.u32 7, 4
  %s5062 = smul.addr %s5061, 8
  %s5063 = scalar_lea.vmem [#allocation2], %s5062
  %v5064 = vld [vmem:[%s5063] sm:$0xff]
  %v5065 = vld [vmem:[%s5063 + $0x8] sm:$0xff]
  %v5066 = vld [vmem:[%s5063 + $0x10] sm:$0xff]
  %v5067 = vld [vmem:[%s5063 + $0x18] sm:$0xff]
  %v5068 = vadd.f32 %v4790, %v5064
  %v5069 = vadd.f32 %v4792, %v5065
  %v5070 = vadd.f32 %v4861, %v5066
  %v5071 = vadd.f32 %v4863, %v5067
  %v5072 = vld [vmem:[#allocation5] sm:$0xff]
  %v5073 = vxor.u32 %v5068, 2147483648
  %v5074 = vmul.f32 %v5073, 1.442695
  %v5075 = vpow.pop %v5074
  %v5076 = vadd.f32 %v5075, 1.0
  %v5077 = vrcp.pop %v5076
  %v5078 = vmul.f32 1.0, %v5077
  %v5079 = vxor.u32 %v5069, 2147483648
  %v5080 = vmul.f32 %v5079, 1.442695
  %v5081 = vpow.pop %v5080
  %v5082 = vadd.f32 %v5081, 1.0
  %v5083 = vrcp.pop %v5082
  %v5084 = vmul.f32 1.0, %v5083
  %v5085 = vtanh.pop %v5070
  %v5086 = vxor.u32 %v5071, 2147483648
  %v5087 = vmul.f32 %v5086, 1.442695
  %v5088 = vpow.pop %v5087
  %v5089 = vadd.f32 %v5088, 1.0
  %v5090 = vrcp.pop %v5089
  %v5091 = vmul.f32 1.0, %v5090
  %v5092 = vmul.f32 %v5084, %v5072
  %v5093 = vmul.f32 %v5078, %v5085
  %v5094 = vadd.f32 %v5092, %v5093
  %v5095 = vtanh.pop %v5094
  %v5096 = vmul.f32 %v5091, %v5095
  %5097 = vst [vmem:[#allocation5] sm:$0xff] %v5094
  %5098 = vst [vmem:[#allocation4] sm:$0xff] %v5096
  %5099 = vst [vmem:[#allocation4 + $0x8] sm:$0xff] %v5057
  %v5100 = vld [vmem:[#allocation4] sm:$0xff]
  %v5101 = vld [vmem:[#allocation4 + $0x8] sm:$0xff]
  %v5102 = vld [vmem:[%s3 + $0x20] sm:$0xff]
  %v5103 = vld [vmem:[%s3 + $0x28] sm:$0xff]
  %v5104 = vld [vmem:[%s3 + $0x30] sm:$0xff]
  %v5105 = vld [vmem:[%s3 + $0x38] sm:$0xff]
  %v5106 = vld [vmem:[%s3 + $0x60] sm:$0xff]
  %v5107 = vld [vmem:[%s3 + $0x68] sm:$0xff]
  %v5108 = vld [vmem:[%s3 + $0x70] sm:$0xff]
  %v5109 = vld [vmem:[%s3 + $0x78] sm:$0xff]
  %v5110 = vld [vmem:[%s3 + $0xa0] sm:$0xff]
  %v5111 = vld [vmem:[%s3 + $0xa8] sm:$0xff]
  %v5112 = vld [vmem:[%s3 + $0xb0] sm:$0xff]
  %v5113 = vld [vmem:[%s3 + $0xb8] sm:$0xff]
  %v5114 = vld [vmem:[%s3 + $0xe0] sm:$0xff]
  %v5115 = vld [vmem:[%s3 + $0xe8] sm:$0xff]
  %v5116 = vld [vmem:[%s3 + $0xf0] sm:$0xff]
  %v5117 = vld [vmem:[%s3 + $0xf8] sm:$0xff]
  %v5118 = vld [vmem:[%s3 + $0x120] sm:$0xff]
  %v5119 = vld [vmem:[%s3 + $0x128] sm:$0xff]
  %v5120 = vld [vmem:[%s3 + $0x130] sm:$0xff]
  %v5121 = vld [vmem:[%s3 + $0x138] sm:$0xff]
  %v5122 = vld [vmem:[%s3 + $0x160] sm:$0xff]
  %v5123 = vld [vmem:[%s3 + $0x168] sm:$0xff]
  %v5124 = vld [vmem:[%s3 + $0x170] sm:$0xff]
  %v5125 = vld [vmem:[%s3 + $0x178] sm:$0xff]
  %v5126 = vld [vmem:[%s3 + $0x1a0] sm:$0xff]
  %v5127 = vld [vmem:[%s3 + $0x1a8] sm:$0xff]
  %v5128 = vld [vmem:[%s3 + $0x1b0] sm:$0xff]
  %v5129 = vld [vmem:[%s3 + $0x1b8] sm:$0xff]
  %v5130 = vld [vmem:[%s3 + $0x1e0] sm:$0xff]
  %v5131 = vld [vmem:[%s3 + $0x1e8] sm:$0xff]
  %v5132 = vld [vmem:[%s3 + $0x1f0] sm:$0xff]
  %v5133 = vld [vmem:[%s3 + $0x1f8] sm:$0xff]
  %v5134 = vld [vmem:[%s3 + $0x220] sm:$0xff]
  %v5135 = vld [vmem:[%s3 + $0x228] sm:$0xff]
  %v5136 = vld [vmem:[%s3 + $0x230] sm:$0xff]
  %v5137 = vld [vmem:[%s3 + $0x238] sm:$0xff]
  %v5138 = vld [vmem:[%s3 + $0x260] sm:$0xff]
  %v5139 = vld [vmem:[%s3 + $0x268] sm:$0xff]
  %v5140 = vld [vmem:[%s3 + $0x270] sm:$0xff]
  %v5141 = vld [vmem:[%s3 + $0x278] sm:$0xff]
  %v5142 = vld [vmem:[%s3 + $0x2a0] sm:$0xff]
  %v5143 = vld [vmem:[%s3 + $0x2a8] sm:$0xff]
  %v5144 = vld [vmem:[%s3 + $0x2b0] sm:$0xff]
  %v5145 = vld [vmem:[%s3 + $0x2b8] sm:$0xff]
  %v5146 = vld [vmem:[%s3 + $0x2e0] sm:$0xff]
  %v5147 = vld [vmem:[%s3 + $0x2e8] sm:$0xff]
  %v5148 = vld [vmem:[%s3 + $0x2f0] sm:$0xff]
  %v5149 = vld [vmem:[%s3 + $0x2f8] sm:$0xff]
  %v5150 = vld [vmem:[%s3 + $0x320] sm:$0xff]
  %v5151 = vld [vmem:[%s3 + $0x328] sm:$0xff]
  %v5152 = vld [vmem:[%s3 + $0x330] sm:$0xff]
  %v5153 = vld [vmem:[%s3 + $0x338] sm:$0xff]
  %v5154 = vld [vmem:[%s3 + $0x360] sm:$0xff]
  %v5155 = vld [vmem:[%s3 + $0x368] sm:$0xff]
  %v5156 = vld [vmem:[%s3 + $0x370] sm:$0xff]
  %v5157 = vld [vmem:[%s3 + $0x378] sm:$0xff]
  %v5158 = vld [vmem:[%s3 + $0x3a0] sm:$0xff]
  %v5159 = vld [vmem:[%s3 + $0x3a8] sm:$0xff]
  %v5160 = vld [vmem:[%s3 + $0x3b0] sm:$0xff]
  %v5161 = vld [vmem:[%s3 + $0x3b8] sm:$0xff]
  %v5162 = vld [vmem:[%s3 + $0x3e0] sm:$0xff]
  %v5163 = vld [vmem:[%s3 + $0x3e8] sm:$0xff]
  %v5164 = vld [vmem:[%s3 + $0x3f0] sm:$0xff]
  %v5165 = vld [vmem:[%s3 + $0x3f8] sm:$0xff]
  %v5166 = vld [vmem:[%s3 + $0x420] sm:$0xff]
  %v5167 = vld [vmem:[%s3 + $0x428] sm:$0xff]
  %v5168 = vld [vmem:[%s3 + $0x430] sm:$0xff]
  %v5169 = vld [vmem:[%s3 + $0x438] sm:$0xff]
  %v5170 = vld [vmem:[%s3 + $0x460] sm:$0xff]
  %v5171 = vld [vmem:[%s3 + $0x468] sm:$0xff]
  %v5172 = vld [vmem:[%s3 + $0x470] sm:$0xff]
  %v5173 = vld [vmem:[%s3 + $0x478] sm:$0xff]
  %v5174 = vld [vmem:[%s3 + $0x4a0] sm:$0xff]
  %v5175 = vld [vmem:[%s3 + $0x4a8] sm:$0xff]
  %v5176 = vld [vmem:[%s3 + $0x4b0] sm:$0xff]
  %v5177 = vld [vmem:[%s3 + $0x4b8] sm:$0xff]
  %v5178 = vld [vmem:[%s3 + $0x4e0] sm:$0xff]
  %v5179 = vld [vmem:[%s3 + $0x4e8] sm:$0xff]
  %v5180 = vld [vmem:[%s3 + $0x4f0] sm:$0xff]
  %v5181 = vld [vmem:[%s3 + $0x4f8] sm:$0xff]
  %v5182 = vld [vmem:[%s3 + $0x520] sm:$0xff]
  %v5183 = vld [vmem:[%s3 + $0x528] sm:$0xff]
  %v5184 = vld [vmem:[%s3 + $0x530] sm:$0xff]
  %v5185 = vld [vmem:[%s3 + $0x538] sm:$0xff]
  %v5186 = vld [vmem:[%s3 + $0x560] sm:$0xff]
  %v5187 = vld [vmem:[%s3 + $0x568] sm:$0xff]
  %v5188 = vld [vmem:[%s3 + $0x570] sm:$0xff]
  %v5189 = vld [vmem:[%s3 + $0x578] sm:$0xff]
  %v5190 = vld [vmem:[%s3 + $0x5a0] sm:$0xff]
  %v5191 = vld [vmem:[%s3 + $0x5a8] sm:$0xff]
  %v5192 = vld [vmem:[%s3 + $0x5b0] sm:$0xff]
  %v5193 = vld [vmem:[%s3 + $0x5b8] sm:$0xff]
  %v5194 = vld [vmem:[%s3 + $0x5e0] sm:$0xff]
  %v5195 = vld [vmem:[%s3 + $0x5e8] sm:$0xff]
  %v5196 = vld [vmem:[%s3 + $0x5f0] sm:$0xff]
  %v5197 = vld [vmem:[%s3 + $0x5f8] sm:$0xff]
  %v5198 = vld [vmem:[%s3 + $0x620] sm:$0xff]
  %v5199 = vld [vmem:[%s3 + $0x628] sm:$0xff]
  %v5200 = vld [vmem:[%s3 + $0x630] sm:$0xff]
  %v5201 = vld [vmem:[%s3 + $0x638] sm:$0xff]
  %v5202 = vld [vmem:[%s3 + $0x660] sm:$0xff]
  %v5203 = vld [vmem:[%s3 + $0x668] sm:$0xff]
  %v5204 = vld [vmem:[%s3 + $0x670] sm:$0xff]
  %v5205 = vld [vmem:[%s3 + $0x678] sm:$0xff]
  %v5206 = vld [vmem:[%s3 + $0x6a0] sm:$0xff]
  %v5207 = vld [vmem:[%s3 + $0x6a8] sm:$0xff]
  %v5208 = vld [vmem:[%s3 + $0x6b0] sm:$0xff]
  %v5209 = vld [vmem:[%s3 + $0x6b8] sm:$0xff]
  %v5210 = vld [vmem:[%s3 + $0x6e0] sm:$0xff]
  %v5211 = vld [vmem:[%s3 + $0x6e8] sm:$0xff]
  %v5212 = vld [vmem:[%s3 + $0x6f0] sm:$0xff]
  %v5213 = vld [vmem:[%s3 + $0x6f8] sm:$0xff]
  %v5214 = vld [vmem:[%s3 + $0x720] sm:$0xff]
  %v5215 = vld [vmem:[%s3 + $0x728] sm:$0xff]
  %v5216 = vld [vmem:[%s3 + $0x730] sm:$0xff]
  %v5217 = vld [vmem:[%s3 + $0x738] sm:$0xff]
  %v5218 = vld [vmem:[%s3 + $0x760] sm:$0xff]
  %v5219 = vld [vmem:[%s3 + $0x768] sm:$0xff]
  %v5220 = vld [vmem:[%s3 + $0x770] sm:$0xff]
  %v5221 = vld [vmem:[%s3 + $0x778] sm:$0xff]
  %v5222 = vld [vmem:[%s3 + $0x7a0] sm:$0xff]
  %v5223 = vld [vmem:[%s3 + $0x7a8] sm:$0xff]
  %v5224 = vld [vmem:[%s3 + $0x7b0] sm:$0xff]
  %v5225 = vld [vmem:[%s3 + $0x7b8] sm:$0xff]
  %v5226 = vld [vmem:[%s3 + $0x7e0] sm:$0xff]
  %v5227 = vld [vmem:[%s3 + $0x7e8] sm:$0xff]
  %v5228 = vld [vmem:[%s3 + $0x7f0] sm:$0xff]
  %v5229 = vld [vmem:[%s3 + $0x7f8] sm:$0xff]
  %v5230 = vld [vmem:[%s4] sm:$0xf]
  %v5232 = vlaneseq
  %v5233 = vshrl.u32 %v5232, 7
  %v5234 = vsub.s32 0, %v5233
  %v5235 = vrot.slane %v5230, %v5234
  %v5236 = vlaneseq
  %v5237 = vshrl.u32 %v5236, 7
  %v5238 = vsub.s32 1, %v5237
  %v5239 = vrot.slane %v5230, %v5238
  %v5240 = vlaneseq
  %v5241 = vshrl.u32 %v5240, 7
  %v5242 = vsub.s32 2, %v5241
  %v5243 = vrot.slane %v5230, %v5242
  %v5244 = vlaneseq
  %v5245 = vshrl.u32 %v5244, 7
  %v5246 = vsub.s32 3, %v5245
  %v5247 = vrot.slane %v5230, %v5246
  %5252 = vmatprep.subr.mxu0 %v5103
  %5253 = vmatpush1.msra.mxu0 %v5102
  %5254 = vmatprep.subr.mxu0 %v5107
  %5255 = vmatpush1.msra.mxu0 %v5106
  %5256 = vmatprep.subr.mxu0 %v5111
  %5257 = vmatpush1.msra.mxu0 %v5110
  %5258 = vmatprep.subr.mxu0 %v5115
  %5259 = vmatpush1.msra.mxu0 %v5114
  %5260 = vmatprep.subr.mxu0 %v5119
  %5261 = vmatpush1.msra.mxu0 %v5118
  %5262 = vmatprep.subr.mxu0 %v5123
  %5263 = vmatpush1.msra.mxu0 %v5122
  %5264 = vmatprep.subr.mxu0 %v5127
  %5265 = vmatpush1.msra.mxu0 %v5126
  %5266 = vmatprep.subr.mxu0 %v5131
  %5267 = vmatpush1.msra.mxu0 %v5130
  %5268 = vmatprep.subr.mxu0 %v5135
  %5269 = vmatpush1.msra.mxu0 %v5134
  %5270 = vmatprep.subr.mxu0 %v5139
  %5271 = vmatpush1.msra.mxu0 %v5138
  %5272 = vmatprep.subr.mxu0 %v5143
  %5273 = vmatpush1.msra.mxu0 %v5142
  %5274 = vmatprep.subr.mxu0 %v5147
  %5275 = vmatpush1.msra.mxu0 %v5146
  %5276 = vmatprep.subr.mxu0 %v5151
  %5277 = vmatpush1.msra.mxu0 %v5150
  %5278 = vmatprep.subr.mxu0 %v5155
  %5279 = vmatpush1.msra.mxu0 %v5154
  %5280 = vmatprep.subr.mxu0 %v5159
  %5281 = vmatpush1.msra.mxu0 %v5158
  %5282 = vmatprep.subr.mxu0 %v5163
  %5283 = vmatpush1.msra.mxu0 %v5162
  %5284 = vmatprep.subr.mxu0 %v5167
  %5285 = vmatpush1.msra.mxu0 %v5166
  %5286 = vmatprep.subr.mxu0 %v5171
  %5287 = vmatpush1.msra.mxu0 %v5170
  %5288 = vmatprep.subr.mxu0 %v5175
  %5289 = vmatpush1.msra.mxu0 %v5174
  %5290 = vmatprep.subr.mxu0 %v5179
  %5291 = vmatpush1.msra.mxu0 %v5178
  %5292 = vmatprep.subr.mxu0 %v5183
  %5293 = vmatpush1.msra.mxu0 %v5182
  %5294 = vmatprep.subr.mxu0 %v5187
  %5295 = vmatpush1.msra.mxu0 %v5186
  %5296 = vmatprep.subr.mxu0 %v5191
  %5297 = vmatpush1.msra.mxu0 %v5190
  %5298 = vmatprep.subr.mxu0 %v5195
  %5299 = vmatpush1.msra.mxu0 %v5194
  %5300 = vmatprep.subr.mxu0 %v5199
  %5301 = vmatpush1.msra.mxu0 %v5198
  %5302 = vmatprep.subr.mxu0 %v5203
  %5303 = vmatpush1.msra.mxu0 %v5202
  %5304 = vmatprep.subr.mxu0 %v5207
  %5305 = vmatpush1.msra.mxu0 %v5206
  %5306 = vmatprep.subr.mxu0 %v5211
  %5307 = vmatpush1.msra.mxu0 %v5210
  %5308 = vmatprep.subr.mxu0 %v5215
  %5309 = vmatpush1.msra.mxu0 %v5214
  %5310 = vmatprep.subr.mxu0 %v5219
  %5311 = vmatpush1.msra.mxu0 %v5218
  %5312 = vmatprep.subr.mxu0 %v5223
  %5313 = vmatpush1.msra.mxu0 %v5222
  %5314 = vmatprep.subr.mxu0 %v5227
  %5315 = vmatpush1.msra.mxu0 %v5226
  %5316 = vmatprep.mubr.f32.mxu0 %v5101
  %5317 = vmatmul.mubr.f32.gmra.mrb[0].mxu0 %v5100
  %v5318 = vpop.f32.mrb[0].mxu0
  %v5319 = vadd.f32 %v5235, %v5318
  %v5320 = vpop.f32.mrb[0].mxu0
  %v5321 = vadd.f32 %v5239, %v5320
  %5322 = vdwg.mxu0
  %5323 = vmatprep.subr.mxu0 %v5105
  %5324 = vmatpush1.msra.mxu0 %v5104
  %5325 = vmatprep.subr.mxu0 %v5109
  %5326 = vmatpush1.msra.mxu0 %v5108
  %5327 = vmatprep.subr.mxu0 %v5113
  %5328 = vmatpush1.msra.mxu0 %v5112
  %5329 = vmatprep.subr.mxu0 %v5117
  %5330 = vmatpush1.msra.mxu0 %v5116
  %5331 = vmatprep.subr.mxu0 %v5121
  %5332 = vmatpush1.msra.mxu0 %v5120
  %5333 = vmatprep.subr.mxu0 %v5125
  %5334 = vmatpush1.msra.mxu0 %v5124
  %5335 = vmatprep.subr.mxu0 %v5129
  %5336 = vmatpush1.msra.mxu0 %v5128
  %5337 = vmatprep.subr.mxu0 %v5133
  %5338 = vmatpush1.msra.mxu0 %v5132
  %5339 = vmatprep.subr.mxu0 %v5137
  %5340 = vmatpush1.msra.mxu0 %v5136
  %5341 = vmatprep.subr.mxu0 %v5141
  %5342 = vmatpush1.msra.mxu0 %v5140
  %5343 = vmatprep.subr.mxu0 %v5145
  %5344 = vmatpush1.msra.mxu0 %v5144
  %5345 = vmatprep.subr.mxu0 %v5149
  %5346 = vmatpush1.msra.mxu0 %v5148
  %5347 = vmatprep.subr.mxu0 %v5153
  %5348 = vmatpush1.msra.mxu0 %v5152
  %5349 = vmatprep.subr.mxu0 %v5157
  %5350 = vmatpush1.msra.mxu0 %v5156
  %5351 = vmatprep.subr.mxu0 %v5161
  %5352 = vmatpush1.msra.mxu0 %v5160
  %5353 = vmatprep.subr.mxu0 %v5165
  %5354 = vmatpush1.msra.mxu0 %v5164
  %5355 = vmatprep.subr.mxu0 %v5169
  %5356 = vmatpush1.msra.mxu0 %v5168
  %5357 = vmatprep.subr.mxu0 %v5173
  %5358 = vmatpush1.msra.mxu0 %v5172
  %5359 = vmatprep.subr.mxu0 %v5177
  %5360 = vmatpush1.msra.mxu0 %v5176
  %5361 = vmatprep.subr.mxu0 %v5181
  %5362 = vmatpush1.msra.mxu0 %v5180
  %5363 = vmatprep.subr.mxu0 %v5185
  %5364 = vmatpush1.msra.mxu0 %v5184
  %5365 = vmatprep.subr.mxu0 %v5189
  %5366 = vmatpush1.msra.mxu0 %v5188
  %5367 = vmatprep.subr.mxu0 %v5193
  %5368 = vmatpush1.msra.mxu0 %v5192
  %5369 = vmatprep.subr.mxu0 %v5197
  %5370 = vmatpush1.msra.mxu0 %v5196
  %5371 = vmatprep.subr.mxu0 %v5201
  %5372 = vmatpush1.msra.mxu0 %v5200
  %5373 = vmatprep.subr.mxu0 %v5205
  %5374 = vmatpush1.msra.mxu0 %v5204
  %5375 = vmatprep.subr.mxu0 %v5209
  %5376 = vmatpush1.msra.mxu0 %v5208
  %5377 = vmatprep.subr.mxu0 %v5213
  %5378 = vmatpush1.msra.mxu0 %v5212
  %5379 = vmatprep.subr.mxu0 %v5217
  %5380 = vmatpush1.msra.mxu0 %v5216
  %5381 = vmatprep.subr.mxu0 %v5221
  %5382 = vmatpush1.msra.mxu0 %v5220
  %5383 = vmatprep.subr.mxu0 %v5225
  %5384 = vmatpush1.msra.mxu0 %v5224
  %5385 = vmatprep.subr.mxu0 %v5229
  %5386 = vmatpush1.msra.mxu0 %v5228
  %5387 = vmatprep.mubr.f32.mxu0 %v5101
  %5388 = vmatmul.mubr.f32.gmra.mrb[0].mxu0 %v5100
  %v5389 = vpop.f32.mrb[0].mxu0
  %v5390 = vadd.f32 %v5243, %v5389
  %v5391 = vpop.f32.mrb[0].mxu0
  %v5392 = vadd.f32 %v5247, %v5391
  %5393 = vdwg.mxu0
  %v5394 = vld [vmem:[#allocation6] sm:$0xff]
  %v5395 = vxor.u32 %v5319, 2147483648
  %v5396 = vmul.f32 %v5395, 1.442695
  %v5397 = vpow.pop %v5396
  %v5398 = vadd.f32 %v5397, 1.0
  %v5399 = vrcp.pop %v5398
  %v5400 = vmul.f32 1.0, %v5399
  %v5401 = vxor.u32 %v5321, 2147483648
  %v5402 = vmul.f32 %v5401, 1.442695
  %v5403 = vpow.pop %v5402
  %v5404 = vadd.f32 %v5403, 1.0
  %v5405 = vrcp.pop %v5404
  %v5406 = vmul.f32 1.0, %v5405
  %v5407 = vtanh.pop %v5390
  %v5408 = vxor.u32 %v5392, 2147483648
  %v5409 = vmul.f32 %v5408, 1.442695
  %v5410 = vpow.pop %v5409
  %v5411 = vadd.f32 %v5410, 1.0
  %v5412 = vrcp.pop %v5411
  %v5413 = vmul.f32 1.0, %v5412
  %v5414 = vmul.f32 %v5406, %v5394
  %v5415 = vmul.f32 %v5400, %v5407
  %v5416 = vadd.f32 %v5414, %v5415
  %v5417 = vtanh.pop %v5416
  %v5418 = vmul.f32 %v5413, %v5417
  %5419 = vst [vmem:[#allocation6] sm:$0xff] %v5416
  %5420 = vst [vmem:[#allocation4 + $0x8] sm:$0xff] %v5418
  %5421 = vst [vmem:[#allocation3 + $0x38] sm:$0xff] %v5418
  %v5422 = vld [vmem:[#allocation3] sm:$0xff]
  %v5423 = vld [vmem:[#allocation3 + $0x8] sm:$0xff]
  %v5424 = vld [vmem:[#allocation3 + $0x10] sm:$0xff]
  %v5425 = vld [vmem:[#allocation3 + $0x18] sm:$0xff]
  %v5426 = vld [vmem:[#allocation3 + $0x20] sm:$0xff]
  %v5427 = vld [vmem:[#allocation3 + $0x28] sm:$0xff]
  %v5428 = vld [vmem:[#allocation3 + $0x30] sm:$0xff]
  %v5429 = vld [vmem:[#allocation3 + $0x38] sm:$0xff]
  %v5430 = vld [vmem:[%s5] sm:$0xff]
  %v5431 = vld [vmem:[%s5 + $0x8] sm:$0xff]
  %v5432 = vld [vmem:[%s5 + $0x10] sm:$0xff]
  %v5433 = vld [vmem:[%s5 + $0x18] sm:$0xff]
  %v5434 = vld [vmem:[%s5 + $0x20] sm:$0xff]
  %v5435 = vld [vmem:[%s5 + $0x28] sm:$0xff]
  %v5436 = vld [vmem:[%s5 + $0x30] sm:$0xff]
  %v5437 = vld [vmem:[%s5 + $0x38] sm:$0xff]
  %v5438 = vld [vmem:[%s5 + $0x40] sm:$0xff]
  %v5439 = vld [vmem:[%s5 + $0x48] sm:$0xff]
  %v5440 = vld [vmem:[%s5 + $0x50] sm:$0xff]
  %v5441 = vld [vmem:[%s5 + $0x58] sm:$0xff]
  %v5442 = vld [vmem:[%s5 + $0x60] sm:$0xff]
  %v5443 = vld [vmem:[%s5 + $0x68] sm:$0xff]
  %v5444 = vld [vmem:[%s5 + $0x70] sm:$0xff]
  %v5445 = vld [vmem:[%s5 + $0x78] sm:$0xff]
  %v5446 = vld [vmem:[#allocation7] sm:$0x1]
  %s5447 = vtos %v5446
  %v5448 = vstv %s5447
  %5449 = vmatprep.subr.mxu0 0.0
  %5450 = vmatpush1.msra.mxu0 %v5430
  %5451 = vmatprep.subr.mxu0 0.0
  %5452 = vmatpush1.msra.mxu0 %v5431
  %5453 = vmatprep.subr.mxu0 0.0
  %5454 = vmatpush1.msra.mxu0 %v5432
  %5455 = vmatprep.subr.mxu0 0.0
  %5456 = vmatpush1.msra.mxu0 %v5433
  %5457 = vmatprep.subr.mxu0 0.0
  %5458 = vmatpush1.msra.mxu0 %v5434
  %5459 = vmatprep.subr.mxu0 0.0
  %5460 = vmatpush1.msra.mxu0 %v5435
  %5461 = vmatprep.subr.mxu0 0.0
  %5462 = vmatpush1.msra.mxu0 %v5436
  %5463 = vmatprep.subr.mxu0 0.0
  %5464 = vmatpush1.msra.mxu0 %v5437
  %5465 = vmatprep.subr.mxu0 0.0
  %5466 = vmatpush1.msra.mxu0 %v5438
  %5467 = vmatprep.subr.mxu0 0.0
  %5468 = vmatpush1.msra.mxu0 %v5439
  %5469 = vmatprep.subr.mxu0 0.0
  %5470 = vmatpush1.msra.mxu0 %v5440
  %5471 = vmatprep.subr.mxu0 0.0
  %5472 = vmatpush1.msra.mxu0 %v5441
  %5473 = vmatprep.subr.mxu0 0.0
  %5474 = vmatpush1.msra.mxu0 %v5442
  %5475 = vmatprep.subr.mxu0 0.0
  %5476 = vmatpush1.msra.mxu0 %v5443
  %5477 = vmatprep.subr.mxu0 0.0
  %5478 = vmatpush1.msra.mxu0 %v5444
  %5479 = vmatprep.subr.mxu0 0.0
  %5480 = vmatpush1.msra.mxu0 %v5445
  %5481 = vmatprep.subr.mxu0 0.0
  %5482 = vmatpush1.msra.mxu0 0.0
  %5483 = vmatprep.subr.mxu0 0.0
  %5484 = vmatpush1.msra.mxu0 0.0
  %5485 = vmatprep.subr.mxu0 0.0
  %5486 = vmatpush1.msra.mxu0 0.0
  %5487 = vmatprep.subr.mxu0 0.0
  %5488 = vmatpush1.msra.mxu0 0.0
  %5489 = vmatprep.subr.mxu0 0.0
  %5490 = vmatpush1.msra.mxu0 0.0
  %5491 = vmatprep.subr.mxu0 0.0
  %5492 = vmatpush1.msra.mxu0 0.0
  %5493 = vmatprep.subr.mxu0 0.0
  %5494 = vmatpush1.msra.mxu0 0.0
  %5495 = vmatprep.subr.mxu0 0.0
  %5496 = vmatpush1.msra.mxu0 0.0
  %5497 = vmatprep.subr.mxu0 0.0
  %5498 = vmatpush1.msra.mxu0 0.0
  %5499 = vmatprep.subr.mxu0 0.0
  %5500 = vmatpush1.msra.mxu0 0.0
  %5501 = vmatprep.subr.mxu0 0.0
  %5502 = vmatpush1.msra.mxu0 0.0
  %5503 = vmatprep.subr.mxu0 0.0
  %5504 = vmatpush1.msra.mxu0 0.0
  %5505 = vmatprep.subr.mxu0 0.0
  %5506 = vmatpush1.msra.mxu0 0.0
  %5507 = vmatprep.subr.mxu0 0.0
  %5508 = vmatpush1.msra.mxu0 0.0
  %5509 = vmatprep.subr.mxu0 0.0
  %5510 = vmatpush1.msra.mxu0 0.0
  %5511 = vmatprep.subr.mxu0 0.0
  %5512 = vmatpush1.msra.mxu0 0.0
  %5513 = vmatprep.mubr.f32.mxu0 0.0
  %5514 = vmatmul.mubr.f32.gmra.mrb[0].mxu0 %v5422
  %v5515 = vpop.f32.mrb[0].mxu0
  %v5516 = vadd.f32 %v5448, %v5515
  %v5517 = vpop.f32.mrb[0].mxu0
  %5518 = vmatprep.mubr.f32.mxu0 0.0
  %5519 = vmatmul.mubr.f32.gmra.mrb[0].mxu0 %v5423
  %v5520 = vpop.f32.mrb[0].mxu0
  %v5521 = vadd.f32 %v5448, %v5520
  %v5522 = vpop.f32.mrb[0].mxu0
  %5523 = vmatprep.mubr.f32.mxu0 0.0
  %5524 = vmatmul.mubr.f32.gmra.mrb[0].mxu0 %v5424
  %v5525 = vpop.f32.mrb[0].mxu0
  %v5526 = vadd.f32 %v5448, %v5525
  %v5527 = vpop.f32.mrb[0].mxu0
  %5528 = vmatprep.mubr.f32.mxu0 0.0
  %5529 = vmatmul.mubr.f32.gmra.mrb[0].mxu0 %v5425
  %v5530 = vpop.f32.mrb[0].mxu0
  %v5531 = vadd.f32 %v5448, %v5530
  %v5532 = vpop.f32.mrb[0].mxu0
  %5533 = vmatprep.mubr.f32.mxu0 0.0
  %5534 = vmatmul.mubr.f32.gmra.mrb[0].mxu0 %v5426
  %v5535 = vpop.f32.mrb[0].mxu0
  %v5536 = vadd.f32 %v5448, %v5535
  %v5537 = vpop.f32.mrb[0].mxu0
  %5538 = vmatprep.mubr.f32.mxu0 0.0
  %5539 = vmatmul.mubr.f32.gmra.mrb[0].mxu0 %v5427
  %v5540 = vpop.f32.mrb[0].mxu0
  %v5541 = vadd.f32 %v5448, %v5540
  %v5542 = vpop.f32.mrb[0].mxu0
  %5543 = vmatprep.mubr.f32.mxu0 0.0
  %5544 = vmatmul.mubr.f32.gmra.mrb[0].mxu0 %v5428
  %v5545 = vpop.f32.mrb[0].mxu0
  %v5546 = vadd.f32 %v5448, %v5545
  %v5547 = vpop.f32.mrb[0].mxu0
  %5548 = vmatprep.mubr.f32.mxu0 0.0
  %5549 = vmatmul.mubr.f32.gmra.mrb[0].mxu0 %v5429
  %v5550 = vpop.f32.mrb[0].mxu0
  %v5551 = vadd.f32 %v5448, %v5550
  %v5552 = vpop.f32.mrb[0].mxu0
  %5553 = vdwg.mxu0
  %vm5554 = vcmask 7168
  %5555 = vst.msk [vmem:[%s61] sm:$0xff] %vm5554, %v5516
  %5556 = vst.msk [vmem:[%s61 + $0x8] sm:$0xff] %vm5554, %v5521
  %5557 = vst.msk [vmem:[%s61 + $0x10] sm:$0xff] %vm5554, %v5526
  %5558 = vst.msk [vmem:[%s61 + $0x18] sm:$0xff] %vm5554, %v5531
  %5559 = vst.msk [vmem:[%s61 + $0x20] sm:$0xff] %vm5554, %v5536
  %5560 = vst.msk [vmem:[%s61 + $0x28] sm:$0xff] %vm5554, %v5541
  %5561 = vst.msk [vmem:[%s61 + $0x30] sm:$0xff] %vm5554, %v5546
  %5562 = vst.msk [vmem:[%s61 + $0x38] sm:$0xff] %vm5554, %v5551
  %s5563 = sadd.s32 0, 0
  %s5564 = smul.u32 8, %s5563
  %p5565 = scmp.lt.s32.totalorder %s5564, 7
  %s5566 = scalar_select %p5565, %s5564, 7
  %s5567 = smul.addr %s5566, 8
  %s5568 = scalar_lea.vmem %s7, %s5567
  // Predicated region
  $region34: #{lstm_model_forward.1} parent=0 // pred_check
    _
  $region35: #{lstm_model_forward.1} parent=0 // pred_check_branch
    %5570 = sbr.rel (0) target = $region37
  $region36: #{lstm_model_forward.1} parent=0 // pred_region
    %s5571 = sadd.s32 0, 0
    %s5572 = smul.u32 8, %s5571
  $region37: #{lstm_model_forward.1} parent=0 // pred_fallthru
    _
  // Predicated region
  $region38: #{lstm_model_forward.1} parent=0 // pred_check
    _
  $region39: #{lstm_model_forward.1} parent=0 // pred_check_branch
    %5574 = sbr.rel (0) target = $region41
  $region40: #{lstm_model_forward.1} parent=0 // pred_region
    %s5575 = sadd.s32 0, 0
    %s5576 = smul.u32 8, %s5575
    %p5577 = scmp.lt.s32.totalorder %s5576, 7
    %s5578 = scalar_select %p5577, %s5576, 7
    %s5579 = smul.addr %s5578, 8
    %s5580 = scalar_lea.vmem %s7, %s5579
  $region41: #{lstm_model_forward.1} parent=0 // pred_fallthru
    _

</llo_original>
